<compile_context>
chip_gen: v5e
topology: v5e:2x2
jax: 0.10.0
libtpu: 0.0.40
codegen_flags: <defaults>
</compile_context>

<pallas_src>
import functools

import jax
import jax.numpy as jnp
import numpy as np
from jax.experimental import pallas as pl
from jax.experimental.pallas import tpu as pltpu


def _round_up(x, m):
    return ((x + m - 1) // m) * m


# ----------------------------------------------------------------------------
# Pallas kernel: direct conv3d (stride=1) + folded-BN shift + ReLU (+ residual)
#   x_ref     : (1, cin_p, Lp)      zero-padded, flattened padded image
#   w_ref     : (T, cout_p, cin_p)  BN-scaled weights, one (cout_p, cin_p)/tap
#   shift_ref : (cout_p, 1)         conv bias + BN shift per output channel
#   res_ref   : (1, cout_p, q_len)  optional residual (same q-layout as output)
#   o_ref     : (1, cout_p, q_len)  lane-dense output
# ----------------------------------------------------------------------------
def _conv_stage_kernel(x_ref, w_ref, shift_ref, *rest, taps, q_len, apply_relu,
                       fuse_residual):
    if fuse_residual:
        res_ref, o_ref = rest
    else:
        (o_ref,) = rest
    cout_p = o_ref.shape[1]

    xx = x_ref[0]                      # (cin_p, Lp), resident in VMEM
    ww = w_ref[...]                    # (T, cout_p, cin_p)

    acc = jnp.zeros((cout_p, q_len), jnp.float32)
    for ti, t in enumerate(taps):      # 27 static taps, fully unrolled
        acc = acc + jnp.dot(ww[ti], xx[:, t:t + q_len],
                            preferred_element_type=jnp.float32)

    y = acc + shift_ref[...]           # conv bias + eval-mode BN, folded
    if apply_relu:
        y = jnp.maximum(y, 0.0)
    if fuse_residual:
        y = y + res_ref[0]             # fused residual add (no extra HBM pass)
    o_ref[0] = y.astype(o_ref.dtype)


# ----------------------------------------------------------------------------
# One Conv3d + BN3d (+ReLU) stage (stride=1), lane-dense q-layout output
# ----------------------------------------------------------------------------
def conv3d_bn_act_stage(a, params, *, ksize, pad, relu, residual=None,
                        eps=1e-5):
    """a: (N, Cin, D, H, W) f32 -> (z, geom); z: (N, cout_p, q_len) q-layout."""
    w, b, gamma, beta, mean, var = params
    Cout, Cin, kd, kh, kw = w.shape
    assert kd == kh == kw == ksize
    N, C, D, H, W = a.shape
    assert C == Cin, "channel mismatch (residual path needs in_size == out_size)"

    Dp, Hp, Wp = D + 2 * pad, H + 2 * pad, W + 2 * pad
    Do, Ho, Wo = Dp - ksize + 1, Hp - ksize + 1, Wp - ksize + 1
    HpWp = Hp * Wp
    P = Dp * HpWp
    q_len = _round_up(Do * HpWp, 128)          # lane-dense output extent
    t_max = (ksize - 1) * (HpWp + Wp + 1)      # largest tap offset
    Lp = _round_up(q_len + t_max, 128)         # flattened padded-input extent
    cin_p = _round_up(Cin, 8)
    cout_p = _round_up(Cout, 8)

    # Zero-pad channels + spatial halo, flatten padded spatial onto the lane axis.
    ap = jnp.pad(a, ((0, 0), (0, cin_p - Cin),
                     (pad, pad), (pad, pad), (pad, pad)))
    ap = ap.reshape(N, cin_p, P)
    ap = jnp.pad(ap, ((0, 0), (0, 0), (0, Lp - P)))

    # Fold eval-mode BN into the conv:  y = conv(x; w * s) + shift.
    inv_std = gamma / jnp.sqrt(var + eps)
    shift = (b - mean) * inv_std + beta
    w_s = w * inv_std[:, None, None, None, None]
    w_taps = w_s.transpose(2, 3, 4, 0, 1).reshape(ksize ** 3, Cout, Cin)
    w_taps = jnp.pad(w_taps, ((0, 0), (0, cout_p - Cout), (0, cin_p - Cin)))
    shift_p = jnp.pad(shift, (0, cout_p - Cout)).reshape(cout_p, 1)

    taps = tuple(dz * HpWp + dy * Wp + dx
                 for dz in range(ksize)
                 for dy in range(ksize)
                 for dx in range(ksize))

    fuse_res = residual is not None
    inputs = [ap, w_taps, shift_p]
    in_specs = [
        pl.BlockSpec((1, cin_p, Lp), lambda n: (n, 0, 0)),
        pl.BlockSpec((ksize ** 3, cout_p, cin_p), lambda n: (0, 0, 0)),
        pl.BlockSpec((cout_p, 1), lambda n: (0, 0)),
    ]
    if fuse_res:
        assert residual.shape == (N, cout_p, q_len)
        inputs.append(residual)
        in_specs.append(pl.BlockSpec((1, cout_p, q_len), lambda n: (n, 0, 0)))

    # TODO(synk): for large volumes add a q-tile grid axis (512-1024 lanes/tile)
    # with a D-slab halo so per-step VMEM stays under v7x's 64 MiB budget; at
    # these shapes a whole image (a few tens of KB) fits trivially.
    z = pl.pallas_call(
        functools.partial(_conv_stage_kernel, taps=taps, q_len=q_len,
                          apply_relu=relu, fuse_residual=fuse_res),
        out_shape=jax.ShapeDtypeStruct((N, cout_p, q_len), jnp.float32),
        grid=(N,),
        in_specs=in_specs,
        out_specs=pl.BlockSpec((1, cout_p, q_len), lambda n: (n, 0, 0)),
        compiler_params=pltpu.CompilerParams(
            dimension_semantics=("parallel",),
            vmem_limit_bytes=32 * 1024 * 1024),
    )(*inputs)
    return z, (Cout, Do, Ho, Wo, Hp, Wp)


def q_layout_to_ncdhw(z, geom):
    Cout, Do, Ho, Wo, Hp, Wp = geom
    N = z.shape[0]
    z = z[:, :Cout, :Do * Hp * Wp].reshape(N, Cout, Do, Hp, Wp)
    return z[:, :, :, :Ho, :Wo]               # (N, Cout, Do, Ho, Wo), NCDHW


# ----------------------------------------------------------------------------
# basconv_block forward (nolinear=ReLU, attmodule=None)
# ----------------------------------------------------------------------------
def basconv_block_forward(x, params, *, kernel_size=3, padding=1, stride=1,
                          is_res=True):
    if stride != 1:
        # TODO(synk): strided conv path not implemented in the fused kernel.
        raise NotImplementedError("fused kernel implements stride=1")

    z1, g1 = conv3d_bn_act_stage(x, params["conv1"], ksize=kernel_size,
                                 pad=padding, relu=True)
    a1 = q_layout_to_ncdhw(z1, g1)
    z2, g2 = conv3d_bn_act_stage(a1, params["conv2"], ksize=kernel_size,
                                 pad=padding, relu=True)
    a2 = q_layout_to_ncdhw(z2, g2)
    # attmodule := None -> identity.
    if not is_res:
        return a2
    # PyTorch applies reconv to `outputs` (not inputs): out = a2 + reconv_bn(a2).
    # The residual add is fused into the reconv kernel whenever the q-layouts
    # line up (always true for 2*padding == kernel_size - 1, e.g. 3/1 here).
    same_geom = (2 * padding == kernel_size - 1)
    z3, g3 = conv3d_bn_act_stage(a2, params["reconv"], ksize=kernel_size,
                                 pad=padding, relu=False,
                                 residual=z2 if same_geom else None)
    out = q_layout_to_ncdhw(z3, g3)
    return out if same_geom else a2 + out


# ----------------------------------------------------------------------------
# Pure-JAX reference (independent correctness check)
# ----------------------------------------------------------------------------
def _conv_bn_ref(x, params, *, stride, padding, relu, eps=1e-5):
    w, b, gamma, beta, mean, var = params
    y = jax.lax.conv_general_dilated(
        x, w, (stride,) * 3, [(padding, padding)] * 3,
        dimension_numbers=("NCDHW", "OIDHW", "NCDHW"))
    y = y + b[None, :, None, None, None]
    y = ((y - mean[None, :, None, None, None])
         / jnp.sqrt(var + eps)[None, :, None, None, None]
         * gamma[None, :, None, None, None]
         + beta[None, :, None, None, None])
    return jnp.maximum(y, 0.0) if relu else y


def _ref_forward(x, params, *, stride, padding, is_res=True):
    out = _conv_bn_ref(x, params["conv1"], stride=stride, padding=padding,
                       relu=True)
    out = _conv_bn_ref(out, params["conv2"], stride=stride, padding=padding,
                       relu=True)
    if is_res:
        out = out + _conv_bn_ref(out, params["reconv"], stride=1,
                                 padding=padding, relu=False)
    return out


# ----------------------------------------------------------------------------
# Deterministic parameter init
# ----------------------------------------------------------------------------
def make_stage_params(key, cin, cout, k):
    kw_, kb, kg, kbe, km, kv = jax.random.split(key, 6)
    w = jax.random.normal(kw_, (cout, cin, k, k, k), jnp.float32) * 0.1
    b = jax.random.normal(kb, (cout,), jnp.float32) * 0.05
    gamma = 1.0 + 0.1 * jax.random.normal(kg, (cout,), jnp.float32)
    beta = 0.05 * jax.random.normal(kbe, (cout,), jnp.float32)
    mean = 0.05 * jax.random.normal(km, (cout,), jnp.float32)
    var = 1.0 + 0.1 * jax.random.uniform(kv, (cout,), jnp.float32)
    return (w, b, gamma, beta, mean, var)


if __name__ == "__main__":
    key = jax.random.PRNGKey(0)
    kx, k1, k2, k3 = jax.random.split(key, 4)

    # small shapes: batch=2, in_size=out_size=4, D=4, H=W=8
    N, C, D, H, W = 2, 4, 4, 8, 8
    in_size = out_size = 4
    ksize, pad, stride = 3, 1, 1

    x = jax.random.normal(kx, (N, C, D, H, W), jnp.float32)
    params = {
        "conv1": make_stage_params(k1, in_size, out_size, ksize),
        "conv2": make_stage_params(k2, out_size, out_size, ksize),
        "reconv": make_stage_params(k3, in_size, out_size, ksize),
    }

    fwd = jax.jit(functools.partial(basconv_block_forward,
                                    kernel_size=ksize, padding=pad,
                                    stride=stride, is_res=True))
    out = jax.block_until_ready(fwd(x, params))

    ref = jax.block_until_ready(
        _ref_forward(x, params, stride=stride, padding=pad, is_res=True))
    np.testing.assert_allclose(np.asarray(out), np.asarray(ref),
                               rtol=2e-3, atol=2e-3)

    print("KERNEL_OK")
</pallas_src>

<mosaic_0001>
module attributes {stable_mosaic.version = 11 : i64} {
  func.func @_conv_stage_kernel(%arg0: i32, %arg1: memref<1x8x768xf32, #tpu.memory_space<vmem>>, %arg2: memref<27x8x8xf32, #tpu.memory_space<vmem>>, %arg3: memref<8x1xf32, #tpu.memory_space<vmem>>, %arg4: memref<1x8x512xf32, #tpu.memory_space<vmem>>) attributes {dimension_semantics = [#tpu.dimension_semantics<parallel>], iteration_bounds = array<i64: 2>, scalar_prefetch = 0 : i64, scratch_operands = 0 : i64, tpu.core_type = #tpu.core_type<tc>, window_params = [{transform_indices = @transform_0, window_bounds = array<i64: 1, 8, 768>}, {pipeline_mode = #tpu.pipeline_mode<synchronous>, transform_indices = @transform_1, window_bounds = array<i64: 27, 8, 8>}, {pipeline_mode = #tpu.pipeline_mode<synchronous>, transform_indices = @transform_2, window_bounds = array<i64: 8, 1>}, {transform_indices = @transform_3, window_bounds = array<i64: 1, 8, 512>}]} {
    %c0 = arith.constant 0 : index
    %c0_0 = arith.constant 0 : index
    %c0_1 = arith.constant 0 : index
    %0 = vector.load %arg1[%c0, %c0_0, %c0_1] : memref<1x8x768xf32, #tpu.memory_space<vmem>>, vector<1x8x768xf32>
    %1 = vector.shape_cast %0 : vector<1x8x768xf32> to vector<8x768xf32>
    %c0_2 = arith.constant 0 : index
    %c0_3 = arith.constant 0 : index
    %c0_4 = arith.constant 0 : index
    %2 = vector.load %arg2[%c0_2, %c0_3, %c0_4] : memref<27x8x8xf32, #tpu.memory_space<vmem>>, vector<27x8x8xf32>
    %cst = arith.constant 0.000000e+00 : f32
    %3 = vector.broadcast %cst : f32 to vector<8x512xf32>
    %4 = vector.extract_strided_slice %2 {offsets = [0, 0, 0], sizes = [1, 8, 8], strides = [1, 1, 1]} : vector<27x8x8xf32> to vector<1x8x8xf32>
    %5 = vector.shape_cast %4 : vector<1x8x8xf32> to vector<8x8xf32>
    %6 = vector.extract_strided_slice %1 {offsets = [0, 0], sizes = [8, 512], strides = [1, 1]} : vector<8x768xf32> to vector<8x512xf32>
    %cst_5 = arith.constant dense<0.000000e+00> : vector<8x512xf32>
    %7 = tpu.matmul %5, %6, %cst_5 {dimension_numbers = #tpu.dot_dimension_numbers<[1], [0], [0], [1], [0, 0, 1, 1], [], []>} : vector<8x8xf32>, vector<8x512xf32>, vector<8x512xf32> -> vector<8x512xf32>
    %8 = arith.addf %3, %7 : vector<8x512xf32>
    %9 = vector.extract_strided_slice %2 {offsets = [1, 0, 0], sizes = [1, 8, 8], strides = [1, 1, 1]} : vector<27x8x8xf32> to vector<1x8x8xf32>
    %10 = vector.shape_cast %9 : vector<1x8x8xf32> to vector<8x8xf32>
    %11 = vector.extract_strided_slice %1 {offsets = [0, 1], sizes = [8, 512], strides = [1, 1]} : vector<8x768xf32> to vector<8x512xf32>
    %cst_6 = arith.constant dense<0.000000e+00> : vector<8x512xf32>
    %12 = tpu.matmul %10, %11, %cst_6 {dimension_numbers = #tpu.dot_dimension_numbers<[1], [0], [0], [1], [0, 0, 1, 1], [], []>} : vector<8x8xf32>, vector<8x512xf32>, vector<8x512xf32> -> vector<8x512xf32>
    %13 = arith.addf %8, %12 : vector<8x512xf32>
    %14 = vector.extract_strided_slice %2 {offsets = [2, 0, 0], sizes = [1, 8, 8], strides = [1, 1, 1]} : vector<27x8x8xf32> to vector<1x8x8xf32>
    %15 = vector.shape_cast %14 : vector<1x8x8xf32> to vector<8x8xf32>
    %16 = vector.extract_strided_slice %1 {offsets = [0, 2], sizes = [8, 512], strides = [1, 1]} : vector<8x768xf32> to vector<8x512xf32>
    %cst_7 = arith.constant dense<0.000000e+00> : vector<8x512xf32>
    %17 = tpu.matmul %15, %16, %cst_7 {dimension_numbers = #tpu.dot_dimension_numbers<[1], [0], [0], [1], [0, 0, 1, 1], [], []>} : vector<8x8xf32>, vector<8x512xf32>, vector<8x512xf32> -> vector<8x512xf32>
    %18 = arith.addf %13, %17 : vector<8x512xf32>
    %19 = vector.extract_strided_slice %2 {offsets = [3, 0, 0], sizes = [1, 8, 8], strides = [1, 1, 1]} : vector<27x8x8xf32> to vector<1x8x8xf32>
    %20 = vector.shape_cast %19 : vector<1x8x8xf32> to vector<8x8xf32>
    %21 = vector.extract_strided_slice %1 {offsets = [0, 10], sizes = [8, 512], strides = [1, 1]} : vector<8x768xf32> to vector<8x512xf32>
    %cst_8 = arith.constant dense<0.000000e+00> : vector<8x512xf32>
    %22 = tpu.matmul %20, %21, %cst_8 {dimension_numbers = #tpu.dot_dimension_numbers<[1], [0], [0], [1], [0, 0, 1, 1], [], []>} : vector<8x8xf32>, vector<8x512xf32>, vector<8x512xf32> -> vector<8x512xf32>
    %23 = arith.addf %18, %22 : vector<8x512xf32>
    %24 = vector.extract_strided_slice %2 {offsets = [4, 0, 0], sizes = [1, 8, 8], strides = [1, 1, 1]} : vector<27x8x8xf32> to vector<1x8x8xf32>
    %25 = vector.shape_cast %24 : vector<1x8x8xf32> to vector<8x8xf32>
    %26 = vector.extract_strided_slice %1 {offsets = [0, 11], sizes = [8, 512], strides = [1, 1]} : vector<8x768xf32> to vector<8x512xf32>
    %cst_9 = arith.constant dense<0.000000e+00> : vector<8x512xf32>
    %27 = tpu.matmul %25, %26, %cst_9 {dimension_numbers = #tpu.dot_dimension_numbers<[1], [0], [0], [1], [0, 0, 1, 1], [], []>} : vector<8x8xf32>, vector<8x512xf32>, vector<8x512xf32> -> vector<8x512xf32>
    %28 = arith.addf %23, %27 : vector<8x512xf32>
    %29 = vector.extract_strided_slice %2 {offsets = [5, 0, 0], sizes = [1, 8, 8], strides = [1, 1, 1]} : vector<27x8x8xf32> to vector<1x8x8xf32>
    %30 = vector.shape_cast %29 : vector<1x8x8xf32> to vector<8x8xf32>
    %31 = vector.extract_strided_slice %1 {offsets = [0, 12], sizes = [8, 512], strides = [1, 1]} : vector<8x768xf32> to vector<8x512xf32>
    %cst_10 = arith.constant dense<0.000000e+00> : vector<8x512xf32>
    %32 = tpu.matmul %30, %31, %cst_10 {dimension_numbers = #tpu.dot_dimension_numbers<[1], [0], [0], [1], [0, 0, 1, 1], [], []>} : vector<8x8xf32>, vector<8x512xf32>, vector<8x512xf32> -> vector<8x512xf32>
    %33 = arith.addf %28, %32 : vector<8x512xf32>
    %34 = vector.extract_strided_slice %2 {offsets = [6, 0, 0], sizes = [1, 8, 8], strides = [1, 1, 1]} : vector<27x8x8xf32> to vector<1x8x8xf32>
    %35 = vector.shape_cast %34 : vector<1x8x8xf32> to vector<8x8xf32>
    %36 = vector.extract_strided_slice %1 {offsets = [0, 20], sizes = [8, 512], strides = [1, 1]} : vector<8x768xf32> to vector<8x512xf32>
    %cst_11 = arith.constant dense<0.000000e+00> : vector<8x512xf32>
    %37 = tpu.matmul %35, %36, %cst_11 {dimension_numbers = #tpu.dot_dimension_numbers<[1], [0], [0], [1], [0, 0, 1, 1], [], []>} : vector<8x8xf32>, vector<8x512xf32>, vector<8x512xf32> -> vector<8x512xf32>
    %38 = arith.addf %33, %37 : vector<8x512xf32>
    %39 = vector.extract_strided_slice %2 {offsets = [7, 0, 0], sizes = [1, 8, 8], strides = [1, 1, 1]} : vector<27x8x8xf32> to vector<1x8x8xf32>
    %40 = vector.shape_cast %39 : vector<1x8x8xf32> to vector<8x8xf32>
    %41 = vector.extract_strided_slice %1 {offsets = [0, 21], sizes = [8, 512], strides = [1, 1]} : vector<8x768xf32> to vector<8x512xf32>
    %cst_12 = arith.constant dense<0.000000e+00> : vector<8x512xf32>
    %42 = tpu.matmul %40, %41, %cst_12 {dimension_numbers = #tpu.dot_dimension_numbers<[1], [0], [0], [1], [0, 0, 1, 1], [], []>} : vector<8x8xf32>, vector<8x512xf32>, vector<8x512xf32> -> vector<8x512xf32>
    %43 = arith.addf %38, %42 : vector<8x512xf32>
    %44 = vector.extract_strided_slice %2 {offsets = [8, 0, 0], sizes = [1, 8, 8], strides = [1, 1, 1]} : vector<27x8x8xf32> to vector<1x8x8xf32>
    %45 = vector.shape_cast %44 : vector<1x8x8xf32> to vector<8x8xf32>
    %46 = vector.extract_strided_slice %1 {offsets = [0, 22], sizes = [8, 512], strides = [1, 1]} : vector<8x768xf32> to vector<8x512xf32>
    %cst_13 = arith.constant dense<0.000000e+00> : vector<8x512xf32>
    %47 = tpu.matmul %45, %46, %cst_13 {dimension_numbers = #tpu.dot_dimension_numbers<[1], [0], [0], [1], [0, 0, 1, 1], [], []>} : vector<8x8xf32>, vector<8x512xf32>, vector<8x512xf32> -> vector<8x512xf32>
    %48 = arith.addf %43, %47 : vector<8x512xf32>
    %49 = vector.extract_strided_slice %2 {offsets = [9, 0, 0], sizes = [1, 8, 8], strides = [1, 1, 1]} : vector<27x8x8xf32> to vector<1x8x8xf32>
    %50 = vector.shape_cast %49 : vector<1x8x8xf32> to vector<8x8xf32>
    %51 = vector.extract_strided_slice %1 {offsets = [0, 100], sizes = [8, 512], strides = [1, 1]} : vector<8x768xf32> to vector<8x512xf32>
    %cst_14 = arith.constant dense<0.000000e+00> : vector<8x512xf32>
    %52 = tpu.matmul %50, %51, %cst_14 {dimension_numbers = #tpu.dot_dimension_numbers<[1], [0], [0], [1], [0, 0, 1, 1], [], []>} : vector<8x8xf32>, vector<8x512xf32>, vector<8x512xf32> -> vector<8x512xf32>
    %53 = arith.addf %48, %52 : vector<8x512xf32>
    %54 = vector.extract_strided_slice %2 {offsets = [10, 0, 0], sizes = [1, 8, 8], strides = [1, 1, 1]} : vector<27x8x8xf32> to vector<1x8x8xf32>
    %55 = vector.shape_cast %54 : vector<1x8x8xf32> to vector<8x8xf32>
    %56 = vector.extract_strided_slice %1 {offsets = [0, 101], sizes = [8, 512], strides = [1, 1]} : vector<8x768xf32> to vector<8x512xf32>
    %cst_15 = arith.constant dense<0.000000e+00> : vector<8x512xf32>
    %57 = tpu.matmul %55, %56, %cst_15 {dimension_numbers = #tpu.dot_dimension_numbers<[1], [0], [0], [1], [0, 0, 1, 1], [], []>} : vector<8x8xf32>, vector<8x512xf32>, vector<8x512xf32> -> vector<8x512xf32>
    %58 = arith.addf %53, %57 : vector<8x512xf32>
    %59 = vector.extract_strided_slice %2 {offsets = [11, 0, 0], sizes = [1, 8, 8], strides = [1, 1, 1]} : vector<27x8x8xf32> to vector<1x8x8xf32>
    %60 = vector.shape_cast %59 : vector<1x8x8xf32> to vector<8x8xf32>
    %61 = vector.extract_strided_slice %1 {offsets = [0, 102], sizes = [8, 512], strides = [1, 1]} : vector<8x768xf32> to vector<8x512xf32>
    %cst_16 = arith.constant dense<0.000000e+00> : vector<8x512xf32>
    %62 = tpu.matmul %60, %61, %cst_16 {dimension_numbers = #tpu.dot_dimension_numbers<[1], [0], [0], [1], [0, 0, 1, 1], [], []>} : vector<8x8xf32>, vector<8x512xf32>, vector<8x512xf32> -> vector<8x512xf32>
    %63 = arith.addf %58, %62 : vector<8x512xf32>
    %64 = vector.extract_strided_slice %2 {offsets = [12, 0, 0], sizes = [1, 8, 8], strides = [1, 1, 1]} : vector<27x8x8xf32> to vector<1x8x8xf32>
    %65 = vector.shape_cast %64 : vector<1x8x8xf32> to vector<8x8xf32>
    %66 = vector.extract_strided_slice %1 {offsets = [0, 110], sizes = [8, 512], strides = [1, 1]} : vector<8x768xf32> to vector<8x512xf32>
    %cst_17 = arith.constant dense<0.000000e+00> : vector<8x512xf32>
    %67 = tpu.matmul %65, %66, %cst_17 {dimension_numbers = #tpu.dot_dimension_numbers<[1], [0], [0], [1], [0, 0, 1, 1], [], []>} : vector<8x8xf32>, vector<8x512xf32>, vector<8x512xf32> -> vector<8x512xf32>
    %68 = arith.addf %63, %67 : vector<8x512xf32>
    %69 = vector.extract_strided_slice %2 {offsets = [13, 0, 0], sizes = [1, 8, 8], strides = [1, 1, 1]} : vector<27x8x8xf32> to vector<1x8x8xf32>
    %70 = vector.shape_cast %69 : vector<1x8x8xf32> to vector<8x8xf32>
    %71 = vector.extract_strided_slice %1 {offsets = [0, 111], sizes = [8, 512], strides = [1, 1]} : vector<8x768xf32> to vector<8x512xf32>
    %cst_18 = arith.constant dense<0.000000e+00> : vector<8x512xf32>
    %72 = tpu.matmul %70, %71, %cst_18 {dimension_numbers = #tpu.dot_dimension_numbers<[1], [0], [0], [1], [0, 0, 1, 1], [], []>} : vector<8x8xf32>, vector<8x512xf32>, vector<8x512xf32> -> vector<8x512xf32>
    %73 = arith.addf %68, %72 : vector<8x512xf32>
    %74 = vector.extract_strided_slice %2 {offsets = [14, 0, 0], sizes = [1, 8, 8], strides = [1, 1, 1]} : vector<27x8x8xf32> to vector<1x8x8xf32>
    %75 = vector.shape_cast %74 : vector<1x8x8xf32> to vector<8x8xf32>
    %76 = vector.extract_strided_slice %1 {offsets = [0, 112], sizes = [8, 512], strides = [1, 1]} : vector<8x768xf32> to vector<8x512xf32>
    %cst_19 = arith.constant dense<0.000000e+00> : vector<8x512xf32>
    %77 = tpu.matmul %75, %76, %cst_19 {dimension_numbers = #tpu.dot_dimension_numbers<[1], [0], [0], [1], [0, 0, 1, 1], [], []>} : vector<8x8xf32>, vector<8x512xf32>, vector<8x512xf32> -> vector<8x512xf32>
    %78 = arith.addf %73, %77 : vector<8x512xf32>
    %79 = vector.extract_strided_slice %2 {offsets = [15, 0, 0], sizes = [1, 8, 8], strides = [1, 1, 1]} : vector<27x8x8xf32> to vector<1x8x8xf32>
    %80 = vector.shape_cast %79 : vector<1x8x8xf32> to vector<8x8xf32>
    %81 = vector.extract_strided_slice %1 {offsets = [0, 120], sizes = [8, 512], strides = [1, 1]} : vector<8x768xf32> to vector<8x512xf32>
    %cst_20 = arith.constant dense<0.000000e+00> : vector<8x512xf32>
    %82 = tpu.matmul %80, %81, %cst_20 {dimension_numbers = #tpu.dot_dimension_numbers<[1], [0], [0], [1], [0, 0, 1, 1], [], []>} : vector<8x8xf32>, vector<8x512xf32>, vector<8x512xf32> -> vector<8x512xf32>
    %83 = arith.addf %78, %82 : vector<8x512xf32>
    %84 = vector.extract_strided_slice %2 {offsets = [16, 0, 0], sizes = [1, 8, 8], strides = [1, 1, 1]} : vector<27x8x8xf32> to vector<1x8x8xf32>
    %85 = vector.shape_cast %84 : vector<1x8x8xf32> to vector<8x8xf32>
    %86 = vector.extract_strided_slice %1 {offsets = [0, 121], sizes = [8, 512], strides = [1, 1]} : vector<8x768xf32> to vector<8x512xf32>
    %cst_21 = arith.constant dense<0.000000e+00> : vector<8x512xf32>
    %87 = tpu.matmul %85, %86, %cst_21 {dimension_numbers = #tpu.dot_dimension_numbers<[1], [0], [0], [1], [0, 0, 1, 1], [], []>} : vector<8x8xf32>, vector<8x512xf32>, vector<8x512xf32> -> vector<8x512xf32>
    %88 = arith.addf %83, %87 : vector<8x512xf32>
    %89 = vector.extract_strided_slice %2 {offsets = [17, 0, 0], sizes = [1, 8, 8], strides = [1, 1, 1]} : vector<27x8x8xf32> to vector<1x8x8xf32>
    %90 = vector.shape_cast %89 : vector<1x8x8xf32> to vector<8x8xf32>
    %91 = vector.extract_strided_slice %1 {offsets = [0, 122], sizes = [8, 512], strides = [1, 1]} : vector<8x768xf32> to vector<8x512xf32>
    %cst_22 = arith.constant dense<0.000000e+00> : vector<8x512xf32>
    %92 = tpu.matmul %90, %91, %cst_22 {dimension_numbers = #tpu.dot_dimension_numbers<[1], [0], [0], [1], [0, 0, 1, 1], [], []>} : vector<8x8xf32>, vector<8x512xf32>, vector<8x512xf32> -> vector<8x512xf32>
    %93 = arith.addf %88, %92 : vector<8x512xf32>
    %94 = vector.extract_strided_slice %2 {offsets = [18, 0, 0], sizes = [1, 8, 8], strides = [1, 1, 1]} : vector<27x8x8xf32> to vector<1x8x8xf32>
    %95 = vector.shape_cast %94 : vector<1x8x8xf32> to vector<8x8xf32>
    %96 = vector.extract_strided_slice %1 {offsets = [0, 200], sizes = [8, 512], strides = [1, 1]} : vector<8x768xf32> to vector<8x512xf32>
    %cst_23 = arith.constant dense<0.000000e+00> : vector<8x512xf32>
    %97 = tpu.matmul %95, %96, %cst_23 {dimension_numbers = #tpu.dot_dimension_numbers<[1], [0], [0], [1], [0, 0, 1, 1], [], []>} : vector<8x8xf32>, vector<8x512xf32>, vector<8x512xf32> -> vector<8x512xf32>
    %98 = arith.addf %93, %97 : vector<8x512xf32>
    %99 = vector.extract_strided_slice %2 {offsets = [19, 0, 0], sizes = [1, 8, 8], strides = [1, 1, 1]} : vector<27x8x8xf32> to vector<1x8x8xf32>
    %100 = vector.shape_cast %99 : vector<1x8x8xf32> to vector<8x8xf32>
    %101 = vector.extract_strided_slice %1 {offsets = [0, 201], sizes = [8, 512], strides = [1, 1]} : vector<8x768xf32> to vector<8x512xf32>
    %cst_24 = arith.constant dense<0.000000e+00> : vector<8x512xf32>
    %102 = tpu.matmul %100, %101, %cst_24 {dimension_numbers = #tpu.dot_dimension_numbers<[1], [0], [0], [1], [0, 0, 1, 1], [], []>} : vector<8x8xf32>, vector<8x512xf32>, vector<8x512xf32> -> vector<8x512xf32>
    %103 = arith.addf %98, %102 : vector<8x512xf32>
    %104 = vector.extract_strided_slice %2 {offsets = [20, 0, 0], sizes = [1, 8, 8], strides = [1, 1, 1]} : vector<27x8x8xf32> to vector<1x8x8xf32>
    %105 = vector.shape_cast %104 : vector<1x8x8xf32> to vector<8x8xf32>
    %106 = vector.extract_strided_slice %1 {offsets = [0, 202], sizes = [8, 512], strides = [1, 1]} : vector<8x768xf32> to vector<8x512xf32>
    %cst_25 = arith.constant dense<0.000000e+00> : vector<8x512xf32>
    %107 = tpu.matmul %105, %106, %cst_25 {dimension_numbers = #tpu.dot_dimension_numbers<[1], [0], [0], [1], [0, 0, 1, 1], [], []>} : vector<8x8xf32>, vector<8x512xf32>, vector<8x512xf32> -> vector<8x512xf32>
    %108 = arith.addf %103, %107 : vector<8x512xf32>
    %109 = vector.extract_strided_slice %2 {offsets = [21, 0, 0], sizes = [1, 8, 8], strides = [1, 1, 1]} : vector<27x8x8xf32> to vector<1x8x8xf32>
    %110 = vector.shape_cast %109 : vector<1x8x8xf32> to vector<8x8xf32>
    %111 = vector.extract_strided_slice %1 {offsets = [0, 210], sizes = [8, 512], strides = [1, 1]} : vector<8x768xf32> to vector<8x512xf32>
    %cst_26 = arith.constant dense<0.000000e+00> : vector<8x512xf32>
    %112 = tpu.matmul %110, %111, %cst_26 {dimension_numbers = #tpu.dot_dimension_numbers<[1], [0], [0], [1], [0, 0, 1, 1], [], []>} : vector<8x8xf32>, vector<8x512xf32>, vector<8x512xf32> -> vector<8x512xf32>
    %113 = arith.addf %108, %112 : vector<8x512xf32>
    %114 = vector.extract_strided_slice %2 {offsets = [22, 0, 0], sizes = [1, 8, 8], strides = [1, 1, 1]} : vector<27x8x8xf32> to vector<1x8x8xf32>
    %115 = vector.shape_cast %114 : vector<1x8x8xf32> to vector<8x8xf32>
    %116 = vector.extract_strided_slice %1 {offsets = [0, 211], sizes = [8, 512], strides = [1, 1]} : vector<8x768xf32> to vector<8x512xf32>
    %cst_27 = arith.constant dense<0.000000e+00> : vector<8x512xf32>
    %117 = tpu.matmul %115, %116, %cst_27 {dimension_numbers = #tpu.dot_dimension_numbers<[1], [0], [0], [1], [0, 0, 1, 1], [], []>} : vector<8x8xf32>, vector<8x512xf32>, vector<8x512xf32> -> vector<8x512xf32>
    %118 = arith.addf %113, %117 : vector<8x512xf32>
    %119 = vector.extract_strided_slice %2 {offsets = [23, 0, 0], sizes = [1, 8, 8], strides = [1, 1, 1]} : vector<27x8x8xf32> to vector<1x8x8xf32>
    %120 = vector.shape_cast %119 : vector<1x8x8xf32> to vector<8x8xf32>
    %121 = vector.extract_strided_slice %1 {offsets = [0, 212], sizes = [8, 512], strides = [1, 1]} : vector<8x768xf32> to vector<8x512xf32>
    %cst_28 = arith.constant dense<0.000000e+00> : vector<8x512xf32>
    %122 = tpu.matmul %120, %121, %cst_28 {dimension_numbers = #tpu.dot_dimension_numbers<[1], [0], [0], [1], [0, 0, 1, 1], [], []>} : vector<8x8xf32>, vector<8x512xf32>, vector<8x512xf32> -> vector<8x512xf32>
    %123 = arith.addf %118, %122 : vector<8x512xf32>
    %124 = vector.extract_strided_slice %2 {offsets = [24, 0, 0], sizes = [1, 8, 8], strides = [1, 1, 1]} : vector<27x8x8xf32> to vector<1x8x8xf32>
    %125 = vector.shape_cast %124 : vector<1x8x8xf32> to vector<8x8xf32>
    %126 = vector.extract_strided_slice %1 {offsets = [0, 220], sizes = [8, 512], strides = [1, 1]} : vector<8x768xf32> to vector<8x512xf32>
    %cst_29 = arith.constant dense<0.000000e+00> : vector<8x512xf32>
    %127 = tpu.matmul %125, %126, %cst_29 {dimension_numbers = #tpu.dot_dimension_numbers<[1], [0], [0], [1], [0, 0, 1, 1], [], []>} : vector<8x8xf32>, vector<8x512xf32>, vector<8x512xf32> -> vector<8x512xf32>
    %128 = arith.addf %123, %127 : vector<8x512xf32>
    %129 = vector.extract_strided_slice %2 {offsets = [25, 0, 0], sizes = [1, 8, 8], strides = [1, 1, 1]} : vector<27x8x8xf32> to vector<1x8x8xf32>
    %130 = vector.shape_cast %129 : vector<1x8x8xf32> to vector<8x8xf32>
    %131 = vector.extract_strided_slice %1 {offsets = [0, 221], sizes = [8, 512], strides = [1, 1]} : vector<8x768xf32> to vector<8x512xf32>
    %cst_30 = arith.constant dense<0.000000e+00> : vector<8x512xf32>
    %132 = tpu.matmul %130, %131, %cst_30 {dimension_numbers = #tpu.dot_dimension_numbers<[1], [0], [0], [1], [0, 0, 1, 1], [], []>} : vector<8x8xf32>, vector<8x512xf32>, vector<8x512xf32> -> vector<8x512xf32>
    %133 = arith.addf %128, %132 : vector<8x512xf32>
    %134 = vector.extract_strided_slice %2 {offsets = [26, 0, 0], sizes = [1, 8, 8], strides = [1, 1, 1]} : vector<27x8x8xf32> to vector<1x8x8xf32>
    %135 = vector.shape_cast %134 : vector<1x8x8xf32> to vector<8x8xf32>
    %136 = vector.extract_strided_slice %1 {offsets = [0, 222], sizes = [8, 512], strides = [1, 1]} : vector<8x768xf32> to vector<8x512xf32>
    %cst_31 = arith.constant dense<0.000000e+00> : vector<8x512xf32>
    %137 = tpu.matmul %135, %136, %cst_31 {dimension_numbers = #tpu.dot_dimension_numbers<[1], [0], [0], [1], [0, 0, 1, 1], [], []>} : vector<8x8xf32>, vector<8x512xf32>, vector<8x512xf32> -> vector<8x512xf32>
    %138 = arith.addf %133, %137 : vector<8x512xf32>
    %c0_32 = arith.constant 0 : index
    %c0_33 = arith.constant 0 : index
    %139 = vector.load %arg3[%c0_32, %c0_33] : memref<8x1xf32, #tpu.memory_space<vmem>>, vector<8x1xf32>
    %140 = vector.broadcast %139 : vector<8x1xf32> to vector<8x512xf32>
    %141 = arith.addf %138, %140 : vector<8x512xf32>
    %cst_34 = arith.constant 0.000000e+00 : f32
    %142 = vector.broadcast %cst_34 : f32 to vector<8x512xf32>
    %143 = arith.maximumf %141, %142 : vector<8x512xf32>
    %c0_35 = arith.constant 0 : index
    %c0_36 = arith.constant 0 : index
    %c0_37 = arith.constant 0 : index
    %144 = vector.load %arg4[%c0_35, %c0_36, %c0_37] : memref<1x8x512xf32, #tpu.memory_space<vmem>>, vector<1x8x512xf32>
    %145 = vector.shape_cast %144 : vector<1x8x512xf32> to vector<8x512xf32>
    %146 = vector.shape_cast %143 : vector<8x512xf32> to vector<1x8x512xf32>
    tpu.vector_store %arg4[%c0_35, %c0_36, %c0_37], %146 {strides = array<i32>} : memref<1x8x512xf32, #tpu.memory_space<vmem>>, vector<1x8x512xf32>,
    return
  }
  func.func @transform_0(%arg0: i32) -> (i32, i32, i32) {
    %c0_i32 = arith.constant 0 : i32
    %c0_i32_0 = arith.constant 0 : i32
    %c0_i32_1 = arith.constant 0 : i32
    return %arg0, %c0_i32, %c0_i32_0 : i32, i32, i32
  }
  func.func @transform_1(%arg0: i32) -> (i32, i32, i32) {
    %c0_i32 = arith.constant 0 : i32
    %c0_i32_0 = arith.constant 0 : i32
    %c0_i32_1 = arith.constant 0 : i32
    %c0_i32_2 = arith.constant 0 : i32
    return %c0_i32, %c0_i32_0, %c0_i32_1 : i32, i32, i32
  }
  func.func @transform_2(%arg0: i32) -> (i32, i32) {
    %c0_i32 = arith.constant 0 : i32
    %c0_i32_0 = arith.constant 0 : i32
    %c0_i32_1 = arith.constant 0 : i32
    return %c0_i32, %c0_i32_0 : i32, i32
  }
  func.func @transform_3(%arg0: i32) -> (i32, i32, i32) {
    %c0_i32 = arith.constant 0 : i32
    %c0_i32_0 = arith.constant 0 : i32
    %c0_i32_1 = arith.constant 0 : i32
    return %arg0, %c0_i32, %c0_i32_0 : i32, i32, i32
  }
}

module attributes {stable_mosaic.version = 11 : i64} {
  func.func @_conv_stage_kernel(%arg0: i32, %arg1: memref<1x8x768xf32, #tpu.memory_space<vmem>>, %arg2: memref<27x8x8xf32, #tpu.memory_space<vmem>>, %arg3: memref<8x1xf32, #tpu.memory_space<vmem>>, %arg4: memref<1x8x512xf32, #tpu.memory_space<vmem>>, %arg5: memref<1x8x512xf32, #tpu.memory_space<vmem>>) attributes {dimension_semantics = [#tpu.dimension_semantics<parallel>], iteration_bounds = array<i64: 2>, scalar_prefetch = 0 : i64, scratch_operands = 0 : i64, tpu.core_type = #tpu.core_type<tc>, window_params = [{transform_indices = @transform_0, window_bounds = array<i64: 1, 8, 768>}, {pipeline_mode = #tpu.pipeline_mode<synchronous>, transform_indices = @transform_1, window_bounds = array<i64: 27, 8, 8>}, {pipeline_mode = #tpu.pipeline_mode<synchronous>, transform_indices = @transform_2, window_bounds = array<i64: 8, 1>}, {transform_indices = @transform_3, window_bounds = array<i64: 1, 8, 512>}, {transform_indices = @transform_4, window_bounds = array<i64: 1, 8, 512>}]} {
    %c0 = arith.constant 0 : index
    %c0_0 = arith.constant 0 : index
    %c0_1 = arith.constant 0 : index
    %0 = vector.load %arg1[%c0, %c0_0, %c0_1] : memref<1x8x768xf32, #tpu.memory_space<vmem>>, vector<1x8x768xf32>
    %1 = vector.shape_cast %0 : vector<1x8x768xf32> to vector<8x768xf32>
    %c0_2 = arith.constant 0 : index
    %c0_3 = arith.constant 0 : index
    %c0_4 = arith.constant 0 : index
    %2 = vector.load %arg2[%c0_2, %c0_3, %c0_4] : memref<27x8x8xf32, #tpu.memory_space<vmem>>, vector<27x8x8xf32>
    %cst = arith.constant 0.000000e+00 : f32
    %3 = vector.broadcast %cst : f32 to vector<8x512xf32>
    %4 = vector.extract_strided_slice %2 {offsets = [0, 0, 0], sizes = [1, 8, 8], strides = [1, 1, 1]} : vector<27x8x8xf32> to vector<1x8x8xf32>
    %5 = vector.shape_cast %4 : vector<1x8x8xf32> to vector<8x8xf32>
    %6 = vector.extract_strided_slice %1 {offsets = [0, 0], sizes = [8, 512], strides = [1, 1]} : vector<8x768xf32> to vector<8x512xf32>
    %cst_5 = arith.constant dense<0.000000e+00> : vector<8x512xf32>
    %7 = tpu.matmul %5, %6, %cst_5 {dimension_numbers = #tpu.dot_dimension_numbers<[1], [0], [0], [1], [0, 0, 1, 1], [], []>} : vector<8x8xf32>, vector<8x512xf32>, vector<8x512xf32> -> vector<8x512xf32>
    %8 = arith.addf %3, %7 : vector<8x512xf32>
    %9 = vector.extract_strided_slice %2 {offsets = [1, 0, 0], sizes = [1, 8, 8], strides = [1, 1, 1]} : vector<27x8x8xf32> to vector<1x8x8xf32>
    %10 = vector.shape_cast %9 : vector<1x8x8xf32> to vector<8x8xf32>
    %11 = vector.extract_strided_slice %1 {offsets = [0, 1], sizes = [8, 512], strides = [1, 1]} : vector<8x768xf32> to vector<8x512xf32>
    %cst_6 = arith.constant dense<0.000000e+00> : vector<8x512xf32>
    %12 = tpu.matmul %10, %11, %cst_6 {dimension_numbers = #tpu.dot_dimension_numbers<[1], [0], [0], [1], [0, 0, 1, 1], [], []>} : vector<8x8xf32>, vector<8x512xf32>, vector<8x512xf32> -> vector<8x512xf32>
    %13 = arith.addf %8, %12 : vector<8x512xf32>
    %14 = vector.extract_strided_slice %2 {offsets = [2, 0, 0], sizes = [1, 8, 8], strides = [1, 1, 1]} : vector<27x8x8xf32> to vector<1x8x8xf32>
    %15 = vector.shape_cast %14 : vector<1x8x8xf32> to vector<8x8xf32>
    %16 = vector.extract_strided_slice %1 {offsets = [0, 2], sizes = [8, 512], strides = [1, 1]} : vector<8x768xf32> to vector<8x512xf32>
    %cst_7 = arith.constant dense<0.000000e+00> : vector<8x512xf32>
    %17 = tpu.matmul %15, %16, %cst_7 {dimension_numbers = #tpu.dot_dimension_numbers<[1], [0], [0], [1], [0, 0, 1, 1], [], []>} : vector<8x8xf32>, vector<8x512xf32>, vector<8x512xf32> -> vector<8x512xf32>
    %18 = arith.addf %13, %17 : vector<8x512xf32>
    %19 = vector.extract_strided_slice %2 {offsets = [3, 0, 0], sizes = [1, 8, 8], strides = [1, 1, 1]} : vector<27x8x8xf32> to vector<1x8x8xf32>
    %20 = vector.shape_cast %19 : vector<1x8x8xf32> to vector<8x8xf32>
    %21 = vector.extract_strided_slice %1 {offsets = [0, 10], sizes = [8, 512], strides = [1, 1]} : vector<8x768xf32> to vector<8x512xf32>
    %cst_8 = arith.constant dense<0.000000e+00> : vector<8x512xf32>
    %22 = tpu.matmul %20, %21, %cst_8 {dimension_numbers = #tpu.dot_dimension_numbers<[1], [0], [0], [1], [0, 0, 1, 1], [], []>} : vector<8x8xf32>, vector<8x512xf32>, vector<8x512xf32> -> vector<8x512xf32>
    %23 = arith.addf %18, %22 : vector<8x512xf32>
    %24 = vector.extract_strided_slice %2 {offsets = [4, 0, 0], sizes = [1, 8, 8], strides = [1, 1, 1]} : vector<27x8x8xf32> to vector<1x8x8xf32>
    %25 = vector.shape_cast %24 : vector<1x8x8xf32> to vector<8x8xf32>
    %26 = vector.extract_strided_slice %1 {offsets = [0, 11], sizes = [8, 512], strides = [1, 1]} : vector<8x768xf32> to vector<8x512xf32>
    %cst_9 = arith.constant dense<0.000000e+00> : vector<8x512xf32>
    %27 = tpu.matmul %25, %26, %cst_9 {dimension_numbers = #tpu.dot_dimension_numbers<[1], [0], [0], [1], [0, 0, 1, 1], [], []>} : vector<8x8xf32>, vector<8x512xf32>, vector<8x512xf32> -> vector<8x512xf32>
    %28 = arith.addf %23, %27 : vector<8x512xf32>
    %29 = vector.extract_strided_slice %2 {offsets = [5, 0, 0], sizes = [1, 8, 8], strides = [1, 1, 1]} : vector<27x8x8xf32> to vector<1x8x8xf32>
    %30 = vector.shape_cast %29 : vector<1x8x8xf32> to vector<8x8xf32>
    %31 = vector.extract_strided_slice %1 {offsets = [0, 12], sizes = [8, 512], strides = [1, 1]} : vector<8x768xf32> to vector<8x512xf32>
    %cst_10 = arith.constant dense<0.000000e+00> : vector<8x512xf32>
    %32 = tpu.matmul %30, %31, %cst_10 {dimension_numbers = #tpu.dot_dimension_numbers<[1], [0], [0], [1], [0, 0, 1, 1], [], []>} : vector<8x8xf32>, vector<8x512xf32>, vector<8x512xf32> -> vector<8x512xf32>
    %33 = arith.addf %28, %32 : vector<8x512xf32>
    %34 = vector.extract_strided_slice %2 {offsets = [6, 0, 0], sizes = [1, 8, 8], strides = [1, 1, 1]} : vector<27x8x8xf32> to vector<1x8x8xf32>
    %35 = vector.shape_cast %34 : vector<1x8x8xf32> to vector<8x8xf32>
    %36 = vector.extract_strided_slice %1 {offsets = [0, 20], sizes = [8, 512], strides = [1, 1]} : vector<8x768xf32> to vector<8x512xf32>
    %cst_11 = arith.constant dense<0.000000e+00> : vector<8x512xf32>
    %37 = tpu.matmul %35, %36, %cst_11 {dimension_numbers = #tpu.dot_dimension_numbers<[1], [0], [0], [1], [0, 0, 1, 1], [], []>} : vector<8x8xf32>, vector<8x512xf32>, vector<8x512xf32> -> vector<8x512xf32>
    %38 = arith.addf %33, %37 : vector<8x512xf32>
    %39 = vector.extract_strided_slice %2 {offsets = [7, 0, 0], sizes = [1, 8, 8], strides = [1, 1, 1]} : vector<27x8x8xf32> to vector<1x8x8xf32>
    %40 = vector.shape_cast %39 : vector<1x8x8xf32> to vector<8x8xf32>
    %41 = vector.extract_strided_slice %1 {offsets = [0, 21], sizes = [8, 512], strides = [1, 1]} : vector<8x768xf32> to vector<8x512xf32>
    %cst_12 = arith.constant dense<0.000000e+00> : vector<8x512xf32>
    %42 = tpu.matmul %40, %41, %cst_12 {dimension_numbers = #tpu.dot_dimension_numbers<[1], [0], [0], [1], [0, 0, 1, 1], [], []>} : vector<8x8xf32>, vector<8x512xf32>, vector<8x512xf32> -> vector<8x512xf32>
    %43 = arith.addf %38, %42 : vector<8x512xf32>
    %44 = vector.extract_strided_slice %2 {offsets = [8, 0, 0], sizes = [1, 8, 8], strides = [1, 1, 1]} : vector<27x8x8xf32> to vector<1x8x8xf32>
    %45 = vector.shape_cast %44 : vector<1x8x8xf32> to vector<8x8xf32>
    %46 = vector.extract_strided_slice %1 {offsets = [0, 22], sizes = [8, 512], strides = [1, 1]} : vector<8x768xf32> to vector<8x512xf32>
    %cst_13 = arith.constant dense<0.000000e+00> : vector<8x512xf32>
    %47 = tpu.matmul %45, %46, %cst_13 {dimension_numbers = #tpu.dot_dimension_numbers<[1], [0], [0], [1], [0, 0, 1, 1], [], []>} : vector<8x8xf32>, vector<8x512xf32>, vector<8x512xf32> -> vector<8x512xf32>
    %48 = arith.addf %43, %47 : vector<8x512xf32>
    %49 = vector.extract_strided_slice %2 {offsets = [9, 0, 0], sizes = [1, 8, 8], strides = [1, 1, 1]} : vector<27x8x8xf32> to vector<1x8x8xf32>
    %50 = vector.shape_cast %49 : vector<1x8x8xf32> to vector<8x8xf32>
    %51 = vector.extract_strided_slice %1 {offsets = [0, 100], sizes = [8, 512], strides = [1, 1]} : vector<8x768xf32> to vector<8x512xf32>
    %cst_14 = arith.constant dense<0.000000e+00> : vector<8x512xf32>
    %52 = tpu.matmul %50, %51, %cst_14 {dimension_numbers = #tpu.dot_dimension_numbers<[1], [0], [0], [1], [0, 0, 1, 1], [], []>} : vector<8x8xf32>, vector<8x512xf32>, vector<8x512xf32> -> vector<8x512xf32>
    %53 = arith.addf %48, %52 : vector<8x512xf32>
    %54 = vector.extract_strided_slice %2 {offsets = [10, 0, 0], sizes = [1, 8, 8], strides = [1, 1, 1]} : vector<27x8x8xf32> to vector<1x8x8xf32>
    %55 = vector.shape_cast %54 : vector<1x8x8xf32> to vector<8x8xf32>
    %56 = vector.extract_strided_slice %1 {offsets = [0, 101], sizes = [8, 512], strides = [1, 1]} : vector<8x768xf32> to vector<8x512xf32>
    %cst_15 = arith.constant dense<0.000000e+00> : vector<8x512xf32>
    %57 = tpu.matmul %55, %56, %cst_15 {dimension_numbers = #tpu.dot_dimension_numbers<[1], [0], [0], [1], [0, 0, 1, 1], [], []>} : vector<8x8xf32>, vector<8x512xf32>, vector<8x512xf32> -> vector<8x512xf32>
    %58 = arith.addf %53, %57 : vector<8x512xf32>
    %59 = vector.extract_strided_slice %2 {offsets = [11, 0, 0], sizes = [1, 8, 8], strides = [1, 1, 1]} : vector<27x8x8xf32> to vector<1x8x8xf32>
    %60 = vector.shape_cast %59 : vector<1x8x8xf32> to vector<8x8xf32>
    %61 = vector.extract_strided_slice %1 {offsets = [0, 102], sizes = [8, 512], strides = [1, 1]} : vector<8x768xf32> to vector<8x512xf32>
    %cst_16 = arith.constant dense<0.000000e+00> : vector<8x512xf32>
    %62 = tpu.matmul %60, %61, %cst_16 {dimension_numbers = #tpu.dot_dimension_numbers<[1], [0], [0], [1], [0, 0, 1, 1], [], []>} : vector<8x8xf32>, vector<8x512xf32>, vector<8x512xf32> -> vector<8x512xf32>
    %63 = arith.addf %58, %62 : vector<8x512xf32>
    %64 = vector.extract_strided_slice %2 {offsets = [12, 0, 0], sizes = [1, 8, 8], strides = [1, 1, 1]} : vector<27x8x8xf32> to vector<1x8x8xf32>
    %65 = vector.shape_cast %64 : vector<1x8x8xf32> to vector<8x8xf32>
    %66 = vector.extract_strided_slice %1 {offsets = [0, 110], sizes = [8, 512], strides = [1, 1]} : vector<8x768xf32> to vector<8x512xf32>
    %cst_17 = arith.constant dense<0.000000e+00> : vector<8x512xf32>
    %67 = tpu.matmul %65, %66, %cst_17 {dimension_numbers = #tpu.dot_dimension_numbers<[1], [0], [0], [1], [0, 0, 1, 1], [], []>} : vector<8x8xf32>, vector<8x512xf32>, vector<8x512xf32> -> vector<8x512xf32>
    %68 = arith.addf %63, %67 : vector<8x512xf32>
    %69 = vector.extract_strided_slice %2 {offsets = [13, 0, 0], sizes = [1, 8, 8], strides = [1, 1, 1]} : vector<27x8x8xf32> to vector<1x8x8xf32>
    %70 = vector.shape_cast %69 : vector<1x8x8xf32> to vector<8x8xf32>
    %71 = vector.extract_strided_slice %1 {offsets = [0, 111], sizes = [8, 512], strides = [1, 1]} : vector<8x768xf32> to vector<8x512xf32>
    %cst_18 = arith.constant dense<0.000000e+00> : vector<8x512xf32>
    %72 = tpu.matmul %70, %71, %cst_18 {dimension_numbers = #tpu.dot_dimension_numbers<[1], [0], [0], [1], [0, 0, 1, 1], [], []>} : vector<8x8xf32>, vector<8x512xf32>, vector<8x512xf32> -> vector<8x512xf32>
    %73 = arith.addf %68, %72 : vector<8x512xf32>
    %74 = vector.extract_strided_slice %2 {offsets = [14, 0, 0], sizes = [1, 8, 8], strides = [1, 1, 1]} : vector<27x8x8xf32> to vector<1x8x8xf32>
    %75 = vector.shape_cast %74 : vector<1x8x8xf32> to vector<8x8xf32>
    %76 = vector.extract_strided_slice %1 {offsets = [0, 112], sizes = [8, 512], strides = [1, 1]} : vector<8x768xf32> to vector<8x512xf32>
    %cst_19 = arith.constant dense<0.000000e+00> : vector<8x512xf32>
    %77 = tpu.matmul %75, %76, %cst_19 {dimension_numbers = #tpu.dot_dimension_numbers<[1], [0], [0], [1], [0, 0, 1, 1], [], []>} : vector<8x8xf32>, vector<8x512xf32>, vector<8x512xf32> -> vector<8x512xf32>
    %78 = arith.addf %73, %77 : vector<8x512xf32>
    %79 = vector.extract_strided_slice %2 {offsets = [15, 0, 0], sizes = [1, 8, 8], strides = [1, 1, 1]} : vector<27x8x8xf32> to vector<1x8x8xf32>
    %80 = vector.shape_cast %79 : vector<1x8x8xf32> to vector<8x8xf32>
    %81 = vector.extract_strided_slice %1 {offsets = [0, 120], sizes = [8, 512], strides = [1, 1]} : vector<8x768xf32> to vector<8x512xf32>
    %cst_20 = arith.constant dense<0.000000e+00> : vector<8x512xf32>
    %82 = tpu.matmul %80, %81, %cst_20 {dimension_numbers = #tpu.dot_dimension_numbers<[1], [0], [0], [1], [0, 0, 1, 1], [], []>} : vector<8x8xf32>, vector<8x512xf32>, vector<8x512xf32> -> vector<8x512xf32>
    %83 = arith.addf %78, %82 : vector<8x512xf32>
    %84 = vector.extract_strided_slice %2 {offsets = [16, 0, 0], sizes = [1, 8, 8], strides = [1, 1, 1]} : vector<27x8x8xf32> to vector<1x8x8xf32>
    %85 = vector.shape_cast %84 : vector<1x8x8xf32> to vector<8x8xf32>
    %86 = vector.extract_strided_slice %1 {offsets = [0, 121], sizes = [8, 512], strides = [1, 1]} : vector<8x768xf32> to vector<8x512xf32>
    %cst_21 = arith.constant dense<0.000000e+00> : vector<8x512xf32>
    %87 = tpu.matmul %85, %86, %cst_21 {dimension_numbers = #tpu.dot_dimension_numbers<[1], [0], [0], [1], [0, 0, 1, 1], [], []>} : vector<8x8xf32>, vector<8x512xf32>, vector<8x512xf32> -> vector<8x512xf32>
    %88 = arith.addf %83, %87 : vector<8x512xf32>
    %89 = vector.extract_strided_slice %2 {offsets = [17, 0, 0], sizes = [1, 8, 8], strides = [1, 1, 1]} : vector<27x8x8xf32> to vector<1x8x8xf32>
    %90 = vector.shape_cast %89 : vector<1x8x8xf32> to vector<8x8xf32>
    %91 = vector.extract_strided_slice %1 {offsets = [0, 122], sizes = [8, 512], strides = [1, 1]} : vector<8x768xf32> to vector<8x512xf32>
    %cst_22 = arith.constant dense<0.000000e+00> : vector<8x512xf32>
    %92 = tpu.matmul %90, %91, %cst_22 {dimension_numbers = #tpu.dot_dimension_numbers<[1], [0], [0], [1], [0, 0, 1, 1], [], []>} : vector<8x8xf32>, vector<8x512xf32>, vector<8x512xf32> -> vector<8x512xf32>
    %93 = arith.addf %88, %92 : vector<8x512xf32>
    %94 = vector.extract_strided_slice %2 {offsets = [18, 0, 0], sizes = [1, 8, 8], strides = [1, 1, 1]} : vector<27x8x8xf32> to vector<1x8x8xf32>
    %95 = vector.shape_cast %94 : vector<1x8x8xf32> to vector<8x8xf32>
    %96 = vector.extract_strided_slice %1 {offsets = [0, 200], sizes = [8, 512], strides = [1, 1]} : vector<8x768xf32> to vector<8x512xf32>
    %cst_23 = arith.constant dense<0.000000e+00> : vector<8x512xf32>
    %97 = tpu.matmul %95, %96, %cst_23 {dimension_numbers = #tpu.dot_dimension_numbers<[1], [0], [0], [1], [0, 0, 1, 1], [], []>} : vector<8x8xf32>, vector<8x512xf32>, vector<8x512xf32> -> vector<8x512xf32>
    %98 = arith.addf %93, %97 : vector<8x512xf32>
    %99 = vector.extract_strided_slice %2 {offsets = [19, 0, 0], sizes = [1, 8, 8], strides = [1, 1, 1]} : vector<27x8x8xf32> to vector<1x8x8xf32>
    %100 = vector.shape_cast %99 : vector<1x8x8xf32> to vector<8x8xf32>
    %101 = vector.extract_strided_slice %1 {offsets = [0, 201], sizes = [8, 512], strides = [1, 1]} : vector<8x768xf32> to vector<8x512xf32>
    %cst_24 = arith.constant dense<0.000000e+00> : vector<8x512xf32>
    %102 = tpu.matmul %100, %101, %cst_24 {dimension_numbers = #tpu.dot_dimension_numbers<[1], [0], [0], [1], [0, 0, 1, 1], [], []>} : vector<8x8xf32>, vector<8x512xf32>, vector<8x512xf32> -> vector<8x512xf32>
    %103 = arith.addf %98, %102 : vector<8x512xf32>
    %104 = vector.extract_strided_slice %2 {offsets = [20, 0, 0], sizes = [1, 8, 8], strides = [1, 1, 1]} : vector<27x8x8xf32> to vector<1x8x8xf32>
    %105 = vector.shape_cast %104 : vector<1x8x8xf32> to vector<8x8xf32>
    %106 = vector.extract_strided_slice %1 {offsets = [0, 202], sizes = [8, 512], strides = [1, 1]} : vector<8x768xf32> to vector<8x512xf32>
    %cst_25 = arith.constant dense<0.000000e+00> : vector<8x512xf32>
    %107 = tpu.matmul %105, %106, %cst_25 {dimension_numbers = #tpu.dot_dimension_numbers<[1], [0], [0], [1], [0, 0, 1, 1], [], []>} : vector<8x8xf32>, vector<8x512xf32>, vector<8x512xf32> -> vector<8x512xf32>
    %108 = arith.addf %103, %107 : vector<8x512xf32>
    %109 = vector.extract_strided_slice %2 {offsets = [21, 0, 0], sizes = [1, 8, 8], strides = [1, 1, 1]} : vector<27x8x8xf32> to vector<1x8x8xf32>
    %110 = vector.shape_cast %109 : vector<1x8x8xf32> to vector<8x8xf32>
    %111 = vector.extract_strided_slice %1 {offsets = [0, 210], sizes = [8, 512], strides = [1, 1]} : vector<8x768xf32> to vector<8x512xf32>
    %cst_26 = arith.constant dense<0.000000e+00> : vector<8x512xf32>
    %112 = tpu.matmul %110, %111, %cst_26 {dimension_numbers = #tpu.dot_dimension_numbers<[1], [0], [0], [1], [0, 0, 1, 1], [], []>} : vector<8x8xf32>, vector<8x512xf32>, vector<8x512xf32> -> vector<8x512xf32>
    %113 = arith.addf %108, %112 : vector<8x512xf32>
    %114 = vector.extract_strided_slice %2 {offsets = [22, 0, 0], sizes = [1, 8, 8], strides = [1, 1, 1]} : vector<27x8x8xf32> to vector<1x8x8xf32>
    %115 = vector.shape_cast %114 : vector<1x8x8xf32> to vector<8x8xf32>
    %116 = vector.extract_strided_slice %1 {offsets = [0, 211], sizes = [8, 512], strides = [1, 1]} : vector<8x768xf32> to vector<8x512xf32>
    %cst_27 = arith.constant dense<0.000000e+00> : vector<8x512xf32>
    %117 = tpu.matmul %115, %116, %cst_27 {dimension_numbers = #tpu.dot_dimension_numbers<[1], [0], [0], [1], [0, 0, 1, 1], [], []>} : vector<8x8xf32>, vector<8x512xf32>, vector<8x512xf32> -> vector<8x512xf32>
    %118 = arith.addf %113, %117 : vector<8x512xf32>
    %119 = vector.extract_strided_slice %2 {offsets = [23, 0, 0], sizes = [1, 8, 8], strides = [1, 1, 1]} : vector<27x8x8xf32> to vector<1x8x8xf32>
    %120 = vector.shape_cast %119 : vector<1x8x8xf32> to vector<8x8xf32>
    %121 = vector.extract_strided_slice %1 {offsets = [0, 212], sizes = [8, 512], strides = [1, 1]} : vector<8x768xf32> to vector<8x512xf32>
    %cst_28 = arith.constant dense<0.000000e+00> : vector<8x512xf32>
    %122 = tpu.matmul %120, %121, %cst_28 {dimension_numbers = #tpu.dot_dimension_numbers<[1], [0], [0], [1], [0, 0, 1, 1], [], []>} : vector<8x8xf32>, vector<8x512xf32>, vector<8x512xf32> -> vector<8x512xf32>
    %123 = arith.addf %118, %122 : vector<8x512xf32>
    %124 = vector.extract_strided_slice %2 {offsets = [24, 0, 0], sizes = [1, 8, 8], strides = [1, 1, 1]} : vector<27x8x8xf32> to vector<1x8x8xf32>
    %125 = vector.shape_cast %124 : vector<1x8x8xf32> to vector<8x8xf32>
    %126 = vector.extract_strided_slice %1 {offsets = [0, 220], sizes = [8, 512], strides = [1, 1]} : vector<8x768xf32> to vector<8x512xf32>
    %cst_29 = arith.constant dense<0.000000e+00> : vector<8x512xf32>
    %127 = tpu.matmul %125, %126, %cst_29 {dimension_numbers = #tpu.dot_dimension_numbers<[1], [0], [0], [1], [0, 0, 1, 1], [], []>} : vector<8x8xf32>, vector<8x512xf32>, vector<8x512xf32> -> vector<8x512xf32>
    %128 = arith.addf %123, %127 : vector<8x512xf32>
    %129 = vector.extract_strided_slice %2 {offsets = [25, 0, 0], sizes = [1, 8, 8], strides = [1, 1, 1]} : vector<27x8x8xf32> to vector<1x8x8xf32>
    %130 = vector.shape_cast %129 : vector<1x8x8xf32> to vector<8x8xf32>
    %131 = vector.extract_strided_slice %1 {offsets = [0, 221], sizes = [8, 512], strides = [1, 1]} : vector<8x768xf32> to vector<8x512xf32>
    %cst_30 = arith.constant dense<0.000000e+00> : vector<8x512xf32>
    %132 = tpu.matmul %130, %131, %cst_30 {dimension_numbers = #tpu.dot_dimension_numbers<[1], [0], [0], [1], [0, 0, 1, 1], [], []>} : vector<8x8xf32>, vector<8x512xf32>, vector<8x512xf32> -> vector<8x512xf32>
    %133 = arith.addf %128, %132 : vector<8x512xf32>
    %134 = vector.extract_strided_slice %2 {offsets = [26, 0, 0], sizes = [1, 8, 8], strides = [1, 1, 1]} : vector<27x8x8xf32> to vector<1x8x8xf32>
    %135 = vector.shape_cast %134 : vector<1x8x8xf32> to vector<8x8xf32>
    %136 = vector.extract_strided_slice %1 {offsets = [0, 222], sizes = [8, 512], strides = [1, 1]} : vector<8x768xf32> to vector<8x512xf32>
    %cst_31 = arith.constant dense<0.000000e+00> : vector<8x512xf32>
    %137 = tpu.matmul %135, %136, %cst_31 {dimension_numbers = #tpu.dot_dimension_numbers<[1], [0], [0], [1], [0, 0, 1, 1], [], []>} : vector<8x8xf32>, vector<8x512xf32>, vector<8x512xf32> -> vector<8x512xf32>
    %138 = arith.addf %133, %137 : vector<8x512xf32>
    %c0_32 = arith.constant 0 : index
    %c0_33 = arith.constant 0 : index
    %139 = vector.load %arg3[%c0_32, %c0_33] : memref<8x1xf32, #tpu.memory_space<vmem>>, vector<8x1xf32>
    %140 = vector.broadcast %139 : vector<8x1xf32> to vector<8x512xf32>
    %141 = arith.addf %138, %140 : vector<8x512xf32>
    %c0_34 = arith.constant 0 : index
    %c0_35 = arith.constant 0 : index
    %c0_36 = arith.constant 0 : index
    %142 = vector.load %arg4[%c0_34, %c0_35, %c0_36] : memref<1x8x512xf32, #tpu.memory_space<vmem>>, vector<1x8x512xf32>
    %143 = vector.shape_cast %142 : vector<1x8x512xf32> to vector<8x512xf32>
    %144 = arith.addf %141, %143 : vector<8x512xf32>
    %c0_37 = arith.constant 0 : index
    %c0_38 = arith.constant 0 : index
    %c0_39 = arith.constant 0 : index
    %145 = vector.load %arg5[%c0_37, %c0_38, %c0_39] : memref<1x8x512xf32, #tpu.memory_space<vmem>>, vector<1x8x512xf32>
    %146 = vector.shape_cast %145 : vector<1x8x512xf32> to vector<8x512xf32>
    %147 = vector.shape_cast %144 : vector<8x512xf32> to vector<1x8x512xf32>
    tpu.vector_store %arg5[%c0_37, %c0_38, %c0_39], %147 {strides = array<i32>} : memref<1x8x512xf32, #tpu.memory_space<vmem>>, vector<1x8x512xf32>,
    return
  }
  func.func @transform_0(%arg0: i32) -> (i32, i32, i32) {
    %c0_i32 = arith.constant 0 : i32
    %c0_i32_0 = arith.constant 0 : i32
    %c0_i32_1 = arith.constant 0 : i32
    return %arg0, %c0_i32, %c0_i32_0 : i32, i32, i32
  }
  func.func @transform_1(%arg0: i32) -> (i32, i32, i32) {
    %c0_i32 = arith.constant 0 : i32
    %c0_i32_0 = arith.constant 0 : i32
    %c0_i32_1 = arith.constant 0 : i32
    %c0_i32_2 = arith.constant 0 : i32
    return %c0_i32, %c0_i32_0, %c0_i32_1 : i32, i32, i32
  }
  func.func @transform_2(%arg0: i32) -> (i32, i32) {
    %c0_i32 = arith.constant 0 : i32
    %c0_i32_0 = arith.constant 0 : i32
    %c0_i32_1 = arith.constant 0 : i32
    return %c0_i32, %c0_i32_0 : i32, i32
  }
  func.func @transform_3(%arg0: i32) -> (i32, i32, i32) {
    %c0_i32 = arith.constant 0 : i32
    %c0_i32_0 = arith.constant 0 : i32
    %c0_i32_1 = arith.constant 0 : i32
    return %arg0, %c0_i32, %c0_i32_0 : i32, i32, i32
  }
  func.func @transform_4(%arg0: i32) -> (i32, i32, i32) {
    %c0_i32 = arith.constant 0 : i32
    %c0_i32_0 = arith.constant 0 : i32
    %c0_i32_1 = arith.constant 0 : i32
    return %arg0, %c0_i32, %c0_i32_0 : i32, i32, i32
  }
}

</mosaic_0001>

<llo_original>
// kernel: basconv_block_forward.5
$region0: #{basconv_block_forward.5}
  #allocation0 [shape = 'u32[]', space=smem, size = 0x4, offset = 0x4, fixed_abs, tag = 'smem constant byte address 0x4 - core index']
  #allocation1 [shape = 'u32[72,128]{1,0:T(1,128)}', space=vmem, size = 0x9000, scoped, tag = 'internal scratch']
  %s0 = inlined_call_operand.vmem [shape: f32[2,8,768], index: 0, kind: input, shape index: {}]
  %s1 = inlined_call_operand.vmem [shape: f32[27,8,8], index: 1, kind: input, shape index: {}]
  %s2 = inlined_call_operand.vmem [shape: f32[8,1], index: 2, kind: input, shape index: {}]
  %s3 = inlined_call_operand.vmem [shape: f32[2,8,512], index: 3, kind: input, shape index: {}]
  %s4 = inlined_call_operand.vmem [shape: f32[2,8,512], index: 4, kind: output, shape index: {}]
  %s5 = sld [smem:[#allocation0]]
  $region49: #{basconv_block_forward.5} parent=0
    _
  %s7 = ssub.s32 1, %s5
  %s8 = scalar_select 0, %s7, %s5
  loop: start=0, step=1, limit=4
  $region2: #{basconv_block_forward.5} parent=0 // loop_pre_header
    _
  $region3: #{basconv_block_forward.5} parent=0 // loop_header
    %s10 = sphi 0, %s14
    %p11 = scmp.ge.s32.totalorder %s10, 4
    %s20 = sphi 0, %s22
    %s23 = sphi 0, %s20
    %s24 = sphi 0, %s23
    %s40 = sphi 0, %s24
    %s44 = sphi 0, %s44
    %s46 = sphi 0, %s44
    %s47 = sphi 0, %s46
    %s61 = sphi 0, %s47
    %s65 = sphi 0, %s65
    %s67 = sphi 0, %s65
    %s68 = sphi 0, %s67
    %s82 = sphi 0, %s68
    %s88 = sphi 0, %s90
    %s91 = sphi 0, %s88
    %s92 = sphi 0, %s91
    %s108 = sphi 0, %s92
    %s114 = sphi 0, %s116
    %s117 = sphi 0, %s114
    %s118 = sphi 0, %s117
    %s134 = sphi 0, %s118
  $region4: #{basconv_block_forward.5} parent=0 // loop_header_branch
    %13 = sbr.rel (%p11) target = $region8
  $region5: #{basconv_block_forward.5} parent=0 // loop_body
    %s15 = ssub.s32 %s10, 1
    %s16 = ssub.s32 %s10, 2
    %s17 = sadd.s32 %s10, 1
    %s18 = ssub.s32 %s10, %s17
    %p19 = scmp.eq.s32.totalorder %s18, 0
    %s21 = sadd.s32 %s20, 1
    %s22 = scalar_select %p19, %s20, %s21
    %p25 = pneg %p19
    %p26 = scmp.eq.s32.totalorder %s10, 1
    %p27 = por %p25, %p26
    %p28 = scmp.ne.s32.totalorder %s20, %s23
    %p29 = scmp.eq.s32.totalorder %s10, 0
    %p30 = por %p28, %p29
    %p31 = scmp.ne.s32.totalorder %s20, %s23
    %p32 = scmp.eq.s32.totalorder %s15, 1
    %p33 = por %p31, %p32
    %p34 = scmp.ne.s32.totalorder %s23, %s24
    %p35 = scmp.eq.s32.totalorder %s15, 0
    %p36 = por %p34, %p35
    %p37 = scmp.ne.s32.totalorder %s23, %s24
    %p38 = scmp.eq.s32.totalorder %s16, 1
    %p39 = por %p37, %p38
    %p41 = scmp.ne.s32.totalorder %s24, %s40
    %p42 = scmp.eq.s32.totalorder %s16, 0
    %p43 = por %p41, %p42
    %s45 = sadd.s32 %s44, 1
    %p48 = scmp.eq.s32.totalorder %s10, 1
    %p49 = scmp.ne.s32.totalorder %s44, %s46
    %p50 = scmp.eq.s32.totalorder %s10, 0
    %p51 = por %p49, %p50
    %p52 = scmp.ne.s32.totalorder %s44, %s46
    %p53 = scmp.eq.s32.totalorder %s15, 1
    %p54 = por %p52, %p53
    %p55 = scmp.ne.s32.totalorder %s46, %s47
    %p56 = scmp.eq.s32.totalorder %s15, 0
    %p57 = por %p55, %p56
    %p58 = scmp.ne.s32.totalorder %s46, %s47
    %p59 = scmp.eq.s32.totalorder %s16, 1
    %p60 = por %p58, %p59
    %p62 = scmp.ne.s32.totalorder %s47, %s61
    %p63 = scmp.eq.s32.totalorder %s16, 0
    %p64 = por %p62, %p63
    %s66 = sadd.s32 %s65, 1
    %p69 = scmp.eq.s32.totalorder %s10, 1
    %p70 = scmp.ne.s32.totalorder %s65, %s67
    %p71 = scmp.eq.s32.totalorder %s10, 0
    %p72 = por %p70, %p71
    %p73 = scmp.ne.s32.totalorder %s65, %s67
    %p74 = scmp.eq.s32.totalorder %s15, 1
    %p75 = por %p73, %p74
    %p76 = scmp.ne.s32.totalorder %s67, %s68
    %p77 = scmp.eq.s32.totalorder %s15, 0
    %p78 = por %p76, %p77
    %p79 = scmp.ne.s32.totalorder %s67, %s68
    %p80 = scmp.eq.s32.totalorder %s16, 1
    %p81 = por %p79, %p80
    %p83 = scmp.ne.s32.totalorder %s68, %s82
    %p84 = scmp.eq.s32.totalorder %s16, 0
    %p85 = por %p83, %p84
    %s86 = ssub.s32 %s10, %s17
    %p87 = scmp.eq.s32.totalorder %s86, 0
    %s89 = sadd.s32 %s88, 1
    %s90 = scalar_select %p87, %s88, %s89
    %p93 = pneg %p87
    %p94 = scmp.eq.s32.totalorder %s10, 1
    %p95 = por %p93, %p94
    %p96 = scmp.ne.s32.totalorder %s88, %s91
    %p97 = scmp.eq.s32.totalorder %s10, 0
    %p98 = por %p96, %p97
    %p99 = scmp.ne.s32.totalorder %s88, %s91
    %p100 = scmp.eq.s32.totalorder %s15, 1
    %p101 = por %p99, %p100
    %p102 = scmp.ne.s32.totalorder %s91, %s92
    %p103 = scmp.eq.s32.totalorder %s15, 0
    %p104 = por %p102, %p103
    %p105 = scmp.ne.s32.totalorder %s91, %s92
    %p106 = scmp.eq.s32.totalorder %s16, 1
    %p107 = por %p105, %p106
    %p109 = scmp.ne.s32.totalorder %s92, %s108
    %p110 = scmp.eq.s32.totalorder %s16, 0
    %p111 = por %p109, %p110
    %s112 = ssub.s32 %s10, %s17
    %p113 = scmp.eq.s32.totalorder %s112, 0
    %s115 = sadd.s32 %s114, 1
    %s116 = scalar_select %p113, %s114, %s115
    %p119 = pneg %p113
    %p120 = scmp.eq.s32.totalorder %s10, 1
    %p121 = por %p119, %p120
    %p122 = scmp.ne.s32.totalorder %s114, %s117
    %p123 = scmp.eq.s32.totalorder %s10, 0
    %p124 = por %p122, %p123
    %p125 = scmp.ne.s32.totalorder %s114, %s117
    %p126 = scmp.eq.s32.totalorder %s15, 1
    %p127 = por %p125, %p126
    %p128 = scmp.ne.s32.totalorder %s117, %s118
    %p129 = scmp.eq.s32.totalorder %s15, 0
    %p130 = por %p128, %p129
    %p131 = scmp.ne.s32.totalorder %s117, %s118
    %p132 = scmp.eq.s32.totalorder %s16, 1
    %p133 = por %p131, %p132
    %p135 = scmp.ne.s32.totalorder %s118, %s134
    %p136 = scmp.eq.s32.totalorder %s16, 0
    %p137 = por %p135, %p136
    %p138 = scmp.le.s32.totalorder 1, %s10
    %p139 = scmp.lt.s32.totalorder %s10, 3
    %p140 = pnand %p138, %p139
    %p141 = pneg %p140
    // Predicated region
    $region9: #{basconv_block_forward.5} parent=5 // pred_check
      _
    $region10: #{basconv_block_forward.5} parent=5 // pred_check_branch
      %143 = sbr.rel (%p140) target = $region12
    $region11: #{basconv_block_forward.5} parent=5 // pred_region
      %s144 = ssub.s32 %s10, 1
      // Predicated region
      $region13: #{basconv_block_forward.5} parent=11 // pred_check
        %p145 = pneg %p57
      $region14: #{basconv_block_forward.5} parent=11 // pred_check_branch
        %147 = sbr.rel (%p145) target = $region16
      $region15: #{basconv_block_forward.5} parent=11 // pred_region
        _
      $region16: #{basconv_block_forward.5} parent=11 // pred_fallthru
        _
      // Predicated region
      $region17: #{basconv_block_forward.5} parent=11 // pred_check
        %p148 = pneg %p78
      $region18: #{basconv_block_forward.5} parent=11 // pred_check_branch
        %150 = sbr.rel (%p148) target = $region20
      $region19: #{basconv_block_forward.5} parent=11 // pred_region
        _
      $region20: #{basconv_block_forward.5} parent=11 // pred_fallthru
        _
    $region12: #{basconv_block_forward.5} parent=5 // pred_fallthru
      _
    %p151 = scmp.lt.s32.totalorder %s10, 2
    // Predicated region
    $region21: #{basconv_block_forward.5} parent=5 // pred_check
      %p152 = pneg %p151
    $region22: #{basconv_block_forward.5} parent=5 // pred_check_branch
      %154 = sbr.rel (%p152) target = $region24
    $region23: #{basconv_block_forward.5} parent=5 // pred_region
      // Predicated region
      $region25: #{basconv_block_forward.5} parent=23 // pred_check
        %p155 = pneg %p30
      $region26: #{basconv_block_forward.5} parent=23 // pred_check_branch
        %157 = sbr.rel (%p155) target = $region28
      $region27: #{basconv_block_forward.5} parent=23 // pred_region
        %p158 = scmp.lt.s32.totalorder %s10, 1
        %s159 = scalar_select %p158, %s10, 1
        %s160 = smul.addr %s159, 6
        %s161 = smul.addr %s160, 8
        %s162 = scalar_lea.vmem %s0, %s161
      $region28: #{basconv_block_forward.5} parent=23 // pred_fallthru
        _
      // Predicated region
      $region29: #{basconv_block_forward.5} parent=23 // pred_check
        %p163 = pneg %p98
      $region30: #{basconv_block_forward.5} parent=23 // pred_check_branch
        %165 = sbr.rel (%p163) target = $region32
      $region31: #{basconv_block_forward.5} parent=23 // pred_region
        %p166 = scmp.lt.s32.totalorder %s10, 1
        %s167 = scalar_select %p166, %s10, 1
        %s168 = smul.addr %s167, 4
        %s169 = smul.addr %s168, 8
        %s170 = scalar_lea.vmem %s3, %s169
      $region32: #{basconv_block_forward.5} parent=23 // pred_fallthru
        _
    $region24: #{basconv_block_forward.5} parent=5 // pred_fallthru
      _
    %p171 = scmp.le.s32.totalorder 1, %s10
    %p172 = scmp.lt.s32.totalorder %s10, 3
    %p173 = pnand %p171, %p172
    %p174 = pneg %p173
    // Predicated region
    $region33: #{basconv_block_forward.5} parent=5 // pred_check
      _
    $region34: #{basconv_block_forward.5} parent=5 // pred_check_branch
      %176 = sbr.rel (%p173) target = $region36
    $region35: #{basconv_block_forward.5} parent=5 // pred_region
      %s177 = ssub.s32 %s10, 1
      %p178 = scmp.lt.s32.totalorder %s15, 1
      %s179 = scalar_select %p178, %s15, 1
      %s180 = smul.addr %s179, 6
      %s181 = smul.addr %s180, 8
      %s182 = scalar_lea.vmem %s0, %s181
      %p183 = pneg %p36
      %p184 = pneg %p33
      %p185 = pneg %p57
      %p186 = pneg %p54
      %p187 = pneg %p78
      %p188 = pneg %p75
      %p189 = scmp.lt.s32.totalorder %s15, 1
      %s190 = scalar_select %p189, %s15, 1
      %s191 = smul.addr %s190, 4
      %s192 = smul.addr %s191, 8
      %s193 = scalar_lea.vmem %s3, %s192
      %p194 = pneg %p104
      %p195 = pneg %p101
      %p196 = pneg %p130
      %p197 = pneg %p127
      %p198 = scmp.lt.s32.totalorder %s15, 1
      %s199 = scalar_select %p198, %s15, 1
      %s200 = smul.addr %s199, 4
      %s201 = smul.addr %s200, 8
      %s202 = scalar_lea.vmem %s4, %s201
      %p203 = scmp.lt.s32.totalorder %s15, 1
      %s204 = scalar_select %p203, %s15, 1
      %s205 = smul.addr %s204, 6
      %s206 = smul.addr %s205, 8
      %s207 = scalar_lea.vmem %s0, %s206
      %p208 = scmp.lt.s32.totalorder %s15, 1
      %s209 = scalar_select %p208, %s15, 1
      %s210 = smul.addr %s209, 4
      %s211 = smul.addr %s210, 8
      %s212 = scalar_lea.vmem %s3, %s211
      %p213 = scmp.lt.s32.totalorder %s15, 1
      %s214 = scalar_select %p213, %s15, 1
      %s215 = smul.addr %s214, 4
      %s216 = smul.addr %s215, 8
      %s217 = scalar_lea.vmem %s4, %s216
      %v218 = vld [vmem:[%s207] sm:$0xff]
      %v219 = vld [vmem:[%s207 + $0x8] sm:$0xff]
      %v220 = vld [vmem:[%s207 + $0x10] sm:$0xff]
      %v221 = vld [vmem:[%s207 + $0x18] sm:$0xff]
      %v222 = vld [vmem:[%s207 + $0x20] sm:$0xff]
      %v223 = vld [vmem:[%s207 + $0x28] sm:$0xff]
      %v224 = vld [vmem:[%s1] sm:$0xff]
      %v225 = vld [vmem:[%s1 + $0x8] sm:$0xff]
      %v226 = vld [vmem:[%s1 + $0x10] sm:$0xff]
      %v227 = vld [vmem:[%s1 + $0x18] sm:$0xff]
      %v228 = vld [vmem:[%s1 + $0x20] sm:$0xff]
      %v229 = vld [vmem:[%s1 + $0x28] sm:$0xff]
      %v230 = vld [vmem:[%s1 + $0x30] sm:$0xff]
      %v231 = vld [vmem:[%s1 + $0x38] sm:$0xff]
      %v232 = vld [vmem:[%s1 + $0x40] sm:$0xff]
      %v233 = vld [vmem:[%s1 + $0x48] sm:$0xff]
      %v234 = vld [vmem:[%s1 + $0x50] sm:$0xff]
      %v235 = vld [vmem:[%s1 + $0x58] sm:$0xff]
      %v236 = vld [vmem:[%s1 + $0x60] sm:$0xff]
      %v237 = vld [vmem:[%s1 + $0x68] sm:$0xff]
      %v238 = vld [vmem:[%s1 + $0x70] sm:$0xff]
      %v239 = vld [vmem:[%s1 + $0x78] sm:$0xff]
      %v240 = vld [vmem:[%s1 + $0x80] sm:$0xff]
      %v241 = vld [vmem:[%s1 + $0x88] sm:$0xff]
      %v242 = vld [vmem:[%s1 + $0x90] sm:$0xff]
      %v243 = vld [vmem:[%s1 + $0x98] sm:$0xff]
      %v244 = vld [vmem:[%s1 + $0xa0] sm:$0xff]
      %v245 = vld [vmem:[%s1 + $0xa8] sm:$0xff]
      %v246 = vld [vmem:[%s1 + $0xb0] sm:$0xff]
      %v247 = vld [vmem:[%s1 + $0xb8] sm:$0xff]
      %v248 = vld [vmem:[%s1 + $0xc0] sm:$0xff]
      %v249 = vld [vmem:[%s1 + $0xc8] sm:$0xff]
      %v250 = vld [vmem:[%s1 + $0xd0] sm:$0xff]
      %256 = vrot.lane.b32.xlu0 %v218, 127
      %v257 = vpop.permute.xlu0 %256
      %258 = vrot.lane.b32.xlu0 %v219, 127
      %v259 = vpop.permute.xlu0 %258
      %260 = vrot.lane.b32.xlu0 %v220, 127
      %v261 = vpop.permute.xlu0 %260
      %262 = vrot.lane.b32.xlu0 %v221, 127
      %v263 = vpop.permute.xlu0 %262
      %264 = vrot.lane.b32.xlu0 %v222, 127
      %v265 = vpop.permute.xlu0 %264
      %vm266 = vcmask 1039360
      %v267 = vsel %vm266, %v257, %v259
      %v268 = vsel %vm266, %v259, %v261
      %v269 = vsel %vm266, %v261, %v263
      %v270 = vsel %vm266, %v263, %v265
      %vm275 = vcmask 64512
      %v277 = vsel %vm275, %v225, 0
      %279 = vmatpush.msra.mxu0 0.0
      %280 = vmatpush.msra.mxu0 0.0
      %281 = vmatpush.msra.mxu0 0.0
      %282 = vmatpush.msra.mxu0 0.0
      %283 = vmatpush.msra.mxu0 0.0
      %284 = vmatpush.msra.mxu0 0.0
      %285 = vmatpush.msra.mxu0 0.0
      %286 = vmatpush.msra.mxu0 0.0
      %287 = vmatpush.msra.mxu0 0.0
      %288 = vmatpush.msra.mxu0 0.0
      %289 = vmatpush.msra.mxu0 0.0
      %290 = vmatpush.msra.mxu0 0.0
      %291 = vmatpush.msra.mxu0 0.0
      %292 = vmatpush.msra.mxu0 0.0
      %293 = vmatpush.msra.mxu0 0.0
      %294 = vmatpush.msra.mxu0 %v267
      %295 = vmatmul.f32.gmra.mxu0 %v277
      %v296 = vpop.f32.mrf.mxu0
      %v297 = vadd.f32 0.0, %v296
      %298 = vdwg.mxu0
      %299 = vmatpush.msra.mxu0 0.0
      %300 = vmatpush.msra.mxu0 0.0
      %301 = vmatpush.msra.mxu0 0.0
      %302 = vmatpush.msra.mxu0 0.0
      %303 = vmatpush.msra.mxu0 0.0
      %304 = vmatpush.msra.mxu0 0.0
      %305 = vmatpush.msra.mxu0 0.0
      %306 = vmatpush.msra.mxu0 0.0
      %307 = vmatpush.msra.mxu0 0.0
      %308 = vmatpush.msra.mxu0 0.0
      %309 = vmatpush.msra.mxu0 0.0
      %310 = vmatpush.msra.mxu0 0.0
      %311 = vmatpush.msra.mxu0 0.0
      %312 = vmatpush.msra.mxu0 0.0
      %313 = vmatpush.msra.mxu0 0.0
      %314 = vmatpush.msra.mxu0 %v268
      %315 = vmatmul.f32.gmra.mxu0 %v277
      %v316 = vpop.f32.mrf.mxu0
      %v317 = vadd.f32 0.0, %v316
      %318 = vdwg.mxu0
      %319 = vmatpush.msra.mxu0 0.0
      %320 = vmatpush.msra.mxu0 0.0
      %321 = vmatpush.msra.mxu0 0.0
      %322 = vmatpush.msra.mxu0 0.0
      %323 = vmatpush.msra.mxu0 0.0
      %324 = vmatpush.msra.mxu0 0.0
      %325 = vmatpush.msra.mxu0 0.0
      %326 = vmatpush.msra.mxu0 0.0
      %327 = vmatpush.msra.mxu0 0.0
      %328 = vmatpush.msra.mxu0 0.0
      %329 = vmatpush.msra.mxu0 0.0
      %330 = vmatpush.msra.mxu0 0.0
      %331 = vmatpush.msra.mxu0 0.0
      %332 = vmatpush.msra.mxu0 0.0
      %333 = vmatpush.msra.mxu0 0.0
      %334 = vmatpush.msra.mxu0 %v269
      %335 = vmatmul.f32.gmra.mxu0 %v277
      %v336 = vpop.f32.mrf.mxu0
      %v337 = vadd.f32 0.0, %v336
      %338 = vdwg.mxu0
      %339 = vmatpush.msra.mxu0 0.0
      %340 = vmatpush.msra.mxu0 0.0
      %341 = vmatpush.msra.mxu0 0.0
      %342 = vmatpush.msra.mxu0 0.0
      %343 = vmatpush.msra.mxu0 0.0
      %344 = vmatpush.msra.mxu0 0.0
      %345 = vmatpush.msra.mxu0 0.0
      %346 = vmatpush.msra.mxu0 0.0
      %347 = vmatpush.msra.mxu0 0.0
      %348 = vmatpush.msra.mxu0 0.0
      %349 = vmatpush.msra.mxu0 0.0
      %350 = vmatpush.msra.mxu0 0.0
      %351 = vmatpush.msra.mxu0 0.0
      %352 = vmatpush.msra.mxu0 0.0
      %353 = vmatpush.msra.mxu0 0.0
      %354 = vmatpush.msra.mxu0 %v270
      %355 = vmatmul.f32.gmra.mxu0 %v277
      %v356 = vpop.f32.mrf.mxu0
      %v357 = vadd.f32 0.0, %v356
      %358 = vdwg.mxu0
      %v360 = vsel %vm275, %v224, 0
      %362 = vmatpush.msra.mxu0 0.0
      %363 = vmatpush.msra.mxu0 0.0
      %364 = vmatpush.msra.mxu0 0.0
      %365 = vmatpush.msra.mxu0 0.0
      %366 = vmatpush.msra.mxu0 0.0
      %367 = vmatpush.msra.mxu0 0.0
      %368 = vmatpush.msra.mxu0 0.0
      %369 = vmatpush.msra.mxu0 0.0
      %370 = vmatpush.msra.mxu0 0.0
      %371 = vmatpush.msra.mxu0 0.0
      %372 = vmatpush.msra.mxu0 0.0
      %373 = vmatpush.msra.mxu0 0.0
      %374 = vmatpush.msra.mxu0 0.0
      %375 = vmatpush.msra.mxu0 0.0
      %376 = vmatpush.msra.mxu0 0.0
      %377 = vmatpush.msra.mxu0 %v218
      %378 = vmatmul.f32.gmra.mxu0 %v360
      %v379 = vpop.f32.mrf.mxu0
      %v380 = vadd.f32 %v297, %v379
      %381 = vdwg.mxu0
      %382 = vmatpush.msra.mxu0 0.0
      %383 = vmatpush.msra.mxu0 0.0
      %384 = vmatpush.msra.mxu0 0.0
      %385 = vmatpush.msra.mxu0 0.0
      %386 = vmatpush.msra.mxu0 0.0
      %387 = vmatpush.msra.mxu0 0.0
      %388 = vmatpush.msra.mxu0 0.0
      %389 = vmatpush.msra.mxu0 0.0
      %390 = vmatpush.msra.mxu0 0.0
      %391 = vmatpush.msra.mxu0 0.0
      %392 = vmatpush.msra.mxu0 0.0
      %393 = vmatpush.msra.mxu0 0.0
      %394 = vmatpush.msra.mxu0 0.0
      %395 = vmatpush.msra.mxu0 0.0
      %396 = vmatpush.msra.mxu0 0.0
      %397 = vmatpush.msra.mxu0 %v219
      %398 = vmatmul.f32.gmra.mxu0 %v360
      %v399 = vpop.f32.mrf.mxu0
      %v400 = vadd.f32 %v317, %v399
      %401 = vdwg.mxu0
      %402 = vmatpush.msra.mxu0 0.0
      %403 = vmatpush.msra.mxu0 0.0
      %404 = vmatpush.msra.mxu0 0.0
      %405 = vmatpush.msra.mxu0 0.0
      %406 = vmatpush.msra.mxu0 0.0
      %407 = vmatpush.msra.mxu0 0.0
      %408 = vmatpush.msra.mxu0 0.0
      %409 = vmatpush.msra.mxu0 0.0
      %410 = vmatpush.msra.mxu0 0.0
      %411 = vmatpush.msra.mxu0 0.0
      %412 = vmatpush.msra.mxu0 0.0
      %413 = vmatpush.msra.mxu0 0.0
      %414 = vmatpush.msra.mxu0 0.0
      %415 = vmatpush.msra.mxu0 0.0
      %416 = vmatpush.msra.mxu0 0.0
      %417 = vmatpush.msra.mxu0 %v220
      %418 = vmatmul.f32.gmra.mxu0 %v360
      %v419 = vpop.f32.mrf.mxu0
      %v420 = vadd.f32 %v337, %v419
      %421 = vdwg.mxu0
      %422 = vmatpush.msra.mxu0 0.0
      %423 = vmatpush.msra.mxu0 0.0
      %424 = vmatpush.msra.mxu0 0.0
      %425 = vmatpush.msra.mxu0 0.0
      %426 = vmatpush.msra.mxu0 0.0
      %427 = vmatpush.msra.mxu0 0.0
      %428 = vmatpush.msra.mxu0 0.0
      %429 = vmatpush.msra.mxu0 0.0
      %430 = vmatpush.msra.mxu0 0.0
      %431 = vmatpush.msra.mxu0 0.0
      %432 = vmatpush.msra.mxu0 0.0
      %433 = vmatpush.msra.mxu0 0.0
      %434 = vmatpush.msra.mxu0 0.0
      %435 = vmatpush.msra.mxu0 0.0
      %436 = vmatpush.msra.mxu0 0.0
      %437 = vmatpush.msra.mxu0 %v221
      %438 = vmatmul.f32.gmra.mxu0 %v360
      %v439 = vpop.f32.mrf.mxu0
      %v440 = vadd.f32 %v357, %v439
      %441 = vdwg.mxu0
      %442 = vrot.lane.b32.xlu0 %v218, 126
      %v443 = vpop.permute.xlu0 %442
      %444 = vrot.lane.b32.xlu0 %v219, 126
      %v445 = vpop.permute.xlu0 %444
      %446 = vrot.lane.b32.xlu0 %v220, 126
      %v447 = vpop.permute.xlu0 %446
      %448 = vrot.lane.b32.xlu0 %v221, 126
      %v449 = vpop.permute.xlu0 %448
      %450 = vrot.lane.b32.xlu0 %v222, 126
      %v451 = vpop.permute.xlu0 %450
      %vm452 = vcmask 1031168
      %v453 = vsel %vm452, %v443, %v445
      %v454 = vsel %vm452, %v445, %v447
      %v455 = vsel %vm452, %v447, %v449
      %v456 = vsel %vm452, %v449, %v451
      %v462 = vsel %vm275, %v226, 0
      %464 = vmatpush.msra.mxu0 0.0
      %465 = vmatpush.msra.mxu0 0.0
      %466 = vmatpush.msra.mxu0 0.0
      %467 = vmatpush.msra.mxu0 0.0
      %468 = vmatpush.msra.mxu0 0.0
      %469 = vmatpush.msra.mxu0 0.0
      %470 = vmatpush.msra.mxu0 0.0
      %471 = vmatpush.msra.mxu0 0.0
      %472 = vmatpush.msra.mxu0 0.0
      %473 = vmatpush.msra.mxu0 0.0
      %474 = vmatpush.msra.mxu0 0.0
      %475 = vmatpush.msra.mxu0 0.0
      %476 = vmatpush.msra.mxu0 0.0
      %477 = vmatpush.msra.mxu0 0.0
      %478 = vmatpush.msra.mxu0 0.0
      %479 = vmatpush.msra.mxu0 %v453
      %480 = vmatmul.f32.gmra.mxu0 %v462
      %v481 = vpop.f32.mrf.mxu0
      %v482 = vadd.f32 0.0, %v481
      %483 = vdwg.mxu0
      %484 = vmatpush.msra.mxu0 0.0
      %485 = vmatpush.msra.mxu0 0.0
      %486 = vmatpush.msra.mxu0 0.0
      %487 = vmatpush.msra.mxu0 0.0
      %488 = vmatpush.msra.mxu0 0.0
      %489 = vmatpush.msra.mxu0 0.0
      %490 = vmatpush.msra.mxu0 0.0
      %491 = vmatpush.msra.mxu0 0.0
      %492 = vmatpush.msra.mxu0 0.0
      %493 = vmatpush.msra.mxu0 0.0
      %494 = vmatpush.msra.mxu0 0.0
      %495 = vmatpush.msra.mxu0 0.0
      %496 = vmatpush.msra.mxu0 0.0
      %497 = vmatpush.msra.mxu0 0.0
      %498 = vmatpush.msra.mxu0 0.0
      %499 = vmatpush.msra.mxu0 %v454
      %500 = vmatmul.f32.gmra.mxu0 %v462
      %v501 = vpop.f32.mrf.mxu0
      %v502 = vadd.f32 0.0, %v501
      %503 = vdwg.mxu0
      %504 = vmatpush.msra.mxu0 0.0
      %505 = vmatpush.msra.mxu0 0.0
      %506 = vmatpush.msra.mxu0 0.0
      %507 = vmatpush.msra.mxu0 0.0
      %508 = vmatpush.msra.mxu0 0.0
      %509 = vmatpush.msra.mxu0 0.0
      %510 = vmatpush.msra.mxu0 0.0
      %511 = vmatpush.msra.mxu0 0.0
      %512 = vmatpush.msra.mxu0 0.0
      %513 = vmatpush.msra.mxu0 0.0
      %514 = vmatpush.msra.mxu0 0.0
      %515 = vmatpush.msra.mxu0 0.0
      %516 = vmatpush.msra.mxu0 0.0
      %517 = vmatpush.msra.mxu0 0.0
      %518 = vmatpush.msra.mxu0 0.0
      %519 = vmatpush.msra.mxu0 %v455
      %520 = vmatmul.f32.gmra.mxu0 %v462
      %v521 = vpop.f32.mrf.mxu0
      %v522 = vadd.f32 0.0, %v521
      %523 = vdwg.mxu0
      %524 = vmatpush.msra.mxu0 0.0
      %525 = vmatpush.msra.mxu0 0.0
      %526 = vmatpush.msra.mxu0 0.0
      %527 = vmatpush.msra.mxu0 0.0
      %528 = vmatpush.msra.mxu0 0.0
      %529 = vmatpush.msra.mxu0 0.0
      %530 = vmatpush.msra.mxu0 0.0
      %531 = vmatpush.msra.mxu0 0.0
      %532 = vmatpush.msra.mxu0 0.0
      %533 = vmatpush.msra.mxu0 0.0
      %534 = vmatpush.msra.mxu0 0.0
      %535 = vmatpush.msra.mxu0 0.0
      %536 = vmatpush.msra.mxu0 0.0
      %537 = vmatpush.msra.mxu0 0.0
      %538 = vmatpush.msra.mxu0 0.0
      %539 = vmatpush.msra.mxu0 %v456
      %540 = vmatmul.f32.gmra.mxu0 %v462
      %v541 = vpop.f32.mrf.mxu0
      %v542 = vadd.f32 0.0, %v541
      %543 = vdwg.mxu0
      %v544 = vadd.f32 %v380, %v482
      %v545 = vadd.f32 %v400, %v502
      %v546 = vadd.f32 %v420, %v522
      %v547 = vadd.f32 %v440, %v542
      %548 = vrot.lane.b32.xlu0 %v218, 118
      %v549 = vpop.permute.xlu0 %548
      %550 = vrot.lane.b32.xlu0 %v219, 118
      %v551 = vpop.permute.xlu0 %550
      %552 = vrot.lane.b32.xlu0 %v220, 118
      %v553 = vpop.permute.xlu0 %552
      %554 = vrot.lane.b32.xlu0 %v221, 118
      %v555 = vpop.permute.xlu0 %554
      %556 = vrot.lane.b32.xlu0 %v222, 118
      %v557 = vpop.permute.xlu0 %556
      %vm558 = vcmask 965632
      %v559 = vsel %vm558, %v549, %v551
      %v560 = vsel %vm558, %v551, %v553
      %v561 = vsel %vm558, %v553, %v555
      %v562 = vsel %vm558, %v555, %v557
      %v568 = vsel %vm275, %v227, 0
      %570 = vmatpush.msra.mxu0 0.0
      %571 = vmatpush.msra.mxu0 0.0
      %572 = vmatpush.msra.mxu0 0.0
      %573 = vmatpush.msra.mxu0 0.0
      %574 = vmatpush.msra.mxu0 0.0
      %575 = vmatpush.msra.mxu0 0.0
      %576 = vmatpush.msra.mxu0 0.0
      %577 = vmatpush.msra.mxu0 0.0
      %578 = vmatpush.msra.mxu0 0.0
      %579 = vmatpush.msra.mxu0 0.0
      %580 = vmatpush.msra.mxu0 0.0
      %581 = vmatpush.msra.mxu0 0.0
      %582 = vmatpush.msra.mxu0 0.0
      %583 = vmatpush.msra.mxu0 0.0
      %584 = vmatpush.msra.mxu0 0.0
      %585 = vmatpush.msra.mxu0 %v559
      %586 = vmatmul.f32.gmra.mxu0 %v568
      %v587 = vpop.f32.mrf.mxu0
      %v588 = vadd.f32 0.0, %v587
      %589 = vdwg.mxu0
      %590 = vmatpush.msra.mxu0 0.0
      %591 = vmatpush.msra.mxu0 0.0
      %592 = vmatpush.msra.mxu0 0.0
      %593 = vmatpush.msra.mxu0 0.0
      %594 = vmatpush.msra.mxu0 0.0
      %595 = vmatpush.msra.mxu0 0.0
      %596 = vmatpush.msra.mxu0 0.0
      %597 = vmatpush.msra.mxu0 0.0
      %598 = vmatpush.msra.mxu0 0.0
      %599 = vmatpush.msra.mxu0 0.0
      %600 = vmatpush.msra.mxu0 0.0
      %601 = vmatpush.msra.mxu0 0.0
      %602 = vmatpush.msra.mxu0 0.0
      %603 = vmatpush.msra.mxu0 0.0
      %604 = vmatpush.msra.mxu0 0.0
      %605 = vmatpush.msra.mxu0 %v560
      %606 = vmatmul.f32.gmra.mxu0 %v568
      %v607 = vpop.f32.mrf.mxu0
      %v608 = vadd.f32 0.0, %v607
      %609 = vdwg.mxu0
      %610 = vmatpush.msra.mxu0 0.0
      %611 = vmatpush.msra.mxu0 0.0
      %612 = vmatpush.msra.mxu0 0.0
      %613 = vmatpush.msra.mxu0 0.0
      %614 = vmatpush.msra.mxu0 0.0
      %615 = vmatpush.msra.mxu0 0.0
      %616 = vmatpush.msra.mxu0 0.0
      %617 = vmatpush.msra.mxu0 0.0
      %618 = vmatpush.msra.mxu0 0.0
      %619 = vmatpush.msra.mxu0 0.0
      %620 = vmatpush.msra.mxu0 0.0
      %621 = vmatpush.msra.mxu0 0.0
      %622 = vmatpush.msra.mxu0 0.0
      %623 = vmatpush.msra.mxu0 0.0
      %624 = vmatpush.msra.mxu0 0.0
      %625 = vmatpush.msra.mxu0 %v561
      %626 = vmatmul.f32.gmra.mxu0 %v568
      %v627 = vpop.f32.mrf.mxu0
      %v628 = vadd.f32 0.0, %v627
      %629 = vdwg.mxu0
      %630 = vmatpush.msra.mxu0 0.0
      %631 = vmatpush.msra.mxu0 0.0
      %632 = vmatpush.msra.mxu0 0.0
      %633 = vmatpush.msra.mxu0 0.0
      %634 = vmatpush.msra.mxu0 0.0
      %635 = vmatpush.msra.mxu0 0.0
      %636 = vmatpush.msra.mxu0 0.0
      %637 = vmatpush.msra.mxu0 0.0
      %638 = vmatpush.msra.mxu0 0.0
      %639 = vmatpush.msra.mxu0 0.0
      %640 = vmatpush.msra.mxu0 0.0
      %641 = vmatpush.msra.mxu0 0.0
      %642 = vmatpush.msra.mxu0 0.0
      %643 = vmatpush.msra.mxu0 0.0
      %644 = vmatpush.msra.mxu0 0.0
      %645 = vmatpush.msra.mxu0 %v562
      %646 = vmatmul.f32.gmra.mxu0 %v568
      %v647 = vpop.f32.mrf.mxu0
      %v648 = vadd.f32 0.0, %v647
      %649 = vdwg.mxu0
      %v650 = vadd.f32 %v544, %v588
      %v651 = vadd.f32 %v545, %v608
      %v652 = vadd.f32 %v546, %v628
      %v653 = vadd.f32 %v547, %v648
      %654 = vrot.lane.b32.xlu0 %v218, 117
      %v655 = vpop.permute.xlu0 %654
      %656 = vrot.lane.b32.xlu0 %v219, 117
      %v657 = vpop.permute.xlu0 %656
      %658 = vrot.lane.b32.xlu0 %v220, 117
      %v659 = vpop.permute.xlu0 %658
      %660 = vrot.lane.b32.xlu0 %v221, 117
      %v661 = vpop.permute.xlu0 %660
      %662 = vrot.lane.b32.xlu0 %v222, 117
      %v663 = vpop.permute.xlu0 %662
      %vm664 = vcmask 957440
      %v665 = vsel %vm664, %v655, %v657
      %v666 = vsel %vm664, %v657, %v659
      %v667 = vsel %vm664, %v659, %v661
      %v668 = vsel %vm664, %v661, %v663
      %v674 = vsel %vm275, %v228, 0
      %676 = vmatpush.msra.mxu0 0.0
      %677 = vmatpush.msra.mxu0 0.0
      %678 = vmatpush.msra.mxu0 0.0
      %679 = vmatpush.msra.mxu0 0.0
      %680 = vmatpush.msra.mxu0 0.0
      %681 = vmatpush.msra.mxu0 0.0
      %682 = vmatpush.msra.mxu0 0.0
      %683 = vmatpush.msra.mxu0 0.0
      %684 = vmatpush.msra.mxu0 0.0
      %685 = vmatpush.msra.mxu0 0.0
      %686 = vmatpush.msra.mxu0 0.0
      %687 = vmatpush.msra.mxu0 0.0
      %688 = vmatpush.msra.mxu0 0.0
      %689 = vmatpush.msra.mxu0 0.0
      %690 = vmatpush.msra.mxu0 0.0
      %691 = vmatpush.msra.mxu0 %v665
      %692 = vmatmul.f32.gmra.mxu0 %v674
      %v693 = vpop.f32.mrf.mxu0
      %v694 = vadd.f32 0.0, %v693
      %695 = vdwg.mxu0
      %696 = vmatpush.msra.mxu0 0.0
      %697 = vmatpush.msra.mxu0 0.0
      %698 = vmatpush.msra.mxu0 0.0
      %699 = vmatpush.msra.mxu0 0.0
      %700 = vmatpush.msra.mxu0 0.0
      %701 = vmatpush.msra.mxu0 0.0
      %702 = vmatpush.msra.mxu0 0.0
      %703 = vmatpush.msra.mxu0 0.0
      %704 = vmatpush.msra.mxu0 0.0
      %705 = vmatpush.msra.mxu0 0.0
      %706 = vmatpush.msra.mxu0 0.0
      %707 = vmatpush.msra.mxu0 0.0
      %708 = vmatpush.msra.mxu0 0.0
      %709 = vmatpush.msra.mxu0 0.0
      %710 = vmatpush.msra.mxu0 0.0
      %711 = vmatpush.msra.mxu0 %v666
      %712 = vmatmul.f32.gmra.mxu0 %v674
      %v713 = vpop.f32.mrf.mxu0
      %v714 = vadd.f32 0.0, %v713
      %715 = vdwg.mxu0
      %716 = vmatpush.msra.mxu0 0.0
      %717 = vmatpush.msra.mxu0 0.0
      %718 = vmatpush.msra.mxu0 0.0
      %719 = vmatpush.msra.mxu0 0.0
      %720 = vmatpush.msra.mxu0 0.0
      %721 = vmatpush.msra.mxu0 0.0
      %722 = vmatpush.msra.mxu0 0.0
      %723 = vmatpush.msra.mxu0 0.0
      %724 = vmatpush.msra.mxu0 0.0
      %725 = vmatpush.msra.mxu0 0.0
      %726 = vmatpush.msra.mxu0 0.0
      %727 = vmatpush.msra.mxu0 0.0
      %728 = vmatpush.msra.mxu0 0.0
      %729 = vmatpush.msra.mxu0 0.0
      %730 = vmatpush.msra.mxu0 0.0
      %731 = vmatpush.msra.mxu0 %v667
      %732 = vmatmul.f32.gmra.mxu0 %v674
      %v733 = vpop.f32.mrf.mxu0
      %v734 = vadd.f32 0.0, %v733
      %735 = vdwg.mxu0
      %736 = vmatpush.msra.mxu0 0.0
      %737 = vmatpush.msra.mxu0 0.0
      %738 = vmatpush.msra.mxu0 0.0
      %739 = vmatpush.msra.mxu0 0.0
      %740 = vmatpush.msra.mxu0 0.0
      %741 = vmatpush.msra.mxu0 0.0
      %742 = vmatpush.msra.mxu0 0.0
      %743 = vmatpush.msra.mxu0 0.0
      %744 = vmatpush.msra.mxu0 0.0
      %745 = vmatpush.msra.mxu0 0.0
      %746 = vmatpush.msra.mxu0 0.0
      %747 = vmatpush.msra.mxu0 0.0
      %748 = vmatpush.msra.mxu0 0.0
      %749 = vmatpush.msra.mxu0 0.0
      %750 = vmatpush.msra.mxu0 0.0
      %751 = vmatpush.msra.mxu0 %v668
      %752 = vmatmul.f32.gmra.mxu0 %v674
      %v753 = vpop.f32.mrf.mxu0
      %v754 = vadd.f32 0.0, %v753
      %755 = vdwg.mxu0
      %v756 = vadd.f32 %v650, %v694
      %v757 = vadd.f32 %v651, %v714
      %v758 = vadd.f32 %v652, %v734
      %v759 = vadd.f32 %v653, %v754
      %760 = vrot.lane.b32.xlu0 %v218, 116
      %v761 = vpop.permute.xlu0 %760
      %762 = vrot.lane.b32.xlu0 %v219, 116
      %v763 = vpop.permute.xlu0 %762
      %764 = vrot.lane.b32.xlu0 %v220, 116
      %v765 = vpop.permute.xlu0 %764
      %766 = vrot.lane.b32.xlu0 %v221, 116
      %v767 = vpop.permute.xlu0 %766
      %768 = vrot.lane.b32.xlu0 %v222, 116
      %v769 = vpop.permute.xlu0 %768
      %vm770 = vcmask 949248
      %v771 = vsel %vm770, %v761, %v763
      %v772 = vsel %vm770, %v763, %v765
      %v773 = vsel %vm770, %v765, %v767
      %v774 = vsel %vm770, %v767, %v769
      %v780 = vsel %vm275, %v229, 0
      %782 = vmatpush.msra.mxu0 0.0
      %783 = vmatpush.msra.mxu0 0.0
      %784 = vmatpush.msra.mxu0 0.0
      %785 = vmatpush.msra.mxu0 0.0
      %786 = vmatpush.msra.mxu0 0.0
      %787 = vmatpush.msra.mxu0 0.0
      %788 = vmatpush.msra.mxu0 0.0
      %789 = vmatpush.msra.mxu0 0.0
      %790 = vmatpush.msra.mxu0 0.0
      %791 = vmatpush.msra.mxu0 0.0
      %792 = vmatpush.msra.mxu0 0.0
      %793 = vmatpush.msra.mxu0 0.0
      %794 = vmatpush.msra.mxu0 0.0
      %795 = vmatpush.msra.mxu0 0.0
      %796 = vmatpush.msra.mxu0 0.0
      %797 = vmatpush.msra.mxu0 %v771
      %798 = vmatmul.f32.gmra.mxu0 %v780
      %v799 = vpop.f32.mrf.mxu0
      %v800 = vadd.f32 0.0, %v799
      %801 = vdwg.mxu0
      %802 = vmatpush.msra.mxu0 0.0
      %803 = vmatpush.msra.mxu0 0.0
      %804 = vmatpush.msra.mxu0 0.0
      %805 = vmatpush.msra.mxu0 0.0
      %806 = vmatpush.msra.mxu0 0.0
      %807 = vmatpush.msra.mxu0 0.0
      %808 = vmatpush.msra.mxu0 0.0
      %809 = vmatpush.msra.mxu0 0.0
      %810 = vmatpush.msra.mxu0 0.0
      %811 = vmatpush.msra.mxu0 0.0
      %812 = vmatpush.msra.mxu0 0.0
      %813 = vmatpush.msra.mxu0 0.0
      %814 = vmatpush.msra.mxu0 0.0
      %815 = vmatpush.msra.mxu0 0.0
      %816 = vmatpush.msra.mxu0 0.0
      %817 = vmatpush.msra.mxu0 %v772
      %818 = vmatmul.f32.gmra.mxu0 %v780
      %v819 = vpop.f32.mrf.mxu0
      %v820 = vadd.f32 0.0, %v819
      %821 = vdwg.mxu0
      %822 = vmatpush.msra.mxu0 0.0
      %823 = vmatpush.msra.mxu0 0.0
      %824 = vmatpush.msra.mxu0 0.0
      %825 = vmatpush.msra.mxu0 0.0
      %826 = vmatpush.msra.mxu0 0.0
      %827 = vmatpush.msra.mxu0 0.0
      %828 = vmatpush.msra.mxu0 0.0
      %829 = vmatpush.msra.mxu0 0.0
      %830 = vmatpush.msra.mxu0 0.0
      %831 = vmatpush.msra.mxu0 0.0
      %832 = vmatpush.msra.mxu0 0.0
      %833 = vmatpush.msra.mxu0 0.0
      %834 = vmatpush.msra.mxu0 0.0
      %835 = vmatpush.msra.mxu0 0.0
      %836 = vmatpush.msra.mxu0 0.0
      %837 = vmatpush.msra.mxu0 %v773
      %838 = vmatmul.f32.gmra.mxu0 %v780
      %v839 = vpop.f32.mrf.mxu0
      %v840 = vadd.f32 0.0, %v839
      %841 = vdwg.mxu0
      %842 = vmatpush.msra.mxu0 0.0
      %843 = vmatpush.msra.mxu0 0.0
      %844 = vmatpush.msra.mxu0 0.0
      %845 = vmatpush.msra.mxu0 0.0
      %846 = vmatpush.msra.mxu0 0.0
      %847 = vmatpush.msra.mxu0 0.0
      %848 = vmatpush.msra.mxu0 0.0
      %849 = vmatpush.msra.mxu0 0.0
      %850 = vmatpush.msra.mxu0 0.0
      %851 = vmatpush.msra.mxu0 0.0
      %852 = vmatpush.msra.mxu0 0.0
      %853 = vmatpush.msra.mxu0 0.0
      %854 = vmatpush.msra.mxu0 0.0
      %855 = vmatpush.msra.mxu0 0.0
      %856 = vmatpush.msra.mxu0 0.0
      %857 = vmatpush.msra.mxu0 %v774
      %858 = vmatmul.f32.gmra.mxu0 %v780
      %v859 = vpop.f32.mrf.mxu0
      %v860 = vadd.f32 0.0, %v859
      %861 = vdwg.mxu0
      %v862 = vadd.f32 %v756, %v800
      %v863 = vadd.f32 %v757, %v820
      %v864 = vadd.f32 %v758, %v840
      %v865 = vadd.f32 %v759, %v860
      %866 = vrot.lane.b32.xlu0 %v218, 108
      %v867 = vpop.permute.xlu0 %866
      %868 = vrot.lane.b32.xlu0 %v219, 108
      %v869 = vpop.permute.xlu0 %868
      %870 = vrot.lane.b32.xlu0 %v220, 108
      %v871 = vpop.permute.xlu0 %870
      %872 = vrot.lane.b32.xlu0 %v221, 108
      %v873 = vpop.permute.xlu0 %872
      %874 = vrot.lane.b32.xlu0 %v222, 108
      %v875 = vpop.permute.xlu0 %874
      %vm876 = vcmask 883712
      %v877 = vsel %vm876, %v867, %v869
      %v878 = vsel %vm876, %v869, %v871
      %v879 = vsel %vm876, %v871, %v873
      %v880 = vsel %vm876, %v873, %v875
      %v886 = vsel %vm275, %v230, 0
      %888 = vmatpush.msra.mxu0 0.0
      %889 = vmatpush.msra.mxu0 0.0
      %890 = vmatpush.msra.mxu0 0.0
      %891 = vmatpush.msra.mxu0 0.0
      %892 = vmatpush.msra.mxu0 0.0
      %893 = vmatpush.msra.mxu0 0.0
      %894 = vmatpush.msra.mxu0 0.0
      %895 = vmatpush.msra.mxu0 0.0
      %896 = vmatpush.msra.mxu0 0.0
      %897 = vmatpush.msra.mxu0 0.0
      %898 = vmatpush.msra.mxu0 0.0
      %899 = vmatpush.msra.mxu0 0.0
      %900 = vmatpush.msra.mxu0 0.0
      %901 = vmatpush.msra.mxu0 0.0
      %902 = vmatpush.msra.mxu0 0.0
      %903 = vmatpush.msra.mxu0 %v877
      %904 = vmatmul.f32.gmra.mxu0 %v886
      %v905 = vpop.f32.mrf.mxu0
      %v906 = vadd.f32 0.0, %v905
      %907 = vdwg.mxu0
      %908 = vmatpush.msra.mxu0 0.0
      %909 = vmatpush.msra.mxu0 0.0
      %910 = vmatpush.msra.mxu0 0.0
      %911 = vmatpush.msra.mxu0 0.0
      %912 = vmatpush.msra.mxu0 0.0
      %913 = vmatpush.msra.mxu0 0.0
      %914 = vmatpush.msra.mxu0 0.0
      %915 = vmatpush.msra.mxu0 0.0
      %916 = vmatpush.msra.mxu0 0.0
      %917 = vmatpush.msra.mxu0 0.0
      %918 = vmatpush.msra.mxu0 0.0
      %919 = vmatpush.msra.mxu0 0.0
      %920 = vmatpush.msra.mxu0 0.0
      %921 = vmatpush.msra.mxu0 0.0
      %922 = vmatpush.msra.mxu0 0.0
      %923 = vmatpush.msra.mxu0 %v878
      %924 = vmatmul.f32.gmra.mxu0 %v886
      %v925 = vpop.f32.mrf.mxu0
      %v926 = vadd.f32 0.0, %v925
      %927 = vdwg.mxu0
      %928 = vmatpush.msra.mxu0 0.0
      %929 = vmatpush.msra.mxu0 0.0
      %930 = vmatpush.msra.mxu0 0.0
      %931 = vmatpush.msra.mxu0 0.0
      %932 = vmatpush.msra.mxu0 0.0
      %933 = vmatpush.msra.mxu0 0.0
      %934 = vmatpush.msra.mxu0 0.0
      %935 = vmatpush.msra.mxu0 0.0
      %936 = vmatpush.msra.mxu0 0.0
      %937 = vmatpush.msra.mxu0 0.0
      %938 = vmatpush.msra.mxu0 0.0
      %939 = vmatpush.msra.mxu0 0.0
      %940 = vmatpush.msra.mxu0 0.0
      %941 = vmatpush.msra.mxu0 0.0
      %942 = vmatpush.msra.mxu0 0.0
      %943 = vmatpush.msra.mxu0 %v879
      %944 = vmatmul.f32.gmra.mxu0 %v886
      %v945 = vpop.f32.mrf.mxu0
      %v946 = vadd.f32 0.0, %v945
      %947 = vdwg.mxu0
      %948 = vmatpush.msra.mxu0 0.0
      %949 = vmatpush.msra.mxu0 0.0
      %950 = vmatpush.msra.mxu0 0.0
      %951 = vmatpush.msra.mxu0 0.0
      %952 = vmatpush.msra.mxu0 0.0
      %953 = vmatpush.msra.mxu0 0.0
      %954 = vmatpush.msra.mxu0 0.0
      %955 = vmatpush.msra.mxu0 0.0
      %956 = vmatpush.msra.mxu0 0.0
      %957 = vmatpush.msra.mxu0 0.0
      %958 = vmatpush.msra.mxu0 0.0
      %959 = vmatpush.msra.mxu0 0.0
      %960 = vmatpush.msra.mxu0 0.0
      %961 = vmatpush.msra.mxu0 0.0
      %962 = vmatpush.msra.mxu0 0.0
      %963 = vmatpush.msra.mxu0 %v880
      %964 = vmatmul.f32.gmra.mxu0 %v886
      %v965 = vpop.f32.mrf.mxu0
      %v966 = vadd.f32 0.0, %v965
      %967 = vdwg.mxu0
      %v968 = vadd.f32 %v862, %v906
      %v969 = vadd.f32 %v863, %v926
      %v970 = vadd.f32 %v864, %v946
      %v971 = vadd.f32 %v865, %v966
      %972 = vrot.lane.b32.xlu0 %v218, 107
      %v973 = vpop.permute.xlu0 %972
      %974 = vrot.lane.b32.xlu0 %v219, 107
      %v975 = vpop.permute.xlu0 %974
      %976 = vrot.lane.b32.xlu0 %v220, 107
      %v977 = vpop.permute.xlu0 %976
      %978 = vrot.lane.b32.xlu0 %v221, 107
      %v979 = vpop.permute.xlu0 %978
      %980 = vrot.lane.b32.xlu0 %v222, 107
      %v981 = vpop.permute.xlu0 %980
      %vm982 = vcmask 875520
      %v983 = vsel %vm982, %v973, %v975
      %v984 = vsel %vm982, %v975, %v977
      %v985 = vsel %vm982, %v977, %v979
      %v986 = vsel %vm982, %v979, %v981
      %v992 = vsel %vm275, %v231, 0
      %994 = vmatpush.msra.mxu0 0.0
      %995 = vmatpush.msra.mxu0 0.0
      %996 = vmatpush.msra.mxu0 0.0
      %997 = vmatpush.msra.mxu0 0.0
      %998 = vmatpush.msra.mxu0 0.0
      %999 = vmatpush.msra.mxu0 0.0
      %1000 = vmatpush.msra.mxu0 0.0
      %1001 = vmatpush.msra.mxu0 0.0
      %1002 = vmatpush.msra.mxu0 0.0
      %1003 = vmatpush.msra.mxu0 0.0
      %1004 = vmatpush.msra.mxu0 0.0
      %1005 = vmatpush.msra.mxu0 0.0
      %1006 = vmatpush.msra.mxu0 0.0
      %1007 = vmatpush.msra.mxu0 0.0
      %1008 = vmatpush.msra.mxu0 0.0
      %1009 = vmatpush.msra.mxu0 %v983
      %1010 = vmatmul.f32.gmra.mxu0 %v992
      %v1011 = vpop.f32.mrf.mxu0
      %v1012 = vadd.f32 0.0, %v1011
      %1013 = vdwg.mxu0
      %1014 = vmatpush.msra.mxu0 0.0
      %1015 = vmatpush.msra.mxu0 0.0
      %1016 = vmatpush.msra.mxu0 0.0
      %1017 = vmatpush.msra.mxu0 0.0
      %1018 = vmatpush.msra.mxu0 0.0
      %1019 = vmatpush.msra.mxu0 0.0
      %1020 = vmatpush.msra.mxu0 0.0
      %1021 = vmatpush.msra.mxu0 0.0
      %1022 = vmatpush.msra.mxu0 0.0
      %1023 = vmatpush.msra.mxu0 0.0
      %1024 = vmatpush.msra.mxu0 0.0
      %1025 = vmatpush.msra.mxu0 0.0
      %1026 = vmatpush.msra.mxu0 0.0
      %1027 = vmatpush.msra.mxu0 0.0
      %1028 = vmatpush.msra.mxu0 0.0
      %1029 = vmatpush.msra.mxu0 %v984
      %1030 = vmatmul.f32.gmra.mxu0 %v992
      %v1031 = vpop.f32.mrf.mxu0
      %v1032 = vadd.f32 0.0, %v1031
      %1033 = vdwg.mxu0
      %1034 = vmatpush.msra.mxu0 0.0
      %1035 = vmatpush.msra.mxu0 0.0
      %1036 = vmatpush.msra.mxu0 0.0
      %1037 = vmatpush.msra.mxu0 0.0
      %1038 = vmatpush.msra.mxu0 0.0
      %1039 = vmatpush.msra.mxu0 0.0
      %1040 = vmatpush.msra.mxu0 0.0
      %1041 = vmatpush.msra.mxu0 0.0
      %1042 = vmatpush.msra.mxu0 0.0
      %1043 = vmatpush.msra.mxu0 0.0
      %1044 = vmatpush.msra.mxu0 0.0
      %1045 = vmatpush.msra.mxu0 0.0
      %1046 = vmatpush.msra.mxu0 0.0
      %1047 = vmatpush.msra.mxu0 0.0
      %1048 = vmatpush.msra.mxu0 0.0
      %1049 = vmatpush.msra.mxu0 %v985
      %1050 = vmatmul.f32.gmra.mxu0 %v992
      %v1051 = vpop.f32.mrf.mxu0
      %v1052 = vadd.f32 0.0, %v1051
      %1053 = vdwg.mxu0
      %1054 = vmatpush.msra.mxu0 0.0
      %1055 = vmatpush.msra.mxu0 0.0
      %1056 = vmatpush.msra.mxu0 0.0
      %1057 = vmatpush.msra.mxu0 0.0
      %1058 = vmatpush.msra.mxu0 0.0
      %1059 = vmatpush.msra.mxu0 0.0
      %1060 = vmatpush.msra.mxu0 0.0
      %1061 = vmatpush.msra.mxu0 0.0
      %1062 = vmatpush.msra.mxu0 0.0
      %1063 = vmatpush.msra.mxu0 0.0
      %1064 = vmatpush.msra.mxu0 0.0
      %1065 = vmatpush.msra.mxu0 0.0
      %1066 = vmatpush.msra.mxu0 0.0
      %1067 = vmatpush.msra.mxu0 0.0
      %1068 = vmatpush.msra.mxu0 0.0
      %1069 = vmatpush.msra.mxu0 %v986
      %1070 = vmatmul.f32.gmra.mxu0 %v992
      %v1071 = vpop.f32.mrf.mxu0
      %v1072 = vadd.f32 0.0, %v1071
      %1073 = vdwg.mxu0
      %v1074 = vadd.f32 %v968, %v1012
      %v1075 = vadd.f32 %v969, %v1032
      %v1076 = vadd.f32 %v970, %v1052
      %v1077 = vadd.f32 %v971, %v1072
      %1078 = vrot.lane.b32.xlu0 %v218, 106
      %v1079 = vpop.permute.xlu0 %1078
      %1080 = vrot.lane.b32.xlu0 %v219, 106
      %v1081 = vpop.permute.xlu0 %1080
      %1082 = vrot.lane.b32.xlu0 %v220, 106
      %v1083 = vpop.permute.xlu0 %1082
      %1084 = vrot.lane.b32.xlu0 %v221, 106
      %v1085 = vpop.permute.xlu0 %1084
      %1086 = vrot.lane.b32.xlu0 %v222, 106
      %v1087 = vpop.permute.xlu0 %1086
      %vm1088 = vcmask 867328
      %v1089 = vsel %vm1088, %v1079, %v1081
      %v1090 = vsel %vm1088, %v1081, %v1083
      %v1091 = vsel %vm1088, %v1083, %v1085
      %v1092 = vsel %vm1088, %v1085, %v1087
      %v1098 = vsel %vm275, %v232, 0
      %1100 = vmatpush.msra.mxu0 0.0
      %1101 = vmatpush.msra.mxu0 0.0
      %1102 = vmatpush.msra.mxu0 0.0
      %1103 = vmatpush.msra.mxu0 0.0
      %1104 = vmatpush.msra.mxu0 0.0
      %1105 = vmatpush.msra.mxu0 0.0
      %1106 = vmatpush.msra.mxu0 0.0
      %1107 = vmatpush.msra.mxu0 0.0
      %1108 = vmatpush.msra.mxu0 0.0
      %1109 = vmatpush.msra.mxu0 0.0
      %1110 = vmatpush.msra.mxu0 0.0
      %1111 = vmatpush.msra.mxu0 0.0
      %1112 = vmatpush.msra.mxu0 0.0
      %1113 = vmatpush.msra.mxu0 0.0
      %1114 = vmatpush.msra.mxu0 0.0
      %1115 = vmatpush.msra.mxu0 %v1089
      %1116 = vmatmul.f32.gmra.mxu0 %v1098
      %v1117 = vpop.f32.mrf.mxu0
      %v1118 = vadd.f32 0.0, %v1117
      %1119 = vdwg.mxu0
      %1120 = vmatpush.msra.mxu0 0.0
      %1121 = vmatpush.msra.mxu0 0.0
      %1122 = vmatpush.msra.mxu0 0.0
      %1123 = vmatpush.msra.mxu0 0.0
      %1124 = vmatpush.msra.mxu0 0.0
      %1125 = vmatpush.msra.mxu0 0.0
      %1126 = vmatpush.msra.mxu0 0.0
      %1127 = vmatpush.msra.mxu0 0.0
      %1128 = vmatpush.msra.mxu0 0.0
      %1129 = vmatpush.msra.mxu0 0.0
      %1130 = vmatpush.msra.mxu0 0.0
      %1131 = vmatpush.msra.mxu0 0.0
      %1132 = vmatpush.msra.mxu0 0.0
      %1133 = vmatpush.msra.mxu0 0.0
      %1134 = vmatpush.msra.mxu0 0.0
      %1135 = vmatpush.msra.mxu0 %v1090
      %1136 = vmatmul.f32.gmra.mxu0 %v1098
      %v1137 = vpop.f32.mrf.mxu0
      %v1138 = vadd.f32 0.0, %v1137
      %1139 = vdwg.mxu0
      %1140 = vmatpush.msra.mxu0 0.0
      %1141 = vmatpush.msra.mxu0 0.0
      %1142 = vmatpush.msra.mxu0 0.0
      %1143 = vmatpush.msra.mxu0 0.0
      %1144 = vmatpush.msra.mxu0 0.0
      %1145 = vmatpush.msra.mxu0 0.0
      %1146 = vmatpush.msra.mxu0 0.0
      %1147 = vmatpush.msra.mxu0 0.0
      %1148 = vmatpush.msra.mxu0 0.0
      %1149 = vmatpush.msra.mxu0 0.0
      %1150 = vmatpush.msra.mxu0 0.0
      %1151 = vmatpush.msra.mxu0 0.0
      %1152 = vmatpush.msra.mxu0 0.0
      %1153 = vmatpush.msra.mxu0 0.0
      %1154 = vmatpush.msra.mxu0 0.0
      %1155 = vmatpush.msra.mxu0 %v1091
      %1156 = vmatmul.f32.gmra.mxu0 %v1098
      %v1157 = vpop.f32.mrf.mxu0
      %v1158 = vadd.f32 0.0, %v1157
      %1159 = vdwg.mxu0
      %1160 = vmatpush.msra.mxu0 0.0
      %1161 = vmatpush.msra.mxu0 0.0
      %1162 = vmatpush.msra.mxu0 0.0
      %1163 = vmatpush.msra.mxu0 0.0
      %1164 = vmatpush.msra.mxu0 0.0
      %1165 = vmatpush.msra.mxu0 0.0
      %1166 = vmatpush.msra.mxu0 0.0
      %1167 = vmatpush.msra.mxu0 0.0
      %1168 = vmatpush.msra.mxu0 0.0
      %1169 = vmatpush.msra.mxu0 0.0
      %1170 = vmatpush.msra.mxu0 0.0
      %1171 = vmatpush.msra.mxu0 0.0
      %1172 = vmatpush.msra.mxu0 0.0
      %1173 = vmatpush.msra.mxu0 0.0
      %1174 = vmatpush.msra.mxu0 0.0
      %1175 = vmatpush.msra.mxu0 %v1092
      %1176 = vmatmul.f32.gmra.mxu0 %v1098
      %v1177 = vpop.f32.mrf.mxu0
      %v1178 = vadd.f32 0.0, %v1177
      %1179 = vdwg.mxu0
      %v1180 = vadd.f32 %v1074, %v1118
      %v1181 = vadd.f32 %v1075, %v1138
      %v1182 = vadd.f32 %v1076, %v1158
      %v1183 = vadd.f32 %v1077, %v1178
      %1184 = vrot.lane.b32.xlu0 %v218, 28
      %v1185 = vpop.permute.xlu0 %1184
      %1186 = vrot.lane.b32.xlu0 %v219, 28
      %v1187 = vpop.permute.xlu0 %1186
      %1188 = vrot.lane.b32.xlu0 %v220, 28
      %v1189 = vpop.permute.xlu0 %1188
      %1190 = vrot.lane.b32.xlu0 %v221, 28
      %v1191 = vpop.permute.xlu0 %1190
      %1192 = vrot.lane.b32.xlu0 %v222, 28
      %v1193 = vpop.permute.xlu0 %1192
      %vm1194 = vcmask 228352
      %v1195 = vsel %vm1194, %v1185, %v1187
      %v1196 = vsel %vm1194, %v1187, %v1189
      %v1197 = vsel %vm1194, %v1189, %v1191
      %v1198 = vsel %vm1194, %v1191, %v1193
      %v1204 = vsel %vm275, %v233, 0
      %1206 = vmatpush.msra.mxu0 0.0
      %1207 = vmatpush.msra.mxu0 0.0
      %1208 = vmatpush.msra.mxu0 0.0
      %1209 = vmatpush.msra.mxu0 0.0
      %1210 = vmatpush.msra.mxu0 0.0
      %1211 = vmatpush.msra.mxu0 0.0
      %1212 = vmatpush.msra.mxu0 0.0
      %1213 = vmatpush.msra.mxu0 0.0
      %1214 = vmatpush.msra.mxu0 0.0
      %1215 = vmatpush.msra.mxu0 0.0
      %1216 = vmatpush.msra.mxu0 0.0
      %1217 = vmatpush.msra.mxu0 0.0
      %1218 = vmatpush.msra.mxu0 0.0
      %1219 = vmatpush.msra.mxu0 0.0
      %1220 = vmatpush.msra.mxu0 0.0
      %1221 = vmatpush.msra.mxu0 %v1195
      %1222 = vmatmul.f32.gmra.mxu0 %v1204
      %v1223 = vpop.f32.mrf.mxu0
      %v1224 = vadd.f32 0.0, %v1223
      %1225 = vdwg.mxu0
      %1226 = vmatpush.msra.mxu0 0.0
      %1227 = vmatpush.msra.mxu0 0.0
      %1228 = vmatpush.msra.mxu0 0.0
      %1229 = vmatpush.msra.mxu0 0.0
      %1230 = vmatpush.msra.mxu0 0.0
      %1231 = vmatpush.msra.mxu0 0.0
      %1232 = vmatpush.msra.mxu0 0.0
      %1233 = vmatpush.msra.mxu0 0.0
      %1234 = vmatpush.msra.mxu0 0.0
      %1235 = vmatpush.msra.mxu0 0.0
      %1236 = vmatpush.msra.mxu0 0.0
      %1237 = vmatpush.msra.mxu0 0.0
      %1238 = vmatpush.msra.mxu0 0.0
      %1239 = vmatpush.msra.mxu0 0.0
      %1240 = vmatpush.msra.mxu0 0.0
      %1241 = vmatpush.msra.mxu0 %v1196
      %1242 = vmatmul.f32.gmra.mxu0 %v1204
      %v1243 = vpop.f32.mrf.mxu0
      %v1244 = vadd.f32 0.0, %v1243
      %1245 = vdwg.mxu0
      %1246 = vmatpush.msra.mxu0 0.0
      %1247 = vmatpush.msra.mxu0 0.0
      %1248 = vmatpush.msra.mxu0 0.0
      %1249 = vmatpush.msra.mxu0 0.0
      %1250 = vmatpush.msra.mxu0 0.0
      %1251 = vmatpush.msra.mxu0 0.0
      %1252 = vmatpush.msra.mxu0 0.0
      %1253 = vmatpush.msra.mxu0 0.0
      %1254 = vmatpush.msra.mxu0 0.0
      %1255 = vmatpush.msra.mxu0 0.0
      %1256 = vmatpush.msra.mxu0 0.0
      %1257 = vmatpush.msra.mxu0 0.0
      %1258 = vmatpush.msra.mxu0 0.0
      %1259 = vmatpush.msra.mxu0 0.0
      %1260 = vmatpush.msra.mxu0 0.0
      %1261 = vmatpush.msra.mxu0 %v1197
      %1262 = vmatmul.f32.gmra.mxu0 %v1204
      %v1263 = vpop.f32.mrf.mxu0
      %v1264 = vadd.f32 0.0, %v1263
      %1265 = vdwg.mxu0
      %1266 = vmatpush.msra.mxu0 0.0
      %1267 = vmatpush.msra.mxu0 0.0
      %1268 = vmatpush.msra.mxu0 0.0
      %1269 = vmatpush.msra.mxu0 0.0
      %1270 = vmatpush.msra.mxu0 0.0
      %1271 = vmatpush.msra.mxu0 0.0
      %1272 = vmatpush.msra.mxu0 0.0
      %1273 = vmatpush.msra.mxu0 0.0
      %1274 = vmatpush.msra.mxu0 0.0
      %1275 = vmatpush.msra.mxu0 0.0
      %1276 = vmatpush.msra.mxu0 0.0
      %1277 = vmatpush.msra.mxu0 0.0
      %1278 = vmatpush.msra.mxu0 0.0
      %1279 = vmatpush.msra.mxu0 0.0
      %1280 = vmatpush.msra.mxu0 0.0
      %1281 = vmatpush.msra.mxu0 %v1198
      %1282 = vmatmul.f32.gmra.mxu0 %v1204
      %v1283 = vpop.f32.mrf.mxu0
      %v1284 = vadd.f32 0.0, %v1283
      %1285 = vdwg.mxu0
      %v1286 = vadd.f32 %v1180, %v1224
      %v1287 = vadd.f32 %v1181, %v1244
      %v1288 = vadd.f32 %v1182, %v1264
      %v1289 = vadd.f32 %v1183, %v1284
      %1290 = vrot.lane.b32.xlu0 %v218, 27
      %v1291 = vpop.permute.xlu0 %1290
      %1292 = vrot.lane.b32.xlu0 %v219, 27
      %v1293 = vpop.permute.xlu0 %1292
      %1294 = vrot.lane.b32.xlu0 %v220, 27
      %v1295 = vpop.permute.xlu0 %1294
      %1296 = vrot.lane.b32.xlu0 %v221, 27
      %v1297 = vpop.permute.xlu0 %1296
      %1298 = vrot.lane.b32.xlu0 %v222, 27
      %v1299 = vpop.permute.xlu0 %1298
      %vm1300 = vcmask 220160
      %v1301 = vsel %vm1300, %v1291, %v1293
      %v1302 = vsel %vm1300, %v1293, %v1295
      %v1303 = vsel %vm1300, %v1295, %v1297
      %v1304 = vsel %vm1300, %v1297, %v1299
      %v1310 = vsel %vm275, %v234, 0
      %1312 = vmatpush.msra.mxu0 0.0
      %1313 = vmatpush.msra.mxu0 0.0
      %1314 = vmatpush.msra.mxu0 0.0
      %1315 = vmatpush.msra.mxu0 0.0
      %1316 = vmatpush.msra.mxu0 0.0
      %1317 = vmatpush.msra.mxu0 0.0
      %1318 = vmatpush.msra.mxu0 0.0
      %1319 = vmatpush.msra.mxu0 0.0
      %1320 = vmatpush.msra.mxu0 0.0
      %1321 = vmatpush.msra.mxu0 0.0
      %1322 = vmatpush.msra.mxu0 0.0
      %1323 = vmatpush.msra.mxu0 0.0
      %1324 = vmatpush.msra.mxu0 0.0
      %1325 = vmatpush.msra.mxu0 0.0
      %1326 = vmatpush.msra.mxu0 0.0
      %1327 = vmatpush.msra.mxu0 %v1301
      %1328 = vmatmul.f32.gmra.mxu0 %v1310
      %v1329 = vpop.f32.mrf.mxu0
      %v1330 = vadd.f32 0.0, %v1329
      %1331 = vdwg.mxu0
      %1332 = vmatpush.msra.mxu0 0.0
      %1333 = vmatpush.msra.mxu0 0.0
      %1334 = vmatpush.msra.mxu0 0.0
      %1335 = vmatpush.msra.mxu0 0.0
      %1336 = vmatpush.msra.mxu0 0.0
      %1337 = vmatpush.msra.mxu0 0.0
      %1338 = vmatpush.msra.mxu0 0.0
      %1339 = vmatpush.msra.mxu0 0.0
      %1340 = vmatpush.msra.mxu0 0.0
      %1341 = vmatpush.msra.mxu0 0.0
      %1342 = vmatpush.msra.mxu0 0.0
      %1343 = vmatpush.msra.mxu0 0.0
      %1344 = vmatpush.msra.mxu0 0.0
      %1345 = vmatpush.msra.mxu0 0.0
      %1346 = vmatpush.msra.mxu0 0.0
      %1347 = vmatpush.msra.mxu0 %v1302
      %1348 = vmatmul.f32.gmra.mxu0 %v1310
      %v1349 = vpop.f32.mrf.mxu0
      %v1350 = vadd.f32 0.0, %v1349
      %1351 = vdwg.mxu0
      %1352 = vmatpush.msra.mxu0 0.0
      %1353 = vmatpush.msra.mxu0 0.0
      %1354 = vmatpush.msra.mxu0 0.0
      %1355 = vmatpush.msra.mxu0 0.0
      %1356 = vmatpush.msra.mxu0 0.0
      %1357 = vmatpush.msra.mxu0 0.0
      %1358 = vmatpush.msra.mxu0 0.0
      %1359 = vmatpush.msra.mxu0 0.0
      %1360 = vmatpush.msra.mxu0 0.0
      %1361 = vmatpush.msra.mxu0 0.0
      %1362 = vmatpush.msra.mxu0 0.0
      %1363 = vmatpush.msra.mxu0 0.0
      %1364 = vmatpush.msra.mxu0 0.0
      %1365 = vmatpush.msra.mxu0 0.0
      %1366 = vmatpush.msra.mxu0 0.0
      %1367 = vmatpush.msra.mxu0 %v1303
      %1368 = vmatmul.f32.gmra.mxu0 %v1310
      %v1369 = vpop.f32.mrf.mxu0
      %v1370 = vadd.f32 0.0, %v1369
      %1371 = vdwg.mxu0
      %1372 = vmatpush.msra.mxu0 0.0
      %1373 = vmatpush.msra.mxu0 0.0
      %1374 = vmatpush.msra.mxu0 0.0
      %1375 = vmatpush.msra.mxu0 0.0
      %1376 = vmatpush.msra.mxu0 0.0
      %1377 = vmatpush.msra.mxu0 0.0
      %1378 = vmatpush.msra.mxu0 0.0
      %1379 = vmatpush.msra.mxu0 0.0
      %1380 = vmatpush.msra.mxu0 0.0
      %1381 = vmatpush.msra.mxu0 0.0
      %1382 = vmatpush.msra.mxu0 0.0
      %1383 = vmatpush.msra.mxu0 0.0
      %1384 = vmatpush.msra.mxu0 0.0
      %1385 = vmatpush.msra.mxu0 0.0
      %1386 = vmatpush.msra.mxu0 0.0
      %1387 = vmatpush.msra.mxu0 %v1304
      %1388 = vmatmul.f32.gmra.mxu0 %v1310
      %v1389 = vpop.f32.mrf.mxu0
      %v1390 = vadd.f32 0.0, %v1389
      %1391 = vdwg.mxu0
      %v1392 = vadd.f32 %v1286, %v1330
      %v1393 = vadd.f32 %v1287, %v1350
      %v1394 = vadd.f32 %v1288, %v1370
      %v1395 = vadd.f32 %v1289, %v1390
      %1396 = vrot.lane.b32.xlu0 %v218, 26
      %v1397 = vpop.permute.xlu0 %1396
      %1398 = vrot.lane.b32.xlu0 %v219, 26
      %v1399 = vpop.permute.xlu0 %1398
      %1400 = vrot.lane.b32.xlu0 %v220, 26
      %v1401 = vpop.permute.xlu0 %1400
      %1402 = vrot.lane.b32.xlu0 %v221, 26
      %v1403 = vpop.permute.xlu0 %1402
      %1404 = vrot.lane.b32.xlu0 %v222, 26
      %v1405 = vpop.permute.xlu0 %1404
      %vm1406 = vcmask 211968
      %v1407 = vsel %vm1406, %v1397, %v1399
      %v1408 = vsel %vm1406, %v1399, %v1401
      %v1409 = vsel %vm1406, %v1401, %v1403
      %v1410 = vsel %vm1406, %v1403, %v1405
      %v1416 = vsel %vm275, %v235, 0
      %1418 = vmatpush.msra.mxu0 0.0
      %1419 = vmatpush.msra.mxu0 0.0
      %1420 = vmatpush.msra.mxu0 0.0
      %1421 = vmatpush.msra.mxu0 0.0
      %1422 = vmatpush.msra.mxu0 0.0
      %1423 = vmatpush.msra.mxu0 0.0
      %1424 = vmatpush.msra.mxu0 0.0
      %1425 = vmatpush.msra.mxu0 0.0
      %1426 = vmatpush.msra.mxu0 0.0
      %1427 = vmatpush.msra.mxu0 0.0
      %1428 = vmatpush.msra.mxu0 0.0
      %1429 = vmatpush.msra.mxu0 0.0
      %1430 = vmatpush.msra.mxu0 0.0
      %1431 = vmatpush.msra.mxu0 0.0
      %1432 = vmatpush.msra.mxu0 0.0
      %1433 = vmatpush.msra.mxu0 %v1407
      %1434 = vmatmul.f32.gmra.mxu0 %v1416
      %v1435 = vpop.f32.mrf.mxu0
      %v1436 = vadd.f32 0.0, %v1435
      %1437 = vdwg.mxu0
      %1438 = vmatpush.msra.mxu0 0.0
      %1439 = vmatpush.msra.mxu0 0.0
      %1440 = vmatpush.msra.mxu0 0.0
      %1441 = vmatpush.msra.mxu0 0.0
      %1442 = vmatpush.msra.mxu0 0.0
      %1443 = vmatpush.msra.mxu0 0.0
      %1444 = vmatpush.msra.mxu0 0.0
      %1445 = vmatpush.msra.mxu0 0.0
      %1446 = vmatpush.msra.mxu0 0.0
      %1447 = vmatpush.msra.mxu0 0.0
      %1448 = vmatpush.msra.mxu0 0.0
      %1449 = vmatpush.msra.mxu0 0.0
      %1450 = vmatpush.msra.mxu0 0.0
      %1451 = vmatpush.msra.mxu0 0.0
      %1452 = vmatpush.msra.mxu0 0.0
      %1453 = vmatpush.msra.mxu0 %v1408
      %1454 = vmatmul.f32.gmra.mxu0 %v1416
      %v1455 = vpop.f32.mrf.mxu0
      %v1456 = vadd.f32 0.0, %v1455
      %1457 = vdwg.mxu0
      %1458 = vmatpush.msra.mxu0 0.0
      %1459 = vmatpush.msra.mxu0 0.0
      %1460 = vmatpush.msra.mxu0 0.0
      %1461 = vmatpush.msra.mxu0 0.0
      %1462 = vmatpush.msra.mxu0 0.0
      %1463 = vmatpush.msra.mxu0 0.0
      %1464 = vmatpush.msra.mxu0 0.0
      %1465 = vmatpush.msra.mxu0 0.0
      %1466 = vmatpush.msra.mxu0 0.0
      %1467 = vmatpush.msra.mxu0 0.0
      %1468 = vmatpush.msra.mxu0 0.0
      %1469 = vmatpush.msra.mxu0 0.0
      %1470 = vmatpush.msra.mxu0 0.0
      %1471 = vmatpush.msra.mxu0 0.0
      %1472 = vmatpush.msra.mxu0 0.0
      %1473 = vmatpush.msra.mxu0 %v1409
      %1474 = vmatmul.f32.gmra.mxu0 %v1416
      %v1475 = vpop.f32.mrf.mxu0
      %v1476 = vadd.f32 0.0, %v1475
      %1477 = vdwg.mxu0
      %1478 = vmatpush.msra.mxu0 0.0
      %1479 = vmatpush.msra.mxu0 0.0
      %1480 = vmatpush.msra.mxu0 0.0
      %1481 = vmatpush.msra.mxu0 0.0
      %1482 = vmatpush.msra.mxu0 0.0
      %1483 = vmatpush.msra.mxu0 0.0
      %1484 = vmatpush.msra.mxu0 0.0
      %1485 = vmatpush.msra.mxu0 0.0
      %1486 = vmatpush.msra.mxu0 0.0
      %1487 = vmatpush.msra.mxu0 0.0
      %1488 = vmatpush.msra.mxu0 0.0
      %1489 = vmatpush.msra.mxu0 0.0
      %1490 = vmatpush.msra.mxu0 0.0
      %1491 = vmatpush.msra.mxu0 0.0
      %1492 = vmatpush.msra.mxu0 0.0
      %1493 = vmatpush.msra.mxu0 %v1410
      %1494 = vmatmul.f32.gmra.mxu0 %v1416
      %v1495 = vpop.f32.mrf.mxu0
      %v1496 = vadd.f32 0.0, %v1495
      %1497 = vdwg.mxu0
      %v1498 = vadd.f32 %v1392, %v1436
      %v1499 = vadd.f32 %v1393, %v1456
      %v1500 = vadd.f32 %v1394, %v1476
      %v1501 = vadd.f32 %v1395, %v1496
      %1502 = vrot.lane.b32.xlu0 %v218, 18
      %v1503 = vpop.permute.xlu0 %1502
      %1504 = vrot.lane.b32.xlu0 %v219, 18
      %v1505 = vpop.permute.xlu0 %1504
      %1506 = vrot.lane.b32.xlu0 %v220, 18
      %v1507 = vpop.permute.xlu0 %1506
      %1508 = vrot.lane.b32.xlu0 %v221, 18
      %v1509 = vpop.permute.xlu0 %1508
      %1510 = vrot.lane.b32.xlu0 %v222, 18
      %v1511 = vpop.permute.xlu0 %1510
      %vm1512 = vcmask 146432
      %v1513 = vsel %vm1512, %v1503, %v1505
      %v1514 = vsel %vm1512, %v1505, %v1507
      %v1515 = vsel %vm1512, %v1507, %v1509
      %v1516 = vsel %vm1512, %v1509, %v1511
      %v1522 = vsel %vm275, %v236, 0
      %1524 = vmatpush.msra.mxu0 0.0
      %1525 = vmatpush.msra.mxu0 0.0
      %1526 = vmatpush.msra.mxu0 0.0
      %1527 = vmatpush.msra.mxu0 0.0
      %1528 = vmatpush.msra.mxu0 0.0
      %1529 = vmatpush.msra.mxu0 0.0
      %1530 = vmatpush.msra.mxu0 0.0
      %1531 = vmatpush.msra.mxu0 0.0
      %1532 = vmatpush.msra.mxu0 0.0
      %1533 = vmatpush.msra.mxu0 0.0
      %1534 = vmatpush.msra.mxu0 0.0
      %1535 = vmatpush.msra.mxu0 0.0
      %1536 = vmatpush.msra.mxu0 0.0
      %1537 = vmatpush.msra.mxu0 0.0
      %1538 = vmatpush.msra.mxu0 0.0
      %1539 = vmatpush.msra.mxu0 %v1513
      %1540 = vmatmul.f32.gmra.mxu0 %v1522
      %v1541 = vpop.f32.mrf.mxu0
      %v1542 = vadd.f32 0.0, %v1541
      %1543 = vdwg.mxu0
      %1544 = vmatpush.msra.mxu0 0.0
      %1545 = vmatpush.msra.mxu0 0.0
      %1546 = vmatpush.msra.mxu0 0.0
      %1547 = vmatpush.msra.mxu0 0.0
      %1548 = vmatpush.msra.mxu0 0.0
      %1549 = vmatpush.msra.mxu0 0.0
      %1550 = vmatpush.msra.mxu0 0.0
      %1551 = vmatpush.msra.mxu0 0.0
      %1552 = vmatpush.msra.mxu0 0.0
      %1553 = vmatpush.msra.mxu0 0.0
      %1554 = vmatpush.msra.mxu0 0.0
      %1555 = vmatpush.msra.mxu0 0.0
      %1556 = vmatpush.msra.mxu0 0.0
      %1557 = vmatpush.msra.mxu0 0.0
      %1558 = vmatpush.msra.mxu0 0.0
      %1559 = vmatpush.msra.mxu0 %v1514
      %1560 = vmatmul.f32.gmra.mxu0 %v1522
      %v1561 = vpop.f32.mrf.mxu0
      %v1562 = vadd.f32 0.0, %v1561
      %1563 = vdwg.mxu0
      %1564 = vmatpush.msra.mxu0 0.0
      %1565 = vmatpush.msra.mxu0 0.0
      %1566 = vmatpush.msra.mxu0 0.0
      %1567 = vmatpush.msra.mxu0 0.0
      %1568 = vmatpush.msra.mxu0 0.0
      %1569 = vmatpush.msra.mxu0 0.0
      %1570 = vmatpush.msra.mxu0 0.0
      %1571 = vmatpush.msra.mxu0 0.0
      %1572 = vmatpush.msra.mxu0 0.0
      %1573 = vmatpush.msra.mxu0 0.0
      %1574 = vmatpush.msra.mxu0 0.0
      %1575 = vmatpush.msra.mxu0 0.0
      %1576 = vmatpush.msra.mxu0 0.0
      %1577 = vmatpush.msra.mxu0 0.0
      %1578 = vmatpush.msra.mxu0 0.0
      %1579 = vmatpush.msra.mxu0 %v1515
      %1580 = vmatmul.f32.gmra.mxu0 %v1522
      %v1581 = vpop.f32.mrf.mxu0
      %v1582 = vadd.f32 0.0, %v1581
      %1583 = vdwg.mxu0
      %1584 = vmatpush.msra.mxu0 0.0
      %1585 = vmatpush.msra.mxu0 0.0
      %1586 = vmatpush.msra.mxu0 0.0
      %1587 = vmatpush.msra.mxu0 0.0
      %1588 = vmatpush.msra.mxu0 0.0
      %1589 = vmatpush.msra.mxu0 0.0
      %1590 = vmatpush.msra.mxu0 0.0
      %1591 = vmatpush.msra.mxu0 0.0
      %1592 = vmatpush.msra.mxu0 0.0
      %1593 = vmatpush.msra.mxu0 0.0
      %1594 = vmatpush.msra.mxu0 0.0
      %1595 = vmatpush.msra.mxu0 0.0
      %1596 = vmatpush.msra.mxu0 0.0
      %1597 = vmatpush.msra.mxu0 0.0
      %1598 = vmatpush.msra.mxu0 0.0
      %1599 = vmatpush.msra.mxu0 %v1516
      %1600 = vmatmul.f32.gmra.mxu0 %v1522
      %v1601 = vpop.f32.mrf.mxu0
      %v1602 = vadd.f32 0.0, %v1601
      %1603 = vdwg.mxu0
      %v1604 = vadd.f32 %v1498, %v1542
      %v1605 = vadd.f32 %v1499, %v1562
      %v1606 = vadd.f32 %v1500, %v1582
      %v1607 = vadd.f32 %v1501, %v1602
      %1608 = vrot.lane.b32.xlu0 %v218, 17
      %v1609 = vpop.permute.xlu0 %1608
      %1610 = vrot.lane.b32.xlu0 %v219, 17
      %v1611 = vpop.permute.xlu0 %1610
      %1612 = vrot.lane.b32.xlu0 %v220, 17
      %v1613 = vpop.permute.xlu0 %1612
      %1614 = vrot.lane.b32.xlu0 %v221, 17
      %v1615 = vpop.permute.xlu0 %1614
      %1616 = vrot.lane.b32.xlu0 %v222, 17
      %v1617 = vpop.permute.xlu0 %1616
      %vm1618 = vcmask 138240
      %v1619 = vsel %vm1618, %v1609, %v1611
      %v1620 = vsel %vm1618, %v1611, %v1613
      %v1621 = vsel %vm1618, %v1613, %v1615
      %v1622 = vsel %vm1618, %v1615, %v1617
      %v1628 = vsel %vm275, %v237, 0
      %1630 = vmatpush.msra.mxu0 0.0
      %1631 = vmatpush.msra.mxu0 0.0
      %1632 = vmatpush.msra.mxu0 0.0
      %1633 = vmatpush.msra.mxu0 0.0
      %1634 = vmatpush.msra.mxu0 0.0
      %1635 = vmatpush.msra.mxu0 0.0
      %1636 = vmatpush.msra.mxu0 0.0
      %1637 = vmatpush.msra.mxu0 0.0
      %1638 = vmatpush.msra.mxu0 0.0
      %1639 = vmatpush.msra.mxu0 0.0
      %1640 = vmatpush.msra.mxu0 0.0
      %1641 = vmatpush.msra.mxu0 0.0
      %1642 = vmatpush.msra.mxu0 0.0
      %1643 = vmatpush.msra.mxu0 0.0
      %1644 = vmatpush.msra.mxu0 0.0
      %1645 = vmatpush.msra.mxu0 %v1619
      %1646 = vmatmul.f32.gmra.mxu0 %v1628
      %v1647 = vpop.f32.mrf.mxu0
      %v1648 = vadd.f32 0.0, %v1647
      %1649 = vdwg.mxu0
      %1650 = vmatpush.msra.mxu0 0.0
      %1651 = vmatpush.msra.mxu0 0.0
      %1652 = vmatpush.msra.mxu0 0.0
      %1653 = vmatpush.msra.mxu0 0.0
      %1654 = vmatpush.msra.mxu0 0.0
      %1655 = vmatpush.msra.mxu0 0.0
      %1656 = vmatpush.msra.mxu0 0.0
      %1657 = vmatpush.msra.mxu0 0.0
      %1658 = vmatpush.msra.mxu0 0.0
      %1659 = vmatpush.msra.mxu0 0.0
      %1660 = vmatpush.msra.mxu0 0.0
      %1661 = vmatpush.msra.mxu0 0.0
      %1662 = vmatpush.msra.mxu0 0.0
      %1663 = vmatpush.msra.mxu0 0.0
      %1664 = vmatpush.msra.mxu0 0.0
      %1665 = vmatpush.msra.mxu0 %v1620
      %1666 = vmatmul.f32.gmra.mxu0 %v1628
      %v1667 = vpop.f32.mrf.mxu0
      %v1668 = vadd.f32 0.0, %v1667
      %1669 = vdwg.mxu0
      %1670 = vmatpush.msra.mxu0 0.0
      %1671 = vmatpush.msra.mxu0 0.0
      %1672 = vmatpush.msra.mxu0 0.0
      %1673 = vmatpush.msra.mxu0 0.0
      %1674 = vmatpush.msra.mxu0 0.0
      %1675 = vmatpush.msra.mxu0 0.0
      %1676 = vmatpush.msra.mxu0 0.0
      %1677 = vmatpush.msra.mxu0 0.0
      %1678 = vmatpush.msra.mxu0 0.0
      %1679 = vmatpush.msra.mxu0 0.0
      %1680 = vmatpush.msra.mxu0 0.0
      %1681 = vmatpush.msra.mxu0 0.0
      %1682 = vmatpush.msra.mxu0 0.0
      %1683 = vmatpush.msra.mxu0 0.0
      %1684 = vmatpush.msra.mxu0 0.0
      %1685 = vmatpush.msra.mxu0 %v1621
      %1686 = vmatmul.f32.gmra.mxu0 %v1628
      %v1687 = vpop.f32.mrf.mxu0
      %v1688 = vadd.f32 0.0, %v1687
      %1689 = vdwg.mxu0
      %1690 = vmatpush.msra.mxu0 0.0
      %1691 = vmatpush.msra.mxu0 0.0
      %1692 = vmatpush.msra.mxu0 0.0
      %1693 = vmatpush.msra.mxu0 0.0
      %1694 = vmatpush.msra.mxu0 0.0
      %1695 = vmatpush.msra.mxu0 0.0
      %1696 = vmatpush.msra.mxu0 0.0
      %1697 = vmatpush.msra.mxu0 0.0
      %1698 = vmatpush.msra.mxu0 0.0
      %1699 = vmatpush.msra.mxu0 0.0
      %1700 = vmatpush.msra.mxu0 0.0
      %1701 = vmatpush.msra.mxu0 0.0
      %1702 = vmatpush.msra.mxu0 0.0
      %1703 = vmatpush.msra.mxu0 0.0
      %1704 = vmatpush.msra.mxu0 0.0
      %1705 = vmatpush.msra.mxu0 %v1622
      %1706 = vmatmul.f32.gmra.mxu0 %v1628
      %v1707 = vpop.f32.mrf.mxu0
      %v1708 = vadd.f32 0.0, %v1707
      %1709 = vdwg.mxu0
      %v1710 = vadd.f32 %v1604, %v1648
      %v1711 = vadd.f32 %v1605, %v1668
      %v1712 = vadd.f32 %v1606, %v1688
      %v1713 = vadd.f32 %v1607, %v1708
      %1714 = vrot.lane.b32.xlu0 %v218, 16
      %v1715 = vpop.permute.xlu0 %1714
      %1716 = vrot.lane.b32.xlu0 %v219, 16
      %v1717 = vpop.permute.xlu0 %1716
      %1718 = vrot.lane.b32.xlu0 %v220, 16
      %v1719 = vpop.permute.xlu0 %1718
      %1720 = vrot.lane.b32.xlu0 %v221, 16
      %v1721 = vpop.permute.xlu0 %1720
      %1722 = vrot.lane.b32.xlu0 %v222, 16
      %v1723 = vpop.permute.xlu0 %1722
      %vm1724 = vcmask 130048
      %v1725 = vsel %vm1724, %v1715, %v1717
      %v1726 = vsel %vm1724, %v1717, %v1719
      %v1727 = vsel %vm1724, %v1719, %v1721
      %v1728 = vsel %vm1724, %v1721, %v1723
      %v1734 = vsel %vm275, %v238, 0
      %1736 = vmatpush.msra.mxu0 0.0
      %1737 = vmatpush.msra.mxu0 0.0
      %1738 = vmatpush.msra.mxu0 0.0
      %1739 = vmatpush.msra.mxu0 0.0
      %1740 = vmatpush.msra.mxu0 0.0
      %1741 = vmatpush.msra.mxu0 0.0
      %1742 = vmatpush.msra.mxu0 0.0
      %1743 = vmatpush.msra.mxu0 0.0
      %1744 = vmatpush.msra.mxu0 0.0
      %1745 = vmatpush.msra.mxu0 0.0
      %1746 = vmatpush.msra.mxu0 0.0
      %1747 = vmatpush.msra.mxu0 0.0
      %1748 = vmatpush.msra.mxu0 0.0
      %1749 = vmatpush.msra.mxu0 0.0
      %1750 = vmatpush.msra.mxu0 0.0
      %1751 = vmatpush.msra.mxu0 %v1725
      %1752 = vmatmul.f32.gmra.mxu0 %v1734
      %v1753 = vpop.f32.mrf.mxu0
      %v1754 = vadd.f32 0.0, %v1753
      %1755 = vdwg.mxu0
      %1756 = vmatpush.msra.mxu0 0.0
      %1757 = vmatpush.msra.mxu0 0.0
      %1758 = vmatpush.msra.mxu0 0.0
      %1759 = vmatpush.msra.mxu0 0.0
      %1760 = vmatpush.msra.mxu0 0.0
      %1761 = vmatpush.msra.mxu0 0.0
      %1762 = vmatpush.msra.mxu0 0.0
      %1763 = vmatpush.msra.mxu0 0.0
      %1764 = vmatpush.msra.mxu0 0.0
      %1765 = vmatpush.msra.mxu0 0.0
      %1766 = vmatpush.msra.mxu0 0.0
      %1767 = vmatpush.msra.mxu0 0.0
      %1768 = vmatpush.msra.mxu0 0.0
      %1769 = vmatpush.msra.mxu0 0.0
      %1770 = vmatpush.msra.mxu0 0.0
      %1771 = vmatpush.msra.mxu0 %v1726
      %1772 = vmatmul.f32.gmra.mxu0 %v1734
      %v1773 = vpop.f32.mrf.mxu0
      %v1774 = vadd.f32 0.0, %v1773
      %1775 = vdwg.mxu0
      %1776 = vmatpush.msra.mxu0 0.0
      %1777 = vmatpush.msra.mxu0 0.0
      %1778 = vmatpush.msra.mxu0 0.0
      %1779 = vmatpush.msra.mxu0 0.0
      %1780 = vmatpush.msra.mxu0 0.0
      %1781 = vmatpush.msra.mxu0 0.0
      %1782 = vmatpush.msra.mxu0 0.0
      %1783 = vmatpush.msra.mxu0 0.0
      %1784 = vmatpush.msra.mxu0 0.0
      %1785 = vmatpush.msra.mxu0 0.0
      %1786 = vmatpush.msra.mxu0 0.0
      %1787 = vmatpush.msra.mxu0 0.0
      %1788 = vmatpush.msra.mxu0 0.0
      %1789 = vmatpush.msra.mxu0 0.0
      %1790 = vmatpush.msra.mxu0 0.0
      %1791 = vmatpush.msra.mxu0 %v1727
      %1792 = vmatmul.f32.gmra.mxu0 %v1734
      %v1793 = vpop.f32.mrf.mxu0
      %v1794 = vadd.f32 0.0, %v1793
      %1795 = vdwg.mxu0
      %1796 = vmatpush.msra.mxu0 0.0
      %1797 = vmatpush.msra.mxu0 0.0
      %1798 = vmatpush.msra.mxu0 0.0
      %1799 = vmatpush.msra.mxu0 0.0
      %1800 = vmatpush.msra.mxu0 0.0
      %1801 = vmatpush.msra.mxu0 0.0
      %1802 = vmatpush.msra.mxu0 0.0
      %1803 = vmatpush.msra.mxu0 0.0
      %1804 = vmatpush.msra.mxu0 0.0
      %1805 = vmatpush.msra.mxu0 0.0
      %1806 = vmatpush.msra.mxu0 0.0
      %1807 = vmatpush.msra.mxu0 0.0
      %1808 = vmatpush.msra.mxu0 0.0
      %1809 = vmatpush.msra.mxu0 0.0
      %1810 = vmatpush.msra.mxu0 0.0
      %1811 = vmatpush.msra.mxu0 %v1728
      %1812 = vmatmul.f32.gmra.mxu0 %v1734
      %v1813 = vpop.f32.mrf.mxu0
      %v1814 = vadd.f32 0.0, %v1813
      %1815 = vdwg.mxu0
      %v1816 = vadd.f32 %v1710, %v1754
      %v1817 = vadd.f32 %v1711, %v1774
      %v1818 = vadd.f32 %v1712, %v1794
      %v1819 = vadd.f32 %v1713, %v1814
      %1820 = vrot.lane.b32.xlu0 %v218, 8
      %v1821 = vpop.permute.xlu0 %1820
      %1822 = vrot.lane.b32.xlu0 %v219, 8
      %v1823 = vpop.permute.xlu0 %1822
      %1824 = vrot.lane.b32.xlu0 %v220, 8
      %v1825 = vpop.permute.xlu0 %1824
      %1826 = vrot.lane.b32.xlu0 %v221, 8
      %v1827 = vpop.permute.xlu0 %1826
      %1828 = vrot.lane.b32.xlu0 %v222, 8
      %v1829 = vpop.permute.xlu0 %1828
      %v1830 = vsel %vm275, %v1821, %v1823
      %v1831 = vsel %vm275, %v1823, %v1825
      %v1832 = vsel %vm275, %v1825, %v1827
      %v1833 = vsel %vm275, %v1827, %v1829
      %v1839 = vsel %vm275, %v239, 0
      %1841 = vmatpush.msra.mxu0 0.0
      %1842 = vmatpush.msra.mxu0 0.0
      %1843 = vmatpush.msra.mxu0 0.0
      %1844 = vmatpush.msra.mxu0 0.0
      %1845 = vmatpush.msra.mxu0 0.0
      %1846 = vmatpush.msra.mxu0 0.0
      %1847 = vmatpush.msra.mxu0 0.0
      %1848 = vmatpush.msra.mxu0 0.0
      %1849 = vmatpush.msra.mxu0 0.0
      %1850 = vmatpush.msra.mxu0 0.0
      %1851 = vmatpush.msra.mxu0 0.0
      %1852 = vmatpush.msra.mxu0 0.0
      %1853 = vmatpush.msra.mxu0 0.0
      %1854 = vmatpush.msra.mxu0 0.0
      %1855 = vmatpush.msra.mxu0 0.0
      %1856 = vmatpush.msra.mxu0 %v1830
      %1857 = vmatmul.f32.gmra.mxu0 %v1839
      %v1858 = vpop.f32.mrf.mxu0
      %v1859 = vadd.f32 0.0, %v1858
      %1860 = vdwg.mxu0
      %1861 = vmatpush.msra.mxu0 0.0
      %1862 = vmatpush.msra.mxu0 0.0
      %1863 = vmatpush.msra.mxu0 0.0
      %1864 = vmatpush.msra.mxu0 0.0
      %1865 = vmatpush.msra.mxu0 0.0
      %1866 = vmatpush.msra.mxu0 0.0
      %1867 = vmatpush.msra.mxu0 0.0
      %1868 = vmatpush.msra.mxu0 0.0
      %1869 = vmatpush.msra.mxu0 0.0
      %1870 = vmatpush.msra.mxu0 0.0
      %1871 = vmatpush.msra.mxu0 0.0
      %1872 = vmatpush.msra.mxu0 0.0
      %1873 = vmatpush.msra.mxu0 0.0
      %1874 = vmatpush.msra.mxu0 0.0
      %1875 = vmatpush.msra.mxu0 0.0
      %1876 = vmatpush.msra.mxu0 %v1831
      %1877 = vmatmul.f32.gmra.mxu0 %v1839
      %v1878 = vpop.f32.mrf.mxu0
      %v1879 = vadd.f32 0.0, %v1878
      %1880 = vdwg.mxu0
      %1881 = vmatpush.msra.mxu0 0.0
      %1882 = vmatpush.msra.mxu0 0.0
      %1883 = vmatpush.msra.mxu0 0.0
      %1884 = vmatpush.msra.mxu0 0.0
      %1885 = vmatpush.msra.mxu0 0.0
      %1886 = vmatpush.msra.mxu0 0.0
      %1887 = vmatpush.msra.mxu0 0.0
      %1888 = vmatpush.msra.mxu0 0.0
      %1889 = vmatpush.msra.mxu0 0.0
      %1890 = vmatpush.msra.mxu0 0.0
      %1891 = vmatpush.msra.mxu0 0.0
      %1892 = vmatpush.msra.mxu0 0.0
      %1893 = vmatpush.msra.mxu0 0.0
      %1894 = vmatpush.msra.mxu0 0.0
      %1895 = vmatpush.msra.mxu0 0.0
      %1896 = vmatpush.msra.mxu0 %v1832
      %1897 = vmatmul.f32.gmra.mxu0 %v1839
      %v1898 = vpop.f32.mrf.mxu0
      %v1899 = vadd.f32 0.0, %v1898
      %1900 = vdwg.mxu0
      %1901 = vmatpush.msra.mxu0 0.0
      %1902 = vmatpush.msra.mxu0 0.0
      %1903 = vmatpush.msra.mxu0 0.0
      %1904 = vmatpush.msra.mxu0 0.0
      %1905 = vmatpush.msra.mxu0 0.0
      %1906 = vmatpush.msra.mxu0 0.0
      %1907 = vmatpush.msra.mxu0 0.0
      %1908 = vmatpush.msra.mxu0 0.0
      %1909 = vmatpush.msra.mxu0 0.0
      %1910 = vmatpush.msra.mxu0 0.0
      %1911 = vmatpush.msra.mxu0 0.0
      %1912 = vmatpush.msra.mxu0 0.0
      %1913 = vmatpush.msra.mxu0 0.0
      %1914 = vmatpush.msra.mxu0 0.0
      %1915 = vmatpush.msra.mxu0 0.0
      %1916 = vmatpush.msra.mxu0 %v1833
      %1917 = vmatmul.f32.gmra.mxu0 %v1839
      %v1918 = vpop.f32.mrf.mxu0
      %v1919 = vadd.f32 0.0, %v1918
      %1920 = vdwg.mxu0
      %v1921 = vadd.f32 %v1816, %v1859
      %v1922 = vadd.f32 %v1817, %v1879
      %v1923 = vadd.f32 %v1818, %v1899
      %v1924 = vadd.f32 %v1819, %v1919
      %1925 = vrot.lane.b32.xlu0 %v218, 7
      %v1926 = vpop.permute.xlu0 %1925
      %1927 = vrot.lane.b32.xlu0 %v219, 7
      %v1928 = vpop.permute.xlu0 %1927
      %1929 = vrot.lane.b32.xlu0 %v220, 7
      %v1930 = vpop.permute.xlu0 %1929
      %1931 = vrot.lane.b32.xlu0 %v221, 7
      %v1932 = vpop.permute.xlu0 %1931
      %1933 = vrot.lane.b32.xlu0 %v222, 7
      %v1934 = vpop.permute.xlu0 %1933
      %vm1935 = vcmask 56320
      %v1936 = vsel %vm1935, %v1926, %v1928
      %v1937 = vsel %vm1935, %v1928, %v1930
      %v1938 = vsel %vm1935, %v1930, %v1932
      %v1939 = vsel %vm1935, %v1932, %v1934
      %v1945 = vsel %vm275, %v240, 0
      %1947 = vmatpush.msra.mxu0 0.0
      %1948 = vmatpush.msra.mxu0 0.0
      %1949 = vmatpush.msra.mxu0 0.0
      %1950 = vmatpush.msra.mxu0 0.0
      %1951 = vmatpush.msra.mxu0 0.0
      %1952 = vmatpush.msra.mxu0 0.0
      %1953 = vmatpush.msra.mxu0 0.0
      %1954 = vmatpush.msra.mxu0 0.0
      %1955 = vmatpush.msra.mxu0 0.0
      %1956 = vmatpush.msra.mxu0 0.0
      %1957 = vmatpush.msra.mxu0 0.0
      %1958 = vmatpush.msra.mxu0 0.0
      %1959 = vmatpush.msra.mxu0 0.0
      %1960 = vmatpush.msra.mxu0 0.0
      %1961 = vmatpush.msra.mxu0 0.0
      %1962 = vmatpush.msra.mxu0 %v1936
      %1963 = vmatmul.f32.gmra.mxu0 %v1945
      %v1964 = vpop.f32.mrf.mxu0
      %v1965 = vadd.f32 0.0, %v1964
      %1966 = vdwg.mxu0
      %1967 = vmatpush.msra.mxu0 0.0
      %1968 = vmatpush.msra.mxu0 0.0
      %1969 = vmatpush.msra.mxu0 0.0
      %1970 = vmatpush.msra.mxu0 0.0
      %1971 = vmatpush.msra.mxu0 0.0
      %1972 = vmatpush.msra.mxu0 0.0
      %1973 = vmatpush.msra.mxu0 0.0
      %1974 = vmatpush.msra.mxu0 0.0
      %1975 = vmatpush.msra.mxu0 0.0
      %1976 = vmatpush.msra.mxu0 0.0
      %1977 = vmatpush.msra.mxu0 0.0
      %1978 = vmatpush.msra.mxu0 0.0
      %1979 = vmatpush.msra.mxu0 0.0
      %1980 = vmatpush.msra.mxu0 0.0
      %1981 = vmatpush.msra.mxu0 0.0
      %1982 = vmatpush.msra.mxu0 %v1937
      %1983 = vmatmul.f32.gmra.mxu0 %v1945
      %v1984 = vpop.f32.mrf.mxu0
      %v1985 = vadd.f32 0.0, %v1984
      %1986 = vdwg.mxu0
      %1987 = vmatpush.msra.mxu0 0.0
      %1988 = vmatpush.msra.mxu0 0.0
      %1989 = vmatpush.msra.mxu0 0.0
      %1990 = vmatpush.msra.mxu0 0.0
      %1991 = vmatpush.msra.mxu0 0.0
      %1992 = vmatpush.msra.mxu0 0.0
      %1993 = vmatpush.msra.mxu0 0.0
      %1994 = vmatpush.msra.mxu0 0.0
      %1995 = vmatpush.msra.mxu0 0.0
      %1996 = vmatpush.msra.mxu0 0.0
      %1997 = vmatpush.msra.mxu0 0.0
      %1998 = vmatpush.msra.mxu0 0.0
      %1999 = vmatpush.msra.mxu0 0.0
      %2000 = vmatpush.msra.mxu0 0.0
      %2001 = vmatpush.msra.mxu0 0.0
      %2002 = vmatpush.msra.mxu0 %v1938
      %2003 = vmatmul.f32.gmra.mxu0 %v1945
      %v2004 = vpop.f32.mrf.mxu0
      %v2005 = vadd.f32 0.0, %v2004
      %2006 = vdwg.mxu0
      %2007 = vmatpush.msra.mxu0 0.0
      %2008 = vmatpush.msra.mxu0 0.0
      %2009 = vmatpush.msra.mxu0 0.0
      %2010 = vmatpush.msra.mxu0 0.0
      %2011 = vmatpush.msra.mxu0 0.0
      %2012 = vmatpush.msra.mxu0 0.0
      %2013 = vmatpush.msra.mxu0 0.0
      %2014 = vmatpush.msra.mxu0 0.0
      %2015 = vmatpush.msra.mxu0 0.0
      %2016 = vmatpush.msra.mxu0 0.0
      %2017 = vmatpush.msra.mxu0 0.0
      %2018 = vmatpush.msra.mxu0 0.0
      %2019 = vmatpush.msra.mxu0 0.0
      %2020 = vmatpush.msra.mxu0 0.0
      %2021 = vmatpush.msra.mxu0 0.0
      %2022 = vmatpush.msra.mxu0 %v1939
      %2023 = vmatmul.f32.gmra.mxu0 %v1945
      %v2024 = vpop.f32.mrf.mxu0
      %v2025 = vadd.f32 0.0, %v2024
      %2026 = vdwg.mxu0
      %v2027 = vadd.f32 %v1921, %v1965
      %v2028 = vadd.f32 %v1922, %v1985
      %v2029 = vadd.f32 %v1923, %v2005
      %v2030 = vadd.f32 %v1924, %v2025
      %2031 = vrot.lane.b32.xlu0 %v218, 6
      %v2032 = vpop.permute.xlu0 %2031
      %2033 = vrot.lane.b32.xlu0 %v219, 6
      %v2034 = vpop.permute.xlu0 %2033
      %2035 = vrot.lane.b32.xlu0 %v220, 6
      %v2036 = vpop.permute.xlu0 %2035
      %2037 = vrot.lane.b32.xlu0 %v221, 6
      %v2038 = vpop.permute.xlu0 %2037
      %2039 = vrot.lane.b32.xlu0 %v222, 6
      %v2040 = vpop.permute.xlu0 %2039
      %vm2041 = vcmask 48128
      %v2042 = vsel %vm2041, %v2032, %v2034
      %v2043 = vsel %vm2041, %v2034, %v2036
      %v2044 = vsel %vm2041, %v2036, %v2038
      %v2045 = vsel %vm2041, %v2038, %v2040
      %v2051 = vsel %vm275, %v241, 0
      %2053 = vmatpush.msra.mxu0 0.0
      %2054 = vmatpush.msra.mxu0 0.0
      %2055 = vmatpush.msra.mxu0 0.0
      %2056 = vmatpush.msra.mxu0 0.0
      %2057 = vmatpush.msra.mxu0 0.0
      %2058 = vmatpush.msra.mxu0 0.0
      %2059 = vmatpush.msra.mxu0 0.0
      %2060 = vmatpush.msra.mxu0 0.0
      %2061 = vmatpush.msra.mxu0 0.0
      %2062 = vmatpush.msra.mxu0 0.0
      %2063 = vmatpush.msra.mxu0 0.0
      %2064 = vmatpush.msra.mxu0 0.0
      %2065 = vmatpush.msra.mxu0 0.0
      %2066 = vmatpush.msra.mxu0 0.0
      %2067 = vmatpush.msra.mxu0 0.0
      %2068 = vmatpush.msra.mxu0 %v2042
      %2069 = vmatmul.f32.gmra.mxu0 %v2051
      %v2070 = vpop.f32.mrf.mxu0
      %v2071 = vadd.f32 0.0, %v2070
      %2072 = vdwg.mxu0
      %2073 = vmatpush.msra.mxu0 0.0
      %2074 = vmatpush.msra.mxu0 0.0
      %2075 = vmatpush.msra.mxu0 0.0
      %2076 = vmatpush.msra.mxu0 0.0
      %2077 = vmatpush.msra.mxu0 0.0
      %2078 = vmatpush.msra.mxu0 0.0
      %2079 = vmatpush.msra.mxu0 0.0
      %2080 = vmatpush.msra.mxu0 0.0
      %2081 = vmatpush.msra.mxu0 0.0
      %2082 = vmatpush.msra.mxu0 0.0
      %2083 = vmatpush.msra.mxu0 0.0
      %2084 = vmatpush.msra.mxu0 0.0
      %2085 = vmatpush.msra.mxu0 0.0
      %2086 = vmatpush.msra.mxu0 0.0
      %2087 = vmatpush.msra.mxu0 0.0
      %2088 = vmatpush.msra.mxu0 %v2043
      %2089 = vmatmul.f32.gmra.mxu0 %v2051
      %v2090 = vpop.f32.mrf.mxu0
      %v2091 = vadd.f32 0.0, %v2090
      %2092 = vdwg.mxu0
      %2093 = vmatpush.msra.mxu0 0.0
      %2094 = vmatpush.msra.mxu0 0.0
      %2095 = vmatpush.msra.mxu0 0.0
      %2096 = vmatpush.msra.mxu0 0.0
      %2097 = vmatpush.msra.mxu0 0.0
      %2098 = vmatpush.msra.mxu0 0.0
      %2099 = vmatpush.msra.mxu0 0.0
      %2100 = vmatpush.msra.mxu0 0.0
      %2101 = vmatpush.msra.mxu0 0.0
      %2102 = vmatpush.msra.mxu0 0.0
      %2103 = vmatpush.msra.mxu0 0.0
      %2104 = vmatpush.msra.mxu0 0.0
      %2105 = vmatpush.msra.mxu0 0.0
      %2106 = vmatpush.msra.mxu0 0.0
      %2107 = vmatpush.msra.mxu0 0.0
      %2108 = vmatpush.msra.mxu0 %v2044
      %2109 = vmatmul.f32.gmra.mxu0 %v2051
      %v2110 = vpop.f32.mrf.mxu0
      %v2111 = vadd.f32 0.0, %v2110
      %2112 = vdwg.mxu0
      %2113 = vmatpush.msra.mxu0 0.0
      %2114 = vmatpush.msra.mxu0 0.0
      %2115 = vmatpush.msra.mxu0 0.0
      %2116 = vmatpush.msra.mxu0 0.0
      %2117 = vmatpush.msra.mxu0 0.0
      %2118 = vmatpush.msra.mxu0 0.0
      %2119 = vmatpush.msra.mxu0 0.0
      %2120 = vmatpush.msra.mxu0 0.0
      %2121 = vmatpush.msra.mxu0 0.0
      %2122 = vmatpush.msra.mxu0 0.0
      %2123 = vmatpush.msra.mxu0 0.0
      %2124 = vmatpush.msra.mxu0 0.0
      %2125 = vmatpush.msra.mxu0 0.0
      %2126 = vmatpush.msra.mxu0 0.0
      %2127 = vmatpush.msra.mxu0 0.0
      %2128 = vmatpush.msra.mxu0 %v2045
      %2129 = vmatmul.f32.gmra.mxu0 %v2051
      %v2130 = vpop.f32.mrf.mxu0
      %v2131 = vadd.f32 0.0, %v2130
      %2132 = vdwg.mxu0
      %v2133 = vadd.f32 %v2027, %v2071
      %v2134 = vadd.f32 %v2028, %v2091
      %v2135 = vadd.f32 %v2029, %v2111
      %v2136 = vadd.f32 %v2030, %v2131
      %2138 = vrot.lane.b32.xlu0 %v219, 56
      %v2139 = vpop.permute.xlu0 %2138
      %2140 = vrot.lane.b32.xlu0 %v220, 56
      %v2141 = vpop.permute.xlu0 %2140
      %2142 = vrot.lane.b32.xlu0 %v221, 56
      %v2143 = vpop.permute.xlu0 %2142
      %2144 = vrot.lane.b32.xlu0 %v222, 56
      %v2145 = vpop.permute.xlu0 %2144
      %2146 = vrot.lane.b32.xlu0 %v223, 56
      %v2147 = vpop.permute.xlu0 %2146
      %vm2148 = vcmask 457728
      %v2149 = vsel %vm2148, %v2139, %v2141
      %v2150 = vsel %vm2148, %v2141, %v2143
      %v2151 = vsel %vm2148, %v2143, %v2145
      %v2152 = vsel %vm2148, %v2145, %v2147
      %v2158 = vsel %vm275, %v242, 0
      %2160 = vmatpush.msra.mxu0 0.0
      %2161 = vmatpush.msra.mxu0 0.0
      %2162 = vmatpush.msra.mxu0 0.0
      %2163 = vmatpush.msra.mxu0 0.0
      %2164 = vmatpush.msra.mxu0 0.0
      %2165 = vmatpush.msra.mxu0 0.0
      %2166 = vmatpush.msra.mxu0 0.0
      %2167 = vmatpush.msra.mxu0 0.0
      %2168 = vmatpush.msra.mxu0 0.0
      %2169 = vmatpush.msra.mxu0 0.0
      %2170 = vmatpush.msra.mxu0 0.0
      %2171 = vmatpush.msra.mxu0 0.0
      %2172 = vmatpush.msra.mxu0 0.0
      %2173 = vmatpush.msra.mxu0 0.0
      %2174 = vmatpush.msra.mxu0 0.0
      %2175 = vmatpush.msra.mxu0 %v2149
      %2176 = vmatmul.f32.gmra.mxu0 %v2158
      %v2177 = vpop.f32.mrf.mxu0
      %v2178 = vadd.f32 0.0, %v2177
      %2179 = vdwg.mxu0
      %2180 = vmatpush.msra.mxu0 0.0
      %2181 = vmatpush.msra.mxu0 0.0
      %2182 = vmatpush.msra.mxu0 0.0
      %2183 = vmatpush.msra.mxu0 0.0
      %2184 = vmatpush.msra.mxu0 0.0
      %2185 = vmatpush.msra.mxu0 0.0
      %2186 = vmatpush.msra.mxu0 0.0
      %2187 = vmatpush.msra.mxu0 0.0
      %2188 = vmatpush.msra.mxu0 0.0
      %2189 = vmatpush.msra.mxu0 0.0
      %2190 = vmatpush.msra.mxu0 0.0
      %2191 = vmatpush.msra.mxu0 0.0
      %2192 = vmatpush.msra.mxu0 0.0
      %2193 = vmatpush.msra.mxu0 0.0
      %2194 = vmatpush.msra.mxu0 0.0
      %2195 = vmatpush.msra.mxu0 %v2150
      %2196 = vmatmul.f32.gmra.mxu0 %v2158
      %v2197 = vpop.f32.mrf.mxu0
      %v2198 = vadd.f32 0.0, %v2197
      %2199 = vdwg.mxu0
      %2200 = vmatpush.msra.mxu0 0.0
      %2201 = vmatpush.msra.mxu0 0.0
      %2202 = vmatpush.msra.mxu0 0.0
      %2203 = vmatpush.msra.mxu0 0.0
      %2204 = vmatpush.msra.mxu0 0.0
      %2205 = vmatpush.msra.mxu0 0.0
      %2206 = vmatpush.msra.mxu0 0.0
      %2207 = vmatpush.msra.mxu0 0.0
      %2208 = vmatpush.msra.mxu0 0.0
      %2209 = vmatpush.msra.mxu0 0.0
      %2210 = vmatpush.msra.mxu0 0.0
      %2211 = vmatpush.msra.mxu0 0.0
      %2212 = vmatpush.msra.mxu0 0.0
      %2213 = vmatpush.msra.mxu0 0.0
      %2214 = vmatpush.msra.mxu0 0.0
      %2215 = vmatpush.msra.mxu0 %v2151
      %2216 = vmatmul.f32.gmra.mxu0 %v2158
      %v2217 = vpop.f32.mrf.mxu0
      %v2218 = vadd.f32 0.0, %v2217
      %2219 = vdwg.mxu0
      %2220 = vmatpush.msra.mxu0 0.0
      %2221 = vmatpush.msra.mxu0 0.0
      %2222 = vmatpush.msra.mxu0 0.0
      %2223 = vmatpush.msra.mxu0 0.0
      %2224 = vmatpush.msra.mxu0 0.0
      %2225 = vmatpush.msra.mxu0 0.0
      %2226 = vmatpush.msra.mxu0 0.0
      %2227 = vmatpush.msra.mxu0 0.0
      %2228 = vmatpush.msra.mxu0 0.0
      %2229 = vmatpush.msra.mxu0 0.0
      %2230 = vmatpush.msra.mxu0 0.0
      %2231 = vmatpush.msra.mxu0 0.0
      %2232 = vmatpush.msra.mxu0 0.0
      %2233 = vmatpush.msra.mxu0 0.0
      %2234 = vmatpush.msra.mxu0 0.0
      %2235 = vmatpush.msra.mxu0 %v2152
      %2236 = vmatmul.f32.gmra.mxu0 %v2158
      %v2237 = vpop.f32.mrf.mxu0
      %v2238 = vadd.f32 0.0, %v2237
      %2239 = vdwg.mxu0
      %v2240 = vadd.f32 %v2133, %v2178
      %v2241 = vadd.f32 %v2134, %v2198
      %v2242 = vadd.f32 %v2135, %v2218
      %v2243 = vadd.f32 %v2136, %v2238
      %2244 = vrot.lane.b32.xlu0 %v219, 55
      %v2245 = vpop.permute.xlu0 %2244
      %2246 = vrot.lane.b32.xlu0 %v220, 55
      %v2247 = vpop.permute.xlu0 %2246
      %2248 = vrot.lane.b32.xlu0 %v221, 55
      %v2249 = vpop.permute.xlu0 %2248
      %2250 = vrot.lane.b32.xlu0 %v222, 55
      %v2251 = vpop.permute.xlu0 %2250
      %2252 = vrot.lane.b32.xlu0 %v223, 55
      %v2253 = vpop.permute.xlu0 %2252
      %vm2254 = vcmask 449536
      %v2255 = vsel %vm2254, %v2245, %v2247
      %v2256 = vsel %vm2254, %v2247, %v2249
      %v2257 = vsel %vm2254, %v2249, %v2251
      %v2258 = vsel %vm2254, %v2251, %v2253
      %v2264 = vsel %vm275, %v243, 0
      %2266 = vmatpush.msra.mxu0 0.0
      %2267 = vmatpush.msra.mxu0 0.0
      %2268 = vmatpush.msra.mxu0 0.0
      %2269 = vmatpush.msra.mxu0 0.0
      %2270 = vmatpush.msra.mxu0 0.0
      %2271 = vmatpush.msra.mxu0 0.0
      %2272 = vmatpush.msra.mxu0 0.0
      %2273 = vmatpush.msra.mxu0 0.0
      %2274 = vmatpush.msra.mxu0 0.0
      %2275 = vmatpush.msra.mxu0 0.0
      %2276 = vmatpush.msra.mxu0 0.0
      %2277 = vmatpush.msra.mxu0 0.0
      %2278 = vmatpush.msra.mxu0 0.0
      %2279 = vmatpush.msra.mxu0 0.0
      %2280 = vmatpush.msra.mxu0 0.0
      %2281 = vmatpush.msra.mxu0 %v2255
      %2282 = vmatmul.f32.gmra.mxu0 %v2264
      %v2283 = vpop.f32.mrf.mxu0
      %v2284 = vadd.f32 0.0, %v2283
      %2285 = vdwg.mxu0
      %2286 = vmatpush.msra.mxu0 0.0
      %2287 = vmatpush.msra.mxu0 0.0
      %2288 = vmatpush.msra.mxu0 0.0
      %2289 = vmatpush.msra.mxu0 0.0
      %2290 = vmatpush.msra.mxu0 0.0
      %2291 = vmatpush.msra.mxu0 0.0
      %2292 = vmatpush.msra.mxu0 0.0
      %2293 = vmatpush.msra.mxu0 0.0
      %2294 = vmatpush.msra.mxu0 0.0
      %2295 = vmatpush.msra.mxu0 0.0
      %2296 = vmatpush.msra.mxu0 0.0
      %2297 = vmatpush.msra.mxu0 0.0
      %2298 = vmatpush.msra.mxu0 0.0
      %2299 = vmatpush.msra.mxu0 0.0
      %2300 = vmatpush.msra.mxu0 0.0
      %2301 = vmatpush.msra.mxu0 %v2256
      %2302 = vmatmul.f32.gmra.mxu0 %v2264
      %v2303 = vpop.f32.mrf.mxu0
      %v2304 = vadd.f32 0.0, %v2303
      %2305 = vdwg.mxu0
      %2306 = vmatpush.msra.mxu0 0.0
      %2307 = vmatpush.msra.mxu0 0.0
      %2308 = vmatpush.msra.mxu0 0.0
      %2309 = vmatpush.msra.mxu0 0.0
      %2310 = vmatpush.msra.mxu0 0.0
      %2311 = vmatpush.msra.mxu0 0.0
      %2312 = vmatpush.msra.mxu0 0.0
      %2313 = vmatpush.msra.mxu0 0.0
      %2314 = vmatpush.msra.mxu0 0.0
      %2315 = vmatpush.msra.mxu0 0.0
      %2316 = vmatpush.msra.mxu0 0.0
      %2317 = vmatpush.msra.mxu0 0.0
      %2318 = vmatpush.msra.mxu0 0.0
      %2319 = vmatpush.msra.mxu0 0.0
      %2320 = vmatpush.msra.mxu0 0.0
      %2321 = vmatpush.msra.mxu0 %v2257
      %2322 = vmatmul.f32.gmra.mxu0 %v2264
      %v2323 = vpop.f32.mrf.mxu0
      %v2324 = vadd.f32 0.0, %v2323
      %2325 = vdwg.mxu0
      %2326 = vmatpush.msra.mxu0 0.0
      %2327 = vmatpush.msra.mxu0 0.0
      %2328 = vmatpush.msra.mxu0 0.0
      %2329 = vmatpush.msra.mxu0 0.0
      %2330 = vmatpush.msra.mxu0 0.0
      %2331 = vmatpush.msra.mxu0 0.0
      %2332 = vmatpush.msra.mxu0 0.0
      %2333 = vmatpush.msra.mxu0 0.0
      %2334 = vmatpush.msra.mxu0 0.0
      %2335 = vmatpush.msra.mxu0 0.0
      %2336 = vmatpush.msra.mxu0 0.0
      %2337 = vmatpush.msra.mxu0 0.0
      %2338 = vmatpush.msra.mxu0 0.0
      %2339 = vmatpush.msra.mxu0 0.0
      %2340 = vmatpush.msra.mxu0 0.0
      %2341 = vmatpush.msra.mxu0 %v2258
      %2342 = vmatmul.f32.gmra.mxu0 %v2264
      %v2343 = vpop.f32.mrf.mxu0
      %v2344 = vadd.f32 0.0, %v2343
      %2345 = vdwg.mxu0
      %v2346 = vadd.f32 %v2240, %v2284
      %v2347 = vadd.f32 %v2241, %v2304
      %v2348 = vadd.f32 %v2242, %v2324
      %v2349 = vadd.f32 %v2243, %v2344
      %2350 = vrot.lane.b32.xlu0 %v219, 54
      %v2351 = vpop.permute.xlu0 %2350
      %2352 = vrot.lane.b32.xlu0 %v220, 54
      %v2353 = vpop.permute.xlu0 %2352
      %2354 = vrot.lane.b32.xlu0 %v221, 54
      %v2355 = vpop.permute.xlu0 %2354
      %2356 = vrot.lane.b32.xlu0 %v222, 54
      %v2357 = vpop.permute.xlu0 %2356
      %2358 = vrot.lane.b32.xlu0 %v223, 54
      %v2359 = vpop.permute.xlu0 %2358
      %vm2360 = vcmask 441344
      %v2361 = vsel %vm2360, %v2351, %v2353
      %v2362 = vsel %vm2360, %v2353, %v2355
      %v2363 = vsel %vm2360, %v2355, %v2357
      %v2364 = vsel %vm2360, %v2357, %v2359
      %v2370 = vsel %vm275, %v244, 0
      %2372 = vmatpush.msra.mxu0 0.0
      %2373 = vmatpush.msra.mxu0 0.0
      %2374 = vmatpush.msra.mxu0 0.0
      %2375 = vmatpush.msra.mxu0 0.0
      %2376 = vmatpush.msra.mxu0 0.0
      %2377 = vmatpush.msra.mxu0 0.0
      %2378 = vmatpush.msra.mxu0 0.0
      %2379 = vmatpush.msra.mxu0 0.0
      %2380 = vmatpush.msra.mxu0 0.0
      %2381 = vmatpush.msra.mxu0 0.0
      %2382 = vmatpush.msra.mxu0 0.0
      %2383 = vmatpush.msra.mxu0 0.0
      %2384 = vmatpush.msra.mxu0 0.0
      %2385 = vmatpush.msra.mxu0 0.0
      %2386 = vmatpush.msra.mxu0 0.0
      %2387 = vmatpush.msra.mxu0 %v2361
      %2388 = vmatmul.f32.gmra.mxu0 %v2370
      %v2389 = vpop.f32.mrf.mxu0
      %v2390 = vadd.f32 0.0, %v2389
      %2391 = vdwg.mxu0
      %2392 = vmatpush.msra.mxu0 0.0
      %2393 = vmatpush.msra.mxu0 0.0
      %2394 = vmatpush.msra.mxu0 0.0
      %2395 = vmatpush.msra.mxu0 0.0
      %2396 = vmatpush.msra.mxu0 0.0
      %2397 = vmatpush.msra.mxu0 0.0
      %2398 = vmatpush.msra.mxu0 0.0
      %2399 = vmatpush.msra.mxu0 0.0
      %2400 = vmatpush.msra.mxu0 0.0
      %2401 = vmatpush.msra.mxu0 0.0
      %2402 = vmatpush.msra.mxu0 0.0
      %2403 = vmatpush.msra.mxu0 0.0
      %2404 = vmatpush.msra.mxu0 0.0
      %2405 = vmatpush.msra.mxu0 0.0
      %2406 = vmatpush.msra.mxu0 0.0
      %2407 = vmatpush.msra.mxu0 %v2362
      %2408 = vmatmul.f32.gmra.mxu0 %v2370
      %v2409 = vpop.f32.mrf.mxu0
      %v2410 = vadd.f32 0.0, %v2409
      %2411 = vdwg.mxu0
      %2412 = vmatpush.msra.mxu0 0.0
      %2413 = vmatpush.msra.mxu0 0.0
      %2414 = vmatpush.msra.mxu0 0.0
      %2415 = vmatpush.msra.mxu0 0.0
      %2416 = vmatpush.msra.mxu0 0.0
      %2417 = vmatpush.msra.mxu0 0.0
      %2418 = vmatpush.msra.mxu0 0.0
      %2419 = vmatpush.msra.mxu0 0.0
      %2420 = vmatpush.msra.mxu0 0.0
      %2421 = vmatpush.msra.mxu0 0.0
      %2422 = vmatpush.msra.mxu0 0.0
      %2423 = vmatpush.msra.mxu0 0.0
      %2424 = vmatpush.msra.mxu0 0.0
      %2425 = vmatpush.msra.mxu0 0.0
      %2426 = vmatpush.msra.mxu0 0.0
      %2427 = vmatpush.msra.mxu0 %v2363
      %2428 = vmatmul.f32.gmra.mxu0 %v2370
      %v2429 = vpop.f32.mrf.mxu0
      %v2430 = vadd.f32 0.0, %v2429
      %2431 = vdwg.mxu0
      %2432 = vmatpush.msra.mxu0 0.0
      %2433 = vmatpush.msra.mxu0 0.0
      %2434 = vmatpush.msra.mxu0 0.0
      %2435 = vmatpush.msra.mxu0 0.0
      %2436 = vmatpush.msra.mxu0 0.0
      %2437 = vmatpush.msra.mxu0 0.0
      %2438 = vmatpush.msra.mxu0 0.0
      %2439 = vmatpush.msra.mxu0 0.0
      %2440 = vmatpush.msra.mxu0 0.0
      %2441 = vmatpush.msra.mxu0 0.0
      %2442 = vmatpush.msra.mxu0 0.0
      %2443 = vmatpush.msra.mxu0 0.0
      %2444 = vmatpush.msra.mxu0 0.0
      %2445 = vmatpush.msra.mxu0 0.0
      %2446 = vmatpush.msra.mxu0 0.0
      %2447 = vmatpush.msra.mxu0 %v2364
      %2448 = vmatmul.f32.gmra.mxu0 %v2370
      %v2449 = vpop.f32.mrf.mxu0
      %v2450 = vadd.f32 0.0, %v2449
      %2451 = vdwg.mxu0
      %v2452 = vadd.f32 %v2346, %v2390
      %v2453 = vadd.f32 %v2347, %v2410
      %v2454 = vadd.f32 %v2348, %v2430
      %v2455 = vadd.f32 %v2349, %v2450
      %2456 = vrot.lane.b32.xlu0 %v219, 46
      %v2457 = vpop.permute.xlu0 %2456
      %2458 = vrot.lane.b32.xlu0 %v220, 46
      %v2459 = vpop.permute.xlu0 %2458
      %2460 = vrot.lane.b32.xlu0 %v221, 46
      %v2461 = vpop.permute.xlu0 %2460
      %2462 = vrot.lane.b32.xlu0 %v222, 46
      %v2463 = vpop.permute.xlu0 %2462
      %2464 = vrot.lane.b32.xlu0 %v223, 46
      %v2465 = vpop.permute.xlu0 %2464
      %vm2466 = vcmask 375808
      %v2467 = vsel %vm2466, %v2457, %v2459
      %v2468 = vsel %vm2466, %v2459, %v2461
      %v2469 = vsel %vm2466, %v2461, %v2463
      %v2470 = vsel %vm2466, %v2463, %v2465
      %v2476 = vsel %vm275, %v245, 0
      %2478 = vmatpush.msra.mxu0 0.0
      %2479 = vmatpush.msra.mxu0 0.0
      %2480 = vmatpush.msra.mxu0 0.0
      %2481 = vmatpush.msra.mxu0 0.0
      %2482 = vmatpush.msra.mxu0 0.0
      %2483 = vmatpush.msra.mxu0 0.0
      %2484 = vmatpush.msra.mxu0 0.0
      %2485 = vmatpush.msra.mxu0 0.0
      %2486 = vmatpush.msra.mxu0 0.0
      %2487 = vmatpush.msra.mxu0 0.0
      %2488 = vmatpush.msra.mxu0 0.0
      %2489 = vmatpush.msra.mxu0 0.0
      %2490 = vmatpush.msra.mxu0 0.0
      %2491 = vmatpush.msra.mxu0 0.0
      %2492 = vmatpush.msra.mxu0 0.0
      %2493 = vmatpush.msra.mxu0 %v2467
      %2494 = vmatmul.f32.gmra.mxu0 %v2476
      %v2495 = vpop.f32.mrf.mxu0
      %v2496 = vadd.f32 0.0, %v2495
      %2497 = vdwg.mxu0
      %2498 = vmatpush.msra.mxu0 0.0
      %2499 = vmatpush.msra.mxu0 0.0
      %2500 = vmatpush.msra.mxu0 0.0
      %2501 = vmatpush.msra.mxu0 0.0
      %2502 = vmatpush.msra.mxu0 0.0
      %2503 = vmatpush.msra.mxu0 0.0
      %2504 = vmatpush.msra.mxu0 0.0
      %2505 = vmatpush.msra.mxu0 0.0
      %2506 = vmatpush.msra.mxu0 0.0
      %2507 = vmatpush.msra.mxu0 0.0
      %2508 = vmatpush.msra.mxu0 0.0
      %2509 = vmatpush.msra.mxu0 0.0
      %2510 = vmatpush.msra.mxu0 0.0
      %2511 = vmatpush.msra.mxu0 0.0
      %2512 = vmatpush.msra.mxu0 0.0
      %2513 = vmatpush.msra.mxu0 %v2468
      %2514 = vmatmul.f32.gmra.mxu0 %v2476
      %v2515 = vpop.f32.mrf.mxu0
      %v2516 = vadd.f32 0.0, %v2515
      %2517 = vdwg.mxu0
      %2518 = vmatpush.msra.mxu0 0.0
      %2519 = vmatpush.msra.mxu0 0.0
      %2520 = vmatpush.msra.mxu0 0.0
      %2521 = vmatpush.msra.mxu0 0.0
      %2522 = vmatpush.msra.mxu0 0.0
      %2523 = vmatpush.msra.mxu0 0.0
      %2524 = vmatpush.msra.mxu0 0.0
      %2525 = vmatpush.msra.mxu0 0.0
      %2526 = vmatpush.msra.mxu0 0.0
      %2527 = vmatpush.msra.mxu0 0.0
      %2528 = vmatpush.msra.mxu0 0.0
      %2529 = vmatpush.msra.mxu0 0.0
      %2530 = vmatpush.msra.mxu0 0.0
      %2531 = vmatpush.msra.mxu0 0.0
      %2532 = vmatpush.msra.mxu0 0.0
      %2533 = vmatpush.msra.mxu0 %v2469
      %2534 = vmatmul.f32.gmra.mxu0 %v2476
      %v2535 = vpop.f32.mrf.mxu0
      %v2536 = vadd.f32 0.0, %v2535
      %2537 = vdwg.mxu0
      %2538 = vmatpush.msra.mxu0 0.0
      %2539 = vmatpush.msra.mxu0 0.0
      %2540 = vmatpush.msra.mxu0 0.0
      %2541 = vmatpush.msra.mxu0 0.0
      %2542 = vmatpush.msra.mxu0 0.0
      %2543 = vmatpush.msra.mxu0 0.0
      %2544 = vmatpush.msra.mxu0 0.0
      %2545 = vmatpush.msra.mxu0 0.0
      %2546 = vmatpush.msra.mxu0 0.0
      %2547 = vmatpush.msra.mxu0 0.0
      %2548 = vmatpush.msra.mxu0 0.0
      %2549 = vmatpush.msra.mxu0 0.0
      %2550 = vmatpush.msra.mxu0 0.0
      %2551 = vmatpush.msra.mxu0 0.0
      %2552 = vmatpush.msra.mxu0 0.0
      %2553 = vmatpush.msra.mxu0 %v2470
      %2554 = vmatmul.f32.gmra.mxu0 %v2476
      %v2555 = vpop.f32.mrf.mxu0
      %v2556 = vadd.f32 0.0, %v2555
      %2557 = vdwg.mxu0
      %v2558 = vadd.f32 %v2452, %v2496
      %v2559 = vadd.f32 %v2453, %v2516
      %v2560 = vadd.f32 %v2454, %v2536
      %v2561 = vadd.f32 %v2455, %v2556
      %2562 = vrot.lane.b32.xlu0 %v219, 45
      %v2563 = vpop.permute.xlu0 %2562
      %2564 = vrot.lane.b32.xlu0 %v220, 45
      %v2565 = vpop.permute.xlu0 %2564
      %2566 = vrot.lane.b32.xlu0 %v221, 45
      %v2567 = vpop.permute.xlu0 %2566
      %2568 = vrot.lane.b32.xlu0 %v222, 45
      %v2569 = vpop.permute.xlu0 %2568
      %2570 = vrot.lane.b32.xlu0 %v223, 45
      %v2571 = vpop.permute.xlu0 %2570
      %vm2572 = vcmask 367616
      %v2573 = vsel %vm2572, %v2563, %v2565
      %v2574 = vsel %vm2572, %v2565, %v2567
      %v2575 = vsel %vm2572, %v2567, %v2569
      %v2576 = vsel %vm2572, %v2569, %v2571
      %v2582 = vsel %vm275, %v246, 0
      %2584 = vmatpush.msra.mxu0 0.0
      %2585 = vmatpush.msra.mxu0 0.0
      %2586 = vmatpush.msra.mxu0 0.0
      %2587 = vmatpush.msra.mxu0 0.0
      %2588 = vmatpush.msra.mxu0 0.0
      %2589 = vmatpush.msra.mxu0 0.0
      %2590 = vmatpush.msra.mxu0 0.0
      %2591 = vmatpush.msra.mxu0 0.0
      %2592 = vmatpush.msra.mxu0 0.0
      %2593 = vmatpush.msra.mxu0 0.0
      %2594 = vmatpush.msra.mxu0 0.0
      %2595 = vmatpush.msra.mxu0 0.0
      %2596 = vmatpush.msra.mxu0 0.0
      %2597 = vmatpush.msra.mxu0 0.0
      %2598 = vmatpush.msra.mxu0 0.0
      %2599 = vmatpush.msra.mxu0 %v2573
      %2600 = vmatmul.f32.gmra.mxu0 %v2582
      %v2601 = vpop.f32.mrf.mxu0
      %v2602 = vadd.f32 0.0, %v2601
      %2603 = vdwg.mxu0
      %2604 = vmatpush.msra.mxu0 0.0
      %2605 = vmatpush.msra.mxu0 0.0
      %2606 = vmatpush.msra.mxu0 0.0
      %2607 = vmatpush.msra.mxu0 0.0
      %2608 = vmatpush.msra.mxu0 0.0
      %2609 = vmatpush.msra.mxu0 0.0
      %2610 = vmatpush.msra.mxu0 0.0
      %2611 = vmatpush.msra.mxu0 0.0
      %2612 = vmatpush.msra.mxu0 0.0
      %2613 = vmatpush.msra.mxu0 0.0
      %2614 = vmatpush.msra.mxu0 0.0
      %2615 = vmatpush.msra.mxu0 0.0
      %2616 = vmatpush.msra.mxu0 0.0
      %2617 = vmatpush.msra.mxu0 0.0
      %2618 = vmatpush.msra.mxu0 0.0
      %2619 = vmatpush.msra.mxu0 %v2574
      %2620 = vmatmul.f32.gmra.mxu0 %v2582
      %v2621 = vpop.f32.mrf.mxu0
      %v2622 = vadd.f32 0.0, %v2621
      %2623 = vdwg.mxu0
      %2624 = vmatpush.msra.mxu0 0.0
      %2625 = vmatpush.msra.mxu0 0.0
      %2626 = vmatpush.msra.mxu0 0.0
      %2627 = vmatpush.msra.mxu0 0.0
      %2628 = vmatpush.msra.mxu0 0.0
      %2629 = vmatpush.msra.mxu0 0.0
      %2630 = vmatpush.msra.mxu0 0.0
      %2631 = vmatpush.msra.mxu0 0.0
      %2632 = vmatpush.msra.mxu0 0.0
      %2633 = vmatpush.msra.mxu0 0.0
      %2634 = vmatpush.msra.mxu0 0.0
      %2635 = vmatpush.msra.mxu0 0.0
      %2636 = vmatpush.msra.mxu0 0.0
      %2637 = vmatpush.msra.mxu0 0.0
      %2638 = vmatpush.msra.mxu0 0.0
      %2639 = vmatpush.msra.mxu0 %v2575
      %2640 = vmatmul.f32.gmra.mxu0 %v2582
      %v2641 = vpop.f32.mrf.mxu0
      %v2642 = vadd.f32 0.0, %v2641
      %2643 = vdwg.mxu0
      %2644 = vmatpush.msra.mxu0 0.0
      %2645 = vmatpush.msra.mxu0 0.0
      %2646 = vmatpush.msra.mxu0 0.0
      %2647 = vmatpush.msra.mxu0 0.0
      %2648 = vmatpush.msra.mxu0 0.0
      %2649 = vmatpush.msra.mxu0 0.0
      %2650 = vmatpush.msra.mxu0 0.0
      %2651 = vmatpush.msra.mxu0 0.0
      %2652 = vmatpush.msra.mxu0 0.0
      %2653 = vmatpush.msra.mxu0 0.0
      %2654 = vmatpush.msra.mxu0 0.0
      %2655 = vmatpush.msra.mxu0 0.0
      %2656 = vmatpush.msra.mxu0 0.0
      %2657 = vmatpush.msra.mxu0 0.0
      %2658 = vmatpush.msra.mxu0 0.0
      %2659 = vmatpush.msra.mxu0 %v2576
      %2660 = vmatmul.f32.gmra.mxu0 %v2582
      %v2661 = vpop.f32.mrf.mxu0
      %v2662 = vadd.f32 0.0, %v2661
      %2663 = vdwg.mxu0
      %v2664 = vadd.f32 %v2558, %v2602
      %v2665 = vadd.f32 %v2559, %v2622
      %v2666 = vadd.f32 %v2560, %v2642
      %v2667 = vadd.f32 %v2561, %v2662
      %2668 = vrot.lane.b32.xlu0 %v219, 44
      %v2669 = vpop.permute.xlu0 %2668
      %2670 = vrot.lane.b32.xlu0 %v220, 44
      %v2671 = vpop.permute.xlu0 %2670
      %2672 = vrot.lane.b32.xlu0 %v221, 44
      %v2673 = vpop.permute.xlu0 %2672
      %2674 = vrot.lane.b32.xlu0 %v222, 44
      %v2675 = vpop.permute.xlu0 %2674
      %2676 = vrot.lane.b32.xlu0 %v223, 44
      %v2677 = vpop.permute.xlu0 %2676
      %vm2678 = vcmask 359424
      %v2679 = vsel %vm2678, %v2669, %v2671
      %v2680 = vsel %vm2678, %v2671, %v2673
      %v2681 = vsel %vm2678, %v2673, %v2675
      %v2682 = vsel %vm2678, %v2675, %v2677
      %v2688 = vsel %vm275, %v247, 0
      %2690 = vmatpush.msra.mxu0 0.0
      %2691 = vmatpush.msra.mxu0 0.0
      %2692 = vmatpush.msra.mxu0 0.0
      %2693 = vmatpush.msra.mxu0 0.0
      %2694 = vmatpush.msra.mxu0 0.0
      %2695 = vmatpush.msra.mxu0 0.0
      %2696 = vmatpush.msra.mxu0 0.0
      %2697 = vmatpush.msra.mxu0 0.0
      %2698 = vmatpush.msra.mxu0 0.0
      %2699 = vmatpush.msra.mxu0 0.0
      %2700 = vmatpush.msra.mxu0 0.0
      %2701 = vmatpush.msra.mxu0 0.0
      %2702 = vmatpush.msra.mxu0 0.0
      %2703 = vmatpush.msra.mxu0 0.0
      %2704 = vmatpush.msra.mxu0 0.0
      %2705 = vmatpush.msra.mxu0 %v2679
      %2706 = vmatmul.f32.gmra.mxu0 %v2688
      %v2707 = vpop.f32.mrf.mxu0
      %v2708 = vadd.f32 0.0, %v2707
      %2709 = vdwg.mxu0
      %2710 = vmatpush.msra.mxu0 0.0
      %2711 = vmatpush.msra.mxu0 0.0
      %2712 = vmatpush.msra.mxu0 0.0
      %2713 = vmatpush.msra.mxu0 0.0
      %2714 = vmatpush.msra.mxu0 0.0
      %2715 = vmatpush.msra.mxu0 0.0
      %2716 = vmatpush.msra.mxu0 0.0
      %2717 = vmatpush.msra.mxu0 0.0
      %2718 = vmatpush.msra.mxu0 0.0
      %2719 = vmatpush.msra.mxu0 0.0
      %2720 = vmatpush.msra.mxu0 0.0
      %2721 = vmatpush.msra.mxu0 0.0
      %2722 = vmatpush.msra.mxu0 0.0
      %2723 = vmatpush.msra.mxu0 0.0
      %2724 = vmatpush.msra.mxu0 0.0
      %2725 = vmatpush.msra.mxu0 %v2680
      %2726 = vmatmul.f32.gmra.mxu0 %v2688
      %v2727 = vpop.f32.mrf.mxu0
      %v2728 = vadd.f32 0.0, %v2727
      %2729 = vdwg.mxu0
      %2730 = vmatpush.msra.mxu0 0.0
      %2731 = vmatpush.msra.mxu0 0.0
      %2732 = vmatpush.msra.mxu0 0.0
      %2733 = vmatpush.msra.mxu0 0.0
      %2734 = vmatpush.msra.mxu0 0.0
      %2735 = vmatpush.msra.mxu0 0.0
      %2736 = vmatpush.msra.mxu0 0.0
      %2737 = vmatpush.msra.mxu0 0.0
      %2738 = vmatpush.msra.mxu0 0.0
      %2739 = vmatpush.msra.mxu0 0.0
      %2740 = vmatpush.msra.mxu0 0.0
      %2741 = vmatpush.msra.mxu0 0.0
      %2742 = vmatpush.msra.mxu0 0.0
      %2743 = vmatpush.msra.mxu0 0.0
      %2744 = vmatpush.msra.mxu0 0.0
      %2745 = vmatpush.msra.mxu0 %v2681
      %2746 = vmatmul.f32.gmra.mxu0 %v2688
      %v2747 = vpop.f32.mrf.mxu0
      %v2748 = vadd.f32 0.0, %v2747
      %2749 = vdwg.mxu0
      %2750 = vmatpush.msra.mxu0 0.0
      %2751 = vmatpush.msra.mxu0 0.0
      %2752 = vmatpush.msra.mxu0 0.0
      %2753 = vmatpush.msra.mxu0 0.0
      %2754 = vmatpush.msra.mxu0 0.0
      %2755 = vmatpush.msra.mxu0 0.0
      %2756 = vmatpush.msra.mxu0 0.0
      %2757 = vmatpush.msra.mxu0 0.0
      %2758 = vmatpush.msra.mxu0 0.0
      %2759 = vmatpush.msra.mxu0 0.0
      %2760 = vmatpush.msra.mxu0 0.0
      %2761 = vmatpush.msra.mxu0 0.0
      %2762 = vmatpush.msra.mxu0 0.0
      %2763 = vmatpush.msra.mxu0 0.0
      %2764 = vmatpush.msra.mxu0 0.0
      %2765 = vmatpush.msra.mxu0 %v2682
      %2766 = vmatmul.f32.gmra.mxu0 %v2688
      %v2767 = vpop.f32.mrf.mxu0
      %v2768 = vadd.f32 0.0, %v2767
      %2769 = vdwg.mxu0
      %v2770 = vadd.f32 %v2664, %v2708
      %v2771 = vadd.f32 %v2665, %v2728
      %v2772 = vadd.f32 %v2666, %v2748
      %v2773 = vadd.f32 %v2667, %v2768
      %2774 = vrot.lane.b32.xlu0 %v219, 36
      %v2775 = vpop.permute.xlu0 %2774
      %2776 = vrot.lane.b32.xlu0 %v220, 36
      %v2777 = vpop.permute.xlu0 %2776
      %2778 = vrot.lane.b32.xlu0 %v221, 36
      %v2779 = vpop.permute.xlu0 %2778
      %2780 = vrot.lane.b32.xlu0 %v222, 36
      %v2781 = vpop.permute.xlu0 %2780
      %2782 = vrot.lane.b32.xlu0 %v223, 36
      %v2783 = vpop.permute.xlu0 %2782
      %vm2784 = vcmask 293888
      %v2785 = vsel %vm2784, %v2775, %v2777
      %v2786 = vsel %vm2784, %v2777, %v2779
      %v2787 = vsel %vm2784, %v2779, %v2781
      %v2788 = vsel %vm2784, %v2781, %v2783
      %v2794 = vsel %vm275, %v248, 0
      %2796 = vmatpush.msra.mxu0 0.0
      %2797 = vmatpush.msra.mxu0 0.0
      %2798 = vmatpush.msra.mxu0 0.0
      %2799 = vmatpush.msra.mxu0 0.0
      %2800 = vmatpush.msra.mxu0 0.0
      %2801 = vmatpush.msra.mxu0 0.0
      %2802 = vmatpush.msra.mxu0 0.0
      %2803 = vmatpush.msra.mxu0 0.0
      %2804 = vmatpush.msra.mxu0 0.0
      %2805 = vmatpush.msra.mxu0 0.0
      %2806 = vmatpush.msra.mxu0 0.0
      %2807 = vmatpush.msra.mxu0 0.0
      %2808 = vmatpush.msra.mxu0 0.0
      %2809 = vmatpush.msra.mxu0 0.0
      %2810 = vmatpush.msra.mxu0 0.0
      %2811 = vmatpush.msra.mxu0 %v2785
      %2812 = vmatmul.f32.gmra.mxu0 %v2794
      %v2813 = vpop.f32.mrf.mxu0
      %v2814 = vadd.f32 0.0, %v2813
      %2815 = vdwg.mxu0
      %2816 = vmatpush.msra.mxu0 0.0
      %2817 = vmatpush.msra.mxu0 0.0
      %2818 = vmatpush.msra.mxu0 0.0
      %2819 = vmatpush.msra.mxu0 0.0
      %2820 = vmatpush.msra.mxu0 0.0
      %2821 = vmatpush.msra.mxu0 0.0
      %2822 = vmatpush.msra.mxu0 0.0
      %2823 = vmatpush.msra.mxu0 0.0
      %2824 = vmatpush.msra.mxu0 0.0
      %2825 = vmatpush.msra.mxu0 0.0
      %2826 = vmatpush.msra.mxu0 0.0
      %2827 = vmatpush.msra.mxu0 0.0
      %2828 = vmatpush.msra.mxu0 0.0
      %2829 = vmatpush.msra.mxu0 0.0
      %2830 = vmatpush.msra.mxu0 0.0
      %2831 = vmatpush.msra.mxu0 %v2786
      %2832 = vmatmul.f32.gmra.mxu0 %v2794
      %v2833 = vpop.f32.mrf.mxu0
      %v2834 = vadd.f32 0.0, %v2833
      %2835 = vdwg.mxu0
      %2836 = vmatpush.msra.mxu0 0.0
      %2837 = vmatpush.msra.mxu0 0.0
      %2838 = vmatpush.msra.mxu0 0.0
      %2839 = vmatpush.msra.mxu0 0.0
      %2840 = vmatpush.msra.mxu0 0.0
      %2841 = vmatpush.msra.mxu0 0.0
      %2842 = vmatpush.msra.mxu0 0.0
      %2843 = vmatpush.msra.mxu0 0.0
      %2844 = vmatpush.msra.mxu0 0.0
      %2845 = vmatpush.msra.mxu0 0.0
      %2846 = vmatpush.msra.mxu0 0.0
      %2847 = vmatpush.msra.mxu0 0.0
      %2848 = vmatpush.msra.mxu0 0.0
      %2849 = vmatpush.msra.mxu0 0.0
      %2850 = vmatpush.msra.mxu0 0.0
      %2851 = vmatpush.msra.mxu0 %v2787
      %2852 = vmatmul.f32.gmra.mxu0 %v2794
      %v2853 = vpop.f32.mrf.mxu0
      %v2854 = vadd.f32 0.0, %v2853
      %2855 = vdwg.mxu0
      %2856 = vmatpush.msra.mxu0 0.0
      %2857 = vmatpush.msra.mxu0 0.0
      %2858 = vmatpush.msra.mxu0 0.0
      %2859 = vmatpush.msra.mxu0 0.0
      %2860 = vmatpush.msra.mxu0 0.0
      %2861 = vmatpush.msra.mxu0 0.0
      %2862 = vmatpush.msra.mxu0 0.0
      %2863 = vmatpush.msra.mxu0 0.0
      %2864 = vmatpush.msra.mxu0 0.0
      %2865 = vmatpush.msra.mxu0 0.0
      %2866 = vmatpush.msra.mxu0 0.0
      %2867 = vmatpush.msra.mxu0 0.0
      %2868 = vmatpush.msra.mxu0 0.0
      %2869 = vmatpush.msra.mxu0 0.0
      %2870 = vmatpush.msra.mxu0 0.0
      %2871 = vmatpush.msra.mxu0 %v2788
      %2872 = vmatmul.f32.gmra.mxu0 %v2794
      %v2873 = vpop.f32.mrf.mxu0
      %v2874 = vadd.f32 0.0, %v2873
      %2875 = vdwg.mxu0
      %v2876 = vadd.f32 %v2770, %v2814
      %v2877 = vadd.f32 %v2771, %v2834
      %v2878 = vadd.f32 %v2772, %v2854
      %v2879 = vadd.f32 %v2773, %v2874
      %2880 = vrot.lane.b32.xlu0 %v219, 35
      %v2881 = vpop.permute.xlu0 %2880
      %2882 = vrot.lane.b32.xlu0 %v220, 35
      %v2883 = vpop.permute.xlu0 %2882
      %2884 = vrot.lane.b32.xlu0 %v221, 35
      %v2885 = vpop.permute.xlu0 %2884
      %2886 = vrot.lane.b32.xlu0 %v222, 35
      %v2887 = vpop.permute.xlu0 %2886
      %2888 = vrot.lane.b32.xlu0 %v223, 35
      %v2889 = vpop.permute.xlu0 %2888
      %vm2890 = vcmask 285696
      %v2891 = vsel %vm2890, %v2881, %v2883
      %v2892 = vsel %vm2890, %v2883, %v2885
      %v2893 = vsel %vm2890, %v2885, %v2887
      %v2894 = vsel %vm2890, %v2887, %v2889
      %v2900 = vsel %vm275, %v249, 0
      %2902 = vmatpush.msra.mxu0 0.0
      %2903 = vmatpush.msra.mxu0 0.0
      %2904 = vmatpush.msra.mxu0 0.0
      %2905 = vmatpush.msra.mxu0 0.0
      %2906 = vmatpush.msra.mxu0 0.0
      %2907 = vmatpush.msra.mxu0 0.0
      %2908 = vmatpush.msra.mxu0 0.0
      %2909 = vmatpush.msra.mxu0 0.0
      %2910 = vmatpush.msra.mxu0 0.0
      %2911 = vmatpush.msra.mxu0 0.0
      %2912 = vmatpush.msra.mxu0 0.0
      %2913 = vmatpush.msra.mxu0 0.0
      %2914 = vmatpush.msra.mxu0 0.0
      %2915 = vmatpush.msra.mxu0 0.0
      %2916 = vmatpush.msra.mxu0 0.0
      %2917 = vmatpush.msra.mxu0 %v2891
      %2918 = vmatmul.f32.gmra.mxu0 %v2900
      %v2919 = vpop.f32.mrf.mxu0
      %v2920 = vadd.f32 0.0, %v2919
      %2921 = vdwg.mxu0
      %2922 = vmatpush.msra.mxu0 0.0
      %2923 = vmatpush.msra.mxu0 0.0
      %2924 = vmatpush.msra.mxu0 0.0
      %2925 = vmatpush.msra.mxu0 0.0
      %2926 = vmatpush.msra.mxu0 0.0
      %2927 = vmatpush.msra.mxu0 0.0
      %2928 = vmatpush.msra.mxu0 0.0
      %2929 = vmatpush.msra.mxu0 0.0
      %2930 = vmatpush.msra.mxu0 0.0
      %2931 = vmatpush.msra.mxu0 0.0
      %2932 = vmatpush.msra.mxu0 0.0
      %2933 = vmatpush.msra.mxu0 0.0
      %2934 = vmatpush.msra.mxu0 0.0
      %2935 = vmatpush.msra.mxu0 0.0
      %2936 = vmatpush.msra.mxu0 0.0
      %2937 = vmatpush.msra.mxu0 %v2892
      %2938 = vmatmul.f32.gmra.mxu0 %v2900
      %v2939 = vpop.f32.mrf.mxu0
      %v2940 = vadd.f32 0.0, %v2939
      %2941 = vdwg.mxu0
      %2942 = vmatpush.msra.mxu0 0.0
      %2943 = vmatpush.msra.mxu0 0.0
      %2944 = vmatpush.msra.mxu0 0.0
      %2945 = vmatpush.msra.mxu0 0.0
      %2946 = vmatpush.msra.mxu0 0.0
      %2947 = vmatpush.msra.mxu0 0.0
      %2948 = vmatpush.msra.mxu0 0.0
      %2949 = vmatpush.msra.mxu0 0.0
      %2950 = vmatpush.msra.mxu0 0.0
      %2951 = vmatpush.msra.mxu0 0.0
      %2952 = vmatpush.msra.mxu0 0.0
      %2953 = vmatpush.msra.mxu0 0.0
      %2954 = vmatpush.msra.mxu0 0.0
      %2955 = vmatpush.msra.mxu0 0.0
      %2956 = vmatpush.msra.mxu0 0.0
      %2957 = vmatpush.msra.mxu0 %v2893
      %2958 = vmatmul.f32.gmra.mxu0 %v2900
      %v2959 = vpop.f32.mrf.mxu0
      %v2960 = vadd.f32 0.0, %v2959
      %2961 = vdwg.mxu0
      %2962 = vmatpush.msra.mxu0 0.0
      %2963 = vmatpush.msra.mxu0 0.0
      %2964 = vmatpush.msra.mxu0 0.0
      %2965 = vmatpush.msra.mxu0 0.0
      %2966 = vmatpush.msra.mxu0 0.0
      %2967 = vmatpush.msra.mxu0 0.0
      %2968 = vmatpush.msra.mxu0 0.0
      %2969 = vmatpush.msra.mxu0 0.0
      %2970 = vmatpush.msra.mxu0 0.0
      %2971 = vmatpush.msra.mxu0 0.0
      %2972 = vmatpush.msra.mxu0 0.0
      %2973 = vmatpush.msra.mxu0 0.0
      %2974 = vmatpush.msra.mxu0 0.0
      %2975 = vmatpush.msra.mxu0 0.0
      %2976 = vmatpush.msra.mxu0 0.0
      %2977 = vmatpush.msra.mxu0 %v2894
      %2978 = vmatmul.f32.gmra.mxu0 %v2900
      %v2979 = vpop.f32.mrf.mxu0
      %v2980 = vadd.f32 0.0, %v2979
      %2981 = vdwg.mxu0
      %v2982 = vadd.f32 %v2876, %v2920
      %v2983 = vadd.f32 %v2877, %v2940
      %v2984 = vadd.f32 %v2878, %v2960
      %v2985 = vadd.f32 %v2879, %v2980
      %2986 = vrot.lane.b32.xlu0 %v219, 34
      %v2987 = vpop.permute.xlu0 %2986
      %2988 = vrot.lane.b32.xlu0 %v220, 34
      %v2989 = vpop.permute.xlu0 %2988
      %2990 = vrot.lane.b32.xlu0 %v221, 34
      %v2991 = vpop.permute.xlu0 %2990
      %2992 = vrot.lane.b32.xlu0 %v222, 34
      %v2993 = vpop.permute.xlu0 %2992
      %2994 = vrot.lane.b32.xlu0 %v223, 34
      %v2995 = vpop.permute.xlu0 %2994
      %vm2996 = vcmask 277504
      %v2997 = vsel %vm2996, %v2987, %v2989
      %v2998 = vsel %vm2996, %v2989, %v2991
      %v2999 = vsel %vm2996, %v2991, %v2993
      %v3000 = vsel %vm2996, %v2993, %v2995
      %v3006 = vsel %vm275, %v250, 0
      %3008 = vmatpush.msra.mxu0 0.0
      %3009 = vmatpush.msra.mxu0 0.0
      %3010 = vmatpush.msra.mxu0 0.0
      %3011 = vmatpush.msra.mxu0 0.0
      %3012 = vmatpush.msra.mxu0 0.0
      %3013 = vmatpush.msra.mxu0 0.0
      %3014 = vmatpush.msra.mxu0 0.0
      %3015 = vmatpush.msra.mxu0 0.0
      %3016 = vmatpush.msra.mxu0 0.0
      %3017 = vmatpush.msra.mxu0 0.0
      %3018 = vmatpush.msra.mxu0 0.0
      %3019 = vmatpush.msra.mxu0 0.0
      %3020 = vmatpush.msra.mxu0 0.0
      %3021 = vmatpush.msra.mxu0 0.0
      %3022 = vmatpush.msra.mxu0 0.0
      %3023 = vmatpush.msra.mxu0 %v2997
      %3024 = vmatmul.f32.gmra.mxu0 %v3006
      %v3025 = vpop.f32.mrf.mxu0
      %v3026 = vadd.f32 0.0, %v3025
      %3027 = vdwg.mxu0
      %3028 = vmatpush.msra.mxu0 0.0
      %3029 = vmatpush.msra.mxu0 0.0
      %3030 = vmatpush.msra.mxu0 0.0
      %3031 = vmatpush.msra.mxu0 0.0
      %3032 = vmatpush.msra.mxu0 0.0
      %3033 = vmatpush.msra.mxu0 0.0
      %3034 = vmatpush.msra.mxu0 0.0
      %3035 = vmatpush.msra.mxu0 0.0
      %3036 = vmatpush.msra.mxu0 0.0
      %3037 = vmatpush.msra.mxu0 0.0
      %3038 = vmatpush.msra.mxu0 0.0
      %3039 = vmatpush.msra.mxu0 0.0
      %3040 = vmatpush.msra.mxu0 0.0
      %3041 = vmatpush.msra.mxu0 0.0
      %3042 = vmatpush.msra.mxu0 0.0
      %3043 = vmatpush.msra.mxu0 %v2998
      %3044 = vmatmul.f32.gmra.mxu0 %v3006
      %v3045 = vpop.f32.mrf.mxu0
      %v3046 = vadd.f32 0.0, %v3045
      %3047 = vdwg.mxu0
      %3048 = vmatpush.msra.mxu0 0.0
      %3049 = vmatpush.msra.mxu0 0.0
      %3050 = vmatpush.msra.mxu0 0.0
      %3051 = vmatpush.msra.mxu0 0.0
      %3052 = vmatpush.msra.mxu0 0.0
      %3053 = vmatpush.msra.mxu0 0.0
      %3054 = vmatpush.msra.mxu0 0.0
      %3055 = vmatpush.msra.mxu0 0.0
      %3056 = vmatpush.msra.mxu0 0.0
      %3057 = vmatpush.msra.mxu0 0.0
      %3058 = vmatpush.msra.mxu0 0.0
      %3059 = vmatpush.msra.mxu0 0.0
      %3060 = vmatpush.msra.mxu0 0.0
      %3061 = vmatpush.msra.mxu0 0.0
      %3062 = vmatpush.msra.mxu0 0.0
      %3063 = vmatpush.msra.mxu0 %v2999
      %3064 = vmatmul.f32.gmra.mxu0 %v3006
      %v3065 = vpop.f32.mrf.mxu0
      %v3066 = vadd.f32 0.0, %v3065
      %3067 = vdwg.mxu0
      %3068 = vmatpush.msra.mxu0 0.0
      %3069 = vmatpush.msra.mxu0 0.0
      %3070 = vmatpush.msra.mxu0 0.0
      %3071 = vmatpush.msra.mxu0 0.0
      %3072 = vmatpush.msra.mxu0 0.0
      %3073 = vmatpush.msra.mxu0 0.0
      %3074 = vmatpush.msra.mxu0 0.0
      %3075 = vmatpush.msra.mxu0 0.0
      %3076 = vmatpush.msra.mxu0 0.0
      %3077 = vmatpush.msra.mxu0 0.0
      %3078 = vmatpush.msra.mxu0 0.0
      %3079 = vmatpush.msra.mxu0 0.0
      %3080 = vmatpush.msra.mxu0 0.0
      %3081 = vmatpush.msra.mxu0 0.0
      %3082 = vmatpush.msra.mxu0 0.0
      %3083 = vmatpush.msra.mxu0 %v3000
      %3084 = vmatmul.f32.gmra.mxu0 %v3006
      %v3085 = vpop.f32.mrf.mxu0
      %v3086 = vadd.f32 0.0, %v3085
      %3087 = vdwg.mxu0
      %v3088 = vadd.f32 %v2982, %v3026
      %v3089 = vadd.f32 %v2983, %v3046
      %v3090 = vadd.f32 %v2984, %v3066
      %v3091 = vadd.f32 %v2985, %v3086
      %v3092 = vld [vmem:[%s2] sm:$0xff]
      %3094 = vset.pattern.permute.xlu0 0
      %3095 = vperm.xlu0 %3094, %v3092
      %v3096 = vpop.permute.xlu0 %3095
      %v3098 = vadd.f32 %v3088, %v3096
      %v3099 = vadd.f32 %v3089, %v3096
      %v3100 = vadd.f32 %v3090, %v3096
      %v3101 = vadd.f32 %v3091, %v3096
      %v3102 = vld [vmem:[%s212] sm:$0xff]
      %v3103 = vld [vmem:[%s212 + $0x8] sm:$0xff]
      %v3104 = vld [vmem:[%s212 + $0x10] sm:$0xff]
      %v3105 = vld [vmem:[%s212 + $0x18] sm:$0xff]
      %v3106 = vadd.f32 %v3098, %v3102
      %v3107 = vadd.f32 %v3099, %v3103
      %v3108 = vadd.f32 %v3100, %v3104
      %v3109 = vadd.f32 %v3101, %v3105
      %3110 = vst [vmem:[%s217] sm:$0xff] %v3106
      %3111 = vst [vmem:[%s217 + $0x8] sm:$0xff] %v3107
      %3112 = vst [vmem:[%s217 + $0x10] sm:$0xff] %v3108
      %3113 = vst [vmem:[%s217 + $0x18] sm:$0xff] %v3109
      %p3114 = scmp.lt.s32.totalorder %s15, 1
      %s3115 = scalar_select %p3114, %s15, 1
      %s3116 = smul.addr %s3115, 4
      %s3117 = smul.addr %s3116, 8
      %s3118 = scalar_lea.vmem %s4, %s3117
      // Predicated region
      $region37: #{basconv_block_forward.5} parent=35 // pred_check
        %p3119 = pneg %p127
      $region38: #{basconv_block_forward.5} parent=35 // pred_check_branch
        %3121 = sbr.rel (%p3119) target = $region40
      $region39: #{basconv_block_forward.5} parent=35 // pred_region
        _
      $region40: #{basconv_block_forward.5} parent=35 // pred_fallthru
        _
    $region36: #{basconv_block_forward.5} parent=5 // pred_fallthru
      _
    %p3122 = scmp.le.s32.totalorder 2, %s10
    // Predicated region
    $region41: #{basconv_block_forward.5} parent=5 // pred_check
      %p3123 = pneg %p3122
    $region42: #{basconv_block_forward.5} parent=5 // pred_check_branch
      %3125 = sbr.rel (%p3123) target = $region44
    $region43: #{basconv_block_forward.5} parent=5 // pred_region
      %s3126 = ssub.s32 %s10, 2
      // Predicated region
      $region45: #{basconv_block_forward.5} parent=43 // pred_check
        %p3127 = pneg %p133
      $region46: #{basconv_block_forward.5} parent=43 // pred_check_branch
        %3129 = sbr.rel (%p3127) target = $region48
      $region47: #{basconv_block_forward.5} parent=43 // pred_region
        %p3130 = scmp.lt.s32.totalorder %s16, 1
        %s3131 = scalar_select %p3130, %s16, 1
        %s3132 = smul.addr %s3131, 4
        %s3133 = smul.addr %s3132, 8
        %s3134 = scalar_lea.vmem %s4, %s3133
      $region48: #{basconv_block_forward.5} parent=43 // pred_fallthru
        _
    $region44: #{basconv_block_forward.5} parent=5 // pred_fallthru
      _
  $region6: #{basconv_block_forward.5} parent=0 // loop_footer
    %s14 = sadd.s32 1, %s10
  $region7: #{basconv_block_forward.5} parent=0 // loop_footer_branch
    %9 = sbr.rel target = $region3
  $region8: #{basconv_block_forward.5} parent=0 // loop_exit
    _

// kernel: basconv_block_forward.3
$region0: #{basconv_block_forward.3}
  #allocation0 [shape = 'u32[]', space=smem, size = 0x4, offset = 0x4, fixed_abs, tag = 'smem constant byte address 0x4 - core index']
  #allocation1 [shape = 'u32[72,128]{1,0:T(1,128)}', space=vmem, size = 0x9000, scoped, tag = 'internal scratch']
  %s0 = inlined_call_operand.vmem [shape: f32[2,8,768], index: 0, kind: input, shape index: {}]
  %s1 = inlined_call_operand.vmem [shape: f32[27,8,8], index: 1, kind: input, shape index: {}]
  %s2 = inlined_call_operand.vmem [shape: f32[8,1], index: 2, kind: input, shape index: {}]
  %s3 = inlined_call_operand.vmem [shape: f32[2,8,512], index: 3, kind: output, shape index: {}]
  %s4 = sld [smem:[#allocation0]]
  $region45: #{basconv_block_forward.3} parent=0
    _
  %s6 = ssub.s32 1, %s4
  %s7 = scalar_select 0, %s6, %s4
  loop: start=0, step=1, limit=4
  $region2: #{basconv_block_forward.3} parent=0 // loop_pre_header
    _
  $region3: #{basconv_block_forward.3} parent=0 // loop_header
    %s9 = sphi 0, %s13
    %p10 = scmp.ge.s32.totalorder %s9, 4
    %s19 = sphi 0, %s21
    %s22 = sphi 0, %s19
    %s23 = sphi 0, %s22
    %s39 = sphi 0, %s23
    %s43 = sphi 0, %s43
    %s45 = sphi 0, %s43
    %s46 = sphi 0, %s45
    %s60 = sphi 0, %s46
    %s64 = sphi 0, %s64
    %s66 = sphi 0, %s64
    %s67 = sphi 0, %s66
    %s81 = sphi 0, %s67
    %s87 = sphi 0, %s89
    %s90 = sphi 0, %s87
    %s91 = sphi 0, %s90
    %s107 = sphi 0, %s91
  $region4: #{basconv_block_forward.3} parent=0 // loop_header_branch
    %12 = sbr.rel (%p10) target = $region8
  $region5: #{basconv_block_forward.3} parent=0 // loop_body
    %s14 = ssub.s32 %s9, 1
    %s15 = ssub.s32 %s9, 2
    %s16 = sadd.s32 %s9, 1
    %s17 = ssub.s32 %s9, %s16
    %p18 = scmp.eq.s32.totalorder %s17, 0
    %s20 = sadd.s32 %s19, 1
    %s21 = scalar_select %p18, %s19, %s20
    %p24 = pneg %p18
    %p25 = scmp.eq.s32.totalorder %s9, 1
    %p26 = por %p24, %p25
    %p27 = scmp.ne.s32.totalorder %s19, %s22
    %p28 = scmp.eq.s32.totalorder %s9, 0
    %p29 = por %p27, %p28
    %p30 = scmp.ne.s32.totalorder %s19, %s22
    %p31 = scmp.eq.s32.totalorder %s14, 1
    %p32 = por %p30, %p31
    %p33 = scmp.ne.s32.totalorder %s22, %s23
    %p34 = scmp.eq.s32.totalorder %s14, 0
    %p35 = por %p33, %p34
    %p36 = scmp.ne.s32.totalorder %s22, %s23
    %p37 = scmp.eq.s32.totalorder %s15, 1
    %p38 = por %p36, %p37
    %p40 = scmp.ne.s32.totalorder %s23, %s39
    %p41 = scmp.eq.s32.totalorder %s15, 0
    %p42 = por %p40, %p41
    %s44 = sadd.s32 %s43, 1
    %p47 = scmp.eq.s32.totalorder %s9, 1
    %p48 = scmp.ne.s32.totalorder %s43, %s45
    %p49 = scmp.eq.s32.totalorder %s9, 0
    %p50 = por %p48, %p49
    %p51 = scmp.ne.s32.totalorder %s43, %s45
    %p52 = scmp.eq.s32.totalorder %s14, 1
    %p53 = por %p51, %p52
    %p54 = scmp.ne.s32.totalorder %s45, %s46
    %p55 = scmp.eq.s32.totalorder %s14, 0
    %p56 = por %p54, %p55
    %p57 = scmp.ne.s32.totalorder %s45, %s46
    %p58 = scmp.eq.s32.totalorder %s15, 1
    %p59 = por %p57, %p58
    %p61 = scmp.ne.s32.totalorder %s46, %s60
    %p62 = scmp.eq.s32.totalorder %s15, 0
    %p63 = por %p61, %p62
    %s65 = sadd.s32 %s64, 1
    %p68 = scmp.eq.s32.totalorder %s9, 1
    %p69 = scmp.ne.s32.totalorder %s64, %s66
    %p70 = scmp.eq.s32.totalorder %s9, 0
    %p71 = por %p69, %p70
    %p72 = scmp.ne.s32.totalorder %s64, %s66
    %p73 = scmp.eq.s32.totalorder %s14, 1
    %p74 = por %p72, %p73
    %p75 = scmp.ne.s32.totalorder %s66, %s67
    %p76 = scmp.eq.s32.totalorder %s14, 0
    %p77 = por %p75, %p76
    %p78 = scmp.ne.s32.totalorder %s66, %s67
    %p79 = scmp.eq.s32.totalorder %s15, 1
    %p80 = por %p78, %p79
    %p82 = scmp.ne.s32.totalorder %s67, %s81
    %p83 = scmp.eq.s32.totalorder %s15, 0
    %p84 = por %p82, %p83
    %s85 = ssub.s32 %s9, %s16
    %p86 = scmp.eq.s32.totalorder %s85, 0
    %s88 = sadd.s32 %s87, 1
    %s89 = scalar_select %p86, %s87, %s88
    %p92 = pneg %p86
    %p93 = scmp.eq.s32.totalorder %s9, 1
    %p94 = por %p92, %p93
    %p95 = scmp.ne.s32.totalorder %s87, %s90
    %p96 = scmp.eq.s32.totalorder %s9, 0
    %p97 = por %p95, %p96
    %p98 = scmp.ne.s32.totalorder %s87, %s90
    %p99 = scmp.eq.s32.totalorder %s14, 1
    %p100 = por %p98, %p99
    %p101 = scmp.ne.s32.totalorder %s90, %s91
    %p102 = scmp.eq.s32.totalorder %s14, 0
    %p103 = por %p101, %p102
    %p104 = scmp.ne.s32.totalorder %s90, %s91
    %p105 = scmp.eq.s32.totalorder %s15, 1
    %p106 = por %p104, %p105
    %p108 = scmp.ne.s32.totalorder %s91, %s107
    %p109 = scmp.eq.s32.totalorder %s15, 0
    %p110 = por %p108, %p109
    %p111 = scmp.le.s32.totalorder 1, %s9
    %p112 = scmp.lt.s32.totalorder %s9, 3
    %p113 = pnand %p111, %p112
    %p114 = pneg %p113
    // Predicated region
    $region9: #{basconv_block_forward.3} parent=5 // pred_check
      _
    $region10: #{basconv_block_forward.3} parent=5 // pred_check_branch
      %116 = sbr.rel (%p113) target = $region12
    $region11: #{basconv_block_forward.3} parent=5 // pred_region
      %s117 = ssub.s32 %s9, 1
      // Predicated region
      $region13: #{basconv_block_forward.3} parent=11 // pred_check
        %p118 = pneg %p56
      $region14: #{basconv_block_forward.3} parent=11 // pred_check_branch
        %120 = sbr.rel (%p118) target = $region16
      $region15: #{basconv_block_forward.3} parent=11 // pred_region
        _
      $region16: #{basconv_block_forward.3} parent=11 // pred_fallthru
        _
      // Predicated region
      $region17: #{basconv_block_forward.3} parent=11 // pred_check
        %p121 = pneg %p77
      $region18: #{basconv_block_forward.3} parent=11 // pred_check_branch
        %123 = sbr.rel (%p121) target = $region20
      $region19: #{basconv_block_forward.3} parent=11 // pred_region
        _
      $region20: #{basconv_block_forward.3} parent=11 // pred_fallthru
        _
    $region12: #{basconv_block_forward.3} parent=5 // pred_fallthru
      _
    %p124 = scmp.lt.s32.totalorder %s9, 2
    // Predicated region
    $region21: #{basconv_block_forward.3} parent=5 // pred_check
      %p125 = pneg %p124
    $region22: #{basconv_block_forward.3} parent=5 // pred_check_branch
      %127 = sbr.rel (%p125) target = $region24
    $region23: #{basconv_block_forward.3} parent=5 // pred_region
      // Predicated region
      $region25: #{basconv_block_forward.3} parent=23 // pred_check
        %p128 = pneg %p29
      $region26: #{basconv_block_forward.3} parent=23 // pred_check_branch
        %130 = sbr.rel (%p128) target = $region28
      $region27: #{basconv_block_forward.3} parent=23 // pred_region
        %p131 = scmp.lt.s32.totalorder %s9, 1
        %s132 = scalar_select %p131, %s9, 1
        %s133 = smul.addr %s132, 6
        %s134 = smul.addr %s133, 8
        %s135 = scalar_lea.vmem %s0, %s134
      $region28: #{basconv_block_forward.3} parent=23 // pred_fallthru
        _
    $region24: #{basconv_block_forward.3} parent=5 // pred_fallthru
      _
    %p136 = scmp.le.s32.totalorder 1, %s9
    %p137 = scmp.lt.s32.totalorder %s9, 3
    %p138 = pnand %p136, %p137
    %p139 = pneg %p138
    // Predicated region
    $region29: #{basconv_block_forward.3} parent=5 // pred_check
      _
    $region30: #{basconv_block_forward.3} parent=5 // pred_check_branch
      %141 = sbr.rel (%p138) target = $region32
    $region31: #{basconv_block_forward.3} parent=5 // pred_region
      %s142 = ssub.s32 %s9, 1
      %p143 = scmp.lt.s32.totalorder %s14, 1
      %s144 = scalar_select %p143, %s14, 1
      %s145 = smul.addr %s144, 6
      %s146 = smul.addr %s145, 8
      %s147 = scalar_lea.vmem %s0, %s146
      %p148 = pneg %p35
      %p149 = pneg %p32
      %p150 = pneg %p56
      %p151 = pneg %p53
      %p152 = pneg %p77
      %p153 = pneg %p74
      %p154 = pneg %p103
      %p155 = pneg %p100
      %p156 = scmp.lt.s32.totalorder %s14, 1
      %s157 = scalar_select %p156, %s14, 1
      %s158 = smul.addr %s157, 4
      %s159 = smul.addr %s158, 8
      %s160 = scalar_lea.vmem %s3, %s159
      %p161 = scmp.lt.s32.totalorder %s14, 1
      %s162 = scalar_select %p161, %s14, 1
      %s163 = smul.addr %s162, 6
      %s164 = smul.addr %s163, 8
      %s165 = scalar_lea.vmem %s0, %s164
      %p166 = scmp.lt.s32.totalorder %s14, 1
      %s167 = scalar_select %p166, %s14, 1
      %s168 = smul.addr %s167, 4
      %s169 = smul.addr %s168, 8
      %s170 = scalar_lea.vmem %s3, %s169
      %v171 = vld [vmem:[%s165] sm:$0xff]
      %v172 = vld [vmem:[%s165 + $0x8] sm:$0xff]
      %v173 = vld [vmem:[%s165 + $0x10] sm:$0xff]
      %v174 = vld [vmem:[%s165 + $0x18] sm:$0xff]
      %v175 = vld [vmem:[%s165 + $0x20] sm:$0xff]
      %v176 = vld [vmem:[%s165 + $0x28] sm:$0xff]
      %v177 = vld [vmem:[%s1] sm:$0xff]
      %v178 = vld [vmem:[%s1 + $0x8] sm:$0xff]
      %v179 = vld [vmem:[%s1 + $0x10] sm:$0xff]
      %v180 = vld [vmem:[%s1 + $0x18] sm:$0xff]
      %v181 = vld [vmem:[%s1 + $0x20] sm:$0xff]
      %v182 = vld [vmem:[%s1 + $0x28] sm:$0xff]
      %v183 = vld [vmem:[%s1 + $0x30] sm:$0xff]
      %v184 = vld [vmem:[%s1 + $0x38] sm:$0xff]
      %v185 = vld [vmem:[%s1 + $0x40] sm:$0xff]
      %v186 = vld [vmem:[%s1 + $0x48] sm:$0xff]
      %v187 = vld [vmem:[%s1 + $0x50] sm:$0xff]
      %v188 = vld [vmem:[%s1 + $0x58] sm:$0xff]
      %v189 = vld [vmem:[%s1 + $0x60] sm:$0xff]
      %v190 = vld [vmem:[%s1 + $0x68] sm:$0xff]
      %v191 = vld [vmem:[%s1 + $0x70] sm:$0xff]
      %v192 = vld [vmem:[%s1 + $0x78] sm:$0xff]
      %v193 = vld [vmem:[%s1 + $0x80] sm:$0xff]
      %v194 = vld [vmem:[%s1 + $0x88] sm:$0xff]
      %v195 = vld [vmem:[%s1 + $0x90] sm:$0xff]
      %v196 = vld [vmem:[%s1 + $0x98] sm:$0xff]
      %v197 = vld [vmem:[%s1 + $0xa0] sm:$0xff]
      %v198 = vld [vmem:[%s1 + $0xa8] sm:$0xff]
      %v199 = vld [vmem:[%s1 + $0xb0] sm:$0xff]
      %v200 = vld [vmem:[%s1 + $0xb8] sm:$0xff]
      %v201 = vld [vmem:[%s1 + $0xc0] sm:$0xff]
      %v202 = vld [vmem:[%s1 + $0xc8] sm:$0xff]
      %v203 = vld [vmem:[%s1 + $0xd0] sm:$0xff]
      %209 = vrot.lane.b32.xlu0 %v171, 127
      %v210 = vpop.permute.xlu0 %209
      %211 = vrot.lane.b32.xlu0 %v172, 127
      %v212 = vpop.permute.xlu0 %211
      %213 = vrot.lane.b32.xlu0 %v173, 127
      %v214 = vpop.permute.xlu0 %213
      %215 = vrot.lane.b32.xlu0 %v174, 127
      %v216 = vpop.permute.xlu0 %215
      %217 = vrot.lane.b32.xlu0 %v175, 127
      %v218 = vpop.permute.xlu0 %217
      %vm219 = vcmask 1039360
      %v220 = vsel %vm219, %v210, %v212
      %v221 = vsel %vm219, %v212, %v214
      %v222 = vsel %vm219, %v214, %v216
      %v223 = vsel %vm219, %v216, %v218
      %vm228 = vcmask 64512
      %v230 = vsel %vm228, %v178, 0
      %232 = vmatpush.msra.mxu0 0.0
      %233 = vmatpush.msra.mxu0 0.0
      %234 = vmatpush.msra.mxu0 0.0
      %235 = vmatpush.msra.mxu0 0.0
      %236 = vmatpush.msra.mxu0 0.0
      %237 = vmatpush.msra.mxu0 0.0
      %238 = vmatpush.msra.mxu0 0.0
      %239 = vmatpush.msra.mxu0 0.0
      %240 = vmatpush.msra.mxu0 0.0
      %241 = vmatpush.msra.mxu0 0.0
      %242 = vmatpush.msra.mxu0 0.0
      %243 = vmatpush.msra.mxu0 0.0
      %244 = vmatpush.msra.mxu0 0.0
      %245 = vmatpush.msra.mxu0 0.0
      %246 = vmatpush.msra.mxu0 0.0
      %247 = vmatpush.msra.mxu0 %v220
      %248 = vmatmul.f32.gmra.mxu0 %v230
      %v249 = vpop.f32.mrf.mxu0
      %v250 = vadd.f32 0.0, %v249
      %251 = vdwg.mxu0
      %252 = vmatpush.msra.mxu0 0.0
      %253 = vmatpush.msra.mxu0 0.0
      %254 = vmatpush.msra.mxu0 0.0
      %255 = vmatpush.msra.mxu0 0.0
      %256 = vmatpush.msra.mxu0 0.0
      %257 = vmatpush.msra.mxu0 0.0
      %258 = vmatpush.msra.mxu0 0.0
      %259 = vmatpush.msra.mxu0 0.0
      %260 = vmatpush.msra.mxu0 0.0
      %261 = vmatpush.msra.mxu0 0.0
      %262 = vmatpush.msra.mxu0 0.0
      %263 = vmatpush.msra.mxu0 0.0
      %264 = vmatpush.msra.mxu0 0.0
      %265 = vmatpush.msra.mxu0 0.0
      %266 = vmatpush.msra.mxu0 0.0
      %267 = vmatpush.msra.mxu0 %v221
      %268 = vmatmul.f32.gmra.mxu0 %v230
      %v269 = vpop.f32.mrf.mxu0
      %v270 = vadd.f32 0.0, %v269
      %271 = vdwg.mxu0
      %272 = vmatpush.msra.mxu0 0.0
      %273 = vmatpush.msra.mxu0 0.0
      %274 = vmatpush.msra.mxu0 0.0
      %275 = vmatpush.msra.mxu0 0.0
      %276 = vmatpush.msra.mxu0 0.0
      %277 = vmatpush.msra.mxu0 0.0
      %278 = vmatpush.msra.mxu0 0.0
      %279 = vmatpush.msra.mxu0 0.0
      %280 = vmatpush.msra.mxu0 0.0
      %281 = vmatpush.msra.mxu0 0.0
      %282 = vmatpush.msra.mxu0 0.0
      %283 = vmatpush.msra.mxu0 0.0
      %284 = vmatpush.msra.mxu0 0.0
      %285 = vmatpush.msra.mxu0 0.0
      %286 = vmatpush.msra.mxu0 0.0
      %287 = vmatpush.msra.mxu0 %v222
      %288 = vmatmul.f32.gmra.mxu0 %v230
      %v289 = vpop.f32.mrf.mxu0
      %v290 = vadd.f32 0.0, %v289
      %291 = vdwg.mxu0
      %292 = vmatpush.msra.mxu0 0.0
      %293 = vmatpush.msra.mxu0 0.0
      %294 = vmatpush.msra.mxu0 0.0
      %295 = vmatpush.msra.mxu0 0.0
      %296 = vmatpush.msra.mxu0 0.0
      %297 = vmatpush.msra.mxu0 0.0
      %298 = vmatpush.msra.mxu0 0.0
      %299 = vmatpush.msra.mxu0 0.0
      %300 = vmatpush.msra.mxu0 0.0
      %301 = vmatpush.msra.mxu0 0.0
      %302 = vmatpush.msra.mxu0 0.0
      %303 = vmatpush.msra.mxu0 0.0
      %304 = vmatpush.msra.mxu0 0.0
      %305 = vmatpush.msra.mxu0 0.0
      %306 = vmatpush.msra.mxu0 0.0
      %307 = vmatpush.msra.mxu0 %v223
      %308 = vmatmul.f32.gmra.mxu0 %v230
      %v309 = vpop.f32.mrf.mxu0
      %v310 = vadd.f32 0.0, %v309
      %311 = vdwg.mxu0
      %v313 = vsel %vm228, %v177, 0
      %315 = vmatpush.msra.mxu0 0.0
      %316 = vmatpush.msra.mxu0 0.0
      %317 = vmatpush.msra.mxu0 0.0
      %318 = vmatpush.msra.mxu0 0.0
      %319 = vmatpush.msra.mxu0 0.0
      %320 = vmatpush.msra.mxu0 0.0
      %321 = vmatpush.msra.mxu0 0.0
      %322 = vmatpush.msra.mxu0 0.0
      %323 = vmatpush.msra.mxu0 0.0
      %324 = vmatpush.msra.mxu0 0.0
      %325 = vmatpush.msra.mxu0 0.0
      %326 = vmatpush.msra.mxu0 0.0
      %327 = vmatpush.msra.mxu0 0.0
      %328 = vmatpush.msra.mxu0 0.0
      %329 = vmatpush.msra.mxu0 0.0
      %330 = vmatpush.msra.mxu0 %v171
      %331 = vmatmul.f32.gmra.mxu0 %v313
      %v332 = vpop.f32.mrf.mxu0
      %v333 = vadd.f32 %v250, %v332
      %334 = vdwg.mxu0
      %335 = vmatpush.msra.mxu0 0.0
      %336 = vmatpush.msra.mxu0 0.0
      %337 = vmatpush.msra.mxu0 0.0
      %338 = vmatpush.msra.mxu0 0.0
      %339 = vmatpush.msra.mxu0 0.0
      %340 = vmatpush.msra.mxu0 0.0
      %341 = vmatpush.msra.mxu0 0.0
      %342 = vmatpush.msra.mxu0 0.0
      %343 = vmatpush.msra.mxu0 0.0
      %344 = vmatpush.msra.mxu0 0.0
      %345 = vmatpush.msra.mxu0 0.0
      %346 = vmatpush.msra.mxu0 0.0
      %347 = vmatpush.msra.mxu0 0.0
      %348 = vmatpush.msra.mxu0 0.0
      %349 = vmatpush.msra.mxu0 0.0
      %350 = vmatpush.msra.mxu0 %v172
      %351 = vmatmul.f32.gmra.mxu0 %v313
      %v352 = vpop.f32.mrf.mxu0
      %v353 = vadd.f32 %v270, %v352
      %354 = vdwg.mxu0
      %355 = vmatpush.msra.mxu0 0.0
      %356 = vmatpush.msra.mxu0 0.0
      %357 = vmatpush.msra.mxu0 0.0
      %358 = vmatpush.msra.mxu0 0.0
      %359 = vmatpush.msra.mxu0 0.0
      %360 = vmatpush.msra.mxu0 0.0
      %361 = vmatpush.msra.mxu0 0.0
      %362 = vmatpush.msra.mxu0 0.0
      %363 = vmatpush.msra.mxu0 0.0
      %364 = vmatpush.msra.mxu0 0.0
      %365 = vmatpush.msra.mxu0 0.0
      %366 = vmatpush.msra.mxu0 0.0
      %367 = vmatpush.msra.mxu0 0.0
      %368 = vmatpush.msra.mxu0 0.0
      %369 = vmatpush.msra.mxu0 0.0
      %370 = vmatpush.msra.mxu0 %v173
      %371 = vmatmul.f32.gmra.mxu0 %v313
      %v372 = vpop.f32.mrf.mxu0
      %v373 = vadd.f32 %v290, %v372
      %374 = vdwg.mxu0
      %375 = vmatpush.msra.mxu0 0.0
      %376 = vmatpush.msra.mxu0 0.0
      %377 = vmatpush.msra.mxu0 0.0
      %378 = vmatpush.msra.mxu0 0.0
      %379 = vmatpush.msra.mxu0 0.0
      %380 = vmatpush.msra.mxu0 0.0
      %381 = vmatpush.msra.mxu0 0.0
      %382 = vmatpush.msra.mxu0 0.0
      %383 = vmatpush.msra.mxu0 0.0
      %384 = vmatpush.msra.mxu0 0.0
      %385 = vmatpush.msra.mxu0 0.0
      %386 = vmatpush.msra.mxu0 0.0
      %387 = vmatpush.msra.mxu0 0.0
      %388 = vmatpush.msra.mxu0 0.0
      %389 = vmatpush.msra.mxu0 0.0
      %390 = vmatpush.msra.mxu0 %v174
      %391 = vmatmul.f32.gmra.mxu0 %v313
      %v392 = vpop.f32.mrf.mxu0
      %v393 = vadd.f32 %v310, %v392
      %394 = vdwg.mxu0
      %395 = vrot.lane.b32.xlu0 %v171, 126
      %v396 = vpop.permute.xlu0 %395
      %397 = vrot.lane.b32.xlu0 %v172, 126
      %v398 = vpop.permute.xlu0 %397
      %399 = vrot.lane.b32.xlu0 %v173, 126
      %v400 = vpop.permute.xlu0 %399
      %401 = vrot.lane.b32.xlu0 %v174, 126
      %v402 = vpop.permute.xlu0 %401
      %403 = vrot.lane.b32.xlu0 %v175, 126
      %v404 = vpop.permute.xlu0 %403
      %vm405 = vcmask 1031168
      %v406 = vsel %vm405, %v396, %v398
      %v407 = vsel %vm405, %v398, %v400
      %v408 = vsel %vm405, %v400, %v402
      %v409 = vsel %vm405, %v402, %v404
      %v415 = vsel %vm228, %v179, 0
      %417 = vmatpush.msra.mxu0 0.0
      %418 = vmatpush.msra.mxu0 0.0
      %419 = vmatpush.msra.mxu0 0.0
      %420 = vmatpush.msra.mxu0 0.0
      %421 = vmatpush.msra.mxu0 0.0
      %422 = vmatpush.msra.mxu0 0.0
      %423 = vmatpush.msra.mxu0 0.0
      %424 = vmatpush.msra.mxu0 0.0
      %425 = vmatpush.msra.mxu0 0.0
      %426 = vmatpush.msra.mxu0 0.0
      %427 = vmatpush.msra.mxu0 0.0
      %428 = vmatpush.msra.mxu0 0.0
      %429 = vmatpush.msra.mxu0 0.0
      %430 = vmatpush.msra.mxu0 0.0
      %431 = vmatpush.msra.mxu0 0.0
      %432 = vmatpush.msra.mxu0 %v406
      %433 = vmatmul.f32.gmra.mxu0 %v415
      %v434 = vpop.f32.mrf.mxu0
      %v435 = vadd.f32 0.0, %v434
      %436 = vdwg.mxu0
      %437 = vmatpush.msra.mxu0 0.0
      %438 = vmatpush.msra.mxu0 0.0
      %439 = vmatpush.msra.mxu0 0.0
      %440 = vmatpush.msra.mxu0 0.0
      %441 = vmatpush.msra.mxu0 0.0
      %442 = vmatpush.msra.mxu0 0.0
      %443 = vmatpush.msra.mxu0 0.0
      %444 = vmatpush.msra.mxu0 0.0
      %445 = vmatpush.msra.mxu0 0.0
      %446 = vmatpush.msra.mxu0 0.0
      %447 = vmatpush.msra.mxu0 0.0
      %448 = vmatpush.msra.mxu0 0.0
      %449 = vmatpush.msra.mxu0 0.0
      %450 = vmatpush.msra.mxu0 0.0
      %451 = vmatpush.msra.mxu0 0.0
      %452 = vmatpush.msra.mxu0 %v407
      %453 = vmatmul.f32.gmra.mxu0 %v415
      %v454 = vpop.f32.mrf.mxu0
      %v455 = vadd.f32 0.0, %v454
      %456 = vdwg.mxu0
      %457 = vmatpush.msra.mxu0 0.0
      %458 = vmatpush.msra.mxu0 0.0
      %459 = vmatpush.msra.mxu0 0.0
      %460 = vmatpush.msra.mxu0 0.0
      %461 = vmatpush.msra.mxu0 0.0
      %462 = vmatpush.msra.mxu0 0.0
      %463 = vmatpush.msra.mxu0 0.0
      %464 = vmatpush.msra.mxu0 0.0
      %465 = vmatpush.msra.mxu0 0.0
      %466 = vmatpush.msra.mxu0 0.0
      %467 = vmatpush.msra.mxu0 0.0
      %468 = vmatpush.msra.mxu0 0.0
      %469 = vmatpush.msra.mxu0 0.0
      %470 = vmatpush.msra.mxu0 0.0
      %471 = vmatpush.msra.mxu0 0.0
      %472 = vmatpush.msra.mxu0 %v408
      %473 = vmatmul.f32.gmra.mxu0 %v415
      %v474 = vpop.f32.mrf.mxu0
      %v475 = vadd.f32 0.0, %v474
      %476 = vdwg.mxu0
      %477 = vmatpush.msra.mxu0 0.0
      %478 = vmatpush.msra.mxu0 0.0
      %479 = vmatpush.msra.mxu0 0.0
      %480 = vmatpush.msra.mxu0 0.0
      %481 = vmatpush.msra.mxu0 0.0
      %482 = vmatpush.msra.mxu0 0.0
      %483 = vmatpush.msra.mxu0 0.0
      %484 = vmatpush.msra.mxu0 0.0
      %485 = vmatpush.msra.mxu0 0.0
      %486 = vmatpush.msra.mxu0 0.0
      %487 = vmatpush.msra.mxu0 0.0
      %488 = vmatpush.msra.mxu0 0.0
      %489 = vmatpush.msra.mxu0 0.0
      %490 = vmatpush.msra.mxu0 0.0
      %491 = vmatpush.msra.mxu0 0.0
      %492 = vmatpush.msra.mxu0 %v409
      %493 = vmatmul.f32.gmra.mxu0 %v415
      %v494 = vpop.f32.mrf.mxu0
      %v495 = vadd.f32 0.0, %v494
      %496 = vdwg.mxu0
      %v497 = vadd.f32 %v333, %v435
      %v498 = vadd.f32 %v353, %v455
      %v499 = vadd.f32 %v373, %v475
      %v500 = vadd.f32 %v393, %v495
      %501 = vrot.lane.b32.xlu0 %v171, 118
      %v502 = vpop.permute.xlu0 %501
      %503 = vrot.lane.b32.xlu0 %v172, 118
      %v504 = vpop.permute.xlu0 %503
      %505 = vrot.lane.b32.xlu0 %v173, 118
      %v506 = vpop.permute.xlu0 %505
      %507 = vrot.lane.b32.xlu0 %v174, 118
      %v508 = vpop.permute.xlu0 %507
      %509 = vrot.lane.b32.xlu0 %v175, 118
      %v510 = vpop.permute.xlu0 %509
      %vm511 = vcmask 965632
      %v512 = vsel %vm511, %v502, %v504
      %v513 = vsel %vm511, %v504, %v506
      %v514 = vsel %vm511, %v506, %v508
      %v515 = vsel %vm511, %v508, %v510
      %v521 = vsel %vm228, %v180, 0
      %523 = vmatpush.msra.mxu0 0.0
      %524 = vmatpush.msra.mxu0 0.0
      %525 = vmatpush.msra.mxu0 0.0
      %526 = vmatpush.msra.mxu0 0.0
      %527 = vmatpush.msra.mxu0 0.0
      %528 = vmatpush.msra.mxu0 0.0
      %529 = vmatpush.msra.mxu0 0.0
      %530 = vmatpush.msra.mxu0 0.0
      %531 = vmatpush.msra.mxu0 0.0
      %532 = vmatpush.msra.mxu0 0.0
      %533 = vmatpush.msra.mxu0 0.0
      %534 = vmatpush.msra.mxu0 0.0
      %535 = vmatpush.msra.mxu0 0.0
      %536 = vmatpush.msra.mxu0 0.0
      %537 = vmatpush.msra.mxu0 0.0
      %538 = vmatpush.msra.mxu0 %v512
      %539 = vmatmul.f32.gmra.mxu0 %v521
      %v540 = vpop.f32.mrf.mxu0
      %v541 = vadd.f32 0.0, %v540
      %542 = vdwg.mxu0
      %543 = vmatpush.msra.mxu0 0.0
      %544 = vmatpush.msra.mxu0 0.0
      %545 = vmatpush.msra.mxu0 0.0
      %546 = vmatpush.msra.mxu0 0.0
      %547 = vmatpush.msra.mxu0 0.0
      %548 = vmatpush.msra.mxu0 0.0
      %549 = vmatpush.msra.mxu0 0.0
      %550 = vmatpush.msra.mxu0 0.0
      %551 = vmatpush.msra.mxu0 0.0
      %552 = vmatpush.msra.mxu0 0.0
      %553 = vmatpush.msra.mxu0 0.0
      %554 = vmatpush.msra.mxu0 0.0
      %555 = vmatpush.msra.mxu0 0.0
      %556 = vmatpush.msra.mxu0 0.0
      %557 = vmatpush.msra.mxu0 0.0
      %558 = vmatpush.msra.mxu0 %v513
      %559 = vmatmul.f32.gmra.mxu0 %v521
      %v560 = vpop.f32.mrf.mxu0
      %v561 = vadd.f32 0.0, %v560
      %562 = vdwg.mxu0
      %563 = vmatpush.msra.mxu0 0.0
      %564 = vmatpush.msra.mxu0 0.0
      %565 = vmatpush.msra.mxu0 0.0
      %566 = vmatpush.msra.mxu0 0.0
      %567 = vmatpush.msra.mxu0 0.0
      %568 = vmatpush.msra.mxu0 0.0
      %569 = vmatpush.msra.mxu0 0.0
      %570 = vmatpush.msra.mxu0 0.0
      %571 = vmatpush.msra.mxu0 0.0
      %572 = vmatpush.msra.mxu0 0.0
      %573 = vmatpush.msra.mxu0 0.0
      %574 = vmatpush.msra.mxu0 0.0
      %575 = vmatpush.msra.mxu0 0.0
      %576 = vmatpush.msra.mxu0 0.0
      %577 = vmatpush.msra.mxu0 0.0
      %578 = vmatpush.msra.mxu0 %v514
      %579 = vmatmul.f32.gmra.mxu0 %v521
      %v580 = vpop.f32.mrf.mxu0
      %v581 = vadd.f32 0.0, %v580
      %582 = vdwg.mxu0
      %583 = vmatpush.msra.mxu0 0.0
      %584 = vmatpush.msra.mxu0 0.0
      %585 = vmatpush.msra.mxu0 0.0
      %586 = vmatpush.msra.mxu0 0.0
      %587 = vmatpush.msra.mxu0 0.0
      %588 = vmatpush.msra.mxu0 0.0
      %589 = vmatpush.msra.mxu0 0.0
      %590 = vmatpush.msra.mxu0 0.0
      %591 = vmatpush.msra.mxu0 0.0
      %592 = vmatpush.msra.mxu0 0.0
      %593 = vmatpush.msra.mxu0 0.0
      %594 = vmatpush.msra.mxu0 0.0
      %595 = vmatpush.msra.mxu0 0.0
      %596 = vmatpush.msra.mxu0 0.0
      %597 = vmatpush.msra.mxu0 0.0
      %598 = vmatpush.msra.mxu0 %v515
      %599 = vmatmul.f32.gmra.mxu0 %v521
      %v600 = vpop.f32.mrf.mxu0
      %v601 = vadd.f32 0.0, %v600
      %602 = vdwg.mxu0
      %v603 = vadd.f32 %v497, %v541
      %v604 = vadd.f32 %v498, %v561
      %v605 = vadd.f32 %v499, %v581
      %v606 = vadd.f32 %v500, %v601
      %607 = vrot.lane.b32.xlu0 %v171, 117
      %v608 = vpop.permute.xlu0 %607
      %609 = vrot.lane.b32.xlu0 %v172, 117
      %v610 = vpop.permute.xlu0 %609
      %611 = vrot.lane.b32.xlu0 %v173, 117
      %v612 = vpop.permute.xlu0 %611
      %613 = vrot.lane.b32.xlu0 %v174, 117
      %v614 = vpop.permute.xlu0 %613
      %615 = vrot.lane.b32.xlu0 %v175, 117
      %v616 = vpop.permute.xlu0 %615
      %vm617 = vcmask 957440
      %v618 = vsel %vm617, %v608, %v610
      %v619 = vsel %vm617, %v610, %v612
      %v620 = vsel %vm617, %v612, %v614
      %v621 = vsel %vm617, %v614, %v616
      %v627 = vsel %vm228, %v181, 0
      %629 = vmatpush.msra.mxu0 0.0
      %630 = vmatpush.msra.mxu0 0.0
      %631 = vmatpush.msra.mxu0 0.0
      %632 = vmatpush.msra.mxu0 0.0
      %633 = vmatpush.msra.mxu0 0.0
      %634 = vmatpush.msra.mxu0 0.0
      %635 = vmatpush.msra.mxu0 0.0
      %636 = vmatpush.msra.mxu0 0.0
      %637 = vmatpush.msra.mxu0 0.0
      %638 = vmatpush.msra.mxu0 0.0
      %639 = vmatpush.msra.mxu0 0.0
      %640 = vmatpush.msra.mxu0 0.0
      %641 = vmatpush.msra.mxu0 0.0
      %642 = vmatpush.msra.mxu0 0.0
      %643 = vmatpush.msra.mxu0 0.0
      %644 = vmatpush.msra.mxu0 %v618
      %645 = vmatmul.f32.gmra.mxu0 %v627
      %v646 = vpop.f32.mrf.mxu0
      %v647 = vadd.f32 0.0, %v646
      %648 = vdwg.mxu0
      %649 = vmatpush.msra.mxu0 0.0
      %650 = vmatpush.msra.mxu0 0.0
      %651 = vmatpush.msra.mxu0 0.0
      %652 = vmatpush.msra.mxu0 0.0
      %653 = vmatpush.msra.mxu0 0.0
      %654 = vmatpush.msra.mxu0 0.0
      %655 = vmatpush.msra.mxu0 0.0
      %656 = vmatpush.msra.mxu0 0.0
      %657 = vmatpush.msra.mxu0 0.0
      %658 = vmatpush.msra.mxu0 0.0
      %659 = vmatpush.msra.mxu0 0.0
      %660 = vmatpush.msra.mxu0 0.0
      %661 = vmatpush.msra.mxu0 0.0
      %662 = vmatpush.msra.mxu0 0.0
      %663 = vmatpush.msra.mxu0 0.0
      %664 = vmatpush.msra.mxu0 %v619
      %665 = vmatmul.f32.gmra.mxu0 %v627
      %v666 = vpop.f32.mrf.mxu0
      %v667 = vadd.f32 0.0, %v666
      %668 = vdwg.mxu0
      %669 = vmatpush.msra.mxu0 0.0
      %670 = vmatpush.msra.mxu0 0.0
      %671 = vmatpush.msra.mxu0 0.0
      %672 = vmatpush.msra.mxu0 0.0
      %673 = vmatpush.msra.mxu0 0.0
      %674 = vmatpush.msra.mxu0 0.0
      %675 = vmatpush.msra.mxu0 0.0
      %676 = vmatpush.msra.mxu0 0.0
      %677 = vmatpush.msra.mxu0 0.0
      %678 = vmatpush.msra.mxu0 0.0
      %679 = vmatpush.msra.mxu0 0.0
      %680 = vmatpush.msra.mxu0 0.0
      %681 = vmatpush.msra.mxu0 0.0
      %682 = vmatpush.msra.mxu0 0.0
      %683 = vmatpush.msra.mxu0 0.0
      %684 = vmatpush.msra.mxu0 %v620
      %685 = vmatmul.f32.gmra.mxu0 %v627
      %v686 = vpop.f32.mrf.mxu0
      %v687 = vadd.f32 0.0, %v686
      %688 = vdwg.mxu0
      %689 = vmatpush.msra.mxu0 0.0
      %690 = vmatpush.msra.mxu0 0.0
      %691 = vmatpush.msra.mxu0 0.0
      %692 = vmatpush.msra.mxu0 0.0
      %693 = vmatpush.msra.mxu0 0.0
      %694 = vmatpush.msra.mxu0 0.0
      %695 = vmatpush.msra.mxu0 0.0
      %696 = vmatpush.msra.mxu0 0.0
      %697 = vmatpush.msra.mxu0 0.0
      %698 = vmatpush.msra.mxu0 0.0
      %699 = vmatpush.msra.mxu0 0.0
      %700 = vmatpush.msra.mxu0 0.0
      %701 = vmatpush.msra.mxu0 0.0
      %702 = vmatpush.msra.mxu0 0.0
      %703 = vmatpush.msra.mxu0 0.0
      %704 = vmatpush.msra.mxu0 %v621
      %705 = vmatmul.f32.gmra.mxu0 %v627
      %v706 = vpop.f32.mrf.mxu0
      %v707 = vadd.f32 0.0, %v706
      %708 = vdwg.mxu0
      %v709 = vadd.f32 %v603, %v647
      %v710 = vadd.f32 %v604, %v667
      %v711 = vadd.f32 %v605, %v687
      %v712 = vadd.f32 %v606, %v707
      %713 = vrot.lane.b32.xlu0 %v171, 116
      %v714 = vpop.permute.xlu0 %713
      %715 = vrot.lane.b32.xlu0 %v172, 116
      %v716 = vpop.permute.xlu0 %715
      %717 = vrot.lane.b32.xlu0 %v173, 116
      %v718 = vpop.permute.xlu0 %717
      %719 = vrot.lane.b32.xlu0 %v174, 116
      %v720 = vpop.permute.xlu0 %719
      %721 = vrot.lane.b32.xlu0 %v175, 116
      %v722 = vpop.permute.xlu0 %721
      %vm723 = vcmask 949248
      %v724 = vsel %vm723, %v714, %v716
      %v725 = vsel %vm723, %v716, %v718
      %v726 = vsel %vm723, %v718, %v720
      %v727 = vsel %vm723, %v720, %v722
      %v733 = vsel %vm228, %v182, 0
      %735 = vmatpush.msra.mxu0 0.0
      %736 = vmatpush.msra.mxu0 0.0
      %737 = vmatpush.msra.mxu0 0.0
      %738 = vmatpush.msra.mxu0 0.0
      %739 = vmatpush.msra.mxu0 0.0
      %740 = vmatpush.msra.mxu0 0.0
      %741 = vmatpush.msra.mxu0 0.0
      %742 = vmatpush.msra.mxu0 0.0
      %743 = vmatpush.msra.mxu0 0.0
      %744 = vmatpush.msra.mxu0 0.0
      %745 = vmatpush.msra.mxu0 0.0
      %746 = vmatpush.msra.mxu0 0.0
      %747 = vmatpush.msra.mxu0 0.0
      %748 = vmatpush.msra.mxu0 0.0
      %749 = vmatpush.msra.mxu0 0.0
      %750 = vmatpush.msra.mxu0 %v724
      %751 = vmatmul.f32.gmra.mxu0 %v733
      %v752 = vpop.f32.mrf.mxu0
      %v753 = vadd.f32 0.0, %v752
      %754 = vdwg.mxu0
      %755 = vmatpush.msra.mxu0 0.0
      %756 = vmatpush.msra.mxu0 0.0
      %757 = vmatpush.msra.mxu0 0.0
      %758 = vmatpush.msra.mxu0 0.0
      %759 = vmatpush.msra.mxu0 0.0
      %760 = vmatpush.msra.mxu0 0.0
      %761 = vmatpush.msra.mxu0 0.0
      %762 = vmatpush.msra.mxu0 0.0
      %763 = vmatpush.msra.mxu0 0.0
      %764 = vmatpush.msra.mxu0 0.0
      %765 = vmatpush.msra.mxu0 0.0
      %766 = vmatpush.msra.mxu0 0.0
      %767 = vmatpush.msra.mxu0 0.0
      %768 = vmatpush.msra.mxu0 0.0
      %769 = vmatpush.msra.mxu0 0.0
      %770 = vmatpush.msra.mxu0 %v725
      %771 = vmatmul.f32.gmra.mxu0 %v733
      %v772 = vpop.f32.mrf.mxu0
      %v773 = vadd.f32 0.0, %v772
      %774 = vdwg.mxu0
      %775 = vmatpush.msra.mxu0 0.0
      %776 = vmatpush.msra.mxu0 0.0
      %777 = vmatpush.msra.mxu0 0.0
      %778 = vmatpush.msra.mxu0 0.0
      %779 = vmatpush.msra.mxu0 0.0
      %780 = vmatpush.msra.mxu0 0.0
      %781 = vmatpush.msra.mxu0 0.0
      %782 = vmatpush.msra.mxu0 0.0
      %783 = vmatpush.msra.mxu0 0.0
      %784 = vmatpush.msra.mxu0 0.0
      %785 = vmatpush.msra.mxu0 0.0
      %786 = vmatpush.msra.mxu0 0.0
      %787 = vmatpush.msra.mxu0 0.0
      %788 = vmatpush.msra.mxu0 0.0
      %789 = vmatpush.msra.mxu0 0.0
      %790 = vmatpush.msra.mxu0 %v726
      %791 = vmatmul.f32.gmra.mxu0 %v733
      %v792 = vpop.f32.mrf.mxu0
      %v793 = vadd.f32 0.0, %v792
      %794 = vdwg.mxu0
      %795 = vmatpush.msra.mxu0 0.0
      %796 = vmatpush.msra.mxu0 0.0
      %797 = vmatpush.msra.mxu0 0.0
      %798 = vmatpush.msra.mxu0 0.0
      %799 = vmatpush.msra.mxu0 0.0
      %800 = vmatpush.msra.mxu0 0.0
      %801 = vmatpush.msra.mxu0 0.0
      %802 = vmatpush.msra.mxu0 0.0
      %803 = vmatpush.msra.mxu0 0.0
      %804 = vmatpush.msra.mxu0 0.0
      %805 = vmatpush.msra.mxu0 0.0
      %806 = vmatpush.msra.mxu0 0.0
      %807 = vmatpush.msra.mxu0 0.0
      %808 = vmatpush.msra.mxu0 0.0
      %809 = vmatpush.msra.mxu0 0.0
      %810 = vmatpush.msra.mxu0 %v727
      %811 = vmatmul.f32.gmra.mxu0 %v733
      %v812 = vpop.f32.mrf.mxu0
      %v813 = vadd.f32 0.0, %v812
      %814 = vdwg.mxu0
      %v815 = vadd.f32 %v709, %v753
      %v816 = vadd.f32 %v710, %v773
      %v817 = vadd.f32 %v711, %v793
      %v818 = vadd.f32 %v712, %v813
      %819 = vrot.lane.b32.xlu0 %v171, 108
      %v820 = vpop.permute.xlu0 %819
      %821 = vrot.lane.b32.xlu0 %v172, 108
      %v822 = vpop.permute.xlu0 %821
      %823 = vrot.lane.b32.xlu0 %v173, 108
      %v824 = vpop.permute.xlu0 %823
      %825 = vrot.lane.b32.xlu0 %v174, 108
      %v826 = vpop.permute.xlu0 %825
      %827 = vrot.lane.b32.xlu0 %v175, 108
      %v828 = vpop.permute.xlu0 %827
      %vm829 = vcmask 883712
      %v830 = vsel %vm829, %v820, %v822
      %v831 = vsel %vm829, %v822, %v824
      %v832 = vsel %vm829, %v824, %v826
      %v833 = vsel %vm829, %v826, %v828
      %v839 = vsel %vm228, %v183, 0
      %841 = vmatpush.msra.mxu0 0.0
      %842 = vmatpush.msra.mxu0 0.0
      %843 = vmatpush.msra.mxu0 0.0
      %844 = vmatpush.msra.mxu0 0.0
      %845 = vmatpush.msra.mxu0 0.0
      %846 = vmatpush.msra.mxu0 0.0
      %847 = vmatpush.msra.mxu0 0.0
      %848 = vmatpush.msra.mxu0 0.0
      %849 = vmatpush.msra.mxu0 0.0
      %850 = vmatpush.msra.mxu0 0.0
      %851 = vmatpush.msra.mxu0 0.0
      %852 = vmatpush.msra.mxu0 0.0
      %853 = vmatpush.msra.mxu0 0.0
      %854 = vmatpush.msra.mxu0 0.0
      %855 = vmatpush.msra.mxu0 0.0
      %856 = vmatpush.msra.mxu0 %v830
      %857 = vmatmul.f32.gmra.mxu0 %v839
      %v858 = vpop.f32.mrf.mxu0
      %v859 = vadd.f32 0.0, %v858
      %860 = vdwg.mxu0
      %861 = vmatpush.msra.mxu0 0.0
      %862 = vmatpush.msra.mxu0 0.0
      %863 = vmatpush.msra.mxu0 0.0
      %864 = vmatpush.msra.mxu0 0.0
      %865 = vmatpush.msra.mxu0 0.0
      %866 = vmatpush.msra.mxu0 0.0
      %867 = vmatpush.msra.mxu0 0.0
      %868 = vmatpush.msra.mxu0 0.0
      %869 = vmatpush.msra.mxu0 0.0
      %870 = vmatpush.msra.mxu0 0.0
      %871 = vmatpush.msra.mxu0 0.0
      %872 = vmatpush.msra.mxu0 0.0
      %873 = vmatpush.msra.mxu0 0.0
      %874 = vmatpush.msra.mxu0 0.0
      %875 = vmatpush.msra.mxu0 0.0
      %876 = vmatpush.msra.mxu0 %v831
      %877 = vmatmul.f32.gmra.mxu0 %v839
      %v878 = vpop.f32.mrf.mxu0
      %v879 = vadd.f32 0.0, %v878
      %880 = vdwg.mxu0
      %881 = vmatpush.msra.mxu0 0.0
      %882 = vmatpush.msra.mxu0 0.0
      %883 = vmatpush.msra.mxu0 0.0
      %884 = vmatpush.msra.mxu0 0.0
      %885 = vmatpush.msra.mxu0 0.0
      %886 = vmatpush.msra.mxu0 0.0
      %887 = vmatpush.msra.mxu0 0.0
      %888 = vmatpush.msra.mxu0 0.0
      %889 = vmatpush.msra.mxu0 0.0
      %890 = vmatpush.msra.mxu0 0.0
      %891 = vmatpush.msra.mxu0 0.0
      %892 = vmatpush.msra.mxu0 0.0
      %893 = vmatpush.msra.mxu0 0.0
      %894 = vmatpush.msra.mxu0 0.0
      %895 = vmatpush.msra.mxu0 0.0
      %896 = vmatpush.msra.mxu0 %v832
      %897 = vmatmul.f32.gmra.mxu0 %v839
      %v898 = vpop.f32.mrf.mxu0
      %v899 = vadd.f32 0.0, %v898
      %900 = vdwg.mxu0
      %901 = vmatpush.msra.mxu0 0.0
      %902 = vmatpush.msra.mxu0 0.0
      %903 = vmatpush.msra.mxu0 0.0
      %904 = vmatpush.msra.mxu0 0.0
      %905 = vmatpush.msra.mxu0 0.0
      %906 = vmatpush.msra.mxu0 0.0
      %907 = vmatpush.msra.mxu0 0.0
      %908 = vmatpush.msra.mxu0 0.0
      %909 = vmatpush.msra.mxu0 0.0
      %910 = vmatpush.msra.mxu0 0.0
      %911 = vmatpush.msra.mxu0 0.0
      %912 = vmatpush.msra.mxu0 0.0
      %913 = vmatpush.msra.mxu0 0.0
      %914 = vmatpush.msra.mxu0 0.0
      %915 = vmatpush.msra.mxu0 0.0
      %916 = vmatpush.msra.mxu0 %v833
      %917 = vmatmul.f32.gmra.mxu0 %v839
      %v918 = vpop.f32.mrf.mxu0
      %v919 = vadd.f32 0.0, %v918
      %920 = vdwg.mxu0
      %v921 = vadd.f32 %v815, %v859
      %v922 = vadd.f32 %v816, %v879
      %v923 = vadd.f32 %v817, %v899
      %v924 = vadd.f32 %v818, %v919
      %925 = vrot.lane.b32.xlu0 %v171, 107
      %v926 = vpop.permute.xlu0 %925
      %927 = vrot.lane.b32.xlu0 %v172, 107
      %v928 = vpop.permute.xlu0 %927
      %929 = vrot.lane.b32.xlu0 %v173, 107
      %v930 = vpop.permute.xlu0 %929
      %931 = vrot.lane.b32.xlu0 %v174, 107
      %v932 = vpop.permute.xlu0 %931
      %933 = vrot.lane.b32.xlu0 %v175, 107
      %v934 = vpop.permute.xlu0 %933
      %vm935 = vcmask 875520
      %v936 = vsel %vm935, %v926, %v928
      %v937 = vsel %vm935, %v928, %v930
      %v938 = vsel %vm935, %v930, %v932
      %v939 = vsel %vm935, %v932, %v934
      %v945 = vsel %vm228, %v184, 0
      %947 = vmatpush.msra.mxu0 0.0
      %948 = vmatpush.msra.mxu0 0.0
      %949 = vmatpush.msra.mxu0 0.0
      %950 = vmatpush.msra.mxu0 0.0
      %951 = vmatpush.msra.mxu0 0.0
      %952 = vmatpush.msra.mxu0 0.0
      %953 = vmatpush.msra.mxu0 0.0
      %954 = vmatpush.msra.mxu0 0.0
      %955 = vmatpush.msra.mxu0 0.0
      %956 = vmatpush.msra.mxu0 0.0
      %957 = vmatpush.msra.mxu0 0.0
      %958 = vmatpush.msra.mxu0 0.0
      %959 = vmatpush.msra.mxu0 0.0
      %960 = vmatpush.msra.mxu0 0.0
      %961 = vmatpush.msra.mxu0 0.0
      %962 = vmatpush.msra.mxu0 %v936
      %963 = vmatmul.f32.gmra.mxu0 %v945
      %v964 = vpop.f32.mrf.mxu0
      %v965 = vadd.f32 0.0, %v964
      %966 = vdwg.mxu0
      %967 = vmatpush.msra.mxu0 0.0
      %968 = vmatpush.msra.mxu0 0.0
      %969 = vmatpush.msra.mxu0 0.0
      %970 = vmatpush.msra.mxu0 0.0
      %971 = vmatpush.msra.mxu0 0.0
      %972 = vmatpush.msra.mxu0 0.0
      %973 = vmatpush.msra.mxu0 0.0
      %974 = vmatpush.msra.mxu0 0.0
      %975 = vmatpush.msra.mxu0 0.0
      %976 = vmatpush.msra.mxu0 0.0
      %977 = vmatpush.msra.mxu0 0.0
      %978 = vmatpush.msra.mxu0 0.0
      %979 = vmatpush.msra.mxu0 0.0
      %980 = vmatpush.msra.mxu0 0.0
      %981 = vmatpush.msra.mxu0 0.0
      %982 = vmatpush.msra.mxu0 %v937
      %983 = vmatmul.f32.gmra.mxu0 %v945
      %v984 = vpop.f32.mrf.mxu0
      %v985 = vadd.f32 0.0, %v984
      %986 = vdwg.mxu0
      %987 = vmatpush.msra.mxu0 0.0
      %988 = vmatpush.msra.mxu0 0.0
      %989 = vmatpush.msra.mxu0 0.0
      %990 = vmatpush.msra.mxu0 0.0
      %991 = vmatpush.msra.mxu0 0.0
      %992 = vmatpush.msra.mxu0 0.0
      %993 = vmatpush.msra.mxu0 0.0
      %994 = vmatpush.msra.mxu0 0.0
      %995 = vmatpush.msra.mxu0 0.0
      %996 = vmatpush.msra.mxu0 0.0
      %997 = vmatpush.msra.mxu0 0.0
      %998 = vmatpush.msra.mxu0 0.0
      %999 = vmatpush.msra.mxu0 0.0
      %1000 = vmatpush.msra.mxu0 0.0
      %1001 = vmatpush.msra.mxu0 0.0
      %1002 = vmatpush.msra.mxu0 %v938
      %1003 = vmatmul.f32.gmra.mxu0 %v945
      %v1004 = vpop.f32.mrf.mxu0
      %v1005 = vadd.f32 0.0, %v1004
      %1006 = vdwg.mxu0
      %1007 = vmatpush.msra.mxu0 0.0
      %1008 = vmatpush.msra.mxu0 0.0
      %1009 = vmatpush.msra.mxu0 0.0
      %1010 = vmatpush.msra.mxu0 0.0
      %1011 = vmatpush.msra.mxu0 0.0
      %1012 = vmatpush.msra.mxu0 0.0
      %1013 = vmatpush.msra.mxu0 0.0
      %1014 = vmatpush.msra.mxu0 0.0
      %1015 = vmatpush.msra.mxu0 0.0
      %1016 = vmatpush.msra.mxu0 0.0
      %1017 = vmatpush.msra.mxu0 0.0
      %1018 = vmatpush.msra.mxu0 0.0
      %1019 = vmatpush.msra.mxu0 0.0
      %1020 = vmatpush.msra.mxu0 0.0
      %1021 = vmatpush.msra.mxu0 0.0
      %1022 = vmatpush.msra.mxu0 %v939
      %1023 = vmatmul.f32.gmra.mxu0 %v945
      %v1024 = vpop.f32.mrf.mxu0
      %v1025 = vadd.f32 0.0, %v1024
      %1026 = vdwg.mxu0
      %v1027 = vadd.f32 %v921, %v965
      %v1028 = vadd.f32 %v922, %v985
      %v1029 = vadd.f32 %v923, %v1005
      %v1030 = vadd.f32 %v924, %v1025
      %1031 = vrot.lane.b32.xlu0 %v171, 106
      %v1032 = vpop.permute.xlu0 %1031
      %1033 = vrot.lane.b32.xlu0 %v172, 106
      %v1034 = vpop.permute.xlu0 %1033
      %1035 = vrot.lane.b32.xlu0 %v173, 106
      %v1036 = vpop.permute.xlu0 %1035
      %1037 = vrot.lane.b32.xlu0 %v174, 106
      %v1038 = vpop.permute.xlu0 %1037
      %1039 = vrot.lane.b32.xlu0 %v175, 106
      %v1040 = vpop.permute.xlu0 %1039
      %vm1041 = vcmask 867328
      %v1042 = vsel %vm1041, %v1032, %v1034
      %v1043 = vsel %vm1041, %v1034, %v1036
      %v1044 = vsel %vm1041, %v1036, %v1038
      %v1045 = vsel %vm1041, %v1038, %v1040
      %v1051 = vsel %vm228, %v185, 0
      %1053 = vmatpush.msra.mxu0 0.0
      %1054 = vmatpush.msra.mxu0 0.0
      %1055 = vmatpush.msra.mxu0 0.0
      %1056 = vmatpush.msra.mxu0 0.0
      %1057 = vmatpush.msra.mxu0 0.0
      %1058 = vmatpush.msra.mxu0 0.0
      %1059 = vmatpush.msra.mxu0 0.0
      %1060 = vmatpush.msra.mxu0 0.0
      %1061 = vmatpush.msra.mxu0 0.0
      %1062 = vmatpush.msra.mxu0 0.0
      %1063 = vmatpush.msra.mxu0 0.0
      %1064 = vmatpush.msra.mxu0 0.0
      %1065 = vmatpush.msra.mxu0 0.0
      %1066 = vmatpush.msra.mxu0 0.0
      %1067 = vmatpush.msra.mxu0 0.0
      %1068 = vmatpush.msra.mxu0 %v1042
      %1069 = vmatmul.f32.gmra.mxu0 %v1051
      %v1070 = vpop.f32.mrf.mxu0
      %v1071 = vadd.f32 0.0, %v1070
      %1072 = vdwg.mxu0
      %1073 = vmatpush.msra.mxu0 0.0
      %1074 = vmatpush.msra.mxu0 0.0
      %1075 = vmatpush.msra.mxu0 0.0
      %1076 = vmatpush.msra.mxu0 0.0
      %1077 = vmatpush.msra.mxu0 0.0
      %1078 = vmatpush.msra.mxu0 0.0
      %1079 = vmatpush.msra.mxu0 0.0
      %1080 = vmatpush.msra.mxu0 0.0
      %1081 = vmatpush.msra.mxu0 0.0
      %1082 = vmatpush.msra.mxu0 0.0
      %1083 = vmatpush.msra.mxu0 0.0
      %1084 = vmatpush.msra.mxu0 0.0
      %1085 = vmatpush.msra.mxu0 0.0
      %1086 = vmatpush.msra.mxu0 0.0
      %1087 = vmatpush.msra.mxu0 0.0
      %1088 = vmatpush.msra.mxu0 %v1043
      %1089 = vmatmul.f32.gmra.mxu0 %v1051
      %v1090 = vpop.f32.mrf.mxu0
      %v1091 = vadd.f32 0.0, %v1090
      %1092 = vdwg.mxu0
      %1093 = vmatpush.msra.mxu0 0.0
      %1094 = vmatpush.msra.mxu0 0.0
      %1095 = vmatpush.msra.mxu0 0.0
      %1096 = vmatpush.msra.mxu0 0.0
      %1097 = vmatpush.msra.mxu0 0.0
      %1098 = vmatpush.msra.mxu0 0.0
      %1099 = vmatpush.msra.mxu0 0.0
      %1100 = vmatpush.msra.mxu0 0.0
      %1101 = vmatpush.msra.mxu0 0.0
      %1102 = vmatpush.msra.mxu0 0.0
      %1103 = vmatpush.msra.mxu0 0.0
      %1104 = vmatpush.msra.mxu0 0.0
      %1105 = vmatpush.msra.mxu0 0.0
      %1106 = vmatpush.msra.mxu0 0.0
      %1107 = vmatpush.msra.mxu0 0.0
      %1108 = vmatpush.msra.mxu0 %v1044
      %1109 = vmatmul.f32.gmra.mxu0 %v1051
      %v1110 = vpop.f32.mrf.mxu0
      %v1111 = vadd.f32 0.0, %v1110
      %1112 = vdwg.mxu0
      %1113 = vmatpush.msra.mxu0 0.0
      %1114 = vmatpush.msra.mxu0 0.0
      %1115 = vmatpush.msra.mxu0 0.0
      %1116 = vmatpush.msra.mxu0 0.0
      %1117 = vmatpush.msra.mxu0 0.0
      %1118 = vmatpush.msra.mxu0 0.0
      %1119 = vmatpush.msra.mxu0 0.0
      %1120 = vmatpush.msra.mxu0 0.0
      %1121 = vmatpush.msra.mxu0 0.0
      %1122 = vmatpush.msra.mxu0 0.0
      %1123 = vmatpush.msra.mxu0 0.0
      %1124 = vmatpush.msra.mxu0 0.0
      %1125 = vmatpush.msra.mxu0 0.0
      %1126 = vmatpush.msra.mxu0 0.0
      %1127 = vmatpush.msra.mxu0 0.0
      %1128 = vmatpush.msra.mxu0 %v1045
      %1129 = vmatmul.f32.gmra.mxu0 %v1051
      %v1130 = vpop.f32.mrf.mxu0
      %v1131 = vadd.f32 0.0, %v1130
      %1132 = vdwg.mxu0
      %v1133 = vadd.f32 %v1027, %v1071
      %v1134 = vadd.f32 %v1028, %v1091
      %v1135 = vadd.f32 %v1029, %v1111
      %v1136 = vadd.f32 %v1030, %v1131
      %1137 = vrot.lane.b32.xlu0 %v171, 28
      %v1138 = vpop.permute.xlu0 %1137
      %1139 = vrot.lane.b32.xlu0 %v172, 28
      %v1140 = vpop.permute.xlu0 %1139
      %1141 = vrot.lane.b32.xlu0 %v173, 28
      %v1142 = vpop.permute.xlu0 %1141
      %1143 = vrot.lane.b32.xlu0 %v174, 28
      %v1144 = vpop.permute.xlu0 %1143
      %1145 = vrot.lane.b32.xlu0 %v175, 28
      %v1146 = vpop.permute.xlu0 %1145
      %vm1147 = vcmask 228352
      %v1148 = vsel %vm1147, %v1138, %v1140
      %v1149 = vsel %vm1147, %v1140, %v1142
      %v1150 = vsel %vm1147, %v1142, %v1144
      %v1151 = vsel %vm1147, %v1144, %v1146
      %v1157 = vsel %vm228, %v186, 0
      %1159 = vmatpush.msra.mxu0 0.0
      %1160 = vmatpush.msra.mxu0 0.0
      %1161 = vmatpush.msra.mxu0 0.0
      %1162 = vmatpush.msra.mxu0 0.0
      %1163 = vmatpush.msra.mxu0 0.0
      %1164 = vmatpush.msra.mxu0 0.0
      %1165 = vmatpush.msra.mxu0 0.0
      %1166 = vmatpush.msra.mxu0 0.0
      %1167 = vmatpush.msra.mxu0 0.0
      %1168 = vmatpush.msra.mxu0 0.0
      %1169 = vmatpush.msra.mxu0 0.0
      %1170 = vmatpush.msra.mxu0 0.0
      %1171 = vmatpush.msra.mxu0 0.0
      %1172 = vmatpush.msra.mxu0 0.0
      %1173 = vmatpush.msra.mxu0 0.0
      %1174 = vmatpush.msra.mxu0 %v1148
      %1175 = vmatmul.f32.gmra.mxu0 %v1157
      %v1176 = vpop.f32.mrf.mxu0
      %v1177 = vadd.f32 0.0, %v1176
      %1178 = vdwg.mxu0
      %1179 = vmatpush.msra.mxu0 0.0
      %1180 = vmatpush.msra.mxu0 0.0
      %1181 = vmatpush.msra.mxu0 0.0
      %1182 = vmatpush.msra.mxu0 0.0
      %1183 = vmatpush.msra.mxu0 0.0
      %1184 = vmatpush.msra.mxu0 0.0
      %1185 = vmatpush.msra.mxu0 0.0
      %1186 = vmatpush.msra.mxu0 0.0
      %1187 = vmatpush.msra.mxu0 0.0
      %1188 = vmatpush.msra.mxu0 0.0
      %1189 = vmatpush.msra.mxu0 0.0
      %1190 = vmatpush.msra.mxu0 0.0
      %1191 = vmatpush.msra.mxu0 0.0
      %1192 = vmatpush.msra.mxu0 0.0
      %1193 = vmatpush.msra.mxu0 0.0
      %1194 = vmatpush.msra.mxu0 %v1149
      %1195 = vmatmul.f32.gmra.mxu0 %v1157
      %v1196 = vpop.f32.mrf.mxu0
      %v1197 = vadd.f32 0.0, %v1196
      %1198 = vdwg.mxu0
      %1199 = vmatpush.msra.mxu0 0.0
      %1200 = vmatpush.msra.mxu0 0.0
      %1201 = vmatpush.msra.mxu0 0.0
      %1202 = vmatpush.msra.mxu0 0.0
      %1203 = vmatpush.msra.mxu0 0.0
      %1204 = vmatpush.msra.mxu0 0.0
      %1205 = vmatpush.msra.mxu0 0.0
      %1206 = vmatpush.msra.mxu0 0.0
      %1207 = vmatpush.msra.mxu0 0.0
      %1208 = vmatpush.msra.mxu0 0.0
      %1209 = vmatpush.msra.mxu0 0.0
      %1210 = vmatpush.msra.mxu0 0.0
      %1211 = vmatpush.msra.mxu0 0.0
      %1212 = vmatpush.msra.mxu0 0.0
      %1213 = vmatpush.msra.mxu0 0.0
      %1214 = vmatpush.msra.mxu0 %v1150
      %1215 = vmatmul.f32.gmra.mxu0 %v1157
      %v1216 = vpop.f32.mrf.mxu0
      %v1217 = vadd.f32 0.0, %v1216
      %1218 = vdwg.mxu0
      %1219 = vmatpush.msra.mxu0 0.0
      %1220 = vmatpush.msra.mxu0 0.0
      %1221 = vmatpush.msra.mxu0 0.0
      %1222 = vmatpush.msra.mxu0 0.0
      %1223 = vmatpush.msra.mxu0 0.0
      %1224 = vmatpush.msra.mxu0 0.0
      %1225 = vmatpush.msra.mxu0 0.0
      %1226 = vmatpush.msra.mxu0 0.0
      %1227 = vmatpush.msra.mxu0 0.0
      %1228 = vmatpush.msra.mxu0 0.0
      %1229 = vmatpush.msra.mxu0 0.0
      %1230 = vmatpush.msra.mxu0 0.0
      %1231 = vmatpush.msra.mxu0 0.0
      %1232 = vmatpush.msra.mxu0 0.0
      %1233 = vmatpush.msra.mxu0 0.0
      %1234 = vmatpush.msra.mxu0 %v1151
      %1235 = vmatmul.f32.gmra.mxu0 %v1157
      %v1236 = vpop.f32.mrf.mxu0
      %v1237 = vadd.f32 0.0, %v1236
      %1238 = vdwg.mxu0
      %v1239 = vadd.f32 %v1133, %v1177
      %v1240 = vadd.f32 %v1134, %v1197
      %v1241 = vadd.f32 %v1135, %v1217
      %v1242 = vadd.f32 %v1136, %v1237
      %1243 = vrot.lane.b32.xlu0 %v171, 27
      %v1244 = vpop.permute.xlu0 %1243
      %1245 = vrot.lane.b32.xlu0 %v172, 27
      %v1246 = vpop.permute.xlu0 %1245
      %1247 = vrot.lane.b32.xlu0 %v173, 27
      %v1248 = vpop.permute.xlu0 %1247
      %1249 = vrot.lane.b32.xlu0 %v174, 27
      %v1250 = vpop.permute.xlu0 %1249
      %1251 = vrot.lane.b32.xlu0 %v175, 27
      %v1252 = vpop.permute.xlu0 %1251
      %vm1253 = vcmask 220160
      %v1254 = vsel %vm1253, %v1244, %v1246
      %v1255 = vsel %vm1253, %v1246, %v1248
      %v1256 = vsel %vm1253, %v1248, %v1250
      %v1257 = vsel %vm1253, %v1250, %v1252
      %v1263 = vsel %vm228, %v187, 0
      %1265 = vmatpush.msra.mxu0 0.0
      %1266 = vmatpush.msra.mxu0 0.0
      %1267 = vmatpush.msra.mxu0 0.0
      %1268 = vmatpush.msra.mxu0 0.0
      %1269 = vmatpush.msra.mxu0 0.0
      %1270 = vmatpush.msra.mxu0 0.0
      %1271 = vmatpush.msra.mxu0 0.0
      %1272 = vmatpush.msra.mxu0 0.0
      %1273 = vmatpush.msra.mxu0 0.0
      %1274 = vmatpush.msra.mxu0 0.0
      %1275 = vmatpush.msra.mxu0 0.0
      %1276 = vmatpush.msra.mxu0 0.0
      %1277 = vmatpush.msra.mxu0 0.0
      %1278 = vmatpush.msra.mxu0 0.0
      %1279 = vmatpush.msra.mxu0 0.0
      %1280 = vmatpush.msra.mxu0 %v1254
      %1281 = vmatmul.f32.gmra.mxu0 %v1263
      %v1282 = vpop.f32.mrf.mxu0
      %v1283 = vadd.f32 0.0, %v1282
      %1284 = vdwg.mxu0
      %1285 = vmatpush.msra.mxu0 0.0
      %1286 = vmatpush.msra.mxu0 0.0
      %1287 = vmatpush.msra.mxu0 0.0
      %1288 = vmatpush.msra.mxu0 0.0
      %1289 = vmatpush.msra.mxu0 0.0
      %1290 = vmatpush.msra.mxu0 0.0
      %1291 = vmatpush.msra.mxu0 0.0
      %1292 = vmatpush.msra.mxu0 0.0
      %1293 = vmatpush.msra.mxu0 0.0
      %1294 = vmatpush.msra.mxu0 0.0
      %1295 = vmatpush.msra.mxu0 0.0
      %1296 = vmatpush.msra.mxu0 0.0
      %1297 = vmatpush.msra.mxu0 0.0
      %1298 = vmatpush.msra.mxu0 0.0
      %1299 = vmatpush.msra.mxu0 0.0
      %1300 = vmatpush.msra.mxu0 %v1255
      %1301 = vmatmul.f32.gmra.mxu0 %v1263
      %v1302 = vpop.f32.mrf.mxu0
      %v1303 = vadd.f32 0.0, %v1302
      %1304 = vdwg.mxu0
      %1305 = vmatpush.msra.mxu0 0.0
      %1306 = vmatpush.msra.mxu0 0.0
      %1307 = vmatpush.msra.mxu0 0.0
      %1308 = vmatpush.msra.mxu0 0.0
      %1309 = vmatpush.msra.mxu0 0.0
      %1310 = vmatpush.msra.mxu0 0.0
      %1311 = vmatpush.msra.mxu0 0.0
      %1312 = vmatpush.msra.mxu0 0.0
      %1313 = vmatpush.msra.mxu0 0.0
      %1314 = vmatpush.msra.mxu0 0.0
      %1315 = vmatpush.msra.mxu0 0.0
      %1316 = vmatpush.msra.mxu0 0.0
      %1317 = vmatpush.msra.mxu0 0.0
      %1318 = vmatpush.msra.mxu0 0.0
      %1319 = vmatpush.msra.mxu0 0.0
      %1320 = vmatpush.msra.mxu0 %v1256
      %1321 = vmatmul.f32.gmra.mxu0 %v1263
      %v1322 = vpop.f32.mrf.mxu0
      %v1323 = vadd.f32 0.0, %v1322
      %1324 = vdwg.mxu0
      %1325 = vmatpush.msra.mxu0 0.0
      %1326 = vmatpush.msra.mxu0 0.0
      %1327 = vmatpush.msra.mxu0 0.0
      %1328 = vmatpush.msra.mxu0 0.0
      %1329 = vmatpush.msra.mxu0 0.0
      %1330 = vmatpush.msra.mxu0 0.0
      %1331 = vmatpush.msra.mxu0 0.0
      %1332 = vmatpush.msra.mxu0 0.0
      %1333 = vmatpush.msra.mxu0 0.0
      %1334 = vmatpush.msra.mxu0 0.0
      %1335 = vmatpush.msra.mxu0 0.0
      %1336 = vmatpush.msra.mxu0 0.0
      %1337 = vmatpush.msra.mxu0 0.0
      %1338 = vmatpush.msra.mxu0 0.0
      %1339 = vmatpush.msra.mxu0 0.0
      %1340 = vmatpush.msra.mxu0 %v1257
      %1341 = vmatmul.f32.gmra.mxu0 %v1263
      %v1342 = vpop.f32.mrf.mxu0
      %v1343 = vadd.f32 0.0, %v1342
      %1344 = vdwg.mxu0
      %v1345 = vadd.f32 %v1239, %v1283
      %v1346 = vadd.f32 %v1240, %v1303
      %v1347 = vadd.f32 %v1241, %v1323
      %v1348 = vadd.f32 %v1242, %v1343
      %1349 = vrot.lane.b32.xlu0 %v171, 26
      %v1350 = vpop.permute.xlu0 %1349
      %1351 = vrot.lane.b32.xlu0 %v172, 26
      %v1352 = vpop.permute.xlu0 %1351
      %1353 = vrot.lane.b32.xlu0 %v173, 26
      %v1354 = vpop.permute.xlu0 %1353
      %1355 = vrot.lane.b32.xlu0 %v174, 26
      %v1356 = vpop.permute.xlu0 %1355
      %1357 = vrot.lane.b32.xlu0 %v175, 26
      %v1358 = vpop.permute.xlu0 %1357
      %vm1359 = vcmask 211968
      %v1360 = vsel %vm1359, %v1350, %v1352
      %v1361 = vsel %vm1359, %v1352, %v1354
      %v1362 = vsel %vm1359, %v1354, %v1356
      %v1363 = vsel %vm1359, %v1356, %v1358
      %v1369 = vsel %vm228, %v188, 0
      %1371 = vmatpush.msra.mxu0 0.0
      %1372 = vmatpush.msra.mxu0 0.0
      %1373 = vmatpush.msra.mxu0 0.0
      %1374 = vmatpush.msra.mxu0 0.0
      %1375 = vmatpush.msra.mxu0 0.0
      %1376 = vmatpush.msra.mxu0 0.0
      %1377 = vmatpush.msra.mxu0 0.0
      %1378 = vmatpush.msra.mxu0 0.0
      %1379 = vmatpush.msra.mxu0 0.0
      %1380 = vmatpush.msra.mxu0 0.0
      %1381 = vmatpush.msra.mxu0 0.0
      %1382 = vmatpush.msra.mxu0 0.0
      %1383 = vmatpush.msra.mxu0 0.0
      %1384 = vmatpush.msra.mxu0 0.0
      %1385 = vmatpush.msra.mxu0 0.0
      %1386 = vmatpush.msra.mxu0 %v1360
      %1387 = vmatmul.f32.gmra.mxu0 %v1369
      %v1388 = vpop.f32.mrf.mxu0
      %v1389 = vadd.f32 0.0, %v1388
      %1390 = vdwg.mxu0
      %1391 = vmatpush.msra.mxu0 0.0
      %1392 = vmatpush.msra.mxu0 0.0
      %1393 = vmatpush.msra.mxu0 0.0
      %1394 = vmatpush.msra.mxu0 0.0
      %1395 = vmatpush.msra.mxu0 0.0
      %1396 = vmatpush.msra.mxu0 0.0
      %1397 = vmatpush.msra.mxu0 0.0
      %1398 = vmatpush.msra.mxu0 0.0
      %1399 = vmatpush.msra.mxu0 0.0
      %1400 = vmatpush.msra.mxu0 0.0
      %1401 = vmatpush.msra.mxu0 0.0
      %1402 = vmatpush.msra.mxu0 0.0
      %1403 = vmatpush.msra.mxu0 0.0
      %1404 = vmatpush.msra.mxu0 0.0
      %1405 = vmatpush.msra.mxu0 0.0
      %1406 = vmatpush.msra.mxu0 %v1361
      %1407 = vmatmul.f32.gmra.mxu0 %v1369
      %v1408 = vpop.f32.mrf.mxu0
      %v1409 = vadd.f32 0.0, %v1408
      %1410 = vdwg.mxu0
      %1411 = vmatpush.msra.mxu0 0.0
      %1412 = vmatpush.msra.mxu0 0.0
      %1413 = vmatpush.msra.mxu0 0.0
      %1414 = vmatpush.msra.mxu0 0.0
      %1415 = vmatpush.msra.mxu0 0.0
      %1416 = vmatpush.msra.mxu0 0.0
      %1417 = vmatpush.msra.mxu0 0.0
      %1418 = vmatpush.msra.mxu0 0.0
      %1419 = vmatpush.msra.mxu0 0.0
      %1420 = vmatpush.msra.mxu0 0.0
      %1421 = vmatpush.msra.mxu0 0.0
      %1422 = vmatpush.msra.mxu0 0.0
      %1423 = vmatpush.msra.mxu0 0.0
      %1424 = vmatpush.msra.mxu0 0.0
      %1425 = vmatpush.msra.mxu0 0.0
      %1426 = vmatpush.msra.mxu0 %v1362
      %1427 = vmatmul.f32.gmra.mxu0 %v1369
      %v1428 = vpop.f32.mrf.mxu0
      %v1429 = vadd.f32 0.0, %v1428
      %1430 = vdwg.mxu0
      %1431 = vmatpush.msra.mxu0 0.0
      %1432 = vmatpush.msra.mxu0 0.0
      %1433 = vmatpush.msra.mxu0 0.0
      %1434 = vmatpush.msra.mxu0 0.0
      %1435 = vmatpush.msra.mxu0 0.0
      %1436 = vmatpush.msra.mxu0 0.0
      %1437 = vmatpush.msra.mxu0 0.0
      %1438 = vmatpush.msra.mxu0 0.0
      %1439 = vmatpush.msra.mxu0 0.0
      %1440 = vmatpush.msra.mxu0 0.0
      %1441 = vmatpush.msra.mxu0 0.0
      %1442 = vmatpush.msra.mxu0 0.0
      %1443 = vmatpush.msra.mxu0 0.0
      %1444 = vmatpush.msra.mxu0 0.0
      %1445 = vmatpush.msra.mxu0 0.0
      %1446 = vmatpush.msra.mxu0 %v1363
      %1447 = vmatmul.f32.gmra.mxu0 %v1369
      %v1448 = vpop.f32.mrf.mxu0
      %v1449 = vadd.f32 0.0, %v1448
      %1450 = vdwg.mxu0
      %v1451 = vadd.f32 %v1345, %v1389
      %v1452 = vadd.f32 %v1346, %v1409
      %v1453 = vadd.f32 %v1347, %v1429
      %v1454 = vadd.f32 %v1348, %v1449
      %1455 = vrot.lane.b32.xlu0 %v171, 18
      %v1456 = vpop.permute.xlu0 %1455
      %1457 = vrot.lane.b32.xlu0 %v172, 18
      %v1458 = vpop.permute.xlu0 %1457
      %1459 = vrot.lane.b32.xlu0 %v173, 18
      %v1460 = vpop.permute.xlu0 %1459
      %1461 = vrot.lane.b32.xlu0 %v174, 18
      %v1462 = vpop.permute.xlu0 %1461
      %1463 = vrot.lane.b32.xlu0 %v175, 18
      %v1464 = vpop.permute.xlu0 %1463
      %vm1465 = vcmask 146432
      %v1466 = vsel %vm1465, %v1456, %v1458
      %v1467 = vsel %vm1465, %v1458, %v1460
      %v1468 = vsel %vm1465, %v1460, %v1462
      %v1469 = vsel %vm1465, %v1462, %v1464
      %v1475 = vsel %vm228, %v189, 0
      %1477 = vmatpush.msra.mxu0 0.0
      %1478 = vmatpush.msra.mxu0 0.0
      %1479 = vmatpush.msra.mxu0 0.0
      %1480 = vmatpush.msra.mxu0 0.0
      %1481 = vmatpush.msra.mxu0 0.0
      %1482 = vmatpush.msra.mxu0 0.0
      %1483 = vmatpush.msra.mxu0 0.0
      %1484 = vmatpush.msra.mxu0 0.0
      %1485 = vmatpush.msra.mxu0 0.0
      %1486 = vmatpush.msra.mxu0 0.0
      %1487 = vmatpush.msra.mxu0 0.0
      %1488 = vmatpush.msra.mxu0 0.0
      %1489 = vmatpush.msra.mxu0 0.0
      %1490 = vmatpush.msra.mxu0 0.0
      %1491 = vmatpush.msra.mxu0 0.0
      %1492 = vmatpush.msra.mxu0 %v1466
      %1493 = vmatmul.f32.gmra.mxu0 %v1475
      %v1494 = vpop.f32.mrf.mxu0
      %v1495 = vadd.f32 0.0, %v1494
      %1496 = vdwg.mxu0
      %1497 = vmatpush.msra.mxu0 0.0
      %1498 = vmatpush.msra.mxu0 0.0
      %1499 = vmatpush.msra.mxu0 0.0
      %1500 = vmatpush.msra.mxu0 0.0
      %1501 = vmatpush.msra.mxu0 0.0
      %1502 = vmatpush.msra.mxu0 0.0
      %1503 = vmatpush.msra.mxu0 0.0
      %1504 = vmatpush.msra.mxu0 0.0
      %1505 = vmatpush.msra.mxu0 0.0
      %1506 = vmatpush.msra.mxu0 0.0
      %1507 = vmatpush.msra.mxu0 0.0
      %1508 = vmatpush.msra.mxu0 0.0
      %1509 = vmatpush.msra.mxu0 0.0
      %1510 = vmatpush.msra.mxu0 0.0
      %1511 = vmatpush.msra.mxu0 0.0
      %1512 = vmatpush.msra.mxu0 %v1467
      %1513 = vmatmul.f32.gmra.mxu0 %v1475
      %v1514 = vpop.f32.mrf.mxu0
      %v1515 = vadd.f32 0.0, %v1514
      %1516 = vdwg.mxu0
      %1517 = vmatpush.msra.mxu0 0.0
      %1518 = vmatpush.msra.mxu0 0.0
      %1519 = vmatpush.msra.mxu0 0.0
      %1520 = vmatpush.msra.mxu0 0.0
      %1521 = vmatpush.msra.mxu0 0.0
      %1522 = vmatpush.msra.mxu0 0.0
      %1523 = vmatpush.msra.mxu0 0.0
      %1524 = vmatpush.msra.mxu0 0.0
      %1525 = vmatpush.msra.mxu0 0.0
      %1526 = vmatpush.msra.mxu0 0.0
      %1527 = vmatpush.msra.mxu0 0.0
      %1528 = vmatpush.msra.mxu0 0.0
      %1529 = vmatpush.msra.mxu0 0.0
      %1530 = vmatpush.msra.mxu0 0.0
      %1531 = vmatpush.msra.mxu0 0.0
      %1532 = vmatpush.msra.mxu0 %v1468
      %1533 = vmatmul.f32.gmra.mxu0 %v1475
      %v1534 = vpop.f32.mrf.mxu0
      %v1535 = vadd.f32 0.0, %v1534
      %1536 = vdwg.mxu0
      %1537 = vmatpush.msra.mxu0 0.0
      %1538 = vmatpush.msra.mxu0 0.0
      %1539 = vmatpush.msra.mxu0 0.0
      %1540 = vmatpush.msra.mxu0 0.0
      %1541 = vmatpush.msra.mxu0 0.0
      %1542 = vmatpush.msra.mxu0 0.0
      %1543 = vmatpush.msra.mxu0 0.0
      %1544 = vmatpush.msra.mxu0 0.0
      %1545 = vmatpush.msra.mxu0 0.0
      %1546 = vmatpush.msra.mxu0 0.0
      %1547 = vmatpush.msra.mxu0 0.0
      %1548 = vmatpush.msra.mxu0 0.0
      %1549 = vmatpush.msra.mxu0 0.0
      %1550 = vmatpush.msra.mxu0 0.0
      %1551 = vmatpush.msra.mxu0 0.0
      %1552 = vmatpush.msra.mxu0 %v1469
      %1553 = vmatmul.f32.gmra.mxu0 %v1475
      %v1554 = vpop.f32.mrf.mxu0
      %v1555 = vadd.f32 0.0, %v1554
      %1556 = vdwg.mxu0
      %v1557 = vadd.f32 %v1451, %v1495
      %v1558 = vadd.f32 %v1452, %v1515
      %v1559 = vadd.f32 %v1453, %v1535
      %v1560 = vadd.f32 %v1454, %v1555
      %1561 = vrot.lane.b32.xlu0 %v171, 17
      %v1562 = vpop.permute.xlu0 %1561
      %1563 = vrot.lane.b32.xlu0 %v172, 17
      %v1564 = vpop.permute.xlu0 %1563
      %1565 = vrot.lane.b32.xlu0 %v173, 17
      %v1566 = vpop.permute.xlu0 %1565
      %1567 = vrot.lane.b32.xlu0 %v174, 17
      %v1568 = vpop.permute.xlu0 %1567
      %1569 = vrot.lane.b32.xlu0 %v175, 17
      %v1570 = vpop.permute.xlu0 %1569
      %vm1571 = vcmask 138240
      %v1572 = vsel %vm1571, %v1562, %v1564
      %v1573 = vsel %vm1571, %v1564, %v1566
      %v1574 = vsel %vm1571, %v1566, %v1568
      %v1575 = vsel %vm1571, %v1568, %v1570
      %v1581 = vsel %vm228, %v190, 0
      %1583 = vmatpush.msra.mxu0 0.0
      %1584 = vmatpush.msra.mxu0 0.0
      %1585 = vmatpush.msra.mxu0 0.0
      %1586 = vmatpush.msra.mxu0 0.0
      %1587 = vmatpush.msra.mxu0 0.0
      %1588 = vmatpush.msra.mxu0 0.0
      %1589 = vmatpush.msra.mxu0 0.0
      %1590 = vmatpush.msra.mxu0 0.0
      %1591 = vmatpush.msra.mxu0 0.0
      %1592 = vmatpush.msra.mxu0 0.0
      %1593 = vmatpush.msra.mxu0 0.0
      %1594 = vmatpush.msra.mxu0 0.0
      %1595 = vmatpush.msra.mxu0 0.0
      %1596 = vmatpush.msra.mxu0 0.0
      %1597 = vmatpush.msra.mxu0 0.0
      %1598 = vmatpush.msra.mxu0 %v1572
      %1599 = vmatmul.f32.gmra.mxu0 %v1581
      %v1600 = vpop.f32.mrf.mxu0
      %v1601 = vadd.f32 0.0, %v1600
      %1602 = vdwg.mxu0
      %1603 = vmatpush.msra.mxu0 0.0
      %1604 = vmatpush.msra.mxu0 0.0
      %1605 = vmatpush.msra.mxu0 0.0
      %1606 = vmatpush.msra.mxu0 0.0
      %1607 = vmatpush.msra.mxu0 0.0
      %1608 = vmatpush.msra.mxu0 0.0
      %1609 = vmatpush.msra.mxu0 0.0
      %1610 = vmatpush.msra.mxu0 0.0
      %1611 = vmatpush.msra.mxu0 0.0
      %1612 = vmatpush.msra.mxu0 0.0
      %1613 = vmatpush.msra.mxu0 0.0
      %1614 = vmatpush.msra.mxu0 0.0
      %1615 = vmatpush.msra.mxu0 0.0
      %1616 = vmatpush.msra.mxu0 0.0
      %1617 = vmatpush.msra.mxu0 0.0
      %1618 = vmatpush.msra.mxu0 %v1573
      %1619 = vmatmul.f32.gmra.mxu0 %v1581
      %v1620 = vpop.f32.mrf.mxu0
      %v1621 = vadd.f32 0.0, %v1620
      %1622 = vdwg.mxu0
      %1623 = vmatpush.msra.mxu0 0.0
      %1624 = vmatpush.msra.mxu0 0.0
      %1625 = vmatpush.msra.mxu0 0.0
      %1626 = vmatpush.msra.mxu0 0.0
      %1627 = vmatpush.msra.mxu0 0.0
      %1628 = vmatpush.msra.mxu0 0.0
      %1629 = vmatpush.msra.mxu0 0.0
      %1630 = vmatpush.msra.mxu0 0.0
      %1631 = vmatpush.msra.mxu0 0.0
      %1632 = vmatpush.msra.mxu0 0.0
      %1633 = vmatpush.msra.mxu0 0.0
      %1634 = vmatpush.msra.mxu0 0.0
      %1635 = vmatpush.msra.mxu0 0.0
      %1636 = vmatpush.msra.mxu0 0.0
      %1637 = vmatpush.msra.mxu0 0.0
      %1638 = vmatpush.msra.mxu0 %v1574
      %1639 = vmatmul.f32.gmra.mxu0 %v1581
      %v1640 = vpop.f32.mrf.mxu0
      %v1641 = vadd.f32 0.0, %v1640
      %1642 = vdwg.mxu0
      %1643 = vmatpush.msra.mxu0 0.0
      %1644 = vmatpush.msra.mxu0 0.0
      %1645 = vmatpush.msra.mxu0 0.0
      %1646 = vmatpush.msra.mxu0 0.0
      %1647 = vmatpush.msra.mxu0 0.0
      %1648 = vmatpush.msra.mxu0 0.0
      %1649 = vmatpush.msra.mxu0 0.0
      %1650 = vmatpush.msra.mxu0 0.0
      %1651 = vmatpush.msra.mxu0 0.0
      %1652 = vmatpush.msra.mxu0 0.0
      %1653 = vmatpush.msra.mxu0 0.0
      %1654 = vmatpush.msra.mxu0 0.0
      %1655 = vmatpush.msra.mxu0 0.0
      %1656 = vmatpush.msra.mxu0 0.0
      %1657 = vmatpush.msra.mxu0 0.0
      %1658 = vmatpush.msra.mxu0 %v1575
      %1659 = vmatmul.f32.gmra.mxu0 %v1581
      %v1660 = vpop.f32.mrf.mxu0
      %v1661 = vadd.f32 0.0, %v1660
      %1662 = vdwg.mxu0
      %v1663 = vadd.f32 %v1557, %v1601
      %v1664 = vadd.f32 %v1558, %v1621
      %v1665 = vadd.f32 %v1559, %v1641
      %v1666 = vadd.f32 %v1560, %v1661
      %1667 = vrot.lane.b32.xlu0 %v171, 16
      %v1668 = vpop.permute.xlu0 %1667
      %1669 = vrot.lane.b32.xlu0 %v172, 16
      %v1670 = vpop.permute.xlu0 %1669
      %1671 = vrot.lane.b32.xlu0 %v173, 16
      %v1672 = vpop.permute.xlu0 %1671
      %1673 = vrot.lane.b32.xlu0 %v174, 16
      %v1674 = vpop.permute.xlu0 %1673
      %1675 = vrot.lane.b32.xlu0 %v175, 16
      %v1676 = vpop.permute.xlu0 %1675
      %vm1677 = vcmask 130048
      %v1678 = vsel %vm1677, %v1668, %v1670
      %v1679 = vsel %vm1677, %v1670, %v1672
      %v1680 = vsel %vm1677, %v1672, %v1674
      %v1681 = vsel %vm1677, %v1674, %v1676
      %v1687 = vsel %vm228, %v191, 0
      %1689 = vmatpush.msra.mxu0 0.0
      %1690 = vmatpush.msra.mxu0 0.0
      %1691 = vmatpush.msra.mxu0 0.0
      %1692 = vmatpush.msra.mxu0 0.0
      %1693 = vmatpush.msra.mxu0 0.0
      %1694 = vmatpush.msra.mxu0 0.0
      %1695 = vmatpush.msra.mxu0 0.0
      %1696 = vmatpush.msra.mxu0 0.0
      %1697 = vmatpush.msra.mxu0 0.0
      %1698 = vmatpush.msra.mxu0 0.0
      %1699 = vmatpush.msra.mxu0 0.0
      %1700 = vmatpush.msra.mxu0 0.0
      %1701 = vmatpush.msra.mxu0 0.0
      %1702 = vmatpush.msra.mxu0 0.0
      %1703 = vmatpush.msra.mxu0 0.0
      %1704 = vmatpush.msra.mxu0 %v1678
      %1705 = vmatmul.f32.gmra.mxu0 %v1687
      %v1706 = vpop.f32.mrf.mxu0
      %v1707 = vadd.f32 0.0, %v1706
      %1708 = vdwg.mxu0
      %1709 = vmatpush.msra.mxu0 0.0
      %1710 = vmatpush.msra.mxu0 0.0
      %1711 = vmatpush.msra.mxu0 0.0
      %1712 = vmatpush.msra.mxu0 0.0
      %1713 = vmatpush.msra.mxu0 0.0
      %1714 = vmatpush.msra.mxu0 0.0
      %1715 = vmatpush.msra.mxu0 0.0
      %1716 = vmatpush.msra.mxu0 0.0
      %1717 = vmatpush.msra.mxu0 0.0
      %1718 = vmatpush.msra.mxu0 0.0
      %1719 = vmatpush.msra.mxu0 0.0
      %1720 = vmatpush.msra.mxu0 0.0
      %1721 = vmatpush.msra.mxu0 0.0
      %1722 = vmatpush.msra.mxu0 0.0
      %1723 = vmatpush.msra.mxu0 0.0
      %1724 = vmatpush.msra.mxu0 %v1679
      %1725 = vmatmul.f32.gmra.mxu0 %v1687
      %v1726 = vpop.f32.mrf.mxu0
      %v1727 = vadd.f32 0.0, %v1726
      %1728 = vdwg.mxu0
      %1729 = vmatpush.msra.mxu0 0.0
      %1730 = vmatpush.msra.mxu0 0.0
      %1731 = vmatpush.msra.mxu0 0.0
      %1732 = vmatpush.msra.mxu0 0.0
      %1733 = vmatpush.msra.mxu0 0.0
      %1734 = vmatpush.msra.mxu0 0.0
      %1735 = vmatpush.msra.mxu0 0.0
      %1736 = vmatpush.msra.mxu0 0.0
      %1737 = vmatpush.msra.mxu0 0.0
      %1738 = vmatpush.msra.mxu0 0.0
      %1739 = vmatpush.msra.mxu0 0.0
      %1740 = vmatpush.msra.mxu0 0.0
      %1741 = vmatpush.msra.mxu0 0.0
      %1742 = vmatpush.msra.mxu0 0.0
      %1743 = vmatpush.msra.mxu0 0.0
      %1744 = vmatpush.msra.mxu0 %v1680
      %1745 = vmatmul.f32.gmra.mxu0 %v1687
      %v1746 = vpop.f32.mrf.mxu0
      %v1747 = vadd.f32 0.0, %v1746
      %1748 = vdwg.mxu0
      %1749 = vmatpush.msra.mxu0 0.0
      %1750 = vmatpush.msra.mxu0 0.0
      %1751 = vmatpush.msra.mxu0 0.0
      %1752 = vmatpush.msra.mxu0 0.0
      %1753 = vmatpush.msra.mxu0 0.0
      %1754 = vmatpush.msra.mxu0 0.0
      %1755 = vmatpush.msra.mxu0 0.0
      %1756 = vmatpush.msra.mxu0 0.0
      %1757 = vmatpush.msra.mxu0 0.0
      %1758 = vmatpush.msra.mxu0 0.0
      %1759 = vmatpush.msra.mxu0 0.0
      %1760 = vmatpush.msra.mxu0 0.0
      %1761 = vmatpush.msra.mxu0 0.0
      %1762 = vmatpush.msra.mxu0 0.0
      %1763 = vmatpush.msra.mxu0 0.0
      %1764 = vmatpush.msra.mxu0 %v1681
      %1765 = vmatmul.f32.gmra.mxu0 %v1687
      %v1766 = vpop.f32.mrf.mxu0
      %v1767 = vadd.f32 0.0, %v1766
      %1768 = vdwg.mxu0
      %v1769 = vadd.f32 %v1663, %v1707
      %v1770 = vadd.f32 %v1664, %v1727
      %v1771 = vadd.f32 %v1665, %v1747
      %v1772 = vadd.f32 %v1666, %v1767
      %1773 = vrot.lane.b32.xlu0 %v171, 8
      %v1774 = vpop.permute.xlu0 %1773
      %1775 = vrot.lane.b32.xlu0 %v172, 8
      %v1776 = vpop.permute.xlu0 %1775
      %1777 = vrot.lane.b32.xlu0 %v173, 8
      %v1778 = vpop.permute.xlu0 %1777
      %1779 = vrot.lane.b32.xlu0 %v174, 8
      %v1780 = vpop.permute.xlu0 %1779
      %1781 = vrot.lane.b32.xlu0 %v175, 8
      %v1782 = vpop.permute.xlu0 %1781
      %v1783 = vsel %vm228, %v1774, %v1776
      %v1784 = vsel %vm228, %v1776, %v1778
      %v1785 = vsel %vm228, %v1778, %v1780
      %v1786 = vsel %vm228, %v1780, %v1782
      %v1792 = vsel %vm228, %v192, 0
      %1794 = vmatpush.msra.mxu0 0.0
      %1795 = vmatpush.msra.mxu0 0.0
      %1796 = vmatpush.msra.mxu0 0.0
      %1797 = vmatpush.msra.mxu0 0.0
      %1798 = vmatpush.msra.mxu0 0.0
      %1799 = vmatpush.msra.mxu0 0.0
      %1800 = vmatpush.msra.mxu0 0.0
      %1801 = vmatpush.msra.mxu0 0.0
      %1802 = vmatpush.msra.mxu0 0.0
      %1803 = vmatpush.msra.mxu0 0.0
      %1804 = vmatpush.msra.mxu0 0.0
      %1805 = vmatpush.msra.mxu0 0.0
      %1806 = vmatpush.msra.mxu0 0.0
      %1807 = vmatpush.msra.mxu0 0.0
      %1808 = vmatpush.msra.mxu0 0.0
      %1809 = vmatpush.msra.mxu0 %v1783
      %1810 = vmatmul.f32.gmra.mxu0 %v1792
      %v1811 = vpop.f32.mrf.mxu0
      %v1812 = vadd.f32 0.0, %v1811
      %1813 = vdwg.mxu0
      %1814 = vmatpush.msra.mxu0 0.0
      %1815 = vmatpush.msra.mxu0 0.0
      %1816 = vmatpush.msra.mxu0 0.0
      %1817 = vmatpush.msra.mxu0 0.0
      %1818 = vmatpush.msra.mxu0 0.0
      %1819 = vmatpush.msra.mxu0 0.0
      %1820 = vmatpush.msra.mxu0 0.0
      %1821 = vmatpush.msra.mxu0 0.0
      %1822 = vmatpush.msra.mxu0 0.0
      %1823 = vmatpush.msra.mxu0 0.0
      %1824 = vmatpush.msra.mxu0 0.0
      %1825 = vmatpush.msra.mxu0 0.0
      %1826 = vmatpush.msra.mxu0 0.0
      %1827 = vmatpush.msra.mxu0 0.0
      %1828 = vmatpush.msra.mxu0 0.0
      %1829 = vmatpush.msra.mxu0 %v1784
      %1830 = vmatmul.f32.gmra.mxu0 %v1792
      %v1831 = vpop.f32.mrf.mxu0
      %v1832 = vadd.f32 0.0, %v1831
      %1833 = vdwg.mxu0
      %1834 = vmatpush.msra.mxu0 0.0
      %1835 = vmatpush.msra.mxu0 0.0
      %1836 = vmatpush.msra.mxu0 0.0
      %1837 = vmatpush.msra.mxu0 0.0
      %1838 = vmatpush.msra.mxu0 0.0
      %1839 = vmatpush.msra.mxu0 0.0
      %1840 = vmatpush.msra.mxu0 0.0
      %1841 = vmatpush.msra.mxu0 0.0
      %1842 = vmatpush.msra.mxu0 0.0
      %1843 = vmatpush.msra.mxu0 0.0
      %1844 = vmatpush.msra.mxu0 0.0
      %1845 = vmatpush.msra.mxu0 0.0
      %1846 = vmatpush.msra.mxu0 0.0
      %1847 = vmatpush.msra.mxu0 0.0
      %1848 = vmatpush.msra.mxu0 0.0
      %1849 = vmatpush.msra.mxu0 %v1785
      %1850 = vmatmul.f32.gmra.mxu0 %v1792
      %v1851 = vpop.f32.mrf.mxu0
      %v1852 = vadd.f32 0.0, %v1851
      %1853 = vdwg.mxu0
      %1854 = vmatpush.msra.mxu0 0.0
      %1855 = vmatpush.msra.mxu0 0.0
      %1856 = vmatpush.msra.mxu0 0.0
      %1857 = vmatpush.msra.mxu0 0.0
      %1858 = vmatpush.msra.mxu0 0.0
      %1859 = vmatpush.msra.mxu0 0.0
      %1860 = vmatpush.msra.mxu0 0.0
      %1861 = vmatpush.msra.mxu0 0.0
      %1862 = vmatpush.msra.mxu0 0.0
      %1863 = vmatpush.msra.mxu0 0.0
      %1864 = vmatpush.msra.mxu0 0.0
      %1865 = vmatpush.msra.mxu0 0.0
      %1866 = vmatpush.msra.mxu0 0.0
      %1867 = vmatpush.msra.mxu0 0.0
      %1868 = vmatpush.msra.mxu0 0.0
      %1869 = vmatpush.msra.mxu0 %v1786
      %1870 = vmatmul.f32.gmra.mxu0 %v1792
      %v1871 = vpop.f32.mrf.mxu0
      %v1872 = vadd.f32 0.0, %v1871
      %1873 = vdwg.mxu0
      %v1874 = vadd.f32 %v1769, %v1812
      %v1875 = vadd.f32 %v1770, %v1832
      %v1876 = vadd.f32 %v1771, %v1852
      %v1877 = vadd.f32 %v1772, %v1872
      %1878 = vrot.lane.b32.xlu0 %v171, 7
      %v1879 = vpop.permute.xlu0 %1878
      %1880 = vrot.lane.b32.xlu0 %v172, 7
      %v1881 = vpop.permute.xlu0 %1880
      %1882 = vrot.lane.b32.xlu0 %v173, 7
      %v1883 = vpop.permute.xlu0 %1882
      %1884 = vrot.lane.b32.xlu0 %v174, 7
      %v1885 = vpop.permute.xlu0 %1884
      %1886 = vrot.lane.b32.xlu0 %v175, 7
      %v1887 = vpop.permute.xlu0 %1886
      %vm1888 = vcmask 56320
      %v1889 = vsel %vm1888, %v1879, %v1881
      %v1890 = vsel %vm1888, %v1881, %v1883
      %v1891 = vsel %vm1888, %v1883, %v1885
      %v1892 = vsel %vm1888, %v1885, %v1887
      %v1898 = vsel %vm228, %v193, 0
      %1900 = vmatpush.msra.mxu0 0.0
      %1901 = vmatpush.msra.mxu0 0.0
      %1902 = vmatpush.msra.mxu0 0.0
      %1903 = vmatpush.msra.mxu0 0.0
      %1904 = vmatpush.msra.mxu0 0.0
      %1905 = vmatpush.msra.mxu0 0.0
      %1906 = vmatpush.msra.mxu0 0.0
      %1907 = vmatpush.msra.mxu0 0.0
      %1908 = vmatpush.msra.mxu0 0.0
      %1909 = vmatpush.msra.mxu0 0.0
      %1910 = vmatpush.msra.mxu0 0.0
      %1911 = vmatpush.msra.mxu0 0.0
      %1912 = vmatpush.msra.mxu0 0.0
      %1913 = vmatpush.msra.mxu0 0.0
      %1914 = vmatpush.msra.mxu0 0.0
      %1915 = vmatpush.msra.mxu0 %v1889
      %1916 = vmatmul.f32.gmra.mxu0 %v1898
      %v1917 = vpop.f32.mrf.mxu0
      %v1918 = vadd.f32 0.0, %v1917
      %1919 = vdwg.mxu0
      %1920 = vmatpush.msra.mxu0 0.0
      %1921 = vmatpush.msra.mxu0 0.0
      %1922 = vmatpush.msra.mxu0 0.0
      %1923 = vmatpush.msra.mxu0 0.0
      %1924 = vmatpush.msra.mxu0 0.0
      %1925 = vmatpush.msra.mxu0 0.0
      %1926 = vmatpush.msra.mxu0 0.0
      %1927 = vmatpush.msra.mxu0 0.0
      %1928 = vmatpush.msra.mxu0 0.0
      %1929 = vmatpush.msra.mxu0 0.0
      %1930 = vmatpush.msra.mxu0 0.0
      %1931 = vmatpush.msra.mxu0 0.0
      %1932 = vmatpush.msra.mxu0 0.0
      %1933 = vmatpush.msra.mxu0 0.0
      %1934 = vmatpush.msra.mxu0 0.0
      %1935 = vmatpush.msra.mxu0 %v1890
      %1936 = vmatmul.f32.gmra.mxu0 %v1898
      %v1937 = vpop.f32.mrf.mxu0
      %v1938 = vadd.f32 0.0, %v1937
      %1939 = vdwg.mxu0
      %1940 = vmatpush.msra.mxu0 0.0
      %1941 = vmatpush.msra.mxu0 0.0
      %1942 = vmatpush.msra.mxu0 0.0
      %1943 = vmatpush.msra.mxu0 0.0
      %1944 = vmatpush.msra.mxu0 0.0
      %1945 = vmatpush.msra.mxu0 0.0
      %1946 = vmatpush.msra.mxu0 0.0
      %1947 = vmatpush.msra.mxu0 0.0
      %1948 = vmatpush.msra.mxu0 0.0
      %1949 = vmatpush.msra.mxu0 0.0
      %1950 = vmatpush.msra.mxu0 0.0
      %1951 = vmatpush.msra.mxu0 0.0
      %1952 = vmatpush.msra.mxu0 0.0
      %1953 = vmatpush.msra.mxu0 0.0
      %1954 = vmatpush.msra.mxu0 0.0
      %1955 = vmatpush.msra.mxu0 %v1891
      %1956 = vmatmul.f32.gmra.mxu0 %v1898
      %v1957 = vpop.f32.mrf.mxu0
      %v1958 = vadd.f32 0.0, %v1957
      %1959 = vdwg.mxu0
      %1960 = vmatpush.msra.mxu0 0.0
      %1961 = vmatpush.msra.mxu0 0.0
      %1962 = vmatpush.msra.mxu0 0.0
      %1963 = vmatpush.msra.mxu0 0.0
      %1964 = vmatpush.msra.mxu0 0.0
      %1965 = vmatpush.msra.mxu0 0.0
      %1966 = vmatpush.msra.mxu0 0.0
      %1967 = vmatpush.msra.mxu0 0.0
      %1968 = vmatpush.msra.mxu0 0.0
      %1969 = vmatpush.msra.mxu0 0.0
      %1970 = vmatpush.msra.mxu0 0.0
      %1971 = vmatpush.msra.mxu0 0.0
      %1972 = vmatpush.msra.mxu0 0.0
      %1973 = vmatpush.msra.mxu0 0.0
      %1974 = vmatpush.msra.mxu0 0.0
      %1975 = vmatpush.msra.mxu0 %v1892
      %1976 = vmatmul.f32.gmra.mxu0 %v1898
      %v1977 = vpop.f32.mrf.mxu0
      %v1978 = vadd.f32 0.0, %v1977
      %1979 = vdwg.mxu0
      %v1980 = vadd.f32 %v1874, %v1918
      %v1981 = vadd.f32 %v1875, %v1938
      %v1982 = vadd.f32 %v1876, %v1958
      %v1983 = vadd.f32 %v1877, %v1978
      %1984 = vrot.lane.b32.xlu0 %v171, 6
      %v1985 = vpop.permute.xlu0 %1984
      %1986 = vrot.lane.b32.xlu0 %v172, 6
      %v1987 = vpop.permute.xlu0 %1986
      %1988 = vrot.lane.b32.xlu0 %v173, 6
      %v1989 = vpop.permute.xlu0 %1988
      %1990 = vrot.lane.b32.xlu0 %v174, 6
      %v1991 = vpop.permute.xlu0 %1990
      %1992 = vrot.lane.b32.xlu0 %v175, 6
      %v1993 = vpop.permute.xlu0 %1992
      %vm1994 = vcmask 48128
      %v1995 = vsel %vm1994, %v1985, %v1987
      %v1996 = vsel %vm1994, %v1987, %v1989
      %v1997 = vsel %vm1994, %v1989, %v1991
      %v1998 = vsel %vm1994, %v1991, %v1993
      %v2004 = vsel %vm228, %v194, 0
      %2006 = vmatpush.msra.mxu0 0.0
      %2007 = vmatpush.msra.mxu0 0.0
      %2008 = vmatpush.msra.mxu0 0.0
      %2009 = vmatpush.msra.mxu0 0.0
      %2010 = vmatpush.msra.mxu0 0.0
      %2011 = vmatpush.msra.mxu0 0.0
      %2012 = vmatpush.msra.mxu0 0.0
      %2013 = vmatpush.msra.mxu0 0.0
      %2014 = vmatpush.msra.mxu0 0.0
      %2015 = vmatpush.msra.mxu0 0.0
      %2016 = vmatpush.msra.mxu0 0.0
      %2017 = vmatpush.msra.mxu0 0.0
      %2018 = vmatpush.msra.mxu0 0.0
      %2019 = vmatpush.msra.mxu0 0.0
      %2020 = vmatpush.msra.mxu0 0.0
      %2021 = vmatpush.msra.mxu0 %v1995
      %2022 = vmatmul.f32.gmra.mxu0 %v2004
      %v2023 = vpop.f32.mrf.mxu0
      %v2024 = vadd.f32 0.0, %v2023
      %2025 = vdwg.mxu0
      %2026 = vmatpush.msra.mxu0 0.0
      %2027 = vmatpush.msra.mxu0 0.0
      %2028 = vmatpush.msra.mxu0 0.0
      %2029 = vmatpush.msra.mxu0 0.0
      %2030 = vmatpush.msra.mxu0 0.0
      %2031 = vmatpush.msra.mxu0 0.0
      %2032 = vmatpush.msra.mxu0 0.0
      %2033 = vmatpush.msra.mxu0 0.0
      %2034 = vmatpush.msra.mxu0 0.0
      %2035 = vmatpush.msra.mxu0 0.0
      %2036 = vmatpush.msra.mxu0 0.0
      %2037 = vmatpush.msra.mxu0 0.0
      %2038 = vmatpush.msra.mxu0 0.0
      %2039 = vmatpush.msra.mxu0 0.0
      %2040 = vmatpush.msra.mxu0 0.0
      %2041 = vmatpush.msra.mxu0 %v1996
      %2042 = vmatmul.f32.gmra.mxu0 %v2004
      %v2043 = vpop.f32.mrf.mxu0
      %v2044 = vadd.f32 0.0, %v2043
      %2045 = vdwg.mxu0
      %2046 = vmatpush.msra.mxu0 0.0
      %2047 = vmatpush.msra.mxu0 0.0
      %2048 = vmatpush.msra.mxu0 0.0
      %2049 = vmatpush.msra.mxu0 0.0
      %2050 = vmatpush.msra.mxu0 0.0
      %2051 = vmatpush.msra.mxu0 0.0
      %2052 = vmatpush.msra.mxu0 0.0
      %2053 = vmatpush.msra.mxu0 0.0
      %2054 = vmatpush.msra.mxu0 0.0
      %2055 = vmatpush.msra.mxu0 0.0
      %2056 = vmatpush.msra.mxu0 0.0
      %2057 = vmatpush.msra.mxu0 0.0
      %2058 = vmatpush.msra.mxu0 0.0
      %2059 = vmatpush.msra.mxu0 0.0
      %2060 = vmatpush.msra.mxu0 0.0
      %2061 = vmatpush.msra.mxu0 %v1997
      %2062 = vmatmul.f32.gmra.mxu0 %v2004
      %v2063 = vpop.f32.mrf.mxu0
      %v2064 = vadd.f32 0.0, %v2063
      %2065 = vdwg.mxu0
      %2066 = vmatpush.msra.mxu0 0.0
      %2067 = vmatpush.msra.mxu0 0.0
      %2068 = vmatpush.msra.mxu0 0.0
      %2069 = vmatpush.msra.mxu0 0.0
      %2070 = vmatpush.msra.mxu0 0.0
      %2071 = vmatpush.msra.mxu0 0.0
      %2072 = vmatpush.msra.mxu0 0.0
      %2073 = vmatpush.msra.mxu0 0.0
      %2074 = vmatpush.msra.mxu0 0.0
      %2075 = vmatpush.msra.mxu0 0.0
      %2076 = vmatpush.msra.mxu0 0.0
      %2077 = vmatpush.msra.mxu0 0.0
      %2078 = vmatpush.msra.mxu0 0.0
      %2079 = vmatpush.msra.mxu0 0.0
      %2080 = vmatpush.msra.mxu0 0.0
      %2081 = vmatpush.msra.mxu0 %v1998
      %2082 = vmatmul.f32.gmra.mxu0 %v2004
      %v2083 = vpop.f32.mrf.mxu0
      %v2084 = vadd.f32 0.0, %v2083
      %2085 = vdwg.mxu0
      %v2086 = vadd.f32 %v1980, %v2024
      %v2087 = vadd.f32 %v1981, %v2044
      %v2088 = vadd.f32 %v1982, %v2064
      %v2089 = vadd.f32 %v1983, %v2084
      %2091 = vrot.lane.b32.xlu0 %v172, 56
      %v2092 = vpop.permute.xlu0 %2091
      %2093 = vrot.lane.b32.xlu0 %v173, 56
      %v2094 = vpop.permute.xlu0 %2093
      %2095 = vrot.lane.b32.xlu0 %v174, 56
      %v2096 = vpop.permute.xlu0 %2095
      %2097 = vrot.lane.b32.xlu0 %v175, 56
      %v2098 = vpop.permute.xlu0 %2097
      %2099 = vrot.lane.b32.xlu0 %v176, 56
      %v2100 = vpop.permute.xlu0 %2099
      %vm2101 = vcmask 457728
      %v2102 = vsel %vm2101, %v2092, %v2094
      %v2103 = vsel %vm2101, %v2094, %v2096
      %v2104 = vsel %vm2101, %v2096, %v2098
      %v2105 = vsel %vm2101, %v2098, %v2100
      %v2111 = vsel %vm228, %v195, 0
      %2113 = vmatpush.msra.mxu0 0.0
      %2114 = vmatpush.msra.mxu0 0.0
      %2115 = vmatpush.msra.mxu0 0.0
      %2116 = vmatpush.msra.mxu0 0.0
      %2117 = vmatpush.msra.mxu0 0.0
      %2118 = vmatpush.msra.mxu0 0.0
      %2119 = vmatpush.msra.mxu0 0.0
      %2120 = vmatpush.msra.mxu0 0.0
      %2121 = vmatpush.msra.mxu0 0.0
      %2122 = vmatpush.msra.mxu0 0.0
      %2123 = vmatpush.msra.mxu0 0.0
      %2124 = vmatpush.msra.mxu0 0.0
      %2125 = vmatpush.msra.mxu0 0.0
      %2126 = vmatpush.msra.mxu0 0.0
      %2127 = vmatpush.msra.mxu0 0.0
      %2128 = vmatpush.msra.mxu0 %v2102
      %2129 = vmatmul.f32.gmra.mxu0 %v2111
      %v2130 = vpop.f32.mrf.mxu0
      %v2131 = vadd.f32 0.0, %v2130
      %2132 = vdwg.mxu0
      %2133 = vmatpush.msra.mxu0 0.0
      %2134 = vmatpush.msra.mxu0 0.0
      %2135 = vmatpush.msra.mxu0 0.0
      %2136 = vmatpush.msra.mxu0 0.0
      %2137 = vmatpush.msra.mxu0 0.0
      %2138 = vmatpush.msra.mxu0 0.0
      %2139 = vmatpush.msra.mxu0 0.0
      %2140 = vmatpush.msra.mxu0 0.0
      %2141 = vmatpush.msra.mxu0 0.0
      %2142 = vmatpush.msra.mxu0 0.0
      %2143 = vmatpush.msra.mxu0 0.0
      %2144 = vmatpush.msra.mxu0 0.0
      %2145 = vmatpush.msra.mxu0 0.0
      %2146 = vmatpush.msra.mxu0 0.0
      %2147 = vmatpush.msra.mxu0 0.0
      %2148 = vmatpush.msra.mxu0 %v2103
      %2149 = vmatmul.f32.gmra.mxu0 %v2111
      %v2150 = vpop.f32.mrf.mxu0
      %v2151 = vadd.f32 0.0, %v2150
      %2152 = vdwg.mxu0
      %2153 = vmatpush.msra.mxu0 0.0
      %2154 = vmatpush.msra.mxu0 0.0
      %2155 = vmatpush.msra.mxu0 0.0
      %2156 = vmatpush.msra.mxu0 0.0
      %2157 = vmatpush.msra.mxu0 0.0
      %2158 = vmatpush.msra.mxu0 0.0
      %2159 = vmatpush.msra.mxu0 0.0
      %2160 = vmatpush.msra.mxu0 0.0
      %2161 = vmatpush.msra.mxu0 0.0
      %2162 = vmatpush.msra.mxu0 0.0
      %2163 = vmatpush.msra.mxu0 0.0
      %2164 = vmatpush.msra.mxu0 0.0
      %2165 = vmatpush.msra.mxu0 0.0
      %2166 = vmatpush.msra.mxu0 0.0
      %2167 = vmatpush.msra.mxu0 0.0
      %2168 = vmatpush.msra.mxu0 %v2104
      %2169 = vmatmul.f32.gmra.mxu0 %v2111
      %v2170 = vpop.f32.mrf.mxu0
      %v2171 = vadd.f32 0.0, %v2170
      %2172 = vdwg.mxu0
      %2173 = vmatpush.msra.mxu0 0.0
      %2174 = vmatpush.msra.mxu0 0.0
      %2175 = vmatpush.msra.mxu0 0.0
      %2176 = vmatpush.msra.mxu0 0.0
      %2177 = vmatpush.msra.mxu0 0.0
      %2178 = vmatpush.msra.mxu0 0.0
      %2179 = vmatpush.msra.mxu0 0.0
      %2180 = vmatpush.msra.mxu0 0.0
      %2181 = vmatpush.msra.mxu0 0.0
      %2182 = vmatpush.msra.mxu0 0.0
      %2183 = vmatpush.msra.mxu0 0.0
      %2184 = vmatpush.msra.mxu0 0.0
      %2185 = vmatpush.msra.mxu0 0.0
      %2186 = vmatpush.msra.mxu0 0.0
      %2187 = vmatpush.msra.mxu0 0.0
      %2188 = vmatpush.msra.mxu0 %v2105
      %2189 = vmatmul.f32.gmra.mxu0 %v2111
      %v2190 = vpop.f32.mrf.mxu0
      %v2191 = vadd.f32 0.0, %v2190
      %2192 = vdwg.mxu0
      %v2193 = vadd.f32 %v2086, %v2131
      %v2194 = vadd.f32 %v2087, %v2151
      %v2195 = vadd.f32 %v2088, %v2171
      %v2196 = vadd.f32 %v2089, %v2191
      %2197 = vrot.lane.b32.xlu0 %v172, 55
      %v2198 = vpop.permute.xlu0 %2197
      %2199 = vrot.lane.b32.xlu0 %v173, 55
      %v2200 = vpop.permute.xlu0 %2199
      %2201 = vrot.lane.b32.xlu0 %v174, 55
      %v2202 = vpop.permute.xlu0 %2201
      %2203 = vrot.lane.b32.xlu0 %v175, 55
      %v2204 = vpop.permute.xlu0 %2203
      %2205 = vrot.lane.b32.xlu0 %v176, 55
      %v2206 = vpop.permute.xlu0 %2205
      %vm2207 = vcmask 449536
      %v2208 = vsel %vm2207, %v2198, %v2200
      %v2209 = vsel %vm2207, %v2200, %v2202
      %v2210 = vsel %vm2207, %v2202, %v2204
      %v2211 = vsel %vm2207, %v2204, %v2206
      %v2217 = vsel %vm228, %v196, 0
      %2219 = vmatpush.msra.mxu0 0.0
      %2220 = vmatpush.msra.mxu0 0.0
      %2221 = vmatpush.msra.mxu0 0.0
      %2222 = vmatpush.msra.mxu0 0.0
      %2223 = vmatpush.msra.mxu0 0.0
      %2224 = vmatpush.msra.mxu0 0.0
      %2225 = vmatpush.msra.mxu0 0.0
      %2226 = vmatpush.msra.mxu0 0.0
      %2227 = vmatpush.msra.mxu0 0.0
      %2228 = vmatpush.msra.mxu0 0.0
      %2229 = vmatpush.msra.mxu0 0.0
      %2230 = vmatpush.msra.mxu0 0.0
      %2231 = vmatpush.msra.mxu0 0.0
      %2232 = vmatpush.msra.mxu0 0.0
      %2233 = vmatpush.msra.mxu0 0.0
      %2234 = vmatpush.msra.mxu0 %v2208
      %2235 = vmatmul.f32.gmra.mxu0 %v2217
      %v2236 = vpop.f32.mrf.mxu0
      %v2237 = vadd.f32 0.0, %v2236
      %2238 = vdwg.mxu0
      %2239 = vmatpush.msra.mxu0 0.0
      %2240 = vmatpush.msra.mxu0 0.0
      %2241 = vmatpush.msra.mxu0 0.0
      %2242 = vmatpush.msra.mxu0 0.0
      %2243 = vmatpush.msra.mxu0 0.0
      %2244 = vmatpush.msra.mxu0 0.0
      %2245 = vmatpush.msra.mxu0 0.0
      %2246 = vmatpush.msra.mxu0 0.0
      %2247 = vmatpush.msra.mxu0 0.0
      %2248 = vmatpush.msra.mxu0 0.0
      %2249 = vmatpush.msra.mxu0 0.0
      %2250 = vmatpush.msra.mxu0 0.0
      %2251 = vmatpush.msra.mxu0 0.0
      %2252 = vmatpush.msra.mxu0 0.0
      %2253 = vmatpush.msra.mxu0 0.0
      %2254 = vmatpush.msra.mxu0 %v2209
      %2255 = vmatmul.f32.gmra.mxu0 %v2217
      %v2256 = vpop.f32.mrf.mxu0
      %v2257 = vadd.f32 0.0, %v2256
      %2258 = vdwg.mxu0
      %2259 = vmatpush.msra.mxu0 0.0
      %2260 = vmatpush.msra.mxu0 0.0
      %2261 = vmatpush.msra.mxu0 0.0
      %2262 = vmatpush.msra.mxu0 0.0
      %2263 = vmatpush.msra.mxu0 0.0
      %2264 = vmatpush.msra.mxu0 0.0
      %2265 = vmatpush.msra.mxu0 0.0
      %2266 = vmatpush.msra.mxu0 0.0
      %2267 = vmatpush.msra.mxu0 0.0
      %2268 = vmatpush.msra.mxu0 0.0
      %2269 = vmatpush.msra.mxu0 0.0
      %2270 = vmatpush.msra.mxu0 0.0
      %2271 = vmatpush.msra.mxu0 0.0
      %2272 = vmatpush.msra.mxu0 0.0
      %2273 = vmatpush.msra.mxu0 0.0
      %2274 = vmatpush.msra.mxu0 %v2210
      %2275 = vmatmul.f32.gmra.mxu0 %v2217
      %v2276 = vpop.f32.mrf.mxu0
      %v2277 = vadd.f32 0.0, %v2276
      %2278 = vdwg.mxu0
      %2279 = vmatpush.msra.mxu0 0.0
      %2280 = vmatpush.msra.mxu0 0.0
      %2281 = vmatpush.msra.mxu0 0.0
      %2282 = vmatpush.msra.mxu0 0.0
      %2283 = vmatpush.msra.mxu0 0.0
      %2284 = vmatpush.msra.mxu0 0.0
      %2285 = vmatpush.msra.mxu0 0.0
      %2286 = vmatpush.msra.mxu0 0.0
      %2287 = vmatpush.msra.mxu0 0.0
      %2288 = vmatpush.msra.mxu0 0.0
      %2289 = vmatpush.msra.mxu0 0.0
      %2290 = vmatpush.msra.mxu0 0.0
      %2291 = vmatpush.msra.mxu0 0.0
      %2292 = vmatpush.msra.mxu0 0.0
      %2293 = vmatpush.msra.mxu0 0.0
      %2294 = vmatpush.msra.mxu0 %v2211
      %2295 = vmatmul.f32.gmra.mxu0 %v2217
      %v2296 = vpop.f32.mrf.mxu0
      %v2297 = vadd.f32 0.0, %v2296
      %2298 = vdwg.mxu0
      %v2299 = vadd.f32 %v2193, %v2237
      %v2300 = vadd.f32 %v2194, %v2257
      %v2301 = vadd.f32 %v2195, %v2277
      %v2302 = vadd.f32 %v2196, %v2297
      %2303 = vrot.lane.b32.xlu0 %v172, 54
      %v2304 = vpop.permute.xlu0 %2303
      %2305 = vrot.lane.b32.xlu0 %v173, 54
      %v2306 = vpop.permute.xlu0 %2305
      %2307 = vrot.lane.b32.xlu0 %v174, 54
      %v2308 = vpop.permute.xlu0 %2307
      %2309 = vrot.lane.b32.xlu0 %v175, 54
      %v2310 = vpop.permute.xlu0 %2309
      %2311 = vrot.lane.b32.xlu0 %v176, 54
      %v2312 = vpop.permute.xlu0 %2311
      %vm2313 = vcmask 441344
      %v2314 = vsel %vm2313, %v2304, %v2306
      %v2315 = vsel %vm2313, %v2306, %v2308
      %v2316 = vsel %vm2313, %v2308, %v2310
      %v2317 = vsel %vm2313, %v2310, %v2312
      %v2323 = vsel %vm228, %v197, 0
      %2325 = vmatpush.msra.mxu0 0.0
      %2326 = vmatpush.msra.mxu0 0.0
      %2327 = vmatpush.msra.mxu0 0.0
      %2328 = vmatpush.msra.mxu0 0.0
      %2329 = vmatpush.msra.mxu0 0.0
      %2330 = vmatpush.msra.mxu0 0.0
      %2331 = vmatpush.msra.mxu0 0.0
      %2332 = vmatpush.msra.mxu0 0.0
      %2333 = vmatpush.msra.mxu0 0.0
      %2334 = vmatpush.msra.mxu0 0.0
      %2335 = vmatpush.msra.mxu0 0.0
      %2336 = vmatpush.msra.mxu0 0.0
      %2337 = vmatpush.msra.mxu0 0.0
      %2338 = vmatpush.msra.mxu0 0.0
      %2339 = vmatpush.msra.mxu0 0.0
      %2340 = vmatpush.msra.mxu0 %v2314
      %2341 = vmatmul.f32.gmra.mxu0 %v2323
      %v2342 = vpop.f32.mrf.mxu0
      %v2343 = vadd.f32 0.0, %v2342
      %2344 = vdwg.mxu0
      %2345 = vmatpush.msra.mxu0 0.0
      %2346 = vmatpush.msra.mxu0 0.0
      %2347 = vmatpush.msra.mxu0 0.0
      %2348 = vmatpush.msra.mxu0 0.0
      %2349 = vmatpush.msra.mxu0 0.0
      %2350 = vmatpush.msra.mxu0 0.0
      %2351 = vmatpush.msra.mxu0 0.0
      %2352 = vmatpush.msra.mxu0 0.0
      %2353 = vmatpush.msra.mxu0 0.0
      %2354 = vmatpush.msra.mxu0 0.0
      %2355 = vmatpush.msra.mxu0 0.0
      %2356 = vmatpush.msra.mxu0 0.0
      %2357 = vmatpush.msra.mxu0 0.0
      %2358 = vmatpush.msra.mxu0 0.0
      %2359 = vmatpush.msra.mxu0 0.0
      %2360 = vmatpush.msra.mxu0 %v2315
      %2361 = vmatmul.f32.gmra.mxu0 %v2323
      %v2362 = vpop.f32.mrf.mxu0
      %v2363 = vadd.f32 0.0, %v2362
      %2364 = vdwg.mxu0
      %2365 = vmatpush.msra.mxu0 0.0
      %2366 = vmatpush.msra.mxu0 0.0
      %2367 = vmatpush.msra.mxu0 0.0
      %2368 = vmatpush.msra.mxu0 0.0
      %2369 = vmatpush.msra.mxu0 0.0
      %2370 = vmatpush.msra.mxu0 0.0
      %2371 = vmatpush.msra.mxu0 0.0
      %2372 = vmatpush.msra.mxu0 0.0
      %2373 = vmatpush.msra.mxu0 0.0
      %2374 = vmatpush.msra.mxu0 0.0
      %2375 = vmatpush.msra.mxu0 0.0
      %2376 = vmatpush.msra.mxu0 0.0
      %2377 = vmatpush.msra.mxu0 0.0
      %2378 = vmatpush.msra.mxu0 0.0
      %2379 = vmatpush.msra.mxu0 0.0
      %2380 = vmatpush.msra.mxu0 %v2316
      %2381 = vmatmul.f32.gmra.mxu0 %v2323
      %v2382 = vpop.f32.mrf.mxu0
      %v2383 = vadd.f32 0.0, %v2382
      %2384 = vdwg.mxu0
      %2385 = vmatpush.msra.mxu0 0.0
      %2386 = vmatpush.msra.mxu0 0.0
      %2387 = vmatpush.msra.mxu0 0.0
      %2388 = vmatpush.msra.mxu0 0.0
      %2389 = vmatpush.msra.mxu0 0.0
      %2390 = vmatpush.msra.mxu0 0.0
      %2391 = vmatpush.msra.mxu0 0.0
      %2392 = vmatpush.msra.mxu0 0.0
      %2393 = vmatpush.msra.mxu0 0.0
      %2394 = vmatpush.msra.mxu0 0.0
      %2395 = vmatpush.msra.mxu0 0.0
      %2396 = vmatpush.msra.mxu0 0.0
      %2397 = vmatpush.msra.mxu0 0.0
      %2398 = vmatpush.msra.mxu0 0.0
      %2399 = vmatpush.msra.mxu0 0.0
      %2400 = vmatpush.msra.mxu0 %v2317
      %2401 = vmatmul.f32.gmra.mxu0 %v2323
      %v2402 = vpop.f32.mrf.mxu0
      %v2403 = vadd.f32 0.0, %v2402
      %2404 = vdwg.mxu0
      %v2405 = vadd.f32 %v2299, %v2343
      %v2406 = vadd.f32 %v2300, %v2363
      %v2407 = vadd.f32 %v2301, %v2383
      %v2408 = vadd.f32 %v2302, %v2403
      %2409 = vrot.lane.b32.xlu0 %v172, 46
      %v2410 = vpop.permute.xlu0 %2409
      %2411 = vrot.lane.b32.xlu0 %v173, 46
      %v2412 = vpop.permute.xlu0 %2411
      %2413 = vrot.lane.b32.xlu0 %v174, 46
      %v2414 = vpop.permute.xlu0 %2413
      %2415 = vrot.lane.b32.xlu0 %v175, 46
      %v2416 = vpop.permute.xlu0 %2415
      %2417 = vrot.lane.b32.xlu0 %v176, 46
      %v2418 = vpop.permute.xlu0 %2417
      %vm2419 = vcmask 375808
      %v2420 = vsel %vm2419, %v2410, %v2412
      %v2421 = vsel %vm2419, %v2412, %v2414
      %v2422 = vsel %vm2419, %v2414, %v2416
      %v2423 = vsel %vm2419, %v2416, %v2418
      %v2429 = vsel %vm228, %v198, 0
      %2431 = vmatpush.msra.mxu0 0.0
      %2432 = vmatpush.msra.mxu0 0.0
      %2433 = vmatpush.msra.mxu0 0.0
      %2434 = vmatpush.msra.mxu0 0.0
      %2435 = vmatpush.msra.mxu0 0.0
      %2436 = vmatpush.msra.mxu0 0.0
      %2437 = vmatpush.msra.mxu0 0.0
      %2438 = vmatpush.msra.mxu0 0.0
      %2439 = vmatpush.msra.mxu0 0.0
      %2440 = vmatpush.msra.mxu0 0.0
      %2441 = vmatpush.msra.mxu0 0.0
      %2442 = vmatpush.msra.mxu0 0.0
      %2443 = vmatpush.msra.mxu0 0.0
      %2444 = vmatpush.msra.mxu0 0.0
      %2445 = vmatpush.msra.mxu0 0.0
      %2446 = vmatpush.msra.mxu0 %v2420
      %2447 = vmatmul.f32.gmra.mxu0 %v2429
      %v2448 = vpop.f32.mrf.mxu0
      %v2449 = vadd.f32 0.0, %v2448
      %2450 = vdwg.mxu0
      %2451 = vmatpush.msra.mxu0 0.0
      %2452 = vmatpush.msra.mxu0 0.0
      %2453 = vmatpush.msra.mxu0 0.0
      %2454 = vmatpush.msra.mxu0 0.0
      %2455 = vmatpush.msra.mxu0 0.0
      %2456 = vmatpush.msra.mxu0 0.0
      %2457 = vmatpush.msra.mxu0 0.0
      %2458 = vmatpush.msra.mxu0 0.0
      %2459 = vmatpush.msra.mxu0 0.0
      %2460 = vmatpush.msra.mxu0 0.0
      %2461 = vmatpush.msra.mxu0 0.0
      %2462 = vmatpush.msra.mxu0 0.0
      %2463 = vmatpush.msra.mxu0 0.0
      %2464 = vmatpush.msra.mxu0 0.0
      %2465 = vmatpush.msra.mxu0 0.0
      %2466 = vmatpush.msra.mxu0 %v2421
      %2467 = vmatmul.f32.gmra.mxu0 %v2429
      %v2468 = vpop.f32.mrf.mxu0
      %v2469 = vadd.f32 0.0, %v2468
      %2470 = vdwg.mxu0
      %2471 = vmatpush.msra.mxu0 0.0
      %2472 = vmatpush.msra.mxu0 0.0
      %2473 = vmatpush.msra.mxu0 0.0
      %2474 = vmatpush.msra.mxu0 0.0
      %2475 = vmatpush.msra.mxu0 0.0
      %2476 = vmatpush.msra.mxu0 0.0
      %2477 = vmatpush.msra.mxu0 0.0
      %2478 = vmatpush.msra.mxu0 0.0
      %2479 = vmatpush.msra.mxu0 0.0
      %2480 = vmatpush.msra.mxu0 0.0
      %2481 = vmatpush.msra.mxu0 0.0
      %2482 = vmatpush.msra.mxu0 0.0
      %2483 = vmatpush.msra.mxu0 0.0
      %2484 = vmatpush.msra.mxu0 0.0
      %2485 = vmatpush.msra.mxu0 0.0
      %2486 = vmatpush.msra.mxu0 %v2422
      %2487 = vmatmul.f32.gmra.mxu0 %v2429
      %v2488 = vpop.f32.mrf.mxu0
      %v2489 = vadd.f32 0.0, %v2488
      %2490 = vdwg.mxu0
      %2491 = vmatpush.msra.mxu0 0.0
      %2492 = vmatpush.msra.mxu0 0.0
      %2493 = vmatpush.msra.mxu0 0.0
      %2494 = vmatpush.msra.mxu0 0.0
      %2495 = vmatpush.msra.mxu0 0.0
      %2496 = vmatpush.msra.mxu0 0.0
      %2497 = vmatpush.msra.mxu0 0.0
      %2498 = vmatpush.msra.mxu0 0.0
      %2499 = vmatpush.msra.mxu0 0.0
      %2500 = vmatpush.msra.mxu0 0.0
      %2501 = vmatpush.msra.mxu0 0.0
      %2502 = vmatpush.msra.mxu0 0.0
      %2503 = vmatpush.msra.mxu0 0.0
      %2504 = vmatpush.msra.mxu0 0.0
      %2505 = vmatpush.msra.mxu0 0.0
      %2506 = vmatpush.msra.mxu0 %v2423
      %2507 = vmatmul.f32.gmra.mxu0 %v2429
      %v2508 = vpop.f32.mrf.mxu0
      %v2509 = vadd.f32 0.0, %v2508
      %2510 = vdwg.mxu0
      %v2511 = vadd.f32 %v2405, %v2449
      %v2512 = vadd.f32 %v2406, %v2469
      %v2513 = vadd.f32 %v2407, %v2489
      %v2514 = vadd.f32 %v2408, %v2509
      %2515 = vrot.lane.b32.xlu0 %v172, 45
      %v2516 = vpop.permute.xlu0 %2515
      %2517 = vrot.lane.b32.xlu0 %v173, 45
      %v2518 = vpop.permute.xlu0 %2517
      %2519 = vrot.lane.b32.xlu0 %v174, 45
      %v2520 = vpop.permute.xlu0 %2519
      %2521 = vrot.lane.b32.xlu0 %v175, 45
      %v2522 = vpop.permute.xlu0 %2521
      %2523 = vrot.lane.b32.xlu0 %v176, 45
      %v2524 = vpop.permute.xlu0 %2523
      %vm2525 = vcmask 367616
      %v2526 = vsel %vm2525, %v2516, %v2518
      %v2527 = vsel %vm2525, %v2518, %v2520
      %v2528 = vsel %vm2525, %v2520, %v2522
      %v2529 = vsel %vm2525, %v2522, %v2524
      %v2535 = vsel %vm228, %v199, 0
      %2537 = vmatpush.msra.mxu0 0.0
      %2538 = vmatpush.msra.mxu0 0.0
      %2539 = vmatpush.msra.mxu0 0.0
      %2540 = vmatpush.msra.mxu0 0.0
      %2541 = vmatpush.msra.mxu0 0.0
      %2542 = vmatpush.msra.mxu0 0.0
      %2543 = vmatpush.msra.mxu0 0.0
      %2544 = vmatpush.msra.mxu0 0.0
      %2545 = vmatpush.msra.mxu0 0.0
      %2546 = vmatpush.msra.mxu0 0.0
      %2547 = vmatpush.msra.mxu0 0.0
      %2548 = vmatpush.msra.mxu0 0.0
      %2549 = vmatpush.msra.mxu0 0.0
      %2550 = vmatpush.msra.mxu0 0.0
      %2551 = vmatpush.msra.mxu0 0.0
      %2552 = vmatpush.msra.mxu0 %v2526
      %2553 = vmatmul.f32.gmra.mxu0 %v2535
      %v2554 = vpop.f32.mrf.mxu0
      %v2555 = vadd.f32 0.0, %v2554
      %2556 = vdwg.mxu0
      %2557 = vmatpush.msra.mxu0 0.0
      %2558 = vmatpush.msra.mxu0 0.0
      %2559 = vmatpush.msra.mxu0 0.0
      %2560 = vmatpush.msra.mxu0 0.0
      %2561 = vmatpush.msra.mxu0 0.0
      %2562 = vmatpush.msra.mxu0 0.0
      %2563 = vmatpush.msra.mxu0 0.0
      %2564 = vmatpush.msra.mxu0 0.0
      %2565 = vmatpush.msra.mxu0 0.0
      %2566 = vmatpush.msra.mxu0 0.0
      %2567 = vmatpush.msra.mxu0 0.0
      %2568 = vmatpush.msra.mxu0 0.0
      %2569 = vmatpush.msra.mxu0 0.0
      %2570 = vmatpush.msra.mxu0 0.0
      %2571 = vmatpush.msra.mxu0 0.0
      %2572 = vmatpush.msra.mxu0 %v2527
      %2573 = vmatmul.f32.gmra.mxu0 %v2535
      %v2574 = vpop.f32.mrf.mxu0
      %v2575 = vadd.f32 0.0, %v2574
      %2576 = vdwg.mxu0
      %2577 = vmatpush.msra.mxu0 0.0
      %2578 = vmatpush.msra.mxu0 0.0
      %2579 = vmatpush.msra.mxu0 0.0
      %2580 = vmatpush.msra.mxu0 0.0
      %2581 = vmatpush.msra.mxu0 0.0
      %2582 = vmatpush.msra.mxu0 0.0
      %2583 = vmatpush.msra.mxu0 0.0
      %2584 = vmatpush.msra.mxu0 0.0
      %2585 = vmatpush.msra.mxu0 0.0
      %2586 = vmatpush.msra.mxu0 0.0
      %2587 = vmatpush.msra.mxu0 0.0
      %2588 = vmatpush.msra.mxu0 0.0
      %2589 = vmatpush.msra.mxu0 0.0
      %2590 = vmatpush.msra.mxu0 0.0
      %2591 = vmatpush.msra.mxu0 0.0
      %2592 = vmatpush.msra.mxu0 %v2528
      %2593 = vmatmul.f32.gmra.mxu0 %v2535
      %v2594 = vpop.f32.mrf.mxu0
      %v2595 = vadd.f32 0.0, %v2594
      %2596 = vdwg.mxu0
      %2597 = vmatpush.msra.mxu0 0.0
      %2598 = vmatpush.msra.mxu0 0.0
      %2599 = vmatpush.msra.mxu0 0.0
      %2600 = vmatpush.msra.mxu0 0.0
      %2601 = vmatpush.msra.mxu0 0.0
      %2602 = vmatpush.msra.mxu0 0.0
      %2603 = vmatpush.msra.mxu0 0.0
      %2604 = vmatpush.msra.mxu0 0.0
      %2605 = vmatpush.msra.mxu0 0.0
      %2606 = vmatpush.msra.mxu0 0.0
      %2607 = vmatpush.msra.mxu0 0.0
      %2608 = vmatpush.msra.mxu0 0.0
      %2609 = vmatpush.msra.mxu0 0.0
      %2610 = vmatpush.msra.mxu0 0.0
      %2611 = vmatpush.msra.mxu0 0.0
      %2612 = vmatpush.msra.mxu0 %v2529
      %2613 = vmatmul.f32.gmra.mxu0 %v2535
      %v2614 = vpop.f32.mrf.mxu0
      %v2615 = vadd.f32 0.0, %v2614
      %2616 = vdwg.mxu0
      %v2617 = vadd.f32 %v2511, %v2555
      %v2618 = vadd.f32 %v2512, %v2575
      %v2619 = vadd.f32 %v2513, %v2595
      %v2620 = vadd.f32 %v2514, %v2615
      %2621 = vrot.lane.b32.xlu0 %v172, 44
      %v2622 = vpop.permute.xlu0 %2621
      %2623 = vrot.lane.b32.xlu0 %v173, 44
      %v2624 = vpop.permute.xlu0 %2623
      %2625 = vrot.lane.b32.xlu0 %v174, 44
      %v2626 = vpop.permute.xlu0 %2625
      %2627 = vrot.lane.b32.xlu0 %v175, 44
      %v2628 = vpop.permute.xlu0 %2627
      %2629 = vrot.lane.b32.xlu0 %v176, 44
      %v2630 = vpop.permute.xlu0 %2629
      %vm2631 = vcmask 359424
      %v2632 = vsel %vm2631, %v2622, %v2624
      %v2633 = vsel %vm2631, %v2624, %v2626
      %v2634 = vsel %vm2631, %v2626, %v2628
      %v2635 = vsel %vm2631, %v2628, %v2630
      %v2641 = vsel %vm228, %v200, 0
      %2643 = vmatpush.msra.mxu0 0.0
      %2644 = vmatpush.msra.mxu0 0.0
      %2645 = vmatpush.msra.mxu0 0.0
      %2646 = vmatpush.msra.mxu0 0.0
      %2647 = vmatpush.msra.mxu0 0.0
      %2648 = vmatpush.msra.mxu0 0.0
      %2649 = vmatpush.msra.mxu0 0.0
      %2650 = vmatpush.msra.mxu0 0.0
      %2651 = vmatpush.msra.mxu0 0.0
      %2652 = vmatpush.msra.mxu0 0.0
      %2653 = vmatpush.msra.mxu0 0.0
      %2654 = vmatpush.msra.mxu0 0.0
      %2655 = vmatpush.msra.mxu0 0.0
      %2656 = vmatpush.msra.mxu0 0.0
      %2657 = vmatpush.msra.mxu0 0.0
      %2658 = vmatpush.msra.mxu0 %v2632
      %2659 = vmatmul.f32.gmra.mxu0 %v2641
      %v2660 = vpop.f32.mrf.mxu0
      %v2661 = vadd.f32 0.0, %v2660
      %2662 = vdwg.mxu0
      %2663 = vmatpush.msra.mxu0 0.0
      %2664 = vmatpush.msra.mxu0 0.0
      %2665 = vmatpush.msra.mxu0 0.0
      %2666 = vmatpush.msra.mxu0 0.0
      %2667 = vmatpush.msra.mxu0 0.0
      %2668 = vmatpush.msra.mxu0 0.0
      %2669 = vmatpush.msra.mxu0 0.0
      %2670 = vmatpush.msra.mxu0 0.0
      %2671 = vmatpush.msra.mxu0 0.0
      %2672 = vmatpush.msra.mxu0 0.0
      %2673 = vmatpush.msra.mxu0 0.0
      %2674 = vmatpush.msra.mxu0 0.0
      %2675 = vmatpush.msra.mxu0 0.0
      %2676 = vmatpush.msra.mxu0 0.0
      %2677 = vmatpush.msra.mxu0 0.0
      %2678 = vmatpush.msra.mxu0 %v2633
      %2679 = vmatmul.f32.gmra.mxu0 %v2641
      %v2680 = vpop.f32.mrf.mxu0
      %v2681 = vadd.f32 0.0, %v2680
      %2682 = vdwg.mxu0
      %2683 = vmatpush.msra.mxu0 0.0
      %2684 = vmatpush.msra.mxu0 0.0
      %2685 = vmatpush.msra.mxu0 0.0
      %2686 = vmatpush.msra.mxu0 0.0
      %2687 = vmatpush.msra.mxu0 0.0
      %2688 = vmatpush.msra.mxu0 0.0
      %2689 = vmatpush.msra.mxu0 0.0
      %2690 = vmatpush.msra.mxu0 0.0
      %2691 = vmatpush.msra.mxu0 0.0
      %2692 = vmatpush.msra.mxu0 0.0
      %2693 = vmatpush.msra.mxu0 0.0
      %2694 = vmatpush.msra.mxu0 0.0
      %2695 = vmatpush.msra.mxu0 0.0
      %2696 = vmatpush.msra.mxu0 0.0
      %2697 = vmatpush.msra.mxu0 0.0
      %2698 = vmatpush.msra.mxu0 %v2634
      %2699 = vmatmul.f32.gmra.mxu0 %v2641
      %v2700 = vpop.f32.mrf.mxu0
      %v2701 = vadd.f32 0.0, %v2700
      %2702 = vdwg.mxu0
      %2703 = vmatpush.msra.mxu0 0.0
      %2704 = vmatpush.msra.mxu0 0.0
      %2705 = vmatpush.msra.mxu0 0.0
      %2706 = vmatpush.msra.mxu0 0.0
      %2707 = vmatpush.msra.mxu0 0.0
      %2708 = vmatpush.msra.mxu0 0.0
      %2709 = vmatpush.msra.mxu0 0.0
      %2710 = vmatpush.msra.mxu0 0.0
      %2711 = vmatpush.msra.mxu0 0.0
      %2712 = vmatpush.msra.mxu0 0.0
      %2713 = vmatpush.msra.mxu0 0.0
      %2714 = vmatpush.msra.mxu0 0.0
      %2715 = vmatpush.msra.mxu0 0.0
      %2716 = vmatpush.msra.mxu0 0.0
      %2717 = vmatpush.msra.mxu0 0.0
      %2718 = vmatpush.msra.mxu0 %v2635
      %2719 = vmatmul.f32.gmra.mxu0 %v2641
      %v2720 = vpop.f32.mrf.mxu0
      %v2721 = vadd.f32 0.0, %v2720
      %2722 = vdwg.mxu0
      %v2723 = vadd.f32 %v2617, %v2661
      %v2724 = vadd.f32 %v2618, %v2681
      %v2725 = vadd.f32 %v2619, %v2701
      %v2726 = vadd.f32 %v2620, %v2721
      %2727 = vrot.lane.b32.xlu0 %v172, 36
      %v2728 = vpop.permute.xlu0 %2727
      %2729 = vrot.lane.b32.xlu0 %v173, 36
      %v2730 = vpop.permute.xlu0 %2729
      %2731 = vrot.lane.b32.xlu0 %v174, 36
      %v2732 = vpop.permute.xlu0 %2731
      %2733 = vrot.lane.b32.xlu0 %v175, 36
      %v2734 = vpop.permute.xlu0 %2733
      %2735 = vrot.lane.b32.xlu0 %v176, 36
      %v2736 = vpop.permute.xlu0 %2735
      %vm2737 = vcmask 293888
      %v2738 = vsel %vm2737, %v2728, %v2730
      %v2739 = vsel %vm2737, %v2730, %v2732
      %v2740 = vsel %vm2737, %v2732, %v2734
      %v2741 = vsel %vm2737, %v2734, %v2736
      %v2747 = vsel %vm228, %v201, 0
      %2749 = vmatpush.msra.mxu0 0.0
      %2750 = vmatpush.msra.mxu0 0.0
      %2751 = vmatpush.msra.mxu0 0.0
      %2752 = vmatpush.msra.mxu0 0.0
      %2753 = vmatpush.msra.mxu0 0.0
      %2754 = vmatpush.msra.mxu0 0.0
      %2755 = vmatpush.msra.mxu0 0.0
      %2756 = vmatpush.msra.mxu0 0.0
      %2757 = vmatpush.msra.mxu0 0.0
      %2758 = vmatpush.msra.mxu0 0.0
      %2759 = vmatpush.msra.mxu0 0.0
      %2760 = vmatpush.msra.mxu0 0.0
      %2761 = vmatpush.msra.mxu0 0.0
      %2762 = vmatpush.msra.mxu0 0.0
      %2763 = vmatpush.msra.mxu0 0.0
      %2764 = vmatpush.msra.mxu0 %v2738
      %2765 = vmatmul.f32.gmra.mxu0 %v2747
      %v2766 = vpop.f32.mrf.mxu0
      %v2767 = vadd.f32 0.0, %v2766
      %2768 = vdwg.mxu0
      %2769 = vmatpush.msra.mxu0 0.0
      %2770 = vmatpush.msra.mxu0 0.0
      %2771 = vmatpush.msra.mxu0 0.0
      %2772 = vmatpush.msra.mxu0 0.0
      %2773 = vmatpush.msra.mxu0 0.0
      %2774 = vmatpush.msra.mxu0 0.0
      %2775 = vmatpush.msra.mxu0 0.0
      %2776 = vmatpush.msra.mxu0 0.0
      %2777 = vmatpush.msra.mxu0 0.0
      %2778 = vmatpush.msra.mxu0 0.0
      %2779 = vmatpush.msra.mxu0 0.0
      %2780 = vmatpush.msra.mxu0 0.0
      %2781 = vmatpush.msra.mxu0 0.0
      %2782 = vmatpush.msra.mxu0 0.0
      %2783 = vmatpush.msra.mxu0 0.0
      %2784 = vmatpush.msra.mxu0 %v2739
      %2785 = vmatmul.f32.gmra.mxu0 %v2747
      %v2786 = vpop.f32.mrf.mxu0
      %v2787 = vadd.f32 0.0, %v2786
      %2788 = vdwg.mxu0
      %2789 = vmatpush.msra.mxu0 0.0
      %2790 = vmatpush.msra.mxu0 0.0
      %2791 = vmatpush.msra.mxu0 0.0
      %2792 = vmatpush.msra.mxu0 0.0
      %2793 = vmatpush.msra.mxu0 0.0
      %2794 = vmatpush.msra.mxu0 0.0
      %2795 = vmatpush.msra.mxu0 0.0
      %2796 = vmatpush.msra.mxu0 0.0
      %2797 = vmatpush.msra.mxu0 0.0
      %2798 = vmatpush.msra.mxu0 0.0
      %2799 = vmatpush.msra.mxu0 0.0
      %2800 = vmatpush.msra.mxu0 0.0
      %2801 = vmatpush.msra.mxu0 0.0
      %2802 = vmatpush.msra.mxu0 0.0
      %2803 = vmatpush.msra.mxu0 0.0
      %2804 = vmatpush.msra.mxu0 %v2740
      %2805 = vmatmul.f32.gmra.mxu0 %v2747
      %v2806 = vpop.f32.mrf.mxu0
      %v2807 = vadd.f32 0.0, %v2806
      %2808 = vdwg.mxu0
      %2809 = vmatpush.msra.mxu0 0.0
      %2810 = vmatpush.msra.mxu0 0.0
      %2811 = vmatpush.msra.mxu0 0.0
      %2812 = vmatpush.msra.mxu0 0.0
      %2813 = vmatpush.msra.mxu0 0.0
      %2814 = vmatpush.msra.mxu0 0.0
      %2815 = vmatpush.msra.mxu0 0.0
      %2816 = vmatpush.msra.mxu0 0.0
      %2817 = vmatpush.msra.mxu0 0.0
      %2818 = vmatpush.msra.mxu0 0.0
      %2819 = vmatpush.msra.mxu0 0.0
      %2820 = vmatpush.msra.mxu0 0.0
      %2821 = vmatpush.msra.mxu0 0.0
      %2822 = vmatpush.msra.mxu0 0.0
      %2823 = vmatpush.msra.mxu0 0.0
      %2824 = vmatpush.msra.mxu0 %v2741
      %2825 = vmatmul.f32.gmra.mxu0 %v2747
      %v2826 = vpop.f32.mrf.mxu0
      %v2827 = vadd.f32 0.0, %v2826
      %2828 = vdwg.mxu0
      %v2829 = vadd.f32 %v2723, %v2767
      %v2830 = vadd.f32 %v2724, %v2787
      %v2831 = vadd.f32 %v2725, %v2807
      %v2832 = vadd.f32 %v2726, %v2827
      %2833 = vrot.lane.b32.xlu0 %v172, 35
      %v2834 = vpop.permute.xlu0 %2833
      %2835 = vrot.lane.b32.xlu0 %v173, 35
      %v2836 = vpop.permute.xlu0 %2835
      %2837 = vrot.lane.b32.xlu0 %v174, 35
      %v2838 = vpop.permute.xlu0 %2837
      %2839 = vrot.lane.b32.xlu0 %v175, 35
      %v2840 = vpop.permute.xlu0 %2839
      %2841 = vrot.lane.b32.xlu0 %v176, 35
      %v2842 = vpop.permute.xlu0 %2841
      %vm2843 = vcmask 285696
      %v2844 = vsel %vm2843, %v2834, %v2836
      %v2845 = vsel %vm2843, %v2836, %v2838
      %v2846 = vsel %vm2843, %v2838, %v2840
      %v2847 = vsel %vm2843, %v2840, %v2842
      %v2853 = vsel %vm228, %v202, 0
      %2855 = vmatpush.msra.mxu0 0.0
      %2856 = vmatpush.msra.mxu0 0.0
      %2857 = vmatpush.msra.mxu0 0.0
      %2858 = vmatpush.msra.mxu0 0.0
      %2859 = vmatpush.msra.mxu0 0.0
      %2860 = vmatpush.msra.mxu0 0.0
      %2861 = vmatpush.msra.mxu0 0.0
      %2862 = vmatpush.msra.mxu0 0.0
      %2863 = vmatpush.msra.mxu0 0.0
      %2864 = vmatpush.msra.mxu0 0.0
      %2865 = vmatpush.msra.mxu0 0.0
      %2866 = vmatpush.msra.mxu0 0.0
      %2867 = vmatpush.msra.mxu0 0.0
      %2868 = vmatpush.msra.mxu0 0.0
      %2869 = vmatpush.msra.mxu0 0.0
      %2870 = vmatpush.msra.mxu0 %v2844
      %2871 = vmatmul.f32.gmra.mxu0 %v2853
      %v2872 = vpop.f32.mrf.mxu0
      %v2873 = vadd.f32 0.0, %v2872
      %2874 = vdwg.mxu0
      %2875 = vmatpush.msra.mxu0 0.0
      %2876 = vmatpush.msra.mxu0 0.0
      %2877 = vmatpush.msra.mxu0 0.0
      %2878 = vmatpush.msra.mxu0 0.0
      %2879 = vmatpush.msra.mxu0 0.0
      %2880 = vmatpush.msra.mxu0 0.0
      %2881 = vmatpush.msra.mxu0 0.0
      %2882 = vmatpush.msra.mxu0 0.0
      %2883 = vmatpush.msra.mxu0 0.0
      %2884 = vmatpush.msra.mxu0 0.0
      %2885 = vmatpush.msra.mxu0 0.0
      %2886 = vmatpush.msra.mxu0 0.0
      %2887 = vmatpush.msra.mxu0 0.0
      %2888 = vmatpush.msra.mxu0 0.0
      %2889 = vmatpush.msra.mxu0 0.0
      %2890 = vmatpush.msra.mxu0 %v2845
      %2891 = vmatmul.f32.gmra.mxu0 %v2853
      %v2892 = vpop.f32.mrf.mxu0
      %v2893 = vadd.f32 0.0, %v2892
      %2894 = vdwg.mxu0
      %2895 = vmatpush.msra.mxu0 0.0
      %2896 = vmatpush.msra.mxu0 0.0
      %2897 = vmatpush.msra.mxu0 0.0
      %2898 = vmatpush.msra.mxu0 0.0
      %2899 = vmatpush.msra.mxu0 0.0
      %2900 = vmatpush.msra.mxu0 0.0
      %2901 = vmatpush.msra.mxu0 0.0
      %2902 = vmatpush.msra.mxu0 0.0
      %2903 = vmatpush.msra.mxu0 0.0
      %2904 = vmatpush.msra.mxu0 0.0
      %2905 = vmatpush.msra.mxu0 0.0
      %2906 = vmatpush.msra.mxu0 0.0
      %2907 = vmatpush.msra.mxu0 0.0
      %2908 = vmatpush.msra.mxu0 0.0
      %2909 = vmatpush.msra.mxu0 0.0
      %2910 = vmatpush.msra.mxu0 %v2846
      %2911 = vmatmul.f32.gmra.mxu0 %v2853
      %v2912 = vpop.f32.mrf.mxu0
      %v2913 = vadd.f32 0.0, %v2912
      %2914 = vdwg.mxu0
      %2915 = vmatpush.msra.mxu0 0.0
      %2916 = vmatpush.msra.mxu0 0.0
      %2917 = vmatpush.msra.mxu0 0.0
      %2918 = vmatpush.msra.mxu0 0.0
      %2919 = vmatpush.msra.mxu0 0.0
      %2920 = vmatpush.msra.mxu0 0.0
      %2921 = vmatpush.msra.mxu0 0.0
      %2922 = vmatpush.msra.mxu0 0.0
      %2923 = vmatpush.msra.mxu0 0.0
      %2924 = vmatpush.msra.mxu0 0.0
      %2925 = vmatpush.msra.mxu0 0.0
      %2926 = vmatpush.msra.mxu0 0.0
      %2927 = vmatpush.msra.mxu0 0.0
      %2928 = vmatpush.msra.mxu0 0.0
      %2929 = vmatpush.msra.mxu0 0.0
      %2930 = vmatpush.msra.mxu0 %v2847
      %2931 = vmatmul.f32.gmra.mxu0 %v2853
      %v2932 = vpop.f32.mrf.mxu0
      %v2933 = vadd.f32 0.0, %v2932
      %2934 = vdwg.mxu0
      %v2935 = vadd.f32 %v2829, %v2873
      %v2936 = vadd.f32 %v2830, %v2893
      %v2937 = vadd.f32 %v2831, %v2913
      %v2938 = vadd.f32 %v2832, %v2933
      %2939 = vrot.lane.b32.xlu0 %v172, 34
      %v2940 = vpop.permute.xlu0 %2939
      %2941 = vrot.lane.b32.xlu0 %v173, 34
      %v2942 = vpop.permute.xlu0 %2941
      %2943 = vrot.lane.b32.xlu0 %v174, 34
      %v2944 = vpop.permute.xlu0 %2943
      %2945 = vrot.lane.b32.xlu0 %v175, 34
      %v2946 = vpop.permute.xlu0 %2945
      %2947 = vrot.lane.b32.xlu0 %v176, 34
      %v2948 = vpop.permute.xlu0 %2947
      %vm2949 = vcmask 277504
      %v2950 = vsel %vm2949, %v2940, %v2942
      %v2951 = vsel %vm2949, %v2942, %v2944
      %v2952 = vsel %vm2949, %v2944, %v2946
      %v2953 = vsel %vm2949, %v2946, %v2948
      %v2959 = vsel %vm228, %v203, 0
      %2961 = vmatpush.msra.mxu0 0.0
      %2962 = vmatpush.msra.mxu0 0.0
      %2963 = vmatpush.msra.mxu0 0.0
      %2964 = vmatpush.msra.mxu0 0.0
      %2965 = vmatpush.msra.mxu0 0.0
      %2966 = vmatpush.msra.mxu0 0.0
      %2967 = vmatpush.msra.mxu0 0.0
      %2968 = vmatpush.msra.mxu0 0.0
      %2969 = vmatpush.msra.mxu0 0.0
      %2970 = vmatpush.msra.mxu0 0.0
      %2971 = vmatpush.msra.mxu0 0.0
      %2972 = vmatpush.msra.mxu0 0.0
      %2973 = vmatpush.msra.mxu0 0.0
      %2974 = vmatpush.msra.mxu0 0.0
      %2975 = vmatpush.msra.mxu0 0.0
      %2976 = vmatpush.msra.mxu0 %v2950
      %2977 = vmatmul.f32.gmra.mxu0 %v2959
      %v2978 = vpop.f32.mrf.mxu0
      %v2979 = vadd.f32 0.0, %v2978
      %2980 = vdwg.mxu0
      %2981 = vmatpush.msra.mxu0 0.0
      %2982 = vmatpush.msra.mxu0 0.0
      %2983 = vmatpush.msra.mxu0 0.0
      %2984 = vmatpush.msra.mxu0 0.0
      %2985 = vmatpush.msra.mxu0 0.0
      %2986 = vmatpush.msra.mxu0 0.0
      %2987 = vmatpush.msra.mxu0 0.0
      %2988 = vmatpush.msra.mxu0 0.0
      %2989 = vmatpush.msra.mxu0 0.0
      %2990 = vmatpush.msra.mxu0 0.0
      %2991 = vmatpush.msra.mxu0 0.0
      %2992 = vmatpush.msra.mxu0 0.0
      %2993 = vmatpush.msra.mxu0 0.0
      %2994 = vmatpush.msra.mxu0 0.0
      %2995 = vmatpush.msra.mxu0 0.0
      %2996 = vmatpush.msra.mxu0 %v2951
      %2997 = vmatmul.f32.gmra.mxu0 %v2959
      %v2998 = vpop.f32.mrf.mxu0
      %v2999 = vadd.f32 0.0, %v2998
      %3000 = vdwg.mxu0
      %3001 = vmatpush.msra.mxu0 0.0
      %3002 = vmatpush.msra.mxu0 0.0
      %3003 = vmatpush.msra.mxu0 0.0
      %3004 = vmatpush.msra.mxu0 0.0
      %3005 = vmatpush.msra.mxu0 0.0
      %3006 = vmatpush.msra.mxu0 0.0
      %3007 = vmatpush.msra.mxu0 0.0
      %3008 = vmatpush.msra.mxu0 0.0
      %3009 = vmatpush.msra.mxu0 0.0
      %3010 = vmatpush.msra.mxu0 0.0
      %3011 = vmatpush.msra.mxu0 0.0
      %3012 = vmatpush.msra.mxu0 0.0
      %3013 = vmatpush.msra.mxu0 0.0
      %3014 = vmatpush.msra.mxu0 0.0
      %3015 = vmatpush.msra.mxu0 0.0
      %3016 = vmatpush.msra.mxu0 %v2952
      %3017 = vmatmul.f32.gmra.mxu0 %v2959
      %v3018 = vpop.f32.mrf.mxu0
      %v3019 = vadd.f32 0.0, %v3018
      %3020 = vdwg.mxu0
      %3021 = vmatpush.msra.mxu0 0.0
      %3022 = vmatpush.msra.mxu0 0.0
      %3023 = vmatpush.msra.mxu0 0.0
      %3024 = vmatpush.msra.mxu0 0.0
      %3025 = vmatpush.msra.mxu0 0.0
      %3026 = vmatpush.msra.mxu0 0.0
      %3027 = vmatpush.msra.mxu0 0.0
      %3028 = vmatpush.msra.mxu0 0.0
      %3029 = vmatpush.msra.mxu0 0.0
      %3030 = vmatpush.msra.mxu0 0.0
      %3031 = vmatpush.msra.mxu0 0.0
      %3032 = vmatpush.msra.mxu0 0.0
      %3033 = vmatpush.msra.mxu0 0.0
      %3034 = vmatpush.msra.mxu0 0.0
      %3035 = vmatpush.msra.mxu0 0.0
      %3036 = vmatpush.msra.mxu0 %v2953
      %3037 = vmatmul.f32.gmra.mxu0 %v2959
      %v3038 = vpop.f32.mrf.mxu0
      %v3039 = vadd.f32 0.0, %v3038
      %3040 = vdwg.mxu0
      %v3041 = vadd.f32 %v2935, %v2979
      %v3042 = vadd.f32 %v2936, %v2999
      %v3043 = vadd.f32 %v2937, %v3019
      %v3044 = vadd.f32 %v2938, %v3039
      %v3045 = vld [vmem:[%s2] sm:$0xff]
      %3047 = vset.pattern.permute.xlu0 0
      %3048 = vperm.xlu0 %3047, %v3045
      %v3049 = vpop.permute.xlu0 %3048
      %v3051 = vadd.f32 %v3041, %v3049
      %v3052 = vadd.f32 %v3042, %v3049
      %v3053 = vadd.f32 %v3043, %v3049
      %v3054 = vadd.f32 %v3044, %v3049
      %v3055 = vmax.f32 %v3051, 0.0
      %v3056 = vmax.f32 %v3052, 0.0
      %v3057 = vmax.f32 %v3053, 0.0
      %v3058 = vmax.f32 %v3054, 0.0
      %3059 = vst [vmem:[%s170] sm:$0xff] %v3055
      %3060 = vst [vmem:[%s170 + $0x8] sm:$0xff] %v3056
      %3061 = vst [vmem:[%s170 + $0x10] sm:$0xff] %v3057
      %3062 = vst [vmem:[%s170 + $0x18] sm:$0xff] %v3058
      %p3063 = scmp.lt.s32.totalorder %s14, 1
      %s3064 = scalar_select %p3063, %s14, 1
      %s3065 = smul.addr %s3064, 4
      %s3066 = smul.addr %s3065, 8
      %s3067 = scalar_lea.vmem %s3, %s3066
      // Predicated region
      $region33: #{basconv_block_forward.3} parent=31 // pred_check
        %p3068 = pneg %p100
      $region34: #{basconv_block_forward.3} parent=31 // pred_check_branch
        %3070 = sbr.rel (%p3068) target = $region36
      $region35: #{basconv_block_forward.3} parent=31 // pred_region
        _
      $region36: #{basconv_block_forward.3} parent=31 // pred_fallthru
        _
    $region32: #{basconv_block_forward.3} parent=5 // pred_fallthru
      _
    %p3071 = scmp.le.s32.totalorder 2, %s9
    // Predicated region
    $region37: #{basconv_block_forward.3} parent=5 // pred_check
      %p3072 = pneg %p3071
    $region38: #{basconv_block_forward.3} parent=5 // pred_check_branch
      %3074 = sbr.rel (%p3072) target = $region40
    $region39: #{basconv_block_forward.3} parent=5 // pred_region
      %s3075 = ssub.s32 %s9, 2
      // Predicated region
      $region41: #{basconv_block_forward.3} parent=39 // pred_check
        %p3076 = pneg %p106
      $region42: #{basconv_block_forward.3} parent=39 // pred_check_branch
        %3078 = sbr.rel (%p3076) target = $region44
      $region43: #{basconv_block_forward.3} parent=39 // pred_region
        %p3079 = scmp.lt.s32.totalorder %s15, 1
        %s3080 = scalar_select %p3079, %s15, 1
        %s3081 = smul.addr %s3080, 4
        %s3082 = smul.addr %s3081, 8
        %s3083 = scalar_lea.vmem %s3, %s3082
      $region44: #{basconv_block_forward.3} parent=39 // pred_fallthru
        _
    $region40: #{basconv_block_forward.3} parent=5 // pred_fallthru
      _
  $region6: #{basconv_block_forward.3} parent=0 // loop_footer
    %s13 = sadd.s32 1, %s9
  $region7: #{basconv_block_forward.3} parent=0 // loop_footer_branch
    %8 = sbr.rel target = $region3
  $region8: #{basconv_block_forward.3} parent=0 // loop_exit
    _

</llo_original>
